<compile_context>
chip_gen: v7x
topology: tpu7x:2x2x1
jax: 0.10.0
libtpu: 0.0.40
codegen_flags: <defaults>
</compile_context>

<pallas_src>
import functools
import math

import jax
import jax.numpy as jnp
from jax import lax
from jax.experimental import pallas as pl
from jax.experimental.pallas import tpu as pltpu

LANE = 128
_VMEM_LIMIT = 48 * 1024 * 1024
_ROW_TILE = 512


def _round_up(x, m):
    return ((x + m - 1) // m) * m


# ----------------------------------------------------------------------------
# Pallas kernels
# ----------------------------------------------------------------------------
def _head1x1_kernel(x_ref, scale_ref, bias_ref, w_ref, o_ref):
    # x: (tm, Cin) f32; scale/bias: (1, Cin) f32; w: (Cin, Cout) bf16
    y = jnp.maximum(x_ref[...] * scale_ref[...] + bias_ref[...], 0.0)
    o_ref[...] = jnp.dot(y.astype(jnp.bfloat16), w_ref[...],
                         preferred_element_type=jnp.float32).astype(o_ref.dtype)


def bnrelu_conv1x1(x2d, scale, bias, w, out_dtype=jnp.bfloat16):
    """Fused inference-BN + ReLU + 1x1 conv as a row-tiled matmul."""
    m, cin = x2d.shape
    cout = w.shape[1]
    tm = min(_ROW_TILE, m)
    grid = (pl.cdiv(m, tm),)
    return pl.pallas_call(
        _head1x1_kernel,
        out_shape=jax.ShapeDtypeStruct((m, cout), out_dtype),
        grid=grid,
        in_specs=[
            pl.BlockSpec((tm, cin), lambda i: (i, 0)),
            pl.BlockSpec((1, cin), lambda i: (0, 0)),
            pl.BlockSpec((1, cin), lambda i: (0, 0)),
            pl.BlockSpec((cin, cout), lambda i: (0, 0)),
        ],
        out_specs=pl.BlockSpec((tm, cout), lambda i: (i, 0)),
        compiler_params=pltpu.CompilerParams(
            dimension_semantics=("parallel",),
            vmem_limit_bytes=_VMEM_LIMIT),
    )(x2d, scale.reshape(1, cin), bias.reshape(1, cin), w)


def _dual_head_kernel(x_ref, s0_ref, b0_ref, w0_ref, s1_ref, b1_ref, w1_ref,
                      o0_ref, o1_ref):
    # Reads x once, produces scale0 head and shortcut head outputs.
    x = x_ref[...]
    y0 = jnp.maximum(x * s0_ref[...] + b0_ref[...], 0.0).astype(jnp.bfloat16)
    y1 = jnp.maximum(x * s1_ref[...] + b1_ref[...], 0.0).astype(jnp.bfloat16)
    o0_ref[...] = jnp.dot(y0, w0_ref[...],
                          preferred_element_type=jnp.float32).astype(o0_ref.dtype)
    o1_ref[...] = jnp.dot(y1, w1_ref[...],
                          preferred_element_type=jnp.float32).astype(o1_ref.dtype)


def dual_head_conv1x1(x2d, p0, p1):
    m, cin = x2d.shape
    c0 = p0['w'].shape[1]
    c1 = p1['w'].shape[1]
    tm = min(_ROW_TILE, m)
    grid = (pl.cdiv(m, tm),)
    return pl.pallas_call(
        _dual_head_kernel,
        out_shape=(jax.ShapeDtypeStruct((m, c0), jnp.bfloat16),
                   jax.ShapeDtypeStruct((m, c1), jnp.bfloat16)),
        grid=grid,
        in_specs=[
            pl.BlockSpec((tm, cin), lambda i: (i, 0)),
            pl.BlockSpec((1, cin), lambda i: (0, 0)),
            pl.BlockSpec((1, cin), lambda i: (0, 0)),
            pl.BlockSpec((cin, c0), lambda i: (0, 0)),
            pl.BlockSpec((1, cin), lambda i: (0, 0)),
            pl.BlockSpec((1, cin), lambda i: (0, 0)),
            pl.BlockSpec((cin, c1), lambda i: (0, 0)),
        ],
        out_specs=(pl.BlockSpec((tm, c0), lambda i: (i, 0)),
                   pl.BlockSpec((tm, c1), lambda i: (i, 0))),
        compiler_params=pltpu.CompilerParams(
            dimension_semantics=("parallel",),
            vmem_limit_bytes=_VMEM_LIMIT),
    )(x2d,
      p0['scale'].reshape(1, cin), p0['bias'].reshape(1, cin), p0['w'],
      p1['scale'].reshape(1, cin), p1['bias'].reshape(1, cin), p1['w'])


def _compress_kernel(x0, x1, x2, x3, x4, sc_ref, scale_ref, bias_ref, w_ref,
                     o_ref):
    # Compression head (BN(5*branch)+ReLU+1x1) as a 5-branch accumulation,
    # with the shortcut head output added in (no concat, no final XLA add).
    acc = sc_ref[...].astype(jnp.float32)
    branches = (x0, x1, x2, x3, x4)
    for k in range(5):
        y = jnp.maximum(
            branches[k][...].astype(jnp.float32) * scale_ref[k:k + 1, :]
            + bias_ref[k:k + 1, :], 0.0)
        acc = acc + jnp.dot(y.astype(jnp.bfloat16), w_ref[k],
                            preferred_element_type=jnp.float32)
    o_ref[...] = acc.astype(o_ref.dtype)


def compress_with_shortcut(branches, shortcut2d, p):
    m, cb = branches[0].shape
    co = p['w'].shape[-1]
    tm = min(_ROW_TILE, m)
    grid = (pl.cdiv(m, tm),)
    data_spec = pl.BlockSpec((tm, cb), lambda i: (i, 0))
    return pl.pallas_call(
        _compress_kernel,
        out_shape=jax.ShapeDtypeStruct((m, co), jnp.float32),
        grid=grid,
        in_specs=[data_spec] * 5 + [
            pl.BlockSpec((tm, co), lambda i: (i, 0)),
            pl.BlockSpec((5, cb), lambda i: (0, 0)),
            pl.BlockSpec((5, cb), lambda i: (0, 0)),
            pl.BlockSpec((5, cb, co), lambda i: (0, 0, 0)),
        ],
        out_specs=pl.BlockSpec((tm, co), lambda i: (i, 0)),
        compiler_params=pltpu.CompilerParams(
            dimension_semantics=("parallel",),
            vmem_limit_bytes=_VMEM_LIMIT),
    )(*branches, shortcut2d, p['scale'], p['bias'], p['w'])


def _process3x3_kernel(u_ref, p_ref, scale_ref, bias_ref, w_ref, o_ref, ybuf):
    # Fused (u + prev) + inference-BN + ReLU + 3x3 conv (stride 1, pad 1).
    # ybuf: (H+2, Wpad, C) bf16 scratch; interior stored at rows [1,H+1),
    # cols [8, 8+W) (column offset 8 keeps the interior store sublane-aligned).
    h = o_ref.shape[1]
    w = o_ref.shape[2]
    cout = o_ref.shape[3]
    hp, wpad, c = ybuf.shape

    # Zero the halo strips (PyTorch zero-pads AFTER BN+ReLU). O(perimeter).
    zero_row = jnp.zeros((1, wpad, c), ybuf.dtype)
    ybuf[0:1, :, :] = zero_row
    ybuf[h + 1:h + 2, :, :] = zero_row
    ybuf[:, 0:8, :] = jnp.zeros((hp, 8, c), ybuf.dtype)
    ybuf[:, 8 + w:wpad, :] = jnp.zeros((hp, wpad - 8 - w, c), ybuf.dtype)

    # Fused residual add + BN + ReLU on the interior (f32 arithmetic).
    xsum = u_ref[0].astype(jnp.float32) + p_ref[0].astype(jnp.float32)
    y = jnp.maximum(xsum * scale_ref[...] + bias_ref[...], 0.0)
    ybuf[1:1 + h, 8:8 + w, :] = y.astype(ybuf.dtype)

    yfull = ybuf[...]                                   # (Hp, Wpad, C) bf16
    acc = jnp.zeros((h, w, cout), jnp.float32)
    for dx in range(3):
        c0 = 7 + dx                                     # column shift (3 slices)
        ydx = yfull[:, c0:c0 + w, :]
        for dy in range(3):                             # row shift: cheap view
            acc = acc + jnp.dot(ydx[dy:dy + h, :, :], w_ref[dy, dx],
                                preferred_element_type=jnp.float32)
    o_ref[0] = acc.astype(o_ref.dtype)


def process3x3(u, prev, p):
    """Fused (u+prev) + BN + ReLU + 3x3 conv, grid over batch."""
    n, h, w, c = u.shape
    cout = p['w'].shape[-1]
    rpad = (-(w + 1)) % 8
    wpad = 8 + w + 1 + rpad                             # multiple of 8
    return pl.pallas_call(
        _process3x3_kernel,
        out_shape=jax.ShapeDtypeStruct((n, h, w, cout), jnp.bfloat16),
        grid=(n,),
        in_specs=[
            pl.BlockSpec((1, h, w, c), lambda i: (i, 0, 0, 0)),
            pl.BlockSpec((1, h, w, c), lambda i: (i, 0, 0, 0)),
            pl.BlockSpec((1, c), lambda i: (0, 0)),
            pl.BlockSpec((1, c), lambda i: (0, 0)),
            pl.BlockSpec((3, 3, c, cout), lambda i: (0, 0, 0, 0)),
        ],
        out_specs=pl.BlockSpec((1, h, w, cout), lambda i: (i, 0, 0, 0)),
        scratch_shapes=[pltpu.VMEM((h + 2, wpad, c), jnp.bfloat16)],
        compiler_params=pltpu.CompilerParams(
            dimension_semantics=("parallel",),
            vmem_limit_bytes=_VMEM_LIMIT),
    )(u, prev, p['scale'].reshape(1, c), p['bias'].reshape(1, c), p['w'])


# ----------------------------------------------------------------------------
# Plain-JAX glue (tiny pooled tensors / bookkeeping)
# ----------------------------------------------------------------------------
def avg_pool_nhwc(x, k, s, p):
    # nn.AvgPool2d default: count_include_pad=True, ceil_mode=False.
    summed = lax.reduce_window(
        x, 0.0, lax.add,
        window_dimensions=(1, k, k, 1),
        window_strides=(1, s, s, 1),
        padding=((0, 0), (p, p), (p, p), (0, 0)))
    return summed / float(k * k)


def bilinear_resize(x, out_h, out_w):
    # F.interpolate(mode='bilinear', align_corners=False) semantics.
    n, in_h, in_w, c = x.shape
    x32 = x.astype(jnp.float32)

    def src_idx(out_size, in_size):
        i = jnp.arange(out_size, dtype=jnp.float32)
        src = (i + 0.5) * (in_size / out_size) - 0.5
        src = jnp.maximum(src, 0.0)
        lo = jnp.minimum(jnp.floor(src).astype(jnp.int32), in_size - 1)
        hi = jnp.minimum(lo + 1, in_size - 1)
        frac = src - lo.astype(jnp.float32)
        return lo, hi, frac

    ly, hy, fy = src_idx(out_h, in_h)
    lx, hx, fx = src_idx(out_w, in_w)
    top = x32[:, ly, :, :]
    bot = x32[:, hy, :, :]
    rows = top * (1.0 - fy)[None, :, None, None] + bot * fy[None, :, None, None]
    left = rows[:, :, lx, :]
    right = rows[:, :, hx, :]
    out = left * (1.0 - fx)[None, None, :, None] + right * fx[None, None, :, None]
    return out.astype(x.dtype)


# ----------------------------------------------------------------------------
# Parameters (deterministic synthetic init; channel counts padded to 128 lanes)
# ----------------------------------------------------------------------------
def _init_bn(key, c):
    k1, k2, k3, k4 = jax.random.split(key, 4)
    gamma = jax.random.uniform(k1, (c,), minval=0.5, maxval=1.5)
    beta = 0.1 * jax.random.normal(k2, (c,))
    mean = 0.1 * jax.random.normal(k3, (c,))
    var = jax.random.uniform(k4, (c,), minval=0.5, maxval=1.5)
    eps = 1e-5
    scale = gamma / jnp.sqrt(var + eps)
    bias = beta - mean * scale
    return scale.astype(jnp.float32), bias.astype(jnp.float32)


def _init_head(key, cin, cout, cout_pad):
    # BN(cin) + ReLU + Conv2d(cin, cout, 1, bias=False); output padded to 128.
    kb, kw = jax.random.split(key)
    scale, bias = _init_bn(kb, cin)
    w = jax.random.normal(kw, (cin, cout)) * (1.0 / math.sqrt(cin))
    w = jnp.pad(w, ((0, 0), (0, cout_pad - cout)))
    return dict(scale=scale, bias=bias, w=w.astype(jnp.bfloat16))


def _init_process(key, c, c_pad):
    # BN(c) + ReLU + Conv2d(c, c, 3, 1, 1, bias=False); padded channels use
    # scale=1, bias=0 and zero weight rows/cols so they stay exactly zero.
    kb, kw = jax.random.split(key)
    scale, bias = _init_bn(kb, c)
    scale = jnp.pad(scale, (0, c_pad - c), constant_values=1.0)
    bias = jnp.pad(bias, (0, c_pad - c))
    w = jax.random.normal(kw, (3, 3, c, c)) * (1.0 / math.sqrt(c * 9))
    w = jnp.pad(w, ((0, 0), (0, 0), (0, c_pad - c), (0, c_pad - c)))
    return dict(scale=scale, bias=bias, w=w.astype(jnp.bfloat16))


def _init_compression(key, branch, cb_pad, cout, co_pad):
    # BN(5*branch) + ReLU + Conv2d(5*branch, cout, 1) stored per-branch.
    kb, kw = jax.random.split(key)
    scale, bias = _init_bn(kb, 5 * branch)
    scale = jnp.pad(scale.reshape(5, branch),
                    ((0, 0), (0, cb_pad - branch)), constant_values=1.0)
    bias = jnp.pad(bias.reshape(5, branch), ((0, 0), (0, cb_pad - branch)))
    w = jax.random.normal(kw, (5, branch, cout)) * (1.0 / math.sqrt(5 * branch))
    w = jnp.pad(w, ((0, 0), (0, cb_pad - branch), (0, co_pad - cout)))
    return dict(scale=scale, bias=bias, w=w.astype(jnp.bfloat16))


def init_dappm_params(key, inplanes, branch_planes, outplanes):
    cb = _round_up(branch_planes, LANE)
    co = _round_up(outplanes, LANE)
    keys = jax.random.split(key, 11)
    return dict(
        scale0=_init_head(keys[0], inplanes, branch_planes, cb),
        scale1=_init_head(keys[1], inplanes, branch_planes, cb),
        scale2=_init_head(keys[2], inplanes, branch_planes, cb),
        scale3=_init_head(keys[3], inplanes, branch_planes, cb),
        scale4=_init_head(keys[4], inplanes, branch_planes, cb),
        process1=_init_process(keys[5], branch_planes, cb),
        process2=_init_process(keys[6], branch_planes, cb),
        process3=_init_process(keys[7], branch_planes, cb),
        process4=_init_process(keys[8], branch_planes, cb),
        compression=_init_compression(keys[9], branch_planes, cb, outplanes, co),
        shortcut=_init_head(keys[10], inplanes, outplanes, co),
    )


# ----------------------------------------------------------------------------
# Forward pass
# ----------------------------------------------------------------------------
def dappm_forward(x_nchw, params, outplanes):
    x = jnp.transpose(x_nchw, (0, 2, 3, 1)).astype(jnp.float32)  # -> NHWC
    n, h, w, cin = x.shape

    # scale0 + shortcut heads fused: x is read once.
    s0_2d, shortcut_2d = dual_head_conv1x1(
        x.reshape(-1, cin), params['scale0'], params['shortcut'])
    cb = s0_2d.shape[1]
    s0 = s0_2d.reshape(n, h, w, cb)

    def head(xp, p):
        nb, hh, ww, cc = xp.shape
        y = bnrelu_conv1x1(xp.reshape(-1, cc), p['scale'], p['bias'], p['w'])
        return y.reshape(nb, hh, ww, -1)

    x1 = avg_pool_nhwc(x, 5, 2, 2)
    u1 = bilinear_resize(head(x1, params['scale1']), h, w)
    p1 = process3x3(u1, s0, params['process1'])

    x2 = avg_pool_nhwc(x, 9, 4, 4)
    u2 = bilinear_resize(head(x2, params['scale2']), h, w)
    p2 = process3x3(u2, p1, params['process2'])

    x3 = avg_pool_nhwc(x, 17, 8, 8)
    u3 = bilinear_resize(head(x3, params['scale3']), h, w)
    p3 = process3x3(u3, p2, params['process3'])

    x4 = jnp.mean(x, axis=(1, 2), keepdims=True)          # AdaptiveAvgPool2d(1,1)
    u4 = bilinear_resize(head(x4, params['scale4']), h, w)
    p4 = process3x3(u4, p3, params['process4'])

    # Compression over the 5 branches (no concat) + shortcut add, one kernel.
    branches = [t.reshape(-1, cb) for t in (s0, p1, p2, p3, p4)]
    out2d = compress_with_shortcut(branches, shortcut_2d, params['compression'])
    co = out2d.shape[1]
    out = out2d.reshape(n, h, w, co)[..., :outplanes]      # drop lane padding
    return jnp.transpose(out, (0, 3, 1, 2))                # -> NCHW


if __name__ == "__main__":
    N, INPLANES, BRANCH, OUTPLANES, H, W = 2, 4, 8, 16, 16, 16

    key = jax.random.PRNGKey(0)
    kx, kp = jax.random.split(key)
    x = jax.random.normal(kx, (N, INPLANES, H, W), dtype=jnp.float32)
    params = init_dappm_params(kp, INPLANES, BRANCH, OUTPLANES)

    fwd = jax.jit(functools.partial(dappm_forward, outplanes=OUTPLANES))
    out = fwd(x, params)
    jax.block_until_ready(out)

    assert out.shape == (N, OUTPLANES, H, W), out.shape
    assert bool(jnp.all(jnp.isfinite(out)))
    print("KERNEL_OK")
</pallas_src>

<mosaic_0001>
module attributes {stable_mosaic.version = 11 : i64} {
  func.func @_head1x1_kernel(%arg0: i32, %arg1: memref<2x4xf32, #tpu.memory_space<vmem>>, %arg2: memref<1x4xf32, #tpu.memory_space<vmem>>, %arg3: memref<1x4xf32, #tpu.memory_space<vmem>>, %arg4: memref<4x128xbf16, #tpu.memory_space<vmem>>, %arg5: memref<2x128xbf16, #tpu.memory_space<vmem>>) attributes {dimension_semantics = [#tpu.dimension_semantics<parallel>], iteration_bounds = array<i64: 1>, scalar_prefetch = 0 : i64, scratch_operands = 0 : i64, tpu.core_type = #tpu.core_type<tc>, window_params = [{transform_indices = @transform_0, window_bounds = array<i64: 2, 4>}, {pipeline_mode = #tpu.pipeline_mode<synchronous>, transform_indices = @transform_1, window_bounds = array<i64: 1, 4>}, {pipeline_mode = #tpu.pipeline_mode<synchronous>, transform_indices = @transform_2, window_bounds = array<i64: 1, 4>}, {pipeline_mode = #tpu.pipeline_mode<synchronous>, transform_indices = @transform_3, window_bounds = array<i64: 4, 128>}, {transform_indices = @transform_4, window_bounds = array<i64: 2, 128>}]} {
    %c0 = arith.constant 0 : index
    %c0_0 = arith.constant 0 : index
    %0 = vector.load %arg1[%c0, %c0_0] : memref<2x4xf32, #tpu.memory_space<vmem>>, vector<2x4xf32>
    %c0_1 = arith.constant 0 : index
    %c0_2 = arith.constant 0 : index
    %1 = vector.load %arg2[%c0_1, %c0_2] : memref<1x4xf32, #tpu.memory_space<vmem>>, vector<1x4xf32>
    %2 = vector.broadcast %1 : vector<1x4xf32> to vector<2x4xf32>
    %3 = arith.mulf %0, %2 : vector<2x4xf32>
    %c0_3 = arith.constant 0 : index
    %c0_4 = arith.constant 0 : index
    %4 = vector.load %arg3[%c0_3, %c0_4] : memref<1x4xf32, #tpu.memory_space<vmem>>, vector<1x4xf32>
    %5 = vector.broadcast %4 : vector<1x4xf32> to vector<2x4xf32>
    %6 = arith.addf %3, %5 : vector<2x4xf32>
    %cst = arith.constant 0.000000e+00 : f32
    %7 = vector.broadcast %cst : f32 to vector<2x4xf32>
    %8 = arith.maximumf %6, %7 : vector<2x4xf32>
    %9 = arith.truncf %8 : vector<2x4xf32> to vector<2x4xbf16>
    %c0_5 = arith.constant 0 : index
    %c0_6 = arith.constant 0 : index
    %10 = vector.load %arg4[%c0_5, %c0_6] : memref<4x128xbf16, #tpu.memory_space<vmem>>, vector<4x128xbf16>
    %cst_7 = arith.constant dense<0.000000e+00> : vector<2x128xf32>
    %11 = tpu.matmul %9, %10, %cst_7 {dimension_numbers = #tpu.dot_dimension_numbers<[1], [0], [0], [1], [0, 0, 1, 1], [], []>} : vector<2x4xbf16>, vector<4x128xbf16>, vector<2x128xf32> -> vector<2x128xf32>
    %12 = arith.truncf %11 : vector<2x128xf32> to vector<2x128xbf16>
    %c0_8 = arith.constant 0 : index
    %c0_9 = arith.constant 0 : index
    %13 = vector.load %arg5[%c0_8, %c0_9] : memref<2x128xbf16, #tpu.memory_space<vmem>>, vector<2x128xbf16>
    tpu.vector_store %arg5[%c0_8, %c0_9], %12 {strides = array<i32>} : memref<2x128xbf16, #tpu.memory_space<vmem>>, vector<2x128xbf16>,
    return
  }
  func.func @transform_0(%arg0: i32) -> (i32, i32) {
    %c0_i32 = arith.constant 0 : i32
    %c0_i32_0 = arith.constant 0 : i32
    return %arg0, %c0_i32 : i32, i32
  }
  func.func @transform_1(%arg0: i32) -> (i32, i32) {
    %c0_i32 = arith.constant 0 : i32
    %c0_i32_0 = arith.constant 0 : i32
    %c0_i32_1 = arith.constant 0 : i32
    return %c0_i32, %c0_i32_0 : i32, i32
  }
  func.func @transform_2(%arg0: i32) -> (i32, i32) {
    %c0_i32 = arith.constant 0 : i32
    %c0_i32_0 = arith.constant 0 : i32
    %c0_i32_1 = arith.constant 0 : i32
    return %c0_i32, %c0_i32_0 : i32, i32
  }
  func.func @transform_3(%arg0: i32) -> (i32, i32) {
    %c0_i32 = arith.constant 0 : i32
    %c0_i32_0 = arith.constant 0 : i32
    %c0_i32_1 = arith.constant 0 : i32
    return %c0_i32, %c0_i32_0 : i32, i32
  }
  func.func @transform_4(%arg0: i32) -> (i32, i32) {
    %c0_i32 = arith.constant 0 : i32
    %c0_i32_0 = arith.constant 0 : i32
    return %arg0, %c0_i32 : i32, i32
  }
}

module attributes {stable_mosaic.version = 11 : i64} {
  func.func @_head1x1_kernel(%arg0: i32, %arg1: memref<32x4xf32, #tpu.memory_space<vmem>>, %arg2: memref<1x4xf32, #tpu.memory_space<vmem>>, %arg3: memref<1x4xf32, #tpu.memory_space<vmem>>, %arg4: memref<4x128xbf16, #tpu.memory_space<vmem>>, %arg5: memref<32x128xbf16, #tpu.memory_space<vmem>>) attributes {dimension_semantics = [#tpu.dimension_semantics<parallel>], iteration_bounds = array<i64: 1>, scalar_prefetch = 0 : i64, scratch_operands = 0 : i64, tpu.core_type = #tpu.core_type<tc>, window_params = [{transform_indices = @transform_0, window_bounds = array<i64: 32, 4>}, {pipeline_mode = #tpu.pipeline_mode<synchronous>, transform_indices = @transform_1, window_bounds = array<i64: 1, 4>}, {pipeline_mode = #tpu.pipeline_mode<synchronous>, transform_indices = @transform_2, window_bounds = array<i64: 1, 4>}, {pipeline_mode = #tpu.pipeline_mode<synchronous>, transform_indices = @transform_3, window_bounds = array<i64: 4, 128>}, {transform_indices = @transform_4, window_bounds = array<i64: 32, 128>}]} {
    %c0 = arith.constant 0 : index
    %c0_0 = arith.constant 0 : index
    %0 = vector.load %arg1[%c0, %c0_0] : memref<32x4xf32, #tpu.memory_space<vmem>>, vector<32x4xf32>
    %c0_1 = arith.constant 0 : index
    %c0_2 = arith.constant 0 : index
    %1 = vector.load %arg2[%c0_1, %c0_2] : memref<1x4xf32, #tpu.memory_space<vmem>>, vector<1x4xf32>
    %2 = vector.broadcast %1 : vector<1x4xf32> to vector<32x4xf32>
    %3 = arith.mulf %0, %2 : vector<32x4xf32>
    %c0_3 = arith.constant 0 : index
    %c0_4 = arith.constant 0 : index
    %4 = vector.load %arg3[%c0_3, %c0_4] : memref<1x4xf32, #tpu.memory_space<vmem>>, vector<1x4xf32>
    %5 = vector.broadcast %4 : vector<1x4xf32> to vector<32x4xf32>
    %6 = arith.addf %3, %5 : vector<32x4xf32>
    %cst = arith.constant 0.000000e+00 : f32
    %7 = vector.broadcast %cst : f32 to vector<32x4xf32>
    %8 = arith.maximumf %6, %7 : vector<32x4xf32>
    %9 = arith.truncf %8 : vector<32x4xf32> to vector<32x4xbf16>
    %c0_5 = arith.constant 0 : index
    %c0_6 = arith.constant 0 : index
    %10 = vector.load %arg4[%c0_5, %c0_6] : memref<4x128xbf16, #tpu.memory_space<vmem>>, vector<4x128xbf16>
    %cst_7 = arith.constant dense<0.000000e+00> : vector<32x128xf32>
    %11 = tpu.matmul %9, %10, %cst_7 {dimension_numbers = #tpu.dot_dimension_numbers<[1], [0], [0], [1], [0, 0, 1, 1], [], []>} : vector<32x4xbf16>, vector<4x128xbf16>, vector<32x128xf32> -> vector<32x128xf32>
    %12 = arith.truncf %11 : vector<32x128xf32> to vector<32x128xbf16>
    %c0_8 = arith.constant 0 : index
    %c0_9 = arith.constant 0 : index
    %13 = vector.load %arg5[%c0_8, %c0_9] : memref<32x128xbf16, #tpu.memory_space<vmem>>, vector<32x128xbf16>
    tpu.vector_store %arg5[%c0_8, %c0_9], %12 {strides = array<i32>} : memref<32x128xbf16, #tpu.memory_space<vmem>>, vector<32x128xbf16>,
    return
  }
  func.func @transform_0(%arg0: i32) -> (i32, i32) {
    %c0_i32 = arith.constant 0 : i32
    %c0_i32_0 = arith.constant 0 : i32
    return %arg0, %c0_i32 : i32, i32
  }
  func.func @transform_1(%arg0: i32) -> (i32, i32) {
    %c0_i32 = arith.constant 0 : i32
    %c0_i32_0 = arith.constant 0 : i32
    %c0_i32_1 = arith.constant 0 : i32
    return %c0_i32, %c0_i32_0 : i32, i32
  }
  func.func @transform_2(%arg0: i32) -> (i32, i32) {
    %c0_i32 = arith.constant 0 : i32
    %c0_i32_0 = arith.constant 0 : i32
    %c0_i32_1 = arith.constant 0 : i32
    return %c0_i32, %c0_i32_0 : i32, i32
  }
  func.func @transform_3(%arg0: i32) -> (i32, i32) {
    %c0_i32 = arith.constant 0 : i32
    %c0_i32_0 = arith.constant 0 : i32
    %c0_i32_1 = arith.constant 0 : i32
    return %c0_i32, %c0_i32_0 : i32, i32
  }
  func.func @transform_4(%arg0: i32) -> (i32, i32) {
    %c0_i32 = arith.constant 0 : i32
    %c0_i32_0 = arith.constant 0 : i32
    return %arg0, %c0_i32 : i32, i32
  }
}

module attributes {stable_mosaic.version = 11 : i64} {
  func.func @_head1x1_kernel(%arg0: i32, %arg1: memref<128x4xf32, #tpu.memory_space<vmem>>, %arg2: memref<1x4xf32, #tpu.memory_space<vmem>>, %arg3: memref<1x4xf32, #tpu.memory_space<vmem>>, %arg4: memref<4x128xbf16, #tpu.memory_space<vmem>>, %arg5: memref<128x128xbf16, #tpu.memory_space<vmem>>) attributes {dimension_semantics = [#tpu.dimension_semantics<parallel>], iteration_bounds = array<i64: 1>, scalar_prefetch = 0 : i64, scratch_operands = 0 : i64, tpu.core_type = #tpu.core_type<tc>, window_params = [{transform_indices = @transform_0, window_bounds = array<i64: 128, 4>}, {pipeline_mode = #tpu.pipeline_mode<synchronous>, transform_indices = @transform_1, window_bounds = array<i64: 1, 4>}, {pipeline_mode = #tpu.pipeline_mode<synchronous>, transform_indices = @transform_2, window_bounds = array<i64: 1, 4>}, {pipeline_mode = #tpu.pipeline_mode<synchronous>, transform_indices = @transform_3, window_bounds = array<i64: 4, 128>}, {transform_indices = @transform_4, window_bounds = array<i64: 128, 128>}]} {
    %c0 = arith.constant 0 : index
    %c0_0 = arith.constant 0 : index
    %0 = vector.load %arg1[%c0, %c0_0] : memref<128x4xf32, #tpu.memory_space<vmem>>, vector<128x4xf32>
    %c0_1 = arith.constant 0 : index
    %c0_2 = arith.constant 0 : index
    %1 = vector.load %arg2[%c0_1, %c0_2] : memref<1x4xf32, #tpu.memory_space<vmem>>, vector<1x4xf32>
    %2 = vector.broadcast %1 : vector<1x4xf32> to vector<128x4xf32>
    %3 = arith.mulf %0, %2 : vector<128x4xf32>
    %c0_3 = arith.constant 0 : index
    %c0_4 = arith.constant 0 : index
    %4 = vector.load %arg3[%c0_3, %c0_4] : memref<1x4xf32, #tpu.memory_space<vmem>>, vector<1x4xf32>
    %5 = vector.broadcast %4 : vector<1x4xf32> to vector<128x4xf32>
    %6 = arith.addf %3, %5 : vector<128x4xf32>
    %cst = arith.constant 0.000000e+00 : f32
    %7 = vector.broadcast %cst : f32 to vector<128x4xf32>
    %8 = arith.maximumf %6, %7 : vector<128x4xf32>
    %9 = arith.truncf %8 : vector<128x4xf32> to vector<128x4xbf16>
    %c0_5 = arith.constant 0 : index
    %c0_6 = arith.constant 0 : index
    %10 = vector.load %arg4[%c0_5, %c0_6] : memref<4x128xbf16, #tpu.memory_space<vmem>>, vector<4x128xbf16>
    %cst_7 = arith.constant dense<0.000000e+00> : vector<128x128xf32>
    %11 = tpu.matmul %9, %10, %cst_7 {dimension_numbers = #tpu.dot_dimension_numbers<[1], [0], [0], [1], [0, 0, 1, 1], [], []>} : vector<128x4xbf16>, vector<4x128xbf16>, vector<128x128xf32> -> vector<128x128xf32>
    %12 = arith.truncf %11 : vector<128x128xf32> to vector<128x128xbf16>
    %c0_8 = arith.constant 0 : index
    %c0_9 = arith.constant 0 : index
    %13 = vector.load %arg5[%c0_8, %c0_9] : memref<128x128xbf16, #tpu.memory_space<vmem>>, vector<128x128xbf16>
    tpu.vector_store %arg5[%c0_8, %c0_9], %12 {strides = array<i32>} : memref<128x128xbf16, #tpu.memory_space<vmem>>, vector<128x128xbf16>,
    return
  }
  func.func @transform_0(%arg0: i32) -> (i32, i32) {
    %c0_i32 = arith.constant 0 : i32
    %c0_i32_0 = arith.constant 0 : i32
    return %arg0, %c0_i32 : i32, i32
  }
  func.func @transform_1(%arg0: i32) -> (i32, i32) {
    %c0_i32 = arith.constant 0 : i32
    %c0_i32_0 = arith.constant 0 : i32
    %c0_i32_1 = arith.constant 0 : i32
    return %c0_i32, %c0_i32_0 : i32, i32
  }
  func.func @transform_2(%arg0: i32) -> (i32, i32) {
    %c0_i32 = arith.constant 0 : i32
    %c0_i32_0 = arith.constant 0 : i32
    %c0_i32_1 = arith.constant 0 : i32
    return %c0_i32, %c0_i32_0 : i32, i32
  }
  func.func @transform_3(%arg0: i32) -> (i32, i32) {
    %c0_i32 = arith.constant 0 : i32
    %c0_i32_0 = arith.constant 0 : i32
    %c0_i32_1 = arith.constant 0 : i32
    return %c0_i32, %c0_i32_0 : i32, i32
  }
  func.func @transform_4(%arg0: i32) -> (i32, i32) {
    %c0_i32 = arith.constant 0 : i32
    %c0_i32_0 = arith.constant 0 : i32
    return %arg0, %c0_i32 : i32, i32
  }
}

module attributes {stable_mosaic.version = 11 : i64} {
  func.func @_head1x1_kernel(%arg0: i32, %arg1: memref<8x4xf32, #tpu.memory_space<vmem>>, %arg2: memref<1x4xf32, #tpu.memory_space<vmem>>, %arg3: memref<1x4xf32, #tpu.memory_space<vmem>>, %arg4: memref<4x128xbf16, #tpu.memory_space<vmem>>, %arg5: memref<8x128xbf16, #tpu.memory_space<vmem>>) attributes {dimension_semantics = [#tpu.dimension_semantics<parallel>], iteration_bounds = array<i64: 1>, scalar_prefetch = 0 : i64, scratch_operands = 0 : i64, tpu.core_type = #tpu.core_type<tc>, window_params = [{transform_indices = @transform_0, window_bounds = array<i64: 8, 4>}, {pipeline_mode = #tpu.pipeline_mode<synchronous>, transform_indices = @transform_1, window_bounds = array<i64: 1, 4>}, {pipeline_mode = #tpu.pipeline_mode<synchronous>, transform_indices = @transform_2, window_bounds = array<i64: 1, 4>}, {pipeline_mode = #tpu.pipeline_mode<synchronous>, transform_indices = @transform_3, window_bounds = array<i64: 4, 128>}, {transform_indices = @transform_4, window_bounds = array<i64: 8, 128>}]} {
    %c0 = arith.constant 0 : index
    %c0_0 = arith.constant 0 : index
    %0 = vector.load %arg1[%c0, %c0_0] : memref<8x4xf32, #tpu.memory_space<vmem>>, vector<8x4xf32>
    %c0_1 = arith.constant 0 : index
    %c0_2 = arith.constant 0 : index
    %1 = vector.load %arg2[%c0_1, %c0_2] : memref<1x4xf32, #tpu.memory_space<vmem>>, vector<1x4xf32>
    %2 = vector.broadcast %1 : vector<1x4xf32> to vector<8x4xf32>
    %3 = arith.mulf %0, %2 : vector<8x4xf32>
    %c0_3 = arith.constant 0 : index
    %c0_4 = arith.constant 0 : index
    %4 = vector.load %arg3[%c0_3, %c0_4] : memref<1x4xf32, #tpu.memory_space<vmem>>, vector<1x4xf32>
    %5 = vector.broadcast %4 : vector<1x4xf32> to vector<8x4xf32>
    %6 = arith.addf %3, %5 : vector<8x4xf32>
    %cst = arith.constant 0.000000e+00 : f32
    %7 = vector.broadcast %cst : f32 to vector<8x4xf32>
    %8 = arith.maximumf %6, %7 : vector<8x4xf32>
    %9 = arith.truncf %8 : vector<8x4xf32> to vector<8x4xbf16>
    %c0_5 = arith.constant 0 : index
    %c0_6 = arith.constant 0 : index
    %10 = vector.load %arg4[%c0_5, %c0_6] : memref<4x128xbf16, #tpu.memory_space<vmem>>, vector<4x128xbf16>
    %cst_7 = arith.constant dense<0.000000e+00> : vector<8x128xf32>
    %11 = tpu.matmul %9, %10, %cst_7 {dimension_numbers = #tpu.dot_dimension_numbers<[1], [0], [0], [1], [0, 0, 1, 1], [], []>} : vector<8x4xbf16>, vector<4x128xbf16>, vector<8x128xf32> -> vector<8x128xf32>
    %12 = arith.truncf %11 : vector<8x128xf32> to vector<8x128xbf16>
    %c0_8 = arith.constant 0 : index
    %c0_9 = arith.constant 0 : index
    %13 = vector.load %arg5[%c0_8, %c0_9] : memref<8x128xbf16, #tpu.memory_space<vmem>>, vector<8x128xbf16>
    tpu.vector_store %arg5[%c0_8, %c0_9], %12 {strides = array<i32>} : memref<8x128xbf16, #tpu.memory_space<vmem>>, vector<8x128xbf16>,
    return
  }
  func.func @transform_0(%arg0: i32) -> (i32, i32) {
    %c0_i32 = arith.constant 0 : i32
    %c0_i32_0 = arith.constant 0 : i32
    return %arg0, %c0_i32 : i32, i32
  }
  func.func @transform_1(%arg0: i32) -> (i32, i32) {
    %c0_i32 = arith.constant 0 : i32
    %c0_i32_0 = arith.constant 0 : i32
    %c0_i32_1 = arith.constant 0 : i32
    return %c0_i32, %c0_i32_0 : i32, i32
  }
  func.func @transform_2(%arg0: i32) -> (i32, i32) {
    %c0_i32 = arith.constant 0 : i32
    %c0_i32_0 = arith.constant 0 : i32
    %c0_i32_1 = arith.constant 0 : i32
    return %c0_i32, %c0_i32_0 : i32, i32
  }
  func.func @transform_3(%arg0: i32) -> (i32, i32) {
    %c0_i32 = arith.constant 0 : i32
    %c0_i32_0 = arith.constant 0 : i32
    %c0_i32_1 = arith.constant 0 : i32
    return %c0_i32, %c0_i32_0 : i32, i32
  }
  func.func @transform_4(%arg0: i32) -> (i32, i32) {
    %c0_i32 = arith.constant 0 : i32
    %c0_i32_0 = arith.constant 0 : i32
    return %arg0, %c0_i32 : i32, i32
  }
}

module attributes {stable_mosaic.version = 11 : i64} {
  func.func @_dual_head_kernel(%arg0: i32, %arg1: memref<512x4xf32, #tpu.memory_space<vmem>>, %arg2: memref<1x4xf32, #tpu.memory_space<vmem>>, %arg3: memref<1x4xf32, #tpu.memory_space<vmem>>, %arg4: memref<4x128xbf16, #tpu.memory_space<vmem>>, %arg5: memref<1x4xf32, #tpu.memory_space<vmem>>, %arg6: memref<1x4xf32, #tpu.memory_space<vmem>>, %arg7: memref<4x128xbf16, #tpu.memory_space<vmem>>, %arg8: memref<512x128xbf16, #tpu.memory_space<vmem>>, %arg9: memref<512x128xbf16, #tpu.memory_space<vmem>>) attributes {dimension_semantics = [#tpu.dimension_semantics<parallel>], iteration_bounds = array<i64: 1>, scalar_prefetch = 0 : i64, scratch_operands = 0 : i64, tpu.core_type = #tpu.core_type<tc>, window_params = [{transform_indices = @transform_0, window_bounds = array<i64: 512, 4>}, {pipeline_mode = #tpu.pipeline_mode<synchronous>, transform_indices = @transform_1, window_bounds = array<i64: 1, 4>}, {pipeline_mode = #tpu.pipeline_mode<synchronous>, transform_indices = @transform_2, window_bounds = array<i64: 1, 4>}, {pipeline_mode = #tpu.pipeline_mode<synchronous>, transform_indices = @transform_3, window_bounds = array<i64: 4, 128>}, {pipeline_mode = #tpu.pipeline_mode<synchronous>, transform_indices = @transform_4, window_bounds = array<i64: 1, 4>}, {pipeline_mode = #tpu.pipeline_mode<synchronous>, transform_indices = @transform_5, window_bounds = array<i64: 1, 4>}, {pipeline_mode = #tpu.pipeline_mode<synchronous>, transform_indices = @transform_6, window_bounds = array<i64: 4, 128>}, {transform_indices = @transform_7, window_bounds = array<i64: 512, 128>}, {transform_indices = @transform_8, window_bounds = array<i64: 512, 128>}]} {
    %c0 = arith.constant 0 : index
    %c0_0 = arith.constant 0 : index
    %0 = vector.load %arg1[%c0, %c0_0] : memref<512x4xf32, #tpu.memory_space<vmem>>, vector<512x4xf32>
    %c0_1 = arith.constant 0 : index
    %c0_2 = arith.constant 0 : index
    %1 = vector.load %arg2[%c0_1, %c0_2] : memref<1x4xf32, #tpu.memory_space<vmem>>, vector<1x4xf32>
    %2 = vector.broadcast %1 : vector<1x4xf32> to vector<512x4xf32>
    %3 = arith.mulf %0, %2 : vector<512x4xf32>
    %c0_3 = arith.constant 0 : index
    %c0_4 = arith.constant 0 : index
    %4 = vector.load %arg3[%c0_3, %c0_4] : memref<1x4xf32, #tpu.memory_space<vmem>>, vector<1x4xf32>
    %5 = vector.broadcast %4 : vector<1x4xf32> to vector<512x4xf32>
    %6 = arith.addf %3, %5 : vector<512x4xf32>
    %cst = arith.constant 0.000000e+00 : f32
    %7 = vector.broadcast %cst : f32 to vector<512x4xf32>
    %8 = arith.maximumf %6, %7 : vector<512x4xf32>
    %9 = arith.truncf %8 : vector<512x4xf32> to vector<512x4xbf16>
    %c0_5 = arith.constant 0 : index
    %c0_6 = arith.constant 0 : index
    %10 = vector.load %arg5[%c0_5, %c0_6] : memref<1x4xf32, #tpu.memory_space<vmem>>, vector<1x4xf32>
    %11 = vector.broadcast %10 : vector<1x4xf32> to vector<512x4xf32>
    %12 = arith.mulf %0, %11 : vector<512x4xf32>
    %c0_7 = arith.constant 0 : index
    %c0_8 = arith.constant 0 : index
    %13 = vector.load %arg6[%c0_7, %c0_8] : memref<1x4xf32, #tpu.memory_space<vmem>>, vector<1x4xf32>
    %14 = vector.broadcast %13 : vector<1x4xf32> to vector<512x4xf32>
    %15 = arith.addf %12, %14 : vector<512x4xf32>
    %cst_9 = arith.constant 0.000000e+00 : f32
    %16 = vector.broadcast %cst_9 : f32 to vector<512x4xf32>
    %17 = arith.maximumf %15, %16 : vector<512x4xf32>
    %18 = arith.truncf %17 : vector<512x4xf32> to vector<512x4xbf16>
    %c0_10 = arith.constant 0 : index
    %c0_11 = arith.constant 0 : index
    %19 = vector.load %arg4[%c0_10, %c0_11] : memref<4x128xbf16, #tpu.memory_space<vmem>>, vector<4x128xbf16>
    %cst_12 = arith.constant dense<0.000000e+00> : vector<512x128xf32>
    %20 = tpu.matmul %9, %19, %cst_12 {dimension_numbers = #tpu.dot_dimension_numbers<[1], [0], [0], [1], [0, 0, 1, 1], [], []>} : vector<512x4xbf16>, vector<4x128xbf16>, vector<512x128xf32> -> vector<512x128xf32>
    %21 = arith.truncf %20 : vector<512x128xf32> to vector<512x128xbf16>
    %c0_13 = arith.constant 0 : index
    %c0_14 = arith.constant 0 : index
    %22 = vector.load %arg8[%c0_13, %c0_14] : memref<512x128xbf16, #tpu.memory_space<vmem>>, vector<512x128xbf16>
    tpu.vector_store %arg8[%c0_13, %c0_14], %21 {strides = array<i32>} : memref<512x128xbf16, #tpu.memory_space<vmem>>, vector<512x128xbf16>,
    %c0_15 = arith.constant 0 : index
    %c0_16 = arith.constant 0 : index
    %23 = vector.load %arg7[%c0_15, %c0_16] : memref<4x128xbf16, #tpu.memory_space<vmem>>, vector<4x128xbf16>
    %cst_17 = arith.constant dense<0.000000e+00> : vector<512x128xf32>
    %24 = tpu.matmul %18, %23, %cst_17 {dimension_numbers = #tpu.dot_dimension_numbers<[1], [0], [0], [1], [0, 0, 1, 1], [], []>} : vector<512x4xbf16>, vector<4x128xbf16>, vector<512x128xf32> -> vector<512x128xf32>
    %25 = arith.truncf %24 : vector<512x128xf32> to vector<512x128xbf16>
    %c0_18 = arith.constant 0 : index
    %c0_19 = arith.constant 0 : index
    %26 = vector.load %arg9[%c0_18, %c0_19] : memref<512x128xbf16, #tpu.memory_space<vmem>>, vector<512x128xbf16>
    tpu.vector_store %arg9[%c0_18, %c0_19], %25 {strides = array<i32>} : memref<512x128xbf16, #tpu.memory_space<vmem>>, vector<512x128xbf16>,
    return
  }
  func.func @transform_0(%arg0: i32) -> (i32, i32) {
    %c0_i32 = arith.constant 0 : i32
    %c0_i32_0 = arith.constant 0 : i32
    return %arg0, %c0_i32 : i32, i32
  }
  func.func @transform_1(%arg0: i32) -> (i32, i32) {
    %c0_i32 = arith.constant 0 : i32
    %c0_i32_0 = arith.constant 0 : i32
    %c0_i32_1 = arith.constant 0 : i32
    return %c0_i32, %c0_i32_0 : i32, i32
  }
  func.func @transform_2(%arg0: i32) -> (i32, i32) {
    %c0_i32 = arith.constant 0 : i32
    %c0_i32_0 = arith.constant 0 : i32
    %c0_i32_1 = arith.constant 0 : i32
    return %c0_i32, %c0_i32_0 : i32, i32
  }
  func.func @transform_3(%arg0: i32) -> (i32, i32) {
    %c0_i32 = arith.constant 0 : i32
    %c0_i32_0 = arith.constant 0 : i32
    %c0_i32_1 = arith.constant 0 : i32
    return %c0_i32, %c0_i32_0 : i32, i32
  }
  func.func @transform_4(%arg0: i32) -> (i32, i32) {
    %c0_i32 = arith.constant 0 : i32
    %c0_i32_0 = arith.constant 0 : i32
    %c0_i32_1 = arith.constant 0 : i32
    return %c0_i32, %c0_i32_0 : i32, i32
  }
  func.func @transform_5(%arg0: i32) -> (i32, i32) {
    %c0_i32 = arith.constant 0 : i32
    %c0_i32_0 = arith.constant 0 : i32
    %c0_i32_1 = arith.constant 0 : i32
    return %c0_i32, %c0_i32_0 : i32, i32
  }
  func.func @transform_6(%arg0: i32) -> (i32, i32) {
    %c0_i32 = arith.constant 0 : i32
    %c0_i32_0 = arith.constant 0 : i32
    %c0_i32_1 = arith.constant 0 : i32
    return %c0_i32, %c0_i32_0 : i32, i32
  }
  func.func @transform_7(%arg0: i32) -> (i32, i32) {
    %c0_i32 = arith.constant 0 : i32
    %c0_i32_0 = arith.constant 0 : i32
    return %arg0, %c0_i32 : i32, i32
  }
  func.func @transform_8(%arg0: i32) -> (i32, i32) {
    %c0_i32 = arith.constant 0 : i32
    %c0_i32_0 = arith.constant 0 : i32
    return %arg0, %c0_i32 : i32, i32
  }
}

module attributes {stable_mosaic.version = 11 : i64} {
  func.func @_compress_kernel(%arg0: i32, %arg1: memref<512x128xbf16, #tpu.memory_space<vmem>>, %arg2: memref<512x128xbf16, #tpu.memory_space<vmem>>, %arg3: memref<512x128xbf16, #tpu.memory_space<vmem>>, %arg4: memref<512x128xbf16, #tpu.memory_space<vmem>>, %arg5: memref<512x128xbf16, #tpu.memory_space<vmem>>, %arg6: memref<512x128xbf16, #tpu.memory_space<vmem>>, %arg7: memref<5x128xf32, #tpu.memory_space<vmem>>, %arg8: memref<5x128xf32, #tpu.memory_space<vmem>>, %arg9: memref<5x128x128xbf16, #tpu.memory_space<vmem>>, %arg10: memref<512x128xf32, #tpu.memory_space<vmem>>) attributes {dimension_semantics = [#tpu.dimension_semantics<parallel>], iteration_bounds = array<i64: 1>, scalar_prefetch = 0 : i64, scratch_operands = 0 : i64, tpu.core_type = #tpu.core_type<tc>, window_params = [{transform_indices = @transform_0, window_bounds = array<i64: 512, 128>}, {transform_indices = @transform_1, window_bounds = array<i64: 512, 128>}, {transform_indices = @transform_2, window_bounds = array<i64: 512, 128>}, {transform_indices = @transform_3, window_bounds = array<i64: 512, 128>}, {transform_indices = @transform_4, window_bounds = array<i64: 512, 128>}, {transform_indices = @transform_5, window_bounds = array<i64: 512, 128>}, {pipeline_mode = #tpu.pipeline_mode<synchronous>, transform_indices = @transform_6, window_bounds = array<i64: 5, 128>}, {pipeline_mode = #tpu.pipeline_mode<synchronous>, transform_indices = @transform_7, window_bounds = array<i64: 5, 128>}, {pipeline_mode = #tpu.pipeline_mode<synchronous>, transform_indices = @transform_8, window_bounds = array<i64: 5, 128, 128>}, {transform_indices = @transform_9, window_bounds = array<i64: 512, 128>}]} {
    %c0 = arith.constant 0 : index
    %c0_0 = arith.constant 0 : index
    %0 = vector.load %arg6[%c0, %c0_0] : memref<512x128xbf16, #tpu.memory_space<vmem>>, vector<512x128xbf16>
    %1 = arith.extf %0 : vector<512x128xbf16> to vector<512x128xf32>
    %c0_1 = arith.constant 0 : index
    %c0_2 = arith.constant 0 : index
    %2 = vector.load %arg1[%c0_1, %c0_2] : memref<512x128xbf16, #tpu.memory_space<vmem>>, vector<512x128xbf16>
    %3 = arith.extf %2 : vector<512x128xbf16> to vector<512x128xf32>
    %c0_3 = arith.constant 0 : index
    %c0_4 = arith.constant 0 : index
    %4 = vector.load %arg7[%c0_3, %c0_4] : memref<5x128xf32, #tpu.memory_space<vmem>>, vector<1x128xf32>
    %5 = vector.broadcast %4 : vector<1x128xf32> to vector<512x128xf32>
    %6 = arith.mulf %3, %5 : vector<512x128xf32>
    %c0_5 = arith.constant 0 : index
    %c0_6 = arith.constant 0 : index
    %7 = vector.load %arg8[%c0_5, %c0_6] : memref<5x128xf32, #tpu.memory_space<vmem>>, vector<1x128xf32>
    %8 = vector.broadcast %7 : vector<1x128xf32> to vector<512x128xf32>
    %9 = arith.addf %6, %8 : vector<512x128xf32>
    %cst = arith.constant 0.000000e+00 : f32
    %10 = vector.broadcast %cst : f32 to vector<512x128xf32>
    %11 = arith.maximumf %9, %10 : vector<512x128xf32>
    %12 = arith.truncf %11 : vector<512x128xf32> to vector<512x128xbf16>
    %c0_7 = arith.constant 0 : index
    %c0_8 = arith.constant 0 : index
    %c0_9 = arith.constant 0 : index
    %13 = vector.load %arg9[%c0_7, %c0_8, %c0_9] : memref<5x128x128xbf16, #tpu.memory_space<vmem>>, vector<1x128x128xbf16>
    %14 = vector.shape_cast %13 : vector<1x128x128xbf16> to vector<128x128xbf16>
    %cst_10 = arith.constant dense<0.000000e+00> : vector<512x128xf32>
    %15 = tpu.matmul %12, %14, %cst_10 {dimension_numbers = #tpu.dot_dimension_numbers<[1], [0], [0], [1], [0, 0, 1, 1], [], []>} : vector<512x128xbf16>, vector<128x128xbf16>, vector<512x128xf32> -> vector<512x128xf32>
    %16 = arith.addf %1, %15 : vector<512x128xf32>
    %c0_11 = arith.constant 0 : index
    %c0_12 = arith.constant 0 : index
    %17 = vector.load %arg2[%c0_11, %c0_12] : memref<512x128xbf16, #tpu.memory_space<vmem>>, vector<512x128xbf16>
    %18 = arith.extf %17 : vector<512x128xbf16> to vector<512x128xf32>
    %c1 = arith.constant 1 : index
    %c0_13 = arith.constant 0 : index
    %19 = vector.load %arg7[%c1, %c0_13] : memref<5x128xf32, #tpu.memory_space<vmem>>, vector<1x128xf32>
    %20 = vector.broadcast %19 : vector<1x128xf32> to vector<512x128xf32>
    %21 = arith.mulf %18, %20 : vector<512x128xf32>
    %c1_14 = arith.constant 1 : index
    %c0_15 = arith.constant 0 : index
    %22 = vector.load %arg8[%c1_14, %c0_15] : memref<5x128xf32, #tpu.memory_space<vmem>>, vector<1x128xf32>
    %23 = vector.broadcast %22 : vector<1x128xf32> to vector<512x128xf32>
    %24 = arith.addf %21, %23 : vector<512x128xf32>
    %cst_16 = arith.constant 0.000000e+00 : f32
    %25 = vector.broadcast %cst_16 : f32 to vector<512x128xf32>
    %26 = arith.maximumf %24, %25 : vector<512x128xf32>
    %27 = arith.truncf %26 : vector<512x128xf32> to vector<512x128xbf16>
    %c1_17 = arith.constant 1 : index
    %c0_18 = arith.constant 0 : index
    %c0_19 = arith.constant 0 : index
    %28 = vector.load %arg9[%c1_17, %c0_18, %c0_19] : memref<5x128x128xbf16, #tpu.memory_space<vmem>>, vector<1x128x128xbf16>
    %29 = vector.shape_cast %28 : vector<1x128x128xbf16> to vector<128x128xbf16>
    %cst_20 = arith.constant dense<0.000000e+00> : vector<512x128xf32>
    %30 = tpu.matmul %27, %29, %cst_20 {dimension_numbers = #tpu.dot_dimension_numbers<[1], [0], [0], [1], [0, 0, 1, 1], [], []>} : vector<512x128xbf16>, vector<128x128xbf16>, vector<512x128xf32> -> vector<512x128xf32>
    %31 = arith.addf %16, %30 : vector<512x128xf32>
    %c0_21 = arith.constant 0 : index
    %c0_22 = arith.constant 0 : index
    %32 = vector.load %arg3[%c0_21, %c0_22] : memref<512x128xbf16, #tpu.memory_space<vmem>>, vector<512x128xbf16>
    %33 = arith.extf %32 : vector<512x128xbf16> to vector<512x128xf32>
    %c2 = arith.constant 2 : index
    %c0_23 = arith.constant 0 : index
    %34 = vector.load %arg7[%c2, %c0_23] : memref<5x128xf32, #tpu.memory_space<vmem>>, vector<1x128xf32>
    %35 = vector.broadcast %34 : vector<1x128xf32> to vector<512x128xf32>
    %36 = arith.mulf %33, %35 : vector<512x128xf32>
    %c2_24 = arith.constant 2 : index
    %c0_25 = arith.constant 0 : index
    %37 = vector.load %arg8[%c2_24, %c0_25] : memref<5x128xf32, #tpu.memory_space<vmem>>, vector<1x128xf32>
    %38 = vector.broadcast %37 : vector<1x128xf32> to vector<512x128xf32>
    %39 = arith.addf %36, %38 : vector<512x128xf32>
    %cst_26 = arith.constant 0.000000e+00 : f32
    %40 = vector.broadcast %cst_26 : f32 to vector<512x128xf32>
    %41 = arith.maximumf %39, %40 : vector<512x128xf32>
    %42 = arith.truncf %41 : vector<512x128xf32> to vector<512x128xbf16>
    %c2_27 = arith.constant 2 : index
    %c0_28 = arith.constant 0 : index
    %c0_29 = arith.constant 0 : index
    %43 = vector.load %arg9[%c2_27, %c0_28, %c0_29] : memref<5x128x128xbf16, #tpu.memory_space<vmem>>, vector<1x128x128xbf16>
    %44 = vector.shape_cast %43 : vector<1x128x128xbf16> to vector<128x128xbf16>
    %cst_30 = arith.constant dense<0.000000e+00> : vector<512x128xf32>
    %45 = tpu.matmul %42, %44, %cst_30 {dimension_numbers = #tpu.dot_dimension_numbers<[1], [0], [0], [1], [0, 0, 1, 1], [], []>} : vector<512x128xbf16>, vector<128x128xbf16>, vector<512x128xf32> -> vector<512x128xf32>
    %46 = arith.addf %31, %45 : vector<512x128xf32>
    %c0_31 = arith.constant 0 : index
    %c0_32 = arith.constant 0 : index
    %47 = vector.load %arg4[%c0_31, %c0_32] : memref<512x128xbf16, #tpu.memory_space<vmem>>, vector<512x128xbf16>
    %48 = arith.extf %47 : vector<512x128xbf16> to vector<512x128xf32>
    %c3 = arith.constant 3 : index
    %c0_33 = arith.constant 0 : index
    %49 = vector.load %arg7[%c3, %c0_33] : memref<5x128xf32, #tpu.memory_space<vmem>>, vector<1x128xf32>
    %50 = vector.broadcast %49 : vector<1x128xf32> to vector<512x128xf32>
    %51 = arith.mulf %48, %50 : vector<512x128xf32>
    %c3_34 = arith.constant 3 : index
    %c0_35 = arith.constant 0 : index
    %52 = vector.load %arg8[%c3_34, %c0_35] : memref<5x128xf32, #tpu.memory_space<vmem>>, vector<1x128xf32>
    %53 = vector.broadcast %52 : vector<1x128xf32> to vector<512x128xf32>
    %54 = arith.addf %51, %53 : vector<512x128xf32>
    %cst_36 = arith.constant 0.000000e+00 : f32
    %55 = vector.broadcast %cst_36 : f32 to vector<512x128xf32>
    %56 = arith.maximumf %54, %55 : vector<512x128xf32>
    %57 = arith.truncf %56 : vector<512x128xf32> to vector<512x128xbf16>
    %c3_37 = arith.constant 3 : index
    %c0_38 = arith.constant 0 : index
    %c0_39 = arith.constant 0 : index
    %58 = vector.load %arg9[%c3_37, %c0_38, %c0_39] : memref<5x128x128xbf16, #tpu.memory_space<vmem>>, vector<1x128x128xbf16>
    %59 = vector.shape_cast %58 : vector<1x128x128xbf16> to vector<128x128xbf16>
    %cst_40 = arith.constant dense<0.000000e+00> : vector<512x128xf32>
    %60 = tpu.matmul %57, %59, %cst_40 {dimension_numbers = #tpu.dot_dimension_numbers<[1], [0], [0], [1], [0, 0, 1, 1], [], []>} : vector<512x128xbf16>, vector<128x128xbf16>, vector<512x128xf32> -> vector<512x128xf32>
    %61 = arith.addf %46, %60 : vector<512x128xf32>
    %c0_41 = arith.constant 0 : index
    %c0_42 = arith.constant 0 : index
    %62 = vector.load %arg5[%c0_41, %c0_42] : memref<512x128xbf16, #tpu.memory_space<vmem>>, vector<512x128xbf16>
    %63 = arith.extf %62 : vector<512x128xbf16> to vector<512x128xf32>
    %c4 = arith.constant 4 : index
    %c0_43 = arith.constant 0 : index
    %64 = vector.load %arg7[%c4, %c0_43] : memref<5x128xf32, #tpu.memory_space<vmem>>, vector<1x128xf32>
    %65 = vector.broadcast %64 : vector<1x128xf32> to vector<512x128xf32>
    %66 = arith.mulf %63, %65 : vector<512x128xf32>
    %c4_44 = arith.constant 4 : index
    %c0_45 = arith.constant 0 : index
    %67 = vector.load %arg8[%c4_44, %c0_45] : memref<5x128xf32, #tpu.memory_space<vmem>>, vector<1x128xf32>
    %68 = vector.broadcast %67 : vector<1x128xf32> to vector<512x128xf32>
    %69 = arith.addf %66, %68 : vector<512x128xf32>
    %cst_46 = arith.constant 0.000000e+00 : f32
    %70 = vector.broadcast %cst_46 : f32 to vector<512x128xf32>
    %71 = arith.maximumf %69, %70 : vector<512x128xf32>
    %72 = arith.truncf %71 : vector<512x128xf32> to vector<512x128xbf16>
    %c4_47 = arith.constant 4 : index
    %c0_48 = arith.constant 0 : index
    %c0_49 = arith.constant 0 : index
    %73 = vector.load %arg9[%c4_47, %c0_48, %c0_49] : memref<5x128x128xbf16, #tpu.memory_space<vmem>>, vector<1x128x128xbf16>
    %74 = vector.shape_cast %73 : vector<1x128x128xbf16> to vector<128x128xbf16>
    %cst_50 = arith.constant dense<0.000000e+00> : vector<512x128xf32>
    %75 = tpu.matmul %72, %74, %cst_50 {dimension_numbers = #tpu.dot_dimension_numbers<[1], [0], [0], [1], [0, 0, 1, 1], [], []>} : vector<512x128xbf16>, vector<128x128xbf16>, vector<512x128xf32> -> vector<512x128xf32>
    %76 = arith.addf %61, %75 : vector<512x128xf32>
    %c0_51 = arith.constant 0 : index
    %c0_52 = arith.constant 0 : index
    %77 = vector.load %arg10[%c0_51, %c0_52] : memref<512x128xf32, #tpu.memory_space<vmem>>, vector<512x128xf32>
    tpu.vector_store %arg10[%c0_51, %c0_52], %76 {strides = array<i32>} : memref<512x128xf32, #tpu.memory_space<vmem>>, vector<512x128xf32>,
    return
  }
  func.func @transform_0(%arg0: i32) -> (i32, i32) {
    %c0_i32 = arith.constant 0 : i32
    %c0_i32_0 = arith.constant 0 : i32
    return %arg0, %c0_i32 : i32, i32
  }
  func.func @transform_1(%arg0: i32) -> (i32, i32) {
    %c0_i32 = arith.constant 0 : i32
    %c0_i32_0 = arith.constant 0 : i32
    return %arg0, %c0_i32 : i32, i32
  }
  func.func @transform_2(%arg0: i32) -> (i32, i32) {
    %c0_i32 = arith.constant 0 : i32
    %c0_i32_0 = arith.constant 0 : i32
    return %arg0, %c0_i32 : i32, i32
  }
  func.func @transform_3(%arg0: i32) -> (i32, i32) {
    %c0_i32 = arith.constant 0 : i32
    %c0_i32_0 = arith.constant 0 : i32
    return %arg0, %c0_i32 : i32, i32
  }
  func.func @transform_4(%arg0: i32) -> (i32, i32) {
    %c0_i32 = arith.constant 0 : i32
    %c0_i32_0 = arith.constant 0 : i32
    return %arg0, %c0_i32 : i32, i32
  }
  func.func @transform_5(%arg0: i32) -> (i32, i32) {
    %c0_i32 = arith.constant 0 : i32
    %c0_i32_0 = arith.constant 0 : i32
    return %arg0, %c0_i32 : i32, i32
  }
  func.func @transform_6(%arg0: i32) -> (i32, i32) {
    %c0_i32 = arith.constant 0 : i32
    %c0_i32_0 = arith.constant 0 : i32
    %c0_i32_1 = arith.constant 0 : i32
    return %c0_i32, %c0_i32_0 : i32, i32
  }
  func.func @transform_7(%arg0: i32) -> (i32, i32) {
    %c0_i32 = arith.constant 0 : i32
    %c0_i32_0 = arith.constant 0 : i32
    %c0_i32_1 = arith.constant 0 : i32
    return %c0_i32, %c0_i32_0 : i32, i32
  }
  func.func @transform_8(%arg0: i32) -> (i32, i32, i32) {
    %c0_i32 = arith.constant 0 : i32
    %c0_i32_0 = arith.constant 0 : i32
    %c0_i32_1 = arith.constant 0 : i32
    %c0_i32_2 = arith.constant 0 : i32
    return %c0_i32, %c0_i32_0, %c0_i32_1 : i32, i32, i32
  }
  func.func @transform_9(%arg0: i32) -> (i32, i32) {
    %c0_i32 = arith.constant 0 : i32
    %c0_i32_0 = arith.constant 0 : i32
    return %arg0, %c0_i32 : i32, i32
  }
}

module attributes {stable_mosaic.version = 11 : i64} {
  func.func @_process3x3_kernel(%arg0: i32, %arg1: memref<1x16x16x128xbf16, #tpu.memory_space<vmem>>, %arg2: memref<1x16x16x128xbf16, #tpu.memory_space<vmem>>, %arg3: memref<1x128xf32, #tpu.memory_space<vmem>>, %arg4: memref<1x128xf32, #tpu.memory_space<vmem>>, %arg5: memref<3x3x128x128xbf16, #tpu.memory_space<vmem>>, %arg6: memref<1x16x16x128xbf16, #tpu.memory_space<vmem>>, %arg7: memref<18x32x128xbf16, #tpu.memory_space<vmem>>) attributes {dimension_semantics = [#tpu.dimension_semantics<parallel>], iteration_bounds = array<i64: 2>, scalar_prefetch = 0 : i64, scratch_operands = 1 : i64, tpu.core_type = #tpu.core_type<tc>, window_params = [{transform_indices = @transform_0, window_bounds = array<i64: 1, 16, 16, 128>}, {transform_indices = @transform_1, window_bounds = array<i64: 1, 16, 16, 128>}, {pipeline_mode = #tpu.pipeline_mode<synchronous>, transform_indices = @transform_2, window_bounds = array<i64: 1, 128>}, {pipeline_mode = #tpu.pipeline_mode<synchronous>, transform_indices = @transform_3, window_bounds = array<i64: 1, 128>}, {pipeline_mode = #tpu.pipeline_mode<synchronous>, transform_indices = @transform_4, window_bounds = array<i64: 3, 3, 128, 128>}, {transform_indices = @transform_5, window_bounds = array<i64: 1, 16, 16, 128>}]} {
    %cst = arith.constant 0.000000e+00 : bf16
    %0 = vector.broadcast %cst : bf16 to vector<1x32x128xbf16>
    %c0 = arith.constant 0 : index
    %c0_0 = arith.constant 0 : index
    %c0_1 = arith.constant 0 : index
    %1 = vector.load %arg7[%c0, %c0_0, %c0_1] : memref<18x32x128xbf16, #tpu.memory_space<vmem>>, vector<1x32x128xbf16>
    tpu.vector_store %arg7[%c0, %c0_0, %c0_1], %0 {strides = array<i32>} : memref<18x32x128xbf16, #tpu.memory_space<vmem>>, vector<1x32x128xbf16>,
    %c17 = arith.constant 17 : index
    %c0_2 = arith.constant 0 : index
    %c0_3 = arith.constant 0 : index
    %2 = vector.load %arg7[%c17, %c0_2, %c0_3] : memref<18x32x128xbf16, #tpu.memory_space<vmem>>, vector<1x32x128xbf16>
    tpu.vector_store %arg7[%c17, %c0_2, %c0_3], %0 {strides = array<i32>} : memref<18x32x128xbf16, #tpu.memory_space<vmem>>, vector<1x32x128xbf16>,
    %cst_4 = arith.constant 0.000000e+00 : bf16
    %3 = vector.broadcast %cst_4 : bf16 to vector<18x8x128xbf16>
    %c0_5 = arith.constant 0 : index
    %c0_6 = arith.constant 0 : index
    %c0_7 = arith.constant 0 : index
    %4 = vector.load %arg7[%c0_5, %c0_6, %c0_7] : memref<18x32x128xbf16, #tpu.memory_space<vmem>>, vector<18x8x128xbf16>
    tpu.vector_store %arg7[%c0_5, %c0_6, %c0_7], %3 {strides = array<i32>} : memref<18x32x128xbf16, #tpu.memory_space<vmem>>, vector<18x8x128xbf16>,
    %cst_8 = arith.constant 0.000000e+00 : bf16
    %5 = vector.broadcast %cst_8 : bf16 to vector<18x8x128xbf16>
    %c0_9 = arith.constant 0 : index
    %c24 = arith.constant 24 : index
    %c0_10 = arith.constant 0 : index
    %6 = vector.load %arg7[%c0_9, %c24, %c0_10] : memref<18x32x128xbf16, #tpu.memory_space<vmem>>, vector<18x8x128xbf16>
    tpu.vector_store %arg7[%c0_9, %c24, %c0_10], %5 {strides = array<i32>} : memref<18x32x128xbf16, #tpu.memory_space<vmem>>, vector<18x8x128xbf16>,
    %c0_11 = arith.constant 0 : index
    %c0_12 = arith.constant 0 : index
    %c0_13 = arith.constant 0 : index
    %c0_14 = arith.constant 0 : index
    %7 = vector.load %arg1[%c0_11, %c0_12, %c0_13, %c0_14] : memref<1x16x16x128xbf16, #tpu.memory_space<vmem>>, vector<1x16x16x128xbf16>
    %8 = vector.shape_cast %7 : vector<1x16x16x128xbf16> to vector<16x16x128xbf16>
    %9 = arith.extf %8 : vector<16x16x128xbf16> to vector<16x16x128xf32>
    %c0_15 = arith.constant 0 : index
    %c0_16 = arith.constant 0 : index
    %c0_17 = arith.constant 0 : index
    %c0_18 = arith.constant 0 : index
    %10 = vector.load %arg2[%c0_15, %c0_16, %c0_17, %c0_18] : memref<1x16x16x128xbf16, #tpu.memory_space<vmem>>, vector<1x16x16x128xbf16>
    %11 = vector.shape_cast %10 : vector<1x16x16x128xbf16> to vector<16x16x128xbf16>
    %12 = arith.extf %11 : vector<16x16x128xbf16> to vector<16x16x128xf32>
    %13 = arith.addf %9, %12 : vector<16x16x128xf32>
    %c0_19 = arith.constant 0 : index
    %c0_20 = arith.constant 0 : index
    %14 = vector.load %arg3[%c0_19, %c0_20] : memref<1x128xf32, #tpu.memory_space<vmem>>, vector<1x128xf32>
    %15 = vector.shape_cast %14 : vector<1x128xf32> to vector<1x1x128xf32>
    %16 = vector.broadcast %15 : vector<1x1x128xf32> to vector<16x16x128xf32>
    %17 = arith.mulf %13, %16 : vector<16x16x128xf32>
    %c0_21 = arith.constant 0 : index
    %c0_22 = arith.constant 0 : index
    %18 = vector.load %arg4[%c0_21, %c0_22] : memref<1x128xf32, #tpu.memory_space<vmem>>, vector<1x128xf32>
    %19 = vector.shape_cast %18 : vector<1x128xf32> to vector<1x1x128xf32>
    %20 = vector.broadcast %19 : vector<1x1x128xf32> to vector<16x16x128xf32>
    %21 = arith.addf %17, %20 : vector<16x16x128xf32>
    %cst_23 = arith.constant 0.000000e+00 : f32
    %22 = vector.broadcast %cst_23 : f32 to vector<16x16x128xf32>
    %23 = arith.maximumf %21, %22 : vector<16x16x128xf32>
    %24 = arith.truncf %23 : vector<16x16x128xf32> to vector<16x16x128xbf16>
    %c1 = arith.constant 1 : index
    %c8 = arith.constant 8 : index
    %c0_24 = arith.constant 0 : index
    %25 = vector.load %arg7[%c1, %c8, %c0_24] : memref<18x32x128xbf16, #tpu.memory_space<vmem>>, vector<16x16x128xbf16>
    tpu.vector_store %arg7[%c1, %c8, %c0_24], %24 {strides = array<i32>} : memref<18x32x128xbf16, #tpu.memory_space<vmem>>, vector<16x16x128xbf16>,
    %c0_25 = arith.constant 0 : index
    %c0_26 = arith.constant 0 : index
    %c0_27 = arith.constant 0 : index
    %26 = vector.load %arg7[%c0_25, %c0_26, %c0_27] : memref<18x32x128xbf16, #tpu.memory_space<vmem>>, vector<18x32x128xbf16>
    %cst_28 = arith.constant 0.000000e+00 : f32
    %27 = vector.broadcast %cst_28 : f32 to vector<16x16x128xf32>
    %28 = vector.extract_strided_slice %26 {offsets = [0, 7, 0], sizes = [18, 16, 128], strides = [1, 1, 1]} : vector<18x32x128xbf16> to vector<18x16x128xbf16>
    %29 = vector.extract_strided_slice %28 {offsets = [0, 0, 0], sizes = [16, 16, 128], strides = [1, 1, 1]} : vector<18x16x128xbf16> to vector<16x16x128xbf16>
    %c0_29 = arith.constant 0 : index
    %c0_30 = arith.constant 0 : index
    %c0_31 = arith.constant 0 : index
    %c0_32 = arith.constant 0 : index
    %30 = vector.load %arg5[%c0_29, %c0_30, %c0_31, %c0_32] : memref<3x3x128x128xbf16, #tpu.memory_space<vmem>>, vector<1x1x128x128xbf16>
    %31 = vector.shape_cast %30 : vector<1x1x128x128xbf16> to vector<128x128xbf16>
    %cst_33 = arith.constant dense<0.000000e+00> : vector<16x16x128xf32>
    %32 = tpu.matmul %29, %31, %cst_33 {dimension_numbers = #tpu.dot_dimension_numbers<[2], [0], [0, 1], [1], [0, 0, 0, 1, 1, 1], [], []>} : vector<16x16x128xbf16>, vector<128x128xbf16>, vector<16x16x128xf32> -> vector<16x16x128xf32>
    %33 = arith.addf %27, %32 : vector<16x16x128xf32>
    %34 = vector.extract_strided_slice %28 {offsets = [1, 0, 0], sizes = [16, 16, 128], strides = [1, 1, 1]} : vector<18x16x128xbf16> to vector<16x16x128xbf16>
    %c1_34 = arith.constant 1 : index
    %c0_35 = arith.constant 0 : index
    %c0_36 = arith.constant 0 : index
    %c0_37 = arith.constant 0 : index
    %35 = vector.load %arg5[%c1_34, %c0_35, %c0_36, %c0_37] : memref<3x3x128x128xbf16, #tpu.memory_space<vmem>>, vector<1x1x128x128xbf16>
    %36 = vector.shape_cast %35 : vector<1x1x128x128xbf16> to vector<128x128xbf16>
    %cst_38 = arith.constant dense<0.000000e+00> : vector<16x16x128xf32>
    %37 = tpu.matmul %34, %36, %cst_38 {dimension_numbers = #tpu.dot_dimension_numbers<[2], [0], [0, 1], [1], [0, 0, 0, 1, 1, 1], [], []>} : vector<16x16x128xbf16>, vector<128x128xbf16>, vector<16x16x128xf32> -> vector<16x16x128xf32>
    %38 = arith.addf %33, %37 : vector<16x16x128xf32>
    %39 = vector.extract_strided_slice %28 {offsets = [2, 0, 0], sizes = [16, 16, 128], strides = [1, 1, 1]} : vector<18x16x128xbf16> to vector<16x16x128xbf16>
    %c2 = arith.constant 2 : index
    %c0_39 = arith.constant 0 : index
    %c0_40 = arith.constant 0 : index
    %c0_41 = arith.constant 0 : index
    %40 = vector.load %arg5[%c2, %c0_39, %c0_40, %c0_41] : memref<3x3x128x128xbf16, #tpu.memory_space<vmem>>, vector<1x1x128x128xbf16>
    %41 = vector.shape_cast %40 : vector<1x1x128x128xbf16> to vector<128x128xbf16>
    %cst_42 = arith.constant dense<0.000000e+00> : vector<16x16x128xf32>
    %42 = tpu.matmul %39, %41, %cst_42 {dimension_numbers = #tpu.dot_dimension_numbers<[2], [0], [0, 1], [1], [0, 0, 0, 1, 1, 1], [], []>} : vector<16x16x128xbf16>, vector<128x128xbf16>, vector<16x16x128xf32> -> vector<16x16x128xf32>
    %43 = arith.addf %38, %42 : vector<16x16x128xf32>
    %44 = vector.extract_strided_slice %26 {offsets = [0, 8, 0], sizes = [18, 16, 128], strides = [1, 1, 1]} : vector<18x32x128xbf16> to vector<18x16x128xbf16>
    %45 = vector.extract_strided_slice %44 {offsets = [0, 0, 0], sizes = [16, 16, 128], strides = [1, 1, 1]} : vector<18x16x128xbf16> to vector<16x16x128xbf16>
    %c0_43 = arith.constant 0 : index
    %c1_44 = arith.constant 1 : index
    %c0_45 = arith.constant 0 : index
    %c0_46 = arith.constant 0 : index
    %46 = vector.load %arg5[%c0_43, %c1_44, %c0_45, %c0_46] : memref<3x3x128x128xbf16, #tpu.memory_space<vmem>>, vector<1x1x128x128xbf16>
    %47 = vector.shape_cast %46 : vector<1x1x128x128xbf16> to vector<128x128xbf16>
    %cst_47 = arith.constant dense<0.000000e+00> : vector<16x16x128xf32>
    %48 = tpu.matmul %45, %47, %cst_47 {dimension_numbers = #tpu.dot_dimension_numbers<[2], [0], [0, 1], [1], [0, 0, 0, 1, 1, 1], [], []>} : vector<16x16x128xbf16>, vector<128x128xbf16>, vector<16x16x128xf32> -> vector<16x16x128xf32>
    %49 = arith.addf %43, %48 : vector<16x16x128xf32>
    %50 = vector.extract_strided_slice %44 {offsets = [1, 0, 0], sizes = [16, 16, 128], strides = [1, 1, 1]} : vector<18x16x128xbf16> to vector<16x16x128xbf16>
    %c1_48 = arith.constant 1 : index
    %c1_49 = arith.constant 1 : index
    %c0_50 = arith.constant 0 : index
    %c0_51 = arith.constant 0 : index
    %51 = vector.load %arg5[%c1_48, %c1_49, %c0_50, %c0_51] : memref<3x3x128x128xbf16, #tpu.memory_space<vmem>>, vector<1x1x128x128xbf16>
    %52 = vector.shape_cast %51 : vector<1x1x128x128xbf16> to vector<128x128xbf16>
    %cst_52 = arith.constant dense<0.000000e+00> : vector<16x16x128xf32>
    %53 = tpu.matmul %50, %52, %cst_52 {dimension_numbers = #tpu.dot_dimension_numbers<[2], [0], [0, 1], [1], [0, 0, 0, 1, 1, 1], [], []>} : vector<16x16x128xbf16>, vector<128x128xbf16>, vector<16x16x128xf32> -> vector<16x16x128xf32>
    %54 = arith.addf %49, %53 : vector<16x16x128xf32>
    %55 = vector.extract_strided_slice %44 {offsets = [2, 0, 0], sizes = [16, 16, 128], strides = [1, 1, 1]} : vector<18x16x128xbf16> to vector<16x16x128xbf16>
    %c2_53 = arith.constant 2 : index
    %c1_54 = arith.constant 1 : index
    %c0_55 = arith.constant 0 : index
    %c0_56 = arith.constant 0 : index
    %56 = vector.load %arg5[%c2_53, %c1_54, %c0_55, %c0_56] : memref<3x3x128x128xbf16, #tpu.memory_space<vmem>>, vector<1x1x128x128xbf16>
    %57 = vector.shape_cast %56 : vector<1x1x128x128xbf16> to vector<128x128xbf16>
    %cst_57 = arith.constant dense<0.000000e+00> : vector<16x16x128xf32>
    %58 = tpu.matmul %55, %57, %cst_57 {dimension_numbers = #tpu.dot_dimension_numbers<[2], [0], [0, 1], [1], [0, 0, 0, 1, 1, 1], [], []>} : vector<16x16x128xbf16>, vector<128x128xbf16>, vector<16x16x128xf32> -> vector<16x16x128xf32>
    %59 = arith.addf %54, %58 : vector<16x16x128xf32>
    %60 = vector.extract_strided_slice %26 {offsets = [0, 9, 0], sizes = [18, 16, 128], strides = [1, 1, 1]} : vector<18x32x128xbf16> to vector<18x16x128xbf16>
    %61 = vector.extract_strided_slice %60 {offsets = [0, 0, 0], sizes = [16, 16, 128], strides = [1, 1, 1]} : vector<18x16x128xbf16> to vector<16x16x128xbf16>
    %c0_58 = arith.constant 0 : index
    %c2_59 = arith.constant 2 : index
    %c0_60 = arith.constant 0 : index
    %c0_61 = arith.constant 0 : index
    %62 = vector.load %arg5[%c0_58, %c2_59, %c0_60, %c0_61] : memref<3x3x128x128xbf16, #tpu.memory_space<vmem>>, vector<1x1x128x128xbf16>
    %63 = vector.shape_cast %62 : vector<1x1x128x128xbf16> to vector<128x128xbf16>
    %cst_62 = arith.constant dense<0.000000e+00> : vector<16x16x128xf32>
    %64 = tpu.matmul %61, %63, %cst_62 {dimension_numbers = #tpu.dot_dimension_numbers<[2], [0], [0, 1], [1], [0, 0, 0, 1, 1, 1], [], []>} : vector<16x16x128xbf16>, vector<128x128xbf16>, vector<16x16x128xf32> -> vector<16x16x128xf32>
    %65 = arith.addf %59, %64 : vector<16x16x128xf32>
    %66 = vector.extract_strided_slice %60 {offsets = [1, 0, 0], sizes = [16, 16, 128], strides = [1, 1, 1]} : vector<18x16x128xbf16> to vector<16x16x128xbf16>
    %c1_63 = arith.constant 1 : index
    %c2_64 = arith.constant 2 : index
    %c0_65 = arith.constant 0 : index
    %c0_66 = arith.constant 0 : index
    %67 = vector.load %arg5[%c1_63, %c2_64, %c0_65, %c0_66] : memref<3x3x128x128xbf16, #tpu.memory_space<vmem>>, vector<1x1x128x128xbf16>
    %68 = vector.shape_cast %67 : vector<1x1x128x128xbf16> to vector<128x128xbf16>
    %cst_67 = arith.constant dense<0.000000e+00> : vector<16x16x128xf32>
    %69 = tpu.matmul %66, %68, %cst_67 {dimension_numbers = #tpu.dot_dimension_numbers<[2], [0], [0, 1], [1], [0, 0, 0, 1, 1, 1], [], []>} : vector<16x16x128xbf16>, vector<128x128xbf16>, vector<16x16x128xf32> -> vector<16x16x128xf32>
    %70 = arith.addf %65, %69 : vector<16x16x128xf32>
    %71 = vector.extract_strided_slice %60 {offsets = [2, 0, 0], sizes = [16, 16, 128], strides = [1, 1, 1]} : vector<18x16x128xbf16> to vector<16x16x128xbf16>
    %c2_68 = arith.constant 2 : index
    %c2_69 = arith.constant 2 : index
    %c0_70 = arith.constant 0 : index
    %c0_71 = arith.constant 0 : index
    %72 = vector.load %arg5[%c2_68, %c2_69, %c0_70, %c0_71] : memref<3x3x128x128xbf16, #tpu.memory_space<vmem>>, vector<1x1x128x128xbf16>
    %73 = vector.shape_cast %72 : vector<1x1x128x128xbf16> to vector<128x128xbf16>
    %cst_72 = arith.constant dense<0.000000e+00> : vector<16x16x128xf32>
    %74 = tpu.matmul %71, %73, %cst_72 {dimension_numbers = #tpu.dot_dimension_numbers<[2], [0], [0, 1], [1], [0, 0, 0, 1, 1, 1], [], []>} : vector<16x16x128xbf16>, vector<128x128xbf16>, vector<16x16x128xf32> -> vector<16x16x128xf32>
    %75 = arith.addf %70, %74 : vector<16x16x128xf32>
    %76 = arith.truncf %75 : vector<16x16x128xf32> to vector<16x16x128xbf16>
    %c0_73 = arith.constant 0 : index
    %c0_74 = arith.constant 0 : index
    %c0_75 = arith.constant 0 : index
    %c0_76 = arith.constant 0 : index
    %77 = vector.load %arg6[%c0_73, %c0_74, %c0_75, %c0_76] : memref<1x16x16x128xbf16, #tpu.memory_space<vmem>>, vector<1x16x16x128xbf16>
    %78 = vector.shape_cast %77 : vector<1x16x16x128xbf16> to vector<16x16x128xbf16>
    %79 = vector.shape_cast %76 : vector<16x16x128xbf16> to vector<1x16x16x128xbf16>
    tpu.vector_store %arg6[%c0_73, %c0_74, %c0_75, %c0_76], %79 {strides = array<i32>} : memref<1x16x16x128xbf16, #tpu.memory_space<vmem>>, vector<1x16x16x128xbf16>,
    return
  }
  func.func @transform_0(%arg0: i32) -> (i32, i32, i32, i32) {
    %c0_i32 = arith.constant 0 : i32
    %c0_i32_0 = arith.constant 0 : i32
    %c0_i32_1 = arith.constant 0 : i32
    %c0_i32_2 = arith.constant 0 : i32
    return %arg0, %c0_i32, %c0_i32_0, %c0_i32_1 : i32, i32, i32, i32
  }
  func.func @transform_1(%arg0: i32) -> (i32, i32, i32, i32) {
    %c0_i32 = arith.constant 0 : i32
    %c0_i32_0 = arith.constant 0 : i32
    %c0_i32_1 = arith.constant 0 : i32
    %c0_i32_2 = arith.constant 0 : i32
    return %arg0, %c0_i32, %c0_i32_0, %c0_i32_1 : i32, i32, i32, i32
  }
  func.func @transform_2(%arg0: i32) -> (i32, i32) {
    %c0_i32 = arith.constant 0 : i32
    %c0_i32_0 = arith.constant 0 : i32
    %c0_i32_1 = arith.constant 0 : i32
    return %c0_i32, %c0_i32_0 : i32, i32
  }
  func.func @transform_3(%arg0: i32) -> (i32, i32) {
    %c0_i32 = arith.constant 0 : i32
    %c0_i32_0 = arith.constant 0 : i32
    %c0_i32_1 = arith.constant 0 : i32
    return %c0_i32, %c0_i32_0 : i32, i32
  }
  func.func @transform_4(%arg0: i32) -> (i32, i32, i32, i32) {
    %c0_i32 = arith.constant 0 : i32
    %c0_i32_0 = arith.constant 0 : i32
    %c0_i32_1 = arith.constant 0 : i32
    %c0_i32_2 = arith.constant 0 : i32
    %c0_i32_3 = arith.constant 0 : i32
    return %c0_i32, %c0_i32_0, %c0_i32_1, %c0_i32_2 : i32, i32, i32, i32
  }
  func.func @transform_5(%arg0: i32) -> (i32, i32, i32, i32) {
    %c0_i32 = arith.constant 0 : i32
    %c0_i32_0 = arith.constant 0 : i32
    %c0_i32_1 = arith.constant 0 : i32
    %c0_i32_2 = arith.constant 0 : i32
    return %arg0, %c0_i32, %c0_i32_0, %c0_i32_1 : i32, i32, i32, i32
  }
}

</mosaic_0001>

<llo_original>
// kernel: dappm_forward.17
$region0: #{dappm_forward.17}
  #allocation0 [shape = 'u32[]', space=smem, size = 0x4, offset = 0x4, fixed_abs, tag = 'smem constant byte address 0x4 - core index']
  #allocation1 [shape = 'u32[144,128]{1,0:T(1,128)}', space=vmem, size = 0x12000, scoped, tag = 'internal scratch']
  %s0 = inlined_call_operand.vmem [shape: f32[2,4], index: 0, kind: input, shape index: {}]
  %s1 = inlined_call_operand.vmem [shape: f32[1,4], index: 1, kind: input, shape index: {}]
  %s2 = inlined_call_operand.vmem [shape: f32[1,4], index: 2, kind: input, shape index: {}]
  %s3 = inlined_call_operand.vmem [shape: bf16[4,128], index: 3, kind: input, shape index: {}]
  %s4 = inlined_call_operand.vmem [shape: bf16[2,128], index: 4, kind: output, shape index: {}]
  %s5 = sld [smem:[#allocation0]]
  $region26: #{dappm_forward.17} parent=0
    _
  %s7 = ssub.s32 1, %s5
  %s8 = scalar_select 0, %s7, %s5
  // Predicated region
  $region2: #{dappm_forward.17} parent=0 // pred_check
    _
  $region3: #{dappm_forward.17} parent=0 // pred_check_branch
    %10 = sbr.rel (0) target = $region5
  $region4: #{dappm_forward.17} parent=0 // pred_region
    _
  $region5: #{dappm_forward.17} parent=0 // pred_fallthru
    _
  // Predicated region
  $region6: #{dappm_forward.17} parent=0 // pred_check
    _
  $region7: #{dappm_forward.17} parent=0 // pred_check_branch
    %12 = sbr.rel (0) target = $region9
  $region8: #{dappm_forward.17} parent=0 // pred_region
    _
  $region9: #{dappm_forward.17} parent=0 // pred_fallthru
    _
  // Predicated region
  $region10: #{dappm_forward.17} parent=0 // pred_check
    _
  $region11: #{dappm_forward.17} parent=0 // pred_check_branch
    %14 = sbr.rel (0) target = $region13
  $region12: #{dappm_forward.17} parent=0 // pred_region
    _
  $region13: #{dappm_forward.17} parent=0 // pred_fallthru
    _
  // Predicated region
  $region14: #{dappm_forward.17} parent=0 // pred_check
    _
  $region15: #{dappm_forward.17} parent=0 // pred_check_branch
    %16 = sbr.rel (0) target = $region17
  $region16: #{dappm_forward.17} parent=0 // pred_region
    _
  $region17: #{dappm_forward.17} parent=0 // pred_fallthru
    _
  %v18 = vld [vmem:[%s0] sm:$0x3]
  %v19 = vld [vmem:[%s1] sm:$0x1]
  %v21 = vlaneseq
  %v22 = vshrl.u32 %v21, 7
  %v23 = vsub.s32 0, %v22
  %v24 = vrot.slane %v19, %v23
  %v26 = vmul.f32 %v18, %v24
  %v27 = vld [vmem:[%s2] sm:$0x1]
  %v29 = vlaneseq
  %v30 = vshrl.u32 %v29, 7
  %v31 = vsub.s32 0, %v30
  %v32 = vrot.slane %v27, %v31
  %v34 = vadd.f32 %v26, %v32
  %v35 = vmax.f32 %v34, 0.0
  %v36 = vpack.c.bf16 %v35, %v35
  %v37 = vld [vmem:[%s3] sm:$0x3]
  %vm38 = vcmask 31744
  %v40 = vsel %vm38, %v36, 0
  %vm42 = vcmask 1041408
  %v44 = vsel %vm42, %v37, 0
  %46 = vmatprep.subr.bf16.mxu0 0
  %47 = vmatpush1.bf16.msra.mxu0 %v44
  %48 = vmatprep.subr.bf16.mxu0 0
  %49 = vmatpush1.bf16.msra.mxu0 0
  %50 = vmatprep.subr.bf16.mxu0 0
  %51 = vmatpush1.bf16.msra.mxu0 0
  %52 = vmatprep.subr.bf16.mxu0 0
  %53 = vmatpush1.bf16.msra.mxu0 0
  %54 = vmatprep.subr.bf16.mxu0 0
  %55 = vmatpush1.bf16.msra.mxu0 0
  %56 = vmatprep.subr.bf16.mxu0 0
  %57 = vmatpush1.bf16.msra.mxu0 0
  %58 = vmatprep.subr.bf16.mxu0 0
  %59 = vmatpush1.bf16.msra.mxu0 0
  %60 = vmatprep.subr.bf16.mxu0 0
  %61 = vmatpush1.bf16.msra.mxu0 0
  %62 = vmatprep.subr.bf16.mxu0 0
  %63 = vmatpush1.bf16.msra.mxu0 0
  %64 = vmatprep.subr.bf16.mxu0 0
  %65 = vmatpush1.bf16.msra.mxu0 0
  %66 = vmatprep.subr.bf16.mxu0 0
  %67 = vmatpush1.bf16.msra.mxu0 0
  %68 = vmatprep.subr.bf16.mxu0 0
  %69 = vmatpush1.bf16.msra.mxu0 0
  %70 = vmatprep.subr.bf16.mxu0 0
  %71 = vmatpush1.bf16.msra.mxu0 0
  %72 = vmatprep.subr.bf16.mxu0 0
  %73 = vmatpush1.bf16.msra.mxu0 0
  %74 = vmatprep.subr.bf16.mxu0 0
  %75 = vmatpush1.bf16.msra.mxu0 0
  %76 = vmatprep.subr.bf16.mxu0 0
  %77 = vmatpush1.bf16.msra.mxu0 0
  %78 = vmatprep.mubr.bf16.mxu0 0
  %79 = vmatmul.mubr.bf16.gmra.mrb[0].mxu0 %v40
  %v80 = vpop.f32.mrb[0].mxu0
  %v81 = vadd.f32 0.0, %v80
  %v82 = vpop.f32.mrb[0].mxu0
  %v83 = vpop.f32.mrb[0].mxu0
  %v84 = vpop.f32.mrb[0].mxu0
  %85 = vdwg.mxu0
  %v86 = vpack.c.bf16 %v81, %v81
  %87 = vst [vmem:[%s4] sm:$0x1] %v86
  // Predicated region
  $region18: #{dappm_forward.17} parent=0 // pred_check
    _
  $region19: #{dappm_forward.17} parent=0 // pred_check_branch
    %89 = sbr.rel (0) target = $region21
  $region20: #{dappm_forward.17} parent=0 // pred_region
    _
  $region21: #{dappm_forward.17} parent=0 // pred_fallthru
    _
  // Predicated region
  $region22: #{dappm_forward.17} parent=0 // pred_check
    _
  $region23: #{dappm_forward.17} parent=0 // pred_check_branch
    %91 = sbr.rel (0) target = $region25
  $region24: #{dappm_forward.17} parent=0 // pred_region
    _
  $region25: #{dappm_forward.17} parent=0 // pred_fallthru
    _

// kernel: dappm_forward.13
$region0: #{dappm_forward.13}
  #allocation0 [shape = 'u32[]', space=smem, size = 0x4, offset = 0x4, fixed_abs, tag = 'smem constant byte address 0x4 - core index']
  #allocation1 [shape = 'u32[144,128]{1,0:T(1,128)}', space=vmem, size = 0x12000, scoped, tag = 'internal scratch']
  %s0 = inlined_call_operand.vmem [shape: f32[32,4], index: 0, kind: input, shape index: {}]
  %s1 = inlined_call_operand.vmem [shape: f32[1,4], index: 1, kind: input, shape index: {}]
  %s2 = inlined_call_operand.vmem [shape: f32[1,4], index: 2, kind: input, shape index: {}]
  %s3 = inlined_call_operand.vmem [shape: bf16[4,128], index: 3, kind: input, shape index: {}]
  %s4 = inlined_call_operand.vmem [shape: bf16[32,128], index: 4, kind: output, shape index: {}]
  %s5 = sld [smem:[#allocation0]]
  $region26: #{dappm_forward.13} parent=0
    _
  %s7 = ssub.s32 1, %s5
  %s8 = scalar_select 0, %s7, %s5
  // Predicated region
  $region2: #{dappm_forward.13} parent=0 // pred_check
    _
  $region3: #{dappm_forward.13} parent=0 // pred_check_branch
    %10 = sbr.rel (0) target = $region5
  $region4: #{dappm_forward.13} parent=0 // pred_region
    _
  $region5: #{dappm_forward.13} parent=0 // pred_fallthru
    _
  // Predicated region
  $region6: #{dappm_forward.13} parent=0 // pred_check
    _
  $region7: #{dappm_forward.13} parent=0 // pred_check_branch
    %12 = sbr.rel (0) target = $region9
  $region8: #{dappm_forward.13} parent=0 // pred_region
    _
  $region9: #{dappm_forward.13} parent=0 // pred_fallthru
    _
  // Predicated region
  $region10: #{dappm_forward.13} parent=0 // pred_check
    _
  $region11: #{dappm_forward.13} parent=0 // pred_check_branch
    %14 = sbr.rel (0) target = $region13
  $region12: #{dappm_forward.13} parent=0 // pred_region
    _
  $region13: #{dappm_forward.13} parent=0 // pred_fallthru
    _
  // Predicated region
  $region14: #{dappm_forward.13} parent=0 // pred_check
    _
  $region15: #{dappm_forward.13} parent=0 // pred_check_branch
    %16 = sbr.rel (0) target = $region17
  $region16: #{dappm_forward.13} parent=0 // pred_region
    _
  $region17: #{dappm_forward.13} parent=0 // pred_fallthru
    _
  %v18 = vld [vmem:[%s0] sm:$0xff]
  %v19 = vld [vmem:[%s0 + $0x8] sm:$0xff]
  %v20 = vld [vmem:[%s0 + $0x10] sm:$0xff]
  %v21 = vld [vmem:[%s0 + $0x18] sm:$0xff]
  %v22 = vld [vmem:[%s1] sm:$0x1]
  %v24 = vlaneseq
  %v25 = vshrl.u32 %v24, 7
  %v26 = vsub.s32 0, %v25
  %v27 = vrot.slane %v22, %v26
  %v29 = vmul.f32 %v18, %v27
  %v30 = vmul.f32 %v19, %v27
  %v31 = vmul.f32 %v20, %v27
  %v32 = vmul.f32 %v21, %v27
  %v33 = vld [vmem:[%s2] sm:$0x1]
  %v35 = vlaneseq
  %v36 = vshrl.u32 %v35, 7
  %v37 = vsub.s32 0, %v36
  %v38 = vrot.slane %v33, %v37
  %v40 = vadd.f32 %v29, %v38
  %v41 = vadd.f32 %v30, %v38
  %v42 = vadd.f32 %v31, %v38
  %v43 = vadd.f32 %v32, %v38
  %v44 = vmax.f32 %v40, 0.0
  %v45 = vmax.f32 %v41, 0.0
  %v46 = vmax.f32 %v42, 0.0
  %v47 = vmax.f32 %v43, 0.0
  %v48 = vpack.c.bf16 %v45, %v44
  %v49 = vpack.c.bf16 %v47, %v46
  %v50 = vld [vmem:[%s3] sm:$0x3]
  %vm51 = vcmask 31744
  %v53 = vsel %vm51, %v48, 0
  %v56 = vsel %vm51, %v49, 0
  %vm58 = vcmask 1041408
  %v60 = vsel %vm58, %v50, 0
  %62 = vmatprep.subr.bf16.mxu0 0
  %63 = vmatpush1.bf16.msra.mxu0 %v60
  %64 = vmatprep.subr.bf16.mxu0 0
  %65 = vmatpush1.bf16.msra.mxu0 0
  %66 = vmatprep.subr.bf16.mxu0 0
  %67 = vmatpush1.bf16.msra.mxu0 0
  %68 = vmatprep.subr.bf16.mxu0 0
  %69 = vmatpush1.bf16.msra.mxu0 0
  %70 = vmatprep.subr.bf16.mxu0 0
  %71 = vmatpush1.bf16.msra.mxu0 0
  %72 = vmatprep.subr.bf16.mxu0 0
  %73 = vmatpush1.bf16.msra.mxu0 0
  %74 = vmatprep.subr.bf16.mxu0 0
  %75 = vmatpush1.bf16.msra.mxu0 0
  %76 = vmatprep.subr.bf16.mxu0 0
  %77 = vmatpush1.bf16.msra.mxu0 0
  %78 = vmatprep.subr.bf16.mxu0 0
  %79 = vmatpush1.bf16.msra.mxu0 0
  %80 = vmatprep.subr.bf16.mxu0 0
  %81 = vmatpush1.bf16.msra.mxu0 0
  %82 = vmatprep.subr.bf16.mxu0 0
  %83 = vmatpush1.bf16.msra.mxu0 0
  %84 = vmatprep.subr.bf16.mxu0 0
  %85 = vmatpush1.bf16.msra.mxu0 0
  %86 = vmatprep.subr.bf16.mxu0 0
  %87 = vmatpush1.bf16.msra.mxu0 0
  %88 = vmatprep.subr.bf16.mxu0 0
  %89 = vmatpush1.bf16.msra.mxu0 0
  %90 = vmatprep.subr.bf16.mxu0 0
  %91 = vmatpush1.bf16.msra.mxu0 0
  %92 = vmatprep.subr.bf16.mxu0 0
  %93 = vmatpush1.bf16.msra.mxu0 0
  %94 = vmatprep.mubr.bf16.mxu0 0
  %95 = vmatmul.mubr.bf16.gmra.mrb[0].mxu0 %v53
  %v96 = vpop.f32.mrb[0].mxu0
  %v97 = vadd.f32 0.0, %v96
  %v98 = vpop.f32.mrb[0].mxu0
  %v99 = vpop.f32.mrb[0].mxu0
  %v100 = vadd.f32 0.0, %v99
  %v101 = vpop.f32.mrb[0].mxu0
  %102 = vmatprep.mubr.bf16.mxu0 0
  %103 = vmatmul.mubr.bf16.gmra.mrb[0].mxu0 %v56
  %v104 = vpop.f32.mrb[0].mxu0
  %v105 = vadd.f32 0.0, %v104
  %v106 = vpop.f32.mrb[0].mxu0
  %v107 = vpop.f32.mrb[0].mxu0
  %v108 = vadd.f32 0.0, %v107
  %v109 = vpop.f32.mrb[0].mxu0
  %110 = vdwg.mxu0
  %v111 = vpack.c.bf16 %v100, %v97
  %v112 = vpack.c.bf16 %v108, %v105
  %v115 = vunpack.c.l.b16 %v111
  %v116 = vunpack.c.h.b16 %v111
  %v117 = vunpack.c.l.b16 %v112
  %v118 = vunpack.c.h.b16 %v112
  %v119 = vpack.c.b16 %v115, %v115
  %v120 = vpack.c.b16 %v116, %v116
  %v121 = vpack.c.b16 %v117, %v117
  %v122 = vpack.c.b16 %v118, %v118
  %127 = vst [vmem:[%s4] sm:$0xf] %v119
  %128 = vst [vmem:[%s4 + $0x4] sm:$0xf] %v120
  %129 = vst [vmem:[%s4 + $0x8] sm:$0xf] %v121
  %130 = vst [vmem:[%s4 + $0xc] sm:$0xf] %v122
  // Predicated region
  $region18: #{dappm_forward.13} parent=0 // pred_check
    _
  $region19: #{dappm_forward.13} parent=0 // pred_check_branch
    %132 = sbr.rel (0) target = $region21
  $region20: #{dappm_forward.13} parent=0 // pred_region
    _
  $region21: #{dappm_forward.13} parent=0 // pred_fallthru
    _
  // Predicated region
  $region22: #{dappm_forward.13} parent=0 // pred_check
    _
  $region23: #{dappm_forward.13} parent=0 // pred_check_branch
    %134 = sbr.rel (0) target = $region25
  $region24: #{dappm_forward.13} parent=0 // pred_region
    _
  $region25: #{dappm_forward.13} parent=0 // pred_fallthru
    _

// kernel: dappm_forward.11
$region0: #{dappm_forward.11}
  #allocation0 [shape = 'u32[]', space=smem, size = 0x4, offset = 0x4, fixed_abs, tag = 'smem constant byte address 0x4 - core index']
  #allocation1 [shape = 'u32[144,128]{1,0:T(1,128)}', space=vmem, size = 0x12000, scoped, tag = 'internal scratch']
  %s0 = inlined_call_operand.vmem [shape: f32[128,4], index: 0, kind: input, shape index: {}]
  %s1 = inlined_call_operand.vmem [shape: f32[1,4], index: 1, kind: input, shape index: {}]
  %s2 = inlined_call_operand.vmem [shape: f32[1,4], index: 2, kind: input, shape index: {}]
  %s3 = inlined_call_operand.vmem [shape: bf16[4,128], index: 3, kind: input, shape index: {}]
  %s4 = inlined_call_operand.vmem [shape: bf16[128,128], index: 4, kind: output, shape index: {}]
  %s5 = sld [smem:[#allocation0]]
  $region26: #{dappm_forward.11} parent=0
    _
  %s7 = ssub.s32 1, %s5
  %s8 = scalar_select 0, %s7, %s5
  // Predicated region
  $region2: #{dappm_forward.11} parent=0 // pred_check
    _
  $region3: #{dappm_forward.11} parent=0 // pred_check_branch
    %10 = sbr.rel (0) target = $region5
  $region4: #{dappm_forward.11} parent=0 // pred_region
    _
  $region5: #{dappm_forward.11} parent=0 // pred_fallthru
    _
  // Predicated region
  $region6: #{dappm_forward.11} parent=0 // pred_check
    _
  $region7: #{dappm_forward.11} parent=0 // pred_check_branch
    %12 = sbr.rel (0) target = $region9
  $region8: #{dappm_forward.11} parent=0 // pred_region
    _
  $region9: #{dappm_forward.11} parent=0 // pred_fallthru
    _
  // Predicated region
  $region10: #{dappm_forward.11} parent=0 // pred_check
    _
  $region11: #{dappm_forward.11} parent=0 // pred_check_branch
    %14 = sbr.rel (0) target = $region13
  $region12: #{dappm_forward.11} parent=0 // pred_region
    _
  $region13: #{dappm_forward.11} parent=0 // pred_fallthru
    _
  // Predicated region
  $region14: #{dappm_forward.11} parent=0 // pred_check
    _
  $region15: #{dappm_forward.11} parent=0 // pred_check_branch
    %16 = sbr.rel (0) target = $region17
  $region16: #{dappm_forward.11} parent=0 // pred_region
    _
  $region17: #{dappm_forward.11} parent=0 // pred_fallthru
    _
  %v18 = vld [vmem:[%s0] sm:$0xff]
  %v19 = vld [vmem:[%s0 + $0x8] sm:$0xff]
  %v20 = vld [vmem:[%s0 + $0x10] sm:$0xff]
  %v21 = vld [vmem:[%s0 + $0x18] sm:$0xff]
  %v22 = vld [vmem:[%s0 + $0x20] sm:$0xff]
  %v23 = vld [vmem:[%s0 + $0x28] sm:$0xff]
  %v24 = vld [vmem:[%s0 + $0x30] sm:$0xff]
  %v25 = vld [vmem:[%s0 + $0x38] sm:$0xff]
  %v26 = vld [vmem:[%s0 + $0x40] sm:$0xff]
  %v27 = vld [vmem:[%s0 + $0x48] sm:$0xff]
  %v28 = vld [vmem:[%s0 + $0x50] sm:$0xff]
  %v29 = vld [vmem:[%s0 + $0x58] sm:$0xff]
  %v30 = vld [vmem:[%s0 + $0x60] sm:$0xff]
  %v31 = vld [vmem:[%s0 + $0x68] sm:$0xff]
  %v32 = vld [vmem:[%s0 + $0x70] sm:$0xff]
  %v33 = vld [vmem:[%s0 + $0x78] sm:$0xff]
  %v34 = vld [vmem:[%s1] sm:$0x1]
  %v36 = vlaneseq
  %v37 = vshrl.u32 %v36, 7
  %v38 = vsub.s32 0, %v37
  %v39 = vrot.slane %v34, %v38
  %v41 = vmul.f32 %v18, %v39
  %v42 = vmul.f32 %v19, %v39
  %v43 = vmul.f32 %v20, %v39
  %v44 = vmul.f32 %v21, %v39
  %v45 = vmul.f32 %v22, %v39
  %v46 = vmul.f32 %v23, %v39
  %v47 = vmul.f32 %v24, %v39
  %v48 = vmul.f32 %v25, %v39
  %v49 = vmul.f32 %v26, %v39
  %v50 = vmul.f32 %v27, %v39
  %v51 = vmul.f32 %v28, %v39
  %v52 = vmul.f32 %v29, %v39
  %v53 = vmul.f32 %v30, %v39
  %v54 = vmul.f32 %v31, %v39
  %v55 = vmul.f32 %v32, %v39
  %v56 = vmul.f32 %v33, %v39
  %v57 = vld [vmem:[%s2] sm:$0x1]
  %v59 = vlaneseq
  %v60 = vshrl.u32 %v59, 7
  %v61 = vsub.s32 0, %v60
  %v62 = vrot.slane %v57, %v61
  %v64 = vadd.f32 %v41, %v62
  %v65 = vadd.f32 %v42, %v62
  %v66 = vadd.f32 %v43, %v62
  %v67 = vadd.f32 %v44, %v62
  %v68 = vadd.f32 %v45, %v62
  %v69 = vadd.f32 %v46, %v62
  %v70 = vadd.f32 %v47, %v62
  %v71 = vadd.f32 %v48, %v62
  %v72 = vadd.f32 %v49, %v62
  %v73 = vadd.f32 %v50, %v62
  %v74 = vadd.f32 %v51, %v62
  %v75 = vadd.f32 %v52, %v62
  %v76 = vadd.f32 %v53, %v62
  %v77 = vadd.f32 %v54, %v62
  %v78 = vadd.f32 %v55, %v62
  %v79 = vadd.f32 %v56, %v62
  %v80 = vmax.f32 %v64, 0.0
  %v81 = vmax.f32 %v65, 0.0
  %v82 = vmax.f32 %v66, 0.0
  %v83 = vmax.f32 %v67, 0.0
  %v84 = vmax.f32 %v68, 0.0
  %v85 = vmax.f32 %v69, 0.0
  %v86 = vmax.f32 %v70, 0.0
  %v87 = vmax.f32 %v71, 0.0
  %v88 = vmax.f32 %v72, 0.0
  %v89 = vmax.f32 %v73, 0.0
  %v90 = vmax.f32 %v74, 0.0
  %v91 = vmax.f32 %v75, 0.0
  %v92 = vmax.f32 %v76, 0.0
  %v93 = vmax.f32 %v77, 0.0
  %v94 = vmax.f32 %v78, 0.0
  %v95 = vmax.f32 %v79, 0.0
  %v96 = vpack.c.bf16 %v81, %v80
  %v97 = vpack.c.bf16 %v83, %v82
  %v98 = vpack.c.bf16 %v85, %v84
  %v99 = vpack.c.bf16 %v87, %v86
  %v100 = vpack.c.bf16 %v89, %v88
  %v101 = vpack.c.bf16 %v91, %v90
  %v102 = vpack.c.bf16 %v93, %v92
  %v103 = vpack.c.bf16 %v95, %v94
  %v104 = vld [vmem:[%s3] sm:$0x3]
  %vm105 = vcmask 31744
  %v107 = vsel %vm105, %v96, 0
  %v110 = vsel %vm105, %v97, 0
  %v113 = vsel %vm105, %v98, 0
  %v116 = vsel %vm105, %v99, 0
  %v119 = vsel %vm105, %v100, 0
  %v122 = vsel %vm105, %v101, 0
  %v125 = vsel %vm105, %v102, 0
  %v128 = vsel %vm105, %v103, 0
  %vm130 = vcmask 1041408
  %v132 = vsel %vm130, %v104, 0
  %134 = vmatprep.subr.bf16.mxu0 0
  %135 = vmatpush1.bf16.msra.mxu0 %v132
  %136 = vmatprep.subr.bf16.mxu0 0
  %137 = vmatpush1.bf16.msra.mxu0 0
  %138 = vmatprep.subr.bf16.mxu0 0
  %139 = vmatpush1.bf16.msra.mxu0 0
  %140 = vmatprep.subr.bf16.mxu0 0
  %141 = vmatpush1.bf16.msra.mxu0 0
  %142 = vmatprep.subr.bf16.mxu0 0
  %143 = vmatpush1.bf16.msra.mxu0 0
  %144 = vmatprep.subr.bf16.mxu0 0
  %145 = vmatpush1.bf16.msra.mxu0 0
  %146 = vmatprep.subr.bf16.mxu0 0
  %147 = vmatpush1.bf16.msra.mxu0 0
  %148 = vmatprep.subr.bf16.mxu0 0
  %149 = vmatpush1.bf16.msra.mxu0 0
  %150 = vmatprep.subr.bf16.mxu0 0
  %151 = vmatpush1.bf16.msra.mxu0 0
  %152 = vmatprep.subr.bf16.mxu0 0
  %153 = vmatpush1.bf16.msra.mxu0 0
  %154 = vmatprep.subr.bf16.mxu0 0
  %155 = vmatpush1.bf16.msra.mxu0 0
  %156 = vmatprep.subr.bf16.mxu0 0
  %157 = vmatpush1.bf16.msra.mxu0 0
  %158 = vmatprep.subr.bf16.mxu0 0
  %159 = vmatpush1.bf16.msra.mxu0 0
  %160 = vmatprep.subr.bf16.mxu0 0
  %161 = vmatpush1.bf16.msra.mxu0 0
  %162 = vmatprep.subr.bf16.mxu0 0
  %163 = vmatpush1.bf16.msra.mxu0 0
  %164 = vmatprep.subr.bf16.mxu0 0
  %165 = vmatpush1.bf16.msra.mxu0 0
  %166 = vmatprep.mubr.bf16.mxu0 0
  %167 = vmatmul.mubr.bf16.gmra.mrb[0].mxu0 %v107
  %v168 = vpop.f32.mrb[0].mxu0
  %v169 = vadd.f32 0.0, %v168
  %v170 = vpop.f32.mrb[0].mxu0
  %v171 = vpop.f32.mrb[0].mxu0
  %v172 = vadd.f32 0.0, %v171
  %v173 = vpop.f32.mrb[0].mxu0
  %174 = vmatprep.mubr.bf16.mxu0 0
  %175 = vmatmul.mubr.bf16.gmra.mrb[0].mxu0 %v110
  %v176 = vpop.f32.mrb[0].mxu0
  %v177 = vadd.f32 0.0, %v176
  %v178 = vpop.f32.mrb[0].mxu0
  %v179 = vpop.f32.mrb[0].mxu0
  %v180 = vadd.f32 0.0, %v179
  %v181 = vpop.f32.mrb[0].mxu0
  %182 = vmatprep.mubr.bf16.mxu0 0
  %183 = vmatmul.mubr.bf16.gmra.mrb[0].mxu0 %v113
  %v184 = vpop.f32.mrb[0].mxu0
  %v185 = vadd.f32 0.0, %v184
  %v186 = vpop.f32.mrb[0].mxu0
  %v187 = vpop.f32.mrb[0].mxu0
  %v188 = vadd.f32 0.0, %v187
  %v189 = vpop.f32.mrb[0].mxu0
  %190 = vmatprep.mubr.bf16.mxu0 0
  %191 = vmatmul.mubr.bf16.gmra.mrb[0].mxu0 %v116
  %v192 = vpop.f32.mrb[0].mxu0
  %v193 = vadd.f32 0.0, %v192
  %v194 = vpop.f32.mrb[0].mxu0
  %v195 = vpop.f32.mrb[0].mxu0
  %v196 = vadd.f32 0.0, %v195
  %v197 = vpop.f32.mrb[0].mxu0
  %198 = vmatprep.mubr.bf16.mxu0 0
  %199 = vmatmul.mubr.bf16.gmra.mrb[0].mxu0 %v119
  %v200 = vpop.f32.mrb[0].mxu0
  %v201 = vadd.f32 0.0, %v200
  %v202 = vpop.f32.mrb[0].mxu0
  %v203 = vpop.f32.mrb[0].mxu0
  %v204 = vadd.f32 0.0, %v203
  %v205 = vpop.f32.mrb[0].mxu0
  %206 = vmatprep.mubr.bf16.mxu0 0
  %207 = vmatmul.mubr.bf16.gmra.mrb[0].mxu0 %v122
  %v208 = vpop.f32.mrb[0].mxu0
  %v209 = vadd.f32 0.0, %v208
  %v210 = vpop.f32.mrb[0].mxu0
  %v211 = vpop.f32.mrb[0].mxu0
  %v212 = vadd.f32 0.0, %v211
  %v213 = vpop.f32.mrb[0].mxu0
  %214 = vmatprep.mubr.bf16.mxu0 0
  %215 = vmatmul.mubr.bf16.gmra.mrb[0].mxu0 %v125
  %v216 = vpop.f32.mrb[0].mxu0
  %v217 = vadd.f32 0.0, %v216
  %v218 = vpop.f32.mrb[0].mxu0
  %v219 = vpop.f32.mrb[0].mxu0
  %v220 = vadd.f32 0.0, %v219
  %v221 = vpop.f32.mrb[0].mxu0
  %222 = vmatprep.mubr.bf16.mxu0 0
  %223 = vmatmul.mubr.bf16.gmra.mrb[0].mxu0 %v128
  %v224 = vpop.f32.mrb[0].mxu0
  %v225 = vadd.f32 0.0, %v224
  %v226 = vpop.f32.mrb[0].mxu0
  %v227 = vpop.f32.mrb[0].mxu0
  %v228 = vadd.f32 0.0, %v227
  %v229 = vpop.f32.mrb[0].mxu0
  %230 = vdwg.mxu0
  %v231 = vpack.c.bf16 %v172, %v169
  %v232 = vpack.c.bf16 %v180, %v177
  %v233 = vpack.c.bf16 %v188, %v185
  %v234 = vpack.c.bf16 %v196, %v193
  %v235 = vpack.c.bf16 %v204, %v201
  %v236 = vpack.c.bf16 %v212, %v209
  %v237 = vpack.c.bf16 %v220, %v217
  %v238 = vpack.c.bf16 %v228, %v225
  %v247 = vunpack.c.l.b16 %v231
  %v248 = vunpack.c.h.b16 %v231
  %v249 = vunpack.c.l.b16 %v232
  %v250 = vunpack.c.h.b16 %v232
  %v251 = vunpack.c.l.b16 %v233
  %v252 = vunpack.c.h.b16 %v233
  %v253 = vunpack.c.l.b16 %v234
  %v254 = vunpack.c.h.b16 %v234
  %v255 = vunpack.c.l.b16 %v235
  %v256 = vunpack.c.h.b16 %v235
  %v257 = vunpack.c.l.b16 %v236
  %v258 = vunpack.c.h.b16 %v236
  %v259 = vunpack.c.l.b16 %v237
  %v260 = vunpack.c.h.b16 %v237
  %v261 = vunpack.c.l.b16 %v238
  %v262 = vunpack.c.h.b16 %v238
  %v263 = vpack.c.b16 %v247, %v247
  %v264 = vpack.c.b16 %v248, %v248
  %v265 = vpack.c.b16 %v249, %v249
  %v266 = vpack.c.b16 %v250, %v250
  %v267 = vpack.c.b16 %v251, %v251
  %v268 = vpack.c.b16 %v252, %v252
  %v269 = vpack.c.b16 %v253, %v253
  %v270 = vpack.c.b16 %v254, %v254
  %v271 = vpack.c.b16 %v255, %v255
  %v272 = vpack.c.b16 %v256, %v256
  %v273 = vpack.c.b16 %v257, %v257
  %v274 = vpack.c.b16 %v258, %v258
  %v275 = vpack.c.b16 %v259, %v259
  %v276 = vpack.c.b16 %v260, %v260
  %v277 = vpack.c.b16 %v261, %v261
  %v278 = vpack.c.b16 %v262, %v262
  %295 = vst [vmem:[%s4] sm:$0xf] %v263
  %296 = vst [vmem:[%s4 + $0x4] sm:$0xf] %v264
  %297 = vst [vmem:[%s4 + $0x8] sm:$0xf] %v265
  %298 = vst [vmem:[%s4 + $0xc] sm:$0xf] %v266
  %299 = vst [vmem:[%s4 + $0x10] sm:$0xf] %v267
  %300 = vst [vmem:[%s4 + $0x14] sm:$0xf] %v268
  %301 = vst [vmem:[%s4 + $0x18] sm:$0xf] %v269
  %302 = vst [vmem:[%s4 + $0x1c] sm:$0xf] %v270
  %303 = vst [vmem:[%s4 + $0x20] sm:$0xf] %v271
  %304 = vst [vmem:[%s4 + $0x24] sm:$0xf] %v272
  %305 = vst [vmem:[%s4 + $0x28] sm:$0xf] %v273
  %306 = vst [vmem:[%s4 + $0x2c] sm:$0xf] %v274
  %307 = vst [vmem:[%s4 + $0x30] sm:$0xf] %v275
  %308 = vst [vmem:[%s4 + $0x34] sm:$0xf] %v276
  %309 = vst [vmem:[%s4 + $0x38] sm:$0xf] %v277
  %310 = vst [vmem:[%s4 + $0x3c] sm:$0xf] %v278
  // Predicated region
  $region18: #{dappm_forward.11} parent=0 // pred_check
    _
  $region19: #{dappm_forward.11} parent=0 // pred_check_branch
    %312 = sbr.rel (0) target = $region21
  $region20: #{dappm_forward.11} parent=0 // pred_region
    _
  $region21: #{dappm_forward.11} parent=0 // pred_fallthru
    _
  // Predicated region
  $region22: #{dappm_forward.11} parent=0 // pred_check
    _
  $region23: #{dappm_forward.11} parent=0 // pred_check_branch
    %314 = sbr.rel (0) target = $region25
  $region24: #{dappm_forward.11} parent=0 // pred_region
    _
  $region25: #{dappm_forward.11} parent=0 // pred_fallthru
    _

// kernel: dappm_forward.15
$region0: #{dappm_forward.15}
  #allocation0 [shape = 'u32[]', space=smem, size = 0x4, offset = 0x4, fixed_abs, tag = 'smem constant byte address 0x4 - core index']
  #allocation1 [shape = 'u32[144,128]{1,0:T(1,128)}', space=vmem, size = 0x12000, scoped, tag = 'internal scratch']
  %s0 = inlined_call_operand.vmem [shape: f32[8,4], index: 0, kind: input, shape index: {}]
  %s1 = inlined_call_operand.vmem [shape: f32[1,4], index: 1, kind: input, shape index: {}]
  %s2 = inlined_call_operand.vmem [shape: f32[1,4], index: 2, kind: input, shape index: {}]
  %s3 = inlined_call_operand.vmem [shape: bf16[4,128], index: 3, kind: input, shape index: {}]
  %s4 = inlined_call_operand.vmem [shape: bf16[8,128], index: 4, kind: output, shape index: {}]
  %s5 = sld [smem:[#allocation0]]
  $region26: #{dappm_forward.15} parent=0
    _
  %s7 = ssub.s32 1, %s5
  %s8 = scalar_select 0, %s7, %s5
  // Predicated region
  $region2: #{dappm_forward.15} parent=0 // pred_check
    _
  $region3: #{dappm_forward.15} parent=0 // pred_check_branch
    %10 = sbr.rel (0) target = $region5
  $region4: #{dappm_forward.15} parent=0 // pred_region
    _
  $region5: #{dappm_forward.15} parent=0 // pred_fallthru
    _
  // Predicated region
  $region6: #{dappm_forward.15} parent=0 // pred_check
    _
  $region7: #{dappm_forward.15} parent=0 // pred_check_branch
    %12 = sbr.rel (0) target = $region9
  $region8: #{dappm_forward.15} parent=0 // pred_region
    _
  $region9: #{dappm_forward.15} parent=0 // pred_fallthru
    _
  // Predicated region
  $region10: #{dappm_forward.15} parent=0 // pred_check
    _
  $region11: #{dappm_forward.15} parent=0 // pred_check_branch
    %14 = sbr.rel (0) target = $region13
  $region12: #{dappm_forward.15} parent=0 // pred_region
    _
  $region13: #{dappm_forward.15} parent=0 // pred_fallthru
    _
  // Predicated region
  $region14: #{dappm_forward.15} parent=0 // pred_check
    _
  $region15: #{dappm_forward.15} parent=0 // pred_check_branch
    %16 = sbr.rel (0) target = $region17
  $region16: #{dappm_forward.15} parent=0 // pred_region
    _
  $region17: #{dappm_forward.15} parent=0 // pred_fallthru
    _
  %v18 = vld [vmem:[%s0] sm:$0xff]
  %v19 = vld [vmem:[%s1] sm:$0x1]
  %v21 = vlaneseq
  %v22 = vshrl.u32 %v21, 7
  %v23 = vsub.s32 0, %v22
  %v24 = vrot.slane %v19, %v23
  %v26 = vmul.f32 %v18, %v24
  %v27 = vld [vmem:[%s2] sm:$0x1]
  %v29 = vlaneseq
  %v30 = vshrl.u32 %v29, 7
  %v31 = vsub.s32 0, %v30
  %v32 = vrot.slane %v27, %v31
  %v34 = vadd.f32 %v26, %v32
  %v35 = vmax.f32 %v34, 0.0
  %v36 = vpack.c.bf16 %v35, %v35
  %v37 = vld [vmem:[%s3] sm:$0x3]
  %vm38 = vcmask 31744
  %v40 = vsel %vm38, %v36, 0
  %vm42 = vcmask 1041408
  %v44 = vsel %vm42, %v37, 0
  %46 = vmatprep.subr.bf16.mxu0 0
  %47 = vmatpush1.bf16.msra.mxu0 %v44
  %48 = vmatprep.subr.bf16.mxu0 0
  %49 = vmatpush1.bf16.msra.mxu0 0
  %50 = vmatprep.subr.bf16.mxu0 0
  %51 = vmatpush1.bf16.msra.mxu0 0
  %52 = vmatprep.subr.bf16.mxu0 0
  %53 = vmatpush1.bf16.msra.mxu0 0
  %54 = vmatprep.subr.bf16.mxu0 0
  %55 = vmatpush1.bf16.msra.mxu0 0
  %56 = vmatprep.subr.bf16.mxu0 0
  %57 = vmatpush1.bf16.msra.mxu0 0
  %58 = vmatprep.subr.bf16.mxu0 0
  %59 = vmatpush1.bf16.msra.mxu0 0
  %60 = vmatprep.subr.bf16.mxu0 0
  %61 = vmatpush1.bf16.msra.mxu0 0
  %62 = vmatprep.subr.bf16.mxu0 0
  %63 = vmatpush1.bf16.msra.mxu0 0
  %64 = vmatprep.subr.bf16.mxu0 0
  %65 = vmatpush1.bf16.msra.mxu0 0
  %66 = vmatprep.subr.bf16.mxu0 0
  %67 = vmatpush1.bf16.msra.mxu0 0
  %68 = vmatprep.subr.bf16.mxu0 0
  %69 = vmatpush1.bf16.msra.mxu0 0
  %70 = vmatprep.subr.bf16.mxu0 0
  %71 = vmatpush1.bf16.msra.mxu0 0
  %72 = vmatprep.subr.bf16.mxu0 0
  %73 = vmatpush1.bf16.msra.mxu0 0
  %74 = vmatprep.subr.bf16.mxu0 0
  %75 = vmatpush1.bf16.msra.mxu0 0
  %76 = vmatprep.subr.bf16.mxu0 0
  %77 = vmatpush1.bf16.msra.mxu0 0
  %78 = vmatprep.mubr.bf16.mxu0 0
  %79 = vmatmul.mubr.bf16.gmra.mrb[0].mxu0 %v40
  %v80 = vpop.f32.mrb[0].mxu0
  %v81 = vadd.f32 0.0, %v80
  %v82 = vpop.f32.mrb[0].mxu0
  %v83 = vpop.f32.mrb[0].mxu0
  %v84 = vpop.f32.mrb[0].mxu0
  %85 = vdwg.mxu0
  %v86 = vpack.c.bf16 %v81, %v81
  %87 = vst [vmem:[%s4] sm:$0xf] %v86
  // Predicated region
  $region18: #{dappm_forward.15} parent=0 // pred_check
    _
  $region19: #{dappm_forward.15} parent=0 // pred_check_branch
    %89 = sbr.rel (0) target = $region21
  $region20: #{dappm_forward.15} parent=0 // pred_region
    _
  $region21: #{dappm_forward.15} parent=0 // pred_fallthru
    _
  // Predicated region
  $region22: #{dappm_forward.15} parent=0 // pred_check
    _
  $region23: #{dappm_forward.15} parent=0 // pred_check_branch
    %91 = sbr.rel (0) target = $region25
  $region24: #{dappm_forward.15} parent=0 // pred_region
    _
  $region25: #{dappm_forward.15} parent=0 // pred_fallthru
    _

// kernel: dappm_forward.10
$region0: #{dappm_forward.10}
  #allocation0 [shape = 'u32[]', space=smem, size = 0x4, offset = 0x4, fixed_abs, tag = 'smem constant byte address 0x4 - core index']
  #allocation1 [shape = 'u32[144,128]{1,0:T(1,128)}', space=vmem, size = 0x12000, scoped, tag = 'internal scratch']
  %s0 = inlined_call_operand.vmem [shape: f32[512,4], index: 0, kind: input, shape index: {}]
  %s1 = inlined_call_operand.vmem [shape: f32[1,4], index: 1, kind: input, shape index: {}]
  %s2 = inlined_call_operand.vmem [shape: f32[1,4], index: 2, kind: input, shape index: {}]
  %s3 = inlined_call_operand.vmem [shape: bf16[4,128], index: 3, kind: input, shape index: {}]
  %s4 = inlined_call_operand.vmem [shape: f32[1,4], index: 4, kind: input, shape index: {}]
  %s5 = inlined_call_operand.vmem [shape: f32[1,4], index: 5, kind: input, shape index: {}]
  %s6 = inlined_call_operand.vmem [shape: bf16[4,128], index: 6, kind: input, shape index: {}]
  %s7 = inlined_call_operand.vmem [shape: bf16[512,128], index: 7, kind: output, shape index: {0}]
  %s8 = inlined_call_operand.vmem [shape: bf16[512,128], index: 8, kind: output, shape index: {1}]
  %9 = xla_tuple %s7, %s8
  %s10 = sld [smem:[#allocation0]]
  $region46: #{dappm_forward.10} parent=0
    _
  %s12 = ssub.s32 1, %s10
  %s13 = scalar_select 0, %s12, %s10
  // Predicated region
  $region2: #{dappm_forward.10} parent=0 // pred_check
    _
  $region3: #{dappm_forward.10} parent=0 // pred_check_branch
    %15 = sbr.rel (0) target = $region5
  $region4: #{dappm_forward.10} parent=0 // pred_region
    _
  $region5: #{dappm_forward.10} parent=0 // pred_fallthru
    _
  // Predicated region
  $region6: #{dappm_forward.10} parent=0 // pred_check
    _
  $region7: #{dappm_forward.10} parent=0 // pred_check_branch
    %17 = sbr.rel (0) target = $region9
  $region8: #{dappm_forward.10} parent=0 // pred_region
    _
  $region9: #{dappm_forward.10} parent=0 // pred_fallthru
    _
  // Predicated region
  $region10: #{dappm_forward.10} parent=0 // pred_check
    _
  $region11: #{dappm_forward.10} parent=0 // pred_check_branch
    %19 = sbr.rel (0) target = $region13
  $region12: #{dappm_forward.10} parent=0 // pred_region
    _
  $region13: #{dappm_forward.10} parent=0 // pred_fallthru
    _
  // Predicated region
  $region14: #{dappm_forward.10} parent=0 // pred_check
    _
  $region15: #{dappm_forward.10} parent=0 // pred_check_branch
    %21 = sbr.rel (0) target = $region17
  $region16: #{dappm_forward.10} parent=0 // pred_region
    _
  $region17: #{dappm_forward.10} parent=0 // pred_fallthru
    _
  // Predicated region
  $region18: #{dappm_forward.10} parent=0 // pred_check
    _
  $region19: #{dappm_forward.10} parent=0 // pred_check_branch
    %23 = sbr.rel (0) target = $region21
  $region20: #{dappm_forward.10} parent=0 // pred_region
    _
  $region21: #{dappm_forward.10} parent=0 // pred_fallthru
    _
  // Predicated region
  $region22: #{dappm_forward.10} parent=0 // pred_check
    _
  $region23: #{dappm_forward.10} parent=0 // pred_check_branch
    %25 = sbr.rel (0) target = $region25
  $region24: #{dappm_forward.10} parent=0 // pred_region
    _
  $region25: #{dappm_forward.10} parent=0 // pred_fallthru
    _
  // Predicated region
  $region26: #{dappm_forward.10} parent=0 // pred_check
    _
  $region27: #{dappm_forward.10} parent=0 // pred_check_branch
    %27 = sbr.rel (0) target = $region29
  $region28: #{dappm_forward.10} parent=0 // pred_region
    _
  $region29: #{dappm_forward.10} parent=0 // pred_fallthru
    _
  %v29 = vld [vmem:[%s0] sm:$0xff]
  %v30 = vld [vmem:[%s0 + $0x8] sm:$0xff]
  %v31 = vld [vmem:[%s0 + $0x10] sm:$0xff]
  %v32 = vld [vmem:[%s0 + $0x18] sm:$0xff]
  %v33 = vld [vmem:[%s0 + $0x20] sm:$0xff]
  %v34 = vld [vmem:[%s0 + $0x28] sm:$0xff]
  %v35 = vld [vmem:[%s0 + $0x30] sm:$0xff]
  %v36 = vld [vmem:[%s0 + $0x38] sm:$0xff]
  %v37 = vld [vmem:[%s0 + $0x40] sm:$0xff]
  %v38 = vld [vmem:[%s0 + $0x48] sm:$0xff]
  %v39 = vld [vmem:[%s0 + $0x50] sm:$0xff]
  %v40 = vld [vmem:[%s0 + $0x58] sm:$0xff]
  %v41 = vld [vmem:[%s0 + $0x60] sm:$0xff]
  %v42 = vld [vmem:[%s0 + $0x68] sm:$0xff]
  %v43 = vld [vmem:[%s0 + $0x70] sm:$0xff]
  %v44 = vld [vmem:[%s0 + $0x78] sm:$0xff]
  %v45 = vld [vmem:[%s0 + $0x80] sm:$0xff]
  %v46 = vld [vmem:[%s0 + $0x88] sm:$0xff]
  %v47 = vld [vmem:[%s0 + $0x90] sm:$0xff]
  %v48 = vld [vmem:[%s0 + $0x98] sm:$0xff]
  %v49 = vld [vmem:[%s0 + $0xa0] sm:$0xff]
  %v50 = vld [vmem:[%s0 + $0xa8] sm:$0xff]
  %v51 = vld [vmem:[%s0 + $0xb0] sm:$0xff]
  %v52 = vld [vmem:[%s0 + $0xb8] sm:$0xff]
  %v53 = vld [vmem:[%s0 + $0xc0] sm:$0xff]
  %v54 = vld [vmem:[%s0 + $0xc8] sm:$0xff]
  %v55 = vld [vmem:[%s0 + $0xd0] sm:$0xff]
  %v56 = vld [vmem:[%s0 + $0xd8] sm:$0xff]
  %v57 = vld [vmem:[%s0 + $0xe0] sm:$0xff]
  %v58 = vld [vmem:[%s0 + $0xe8] sm:$0xff]
  %v59 = vld [vmem:[%s0 + $0xf0] sm:$0xff]
  %v60 = vld [vmem:[%s0 + $0xf8] sm:$0xff]
  %v61 = vld [vmem:[%s0 + $0x100] sm:$0xff]
  %v62 = vld [vmem:[%s0 + $0x108] sm:$0xff]
  %v63 = vld [vmem:[%s0 + $0x110] sm:$0xff]
  %v64 = vld [vmem:[%s0 + $0x118] sm:$0xff]
  %v65 = vld [vmem:[%s0 + $0x120] sm:$0xff]
  %v66 = vld [vmem:[%s0 + $0x128] sm:$0xff]
  %v67 = vld [vmem:[%s0 + $0x130] sm:$0xff]
  %v68 = vld [vmem:[%s0 + $0x138] sm:$0xff]
  %v69 = vld [vmem:[%s0 + $0x140] sm:$0xff]
  %v70 = vld [vmem:[%s0 + $0x148] sm:$0xff]
  %v71 = vld [vmem:[%s0 + $0x150] sm:$0xff]
  %v72 = vld [vmem:[%s0 + $0x158] sm:$0xff]
  %v73 = vld [vmem:[%s0 + $0x160] sm:$0xff]
  %v74 = vld [vmem:[%s0 + $0x168] sm:$0xff]
  %v75 = vld [vmem:[%s0 + $0x170] sm:$0xff]
  %v76 = vld [vmem:[%s0 + $0x178] sm:$0xff]
  %v77 = vld [vmem:[%s0 + $0x180] sm:$0xff]
  %v78 = vld [vmem:[%s0 + $0x188] sm:$0xff]
  %v79 = vld [vmem:[%s0 + $0x190] sm:$0xff]
  %v80 = vld [vmem:[%s0 + $0x198] sm:$0xff]
  %v81 = vld [vmem:[%s0 + $0x1a0] sm:$0xff]
  %v82 = vld [vmem:[%s0 + $0x1a8] sm:$0xff]
  %v83 = vld [vmem:[%s0 + $0x1b0] sm:$0xff]
  %v84 = vld [vmem:[%s0 + $0x1b8] sm:$0xff]
  %v85 = vld [vmem:[%s0 + $0x1c0] sm:$0xff]
  %v86 = vld [vmem:[%s0 + $0x1c8] sm:$0xff]
  %v87 = vld [vmem:[%s0 + $0x1d0] sm:$0xff]
  %v88 = vld [vmem:[%s0 + $0x1d8] sm:$0xff]
  %v89 = vld [vmem:[%s0 + $0x1e0] sm:$0xff]
  %v90 = vld [vmem:[%s0 + $0x1e8] sm:$0xff]
  %v91 = vld [vmem:[%s0 + $0x1f0] sm:$0xff]
  %v92 = vld [vmem:[%s0 + $0x1f8] sm:$0xff]
  %v93 = vld [vmem:[%s1] sm:$0x1]
  %v95 = vlaneseq
  %v96 = vshrl.u32 %v95, 7
  %v97 = vsub.s32 0, %v96
  %v98 = vrot.slane %v93, %v97
  %v100 = vmul.f32 %v29, %v98
  %v101 = vmul.f32 %v30, %v98
  %v102 = vmul.f32 %v31, %v98
  %v103 = vmul.f32 %v32, %v98
  %v104 = vmul.f32 %v33, %v98
  %v105 = vmul.f32 %v34, %v98
  %v106 = vmul.f32 %v35, %v98
  %v107 = vmul.f32 %v36, %v98
  %v108 = vmul.f32 %v37, %v98
  %v109 = vmul.f32 %v38, %v98
  %v110 = vmul.f32 %v39, %v98
  %v111 = vmul.f32 %v40, %v98
  %v112 = vmul.f32 %v41, %v98
  %v113 = vmul.f32 %v42, %v98
  %v114 = vmul.f32 %v43, %v98
  %v115 = vmul.f32 %v44, %v98
  %v116 = vmul.f32 %v45, %v98
  %v117 = vmul.f32 %v46, %v98
  %v118 = vmul.f32 %v47, %v98
  %v119 = vmul.f32 %v48, %v98
  %v120 = vmul.f32 %v49, %v98
  %v121 = vmul.f32 %v50, %v98
  %v122 = vmul.f32 %v51, %v98
  %v123 = vmul.f32 %v52, %v98
  %v124 = vmul.f32 %v53, %v98
  %v125 = vmul.f32 %v54, %v98
  %v126 = vmul.f32 %v55, %v98
  %v127 = vmul.f32 %v56, %v98
  %v128 = vmul.f32 %v57, %v98
  %v129 = vmul.f32 %v58, %v98
  %v130 = vmul.f32 %v59, %v98
  %v131 = vmul.f32 %v60, %v98
  %v132 = vmul.f32 %v61, %v98
  %v133 = vmul.f32 %v62, %v98
  %v134 = vmul.f32 %v63, %v98
  %v135 = vmul.f32 %v64, %v98
  %v136 = vmul.f32 %v65, %v98
  %v137 = vmul.f32 %v66, %v98
  %v138 = vmul.f32 %v67, %v98
  %v139 = vmul.f32 %v68, %v98
  %v140 = vmul.f32 %v69, %v98
  %v141 = vmul.f32 %v70, %v98
  %v142 = vmul.f32 %v71, %v98
  %v143 = vmul.f32 %v72, %v98
  %v144 = vmul.f32 %v73, %v98
  %v145 = vmul.f32 %v74, %v98
  %v146 = vmul.f32 %v75, %v98
  %v147 = vmul.f32 %v76, %v98
  %v148 = vmul.f32 %v77, %v98
  %v149 = vmul.f32 %v78, %v98
  %v150 = vmul.f32 %v79, %v98
  %v151 = vmul.f32 %v80, %v98
  %v152 = vmul.f32 %v81, %v98
  %v153 = vmul.f32 %v82, %v98
  %v154 = vmul.f32 %v83, %v98
  %v155 = vmul.f32 %v84, %v98
  %v156 = vmul.f32 %v85, %v98
  %v157 = vmul.f32 %v86, %v98
  %v158 = vmul.f32 %v87, %v98
  %v159 = vmul.f32 %v88, %v98
  %v160 = vmul.f32 %v89, %v98
  %v161 = vmul.f32 %v90, %v98
  %v162 = vmul.f32 %v91, %v98
  %v163 = vmul.f32 %v92, %v98
  %v164 = vld [vmem:[%s2] sm:$0x1]
  %v166 = vlaneseq
  %v167 = vshrl.u32 %v166, 7
  %v168 = vsub.s32 0, %v167
  %v169 = vrot.slane %v164, %v168
  %v171 = vadd.f32 %v100, %v169
  %v172 = vadd.f32 %v101, %v169
  %v173 = vadd.f32 %v102, %v169
  %v174 = vadd.f32 %v103, %v169
  %v175 = vadd.f32 %v104, %v169
  %v176 = vadd.f32 %v105, %v169
  %v177 = vadd.f32 %v106, %v169
  %v178 = vadd.f32 %v107, %v169
  %v179 = vadd.f32 %v108, %v169
  %v180 = vadd.f32 %v109, %v169
  %v181 = vadd.f32 %v110, %v169
  %v182 = vadd.f32 %v111, %v169
  %v183 = vadd.f32 %v112, %v169
  %v184 = vadd.f32 %v113, %v169
  %v185 = vadd.f32 %v114, %v169
  %v186 = vadd.f32 %v115, %v169
  %v187 = vadd.f32 %v116, %v169
  %v188 = vadd.f32 %v117, %v169
  %v189 = vadd.f32 %v118, %v169
  %v190 = vadd.f32 %v119, %v169
  %v191 = vadd.f32 %v120, %v169
  %v192 = vadd.f32 %v121, %v169
  %v193 = vadd.f32 %v122, %v169
  %v194 = vadd.f32 %v123, %v169
  %v195 = vadd.f32 %v124, %v169
  %v196 = vadd.f32 %v125, %v169
  %v197 = vadd.f32 %v126, %v169
  %v198 = vadd.f32 %v127, %v169
  %v199 = vadd.f32 %v128, %v169
  %v200 = vadd.f32 %v129, %v169
  %v201 = vadd.f32 %v130, %v169
  %v202 = vadd.f32 %v131, %v169
  %v203 = vadd.f32 %v132, %v169
  %v204 = vadd.f32 %v133, %v169
  %v205 = vadd.f32 %v134, %v169
  %v206 = vadd.f32 %v135, %v169
  %v207 = vadd.f32 %v136, %v169
  %v208 = vadd.f32 %v137, %v169
  %v209 = vadd.f32 %v138, %v169
  %v210 = vadd.f32 %v139, %v169
  %v211 = vadd.f32 %v140, %v169
  %v212 = vadd.f32 %v141, %v169
  %v213 = vadd.f32 %v142, %v169
  %v214 = vadd.f32 %v143, %v169
  %v215 = vadd.f32 %v144, %v169
  %v216 = vadd.f32 %v145, %v169
  %v217 = vadd.f32 %v146, %v169
  %v218 = vadd.f32 %v147, %v169
  %v219 = vadd.f32 %v148, %v169
  %v220 = vadd.f32 %v149, %v169
  %v221 = vadd.f32 %v150, %v169
  %v222 = vadd.f32 %v151, %v169
  %v223 = vadd.f32 %v152, %v169
  %v224 = vadd.f32 %v153, %v169
  %v225 = vadd.f32 %v154, %v169
  %v226 = vadd.f32 %v155, %v169
  %v227 = vadd.f32 %v156, %v169
  %v228 = vadd.f32 %v157, %v169
  %v229 = vadd.f32 %v158, %v169
  %v230 = vadd.f32 %v159, %v169
  %v231 = vadd.f32 %v160, %v169
  %v232 = vadd.f32 %v161, %v169
  %v233 = vadd.f32 %v162, %v169
  %v234 = vadd.f32 %v163, %v169
  %v235 = vmax.f32 %v171, 0.0
  %v236 = vmax.f32 %v172, 0.0
  %v237 = vmax.f32 %v173, 0.0
  %v238 = vmax.f32 %v174, 0.0
  %v239 = vmax.f32 %v175, 0.0
  %v240 = vmax.f32 %v176, 0.0
  %v241 = vmax.f32 %v177, 0.0
  %v242 = vmax.f32 %v178, 0.0
  %v243 = vmax.f32 %v179, 0.0
  %v244 = vmax.f32 %v180, 0.0
  %v245 = vmax.f32 %v181, 0.0
  %v246 = vmax.f32 %v182, 0.0
  %v247 = vmax.f32 %v183, 0.0
  %v248 = vmax.f32 %v184, 0.0
  %v249 = vmax.f32 %v185, 0.0
  %v250 = vmax.f32 %v186, 0.0
  %v251 = vmax.f32 %v187, 0.0
  %v252 = vmax.f32 %v188, 0.0
  %v253 = vmax.f32 %v189, 0.0
  %v254 = vmax.f32 %v190, 0.0
  %v255 = vmax.f32 %v191, 0.0
  %v256 = vmax.f32 %v192, 0.0
  %v257 = vmax.f32 %v193, 0.0
  %v258 = vmax.f32 %v194, 0.0
  %v259 = vmax.f32 %v195, 0.0
  %v260 = vmax.f32 %v196, 0.0
  %v261 = vmax.f32 %v197, 0.0
  %v262 = vmax.f32 %v198, 0.0
  %v263 = vmax.f32 %v199, 0.0
  %v264 = vmax.f32 %v200, 0.0
  %v265 = vmax.f32 %v201, 0.0
  %v266 = vmax.f32 %v202, 0.0
  %v267 = vmax.f32 %v203, 0.0
  %v268 = vmax.f32 %v204, 0.0
  %v269 = vmax.f32 %v205, 0.0
  %v270 = vmax.f32 %v206, 0.0
  %v271 = vmax.f32 %v207, 0.0
  %v272 = vmax.f32 %v208, 0.0
  %v273 = vmax.f32 %v209, 0.0
  %v274 = vmax.f32 %v210, 0.0
  %v275 = vmax.f32 %v211, 0.0
  %v276 = vmax.f32 %v212, 0.0
  %v277 = vmax.f32 %v213, 0.0
  %v278 = vmax.f32 %v214, 0.0
  %v279 = vmax.f32 %v215, 0.0
  %v280 = vmax.f32 %v216, 0.0
  %v281 = vmax.f32 %v217, 0.0
  %v282 = vmax.f32 %v218, 0.0
  %v283 = vmax.f32 %v219, 0.0
  %v284 = vmax.f32 %v220, 0.0
  %v285 = vmax.f32 %v221, 0.0
  %v286 = vmax.f32 %v222, 0.0
  %v287 = vmax.f32 %v223, 0.0
  %v288 = vmax.f32 %v224, 0.0
  %v289 = vmax.f32 %v225, 0.0
  %v290 = vmax.f32 %v226, 0.0
  %v291 = vmax.f32 %v227, 0.0
  %v292 = vmax.f32 %v228, 0.0
  %v293 = vmax.f32 %v229, 0.0
  %v294 = vmax.f32 %v230, 0.0
  %v295 = vmax.f32 %v231, 0.0
  %v296 = vmax.f32 %v232, 0.0
  %v297 = vmax.f32 %v233, 0.0
  %v298 = vmax.f32 %v234, 0.0
  %v299 = vpack.c.bf16 %v236, %v235
  %v300 = vpack.c.bf16 %v238, %v237
  %v301 = vpack.c.bf16 %v240, %v239
  %v302 = vpack.c.bf16 %v242, %v241
  %v303 = vpack.c.bf16 %v244, %v243
  %v304 = vpack.c.bf16 %v246, %v245
  %v305 = vpack.c.bf16 %v248, %v247
  %v306 = vpack.c.bf16 %v250, %v249
  %v307 = vpack.c.bf16 %v252, %v251
  %v308 = vpack.c.bf16 %v254, %v253
  %v309 = vpack.c.bf16 %v256, %v255
  %v310 = vpack.c.bf16 %v258, %v257
  %v311 = vpack.c.bf16 %v260, %v259
  %v312 = vpack.c.bf16 %v262, %v261
  %v313 = vpack.c.bf16 %v264, %v263
  %v314 = vpack.c.bf16 %v266, %v265
  %v315 = vpack.c.bf16 %v268, %v267
  %v316 = vpack.c.bf16 %v270, %v269
  %v317 = vpack.c.bf16 %v272, %v271
  %v318 = vpack.c.bf16 %v274, %v273
  %v319 = vpack.c.bf16 %v276, %v275
  %v320 = vpack.c.bf16 %v278, %v277
  %v321 = vpack.c.bf16 %v280, %v279
  %v322 = vpack.c.bf16 %v282, %v281
  %v323 = vpack.c.bf16 %v284, %v283
  %v324 = vpack.c.bf16 %v286, %v285
  %v325 = vpack.c.bf16 %v288, %v287
  %v326 = vpack.c.bf16 %v290, %v289
  %v327 = vpack.c.bf16 %v292, %v291
  %v328 = vpack.c.bf16 %v294, %v293
  %v329 = vpack.c.bf16 %v296, %v295
  %v330 = vpack.c.bf16 %v298, %v297
  %v331 = vld [vmem:[%s4] sm:$0x1]
  %v333 = vlaneseq
  %v334 = vshrl.u32 %v333, 7
  %v335 = vsub.s32 0, %v334
  %v336 = vrot.slane %v331, %v335
  %v338 = vmul.f32 %v29, %v336
  %v339 = vmul.f32 %v30, %v336
  %v340 = vmul.f32 %v31, %v336
  %v341 = vmul.f32 %v32, %v336
  %v342 = vmul.f32 %v33, %v336
  %v343 = vmul.f32 %v34, %v336
  %v344 = vmul.f32 %v35, %v336
  %v345 = vmul.f32 %v36, %v336
  %v346 = vmul.f32 %v37, %v336
  %v347 = vmul.f32 %v38, %v336
  %v348 = vmul.f32 %v39, %v336
  %v349 = vmul.f32 %v40, %v336
  %v350 = vmul.f32 %v41, %v336
  %v351 = vmul.f32 %v42, %v336
  %v352 = vmul.f32 %v43, %v336
  %v353 = vmul.f32 %v44, %v336
  %v354 = vmul.f32 %v45, %v336
  %v355 = vmul.f32 %v46, %v336
  %v356 = vmul.f32 %v47, %v336
  %v357 = vmul.f32 %v48, %v336
  %v358 = vmul.f32 %v49, %v336
  %v359 = vmul.f32 %v50, %v336
  %v360 = vmul.f32 %v51, %v336
  %v361 = vmul.f32 %v52, %v336
  %v362 = vmul.f32 %v53, %v336
  %v363 = vmul.f32 %v54, %v336
  %v364 = vmul.f32 %v55, %v336
  %v365 = vmul.f32 %v56, %v336
  %v366 = vmul.f32 %v57, %v336
  %v367 = vmul.f32 %v58, %v336
  %v368 = vmul.f32 %v59, %v336
  %v369 = vmul.f32 %v60, %v336
  %v370 = vmul.f32 %v61, %v336
  %v371 = vmul.f32 %v62, %v336
  %v372 = vmul.f32 %v63, %v336
  %v373 = vmul.f32 %v64, %v336
  %v374 = vmul.f32 %v65, %v336
  %v375 = vmul.f32 %v66, %v336
  %v376 = vmul.f32 %v67, %v336
  %v377 = vmul.f32 %v68, %v336
  %v378 = vmul.f32 %v69, %v336
  %v379 = vmul.f32 %v70, %v336
  %v380 = vmul.f32 %v71, %v336
  %v381 = vmul.f32 %v72, %v336
  %v382 = vmul.f32 %v73, %v336
  %v383 = vmul.f32 %v74, %v336
  %v384 = vmul.f32 %v75, %v336
  %v385 = vmul.f32 %v76, %v336
  %v386 = vmul.f32 %v77, %v336
  %v387 = vmul.f32 %v78, %v336
  %v388 = vmul.f32 %v79, %v336
  %v389 = vmul.f32 %v80, %v336
  %v390 = vmul.f32 %v81, %v336
  %v391 = vmul.f32 %v82, %v336
  %v392 = vmul.f32 %v83, %v336
  %v393 = vmul.f32 %v84, %v336
  %v394 = vmul.f32 %v85, %v336
  %v395 = vmul.f32 %v86, %v336
  %v396 = vmul.f32 %v87, %v336
  %v397 = vmul.f32 %v88, %v336
  %v398 = vmul.f32 %v89, %v336
  %v399 = vmul.f32 %v90, %v336
  %v400 = vmul.f32 %v91, %v336
  %v401 = vmul.f32 %v92, %v336
  %v402 = vld [vmem:[%s5] sm:$0x1]
  %v404 = vlaneseq
  %v405 = vshrl.u32 %v404, 7
  %v406 = vsub.s32 0, %v405
  %v407 = vrot.slane %v402, %v406
  %v409 = vadd.f32 %v338, %v407
  %v410 = vadd.f32 %v339, %v407
  %v411 = vadd.f32 %v340, %v407
  %v412 = vadd.f32 %v341, %v407
  %v413 = vadd.f32 %v342, %v407
  %v414 = vadd.f32 %v343, %v407
  %v415 = vadd.f32 %v344, %v407
  %v416 = vadd.f32 %v345, %v407
  %v417 = vadd.f32 %v346, %v407
  %v418 = vadd.f32 %v347, %v407
  %v419 = vadd.f32 %v348, %v407
  %v420 = vadd.f32 %v349, %v407
  %v421 = vadd.f32 %v350, %v407
  %v422 = vadd.f32 %v351, %v407
  %v423 = vadd.f32 %v352, %v407
  %v424 = vadd.f32 %v353, %v407
  %v425 = vadd.f32 %v354, %v407
  %v426 = vadd.f32 %v355, %v407
  %v427 = vadd.f32 %v356, %v407
  %v428 = vadd.f32 %v357, %v407
  %v429 = vadd.f32 %v358, %v407
  %v430 = vadd.f32 %v359, %v407
  %v431 = vadd.f32 %v360, %v407
  %v432 = vadd.f32 %v361, %v407
  %v433 = vadd.f32 %v362, %v407
  %v434 = vadd.f32 %v363, %v407
  %v435 = vadd.f32 %v364, %v407
  %v436 = vadd.f32 %v365, %v407
  %v437 = vadd.f32 %v366, %v407
  %v438 = vadd.f32 %v367, %v407
  %v439 = vadd.f32 %v368, %v407
  %v440 = vadd.f32 %v369, %v407
  %v441 = vadd.f32 %v370, %v407
  %v442 = vadd.f32 %v371, %v407
  %v443 = vadd.f32 %v372, %v407
  %v444 = vadd.f32 %v373, %v407
  %v445 = vadd.f32 %v374, %v407
  %v446 = vadd.f32 %v375, %v407
  %v447 = vadd.f32 %v376, %v407
  %v448 = vadd.f32 %v377, %v407
  %v449 = vadd.f32 %v378, %v407
  %v450 = vadd.f32 %v379, %v407
  %v451 = vadd.f32 %v380, %v407
  %v452 = vadd.f32 %v381, %v407
  %v453 = vadd.f32 %v382, %v407
  %v454 = vadd.f32 %v383, %v407
  %v455 = vadd.f32 %v384, %v407
  %v456 = vadd.f32 %v385, %v407
  %v457 = vadd.f32 %v386, %v407
  %v458 = vadd.f32 %v387, %v407
  %v459 = vadd.f32 %v388, %v407
  %v460 = vadd.f32 %v389, %v407
  %v461 = vadd.f32 %v390, %v407
  %v462 = vadd.f32 %v391, %v407
  %v463 = vadd.f32 %v392, %v407
  %v464 = vadd.f32 %v393, %v407
  %v465 = vadd.f32 %v394, %v407
  %v466 = vadd.f32 %v395, %v407
  %v467 = vadd.f32 %v396, %v407
  %v468 = vadd.f32 %v397, %v407
  %v469 = vadd.f32 %v398, %v407
  %v470 = vadd.f32 %v399, %v407
  %v471 = vadd.f32 %v400, %v407
  %v472 = vadd.f32 %v401, %v407
  %v473 = vmax.f32 %v409, 0.0
  %v474 = vmax.f32 %v410, 0.0
  %v475 = vmax.f32 %v411, 0.0
  %v476 = vmax.f32 %v412, 0.0
  %v477 = vmax.f32 %v413, 0.0
  %v478 = vmax.f32 %v414, 0.0
  %v479 = vmax.f32 %v415, 0.0
  %v480 = vmax.f32 %v416, 0.0
  %v481 = vmax.f32 %v417, 0.0
  %v482 = vmax.f32 %v418, 0.0
  %v483 = vmax.f32 %v419, 0.0
  %v484 = vmax.f32 %v420, 0.0
  %v485 = vmax.f32 %v421, 0.0
  %v486 = vmax.f32 %v422, 0.0
  %v487 = vmax.f32 %v423, 0.0
  %v488 = vmax.f32 %v424, 0.0
  %v489 = vmax.f32 %v425, 0.0
  %v490 = vmax.f32 %v426, 0.0
  %v491 = vmax.f32 %v427, 0.0
  %v492 = vmax.f32 %v428, 0.0
  %v493 = vmax.f32 %v429, 0.0
  %v494 = vmax.f32 %v430, 0.0
  %v495 = vmax.f32 %v431, 0.0
  %v496 = vmax.f32 %v432, 0.0
  %v497 = vmax.f32 %v433, 0.0
  %v498 = vmax.f32 %v434, 0.0
  %v499 = vmax.f32 %v435, 0.0
  %v500 = vmax.f32 %v436, 0.0
  %v501 = vmax.f32 %v437, 0.0
  %v502 = vmax.f32 %v438, 0.0
  %v503 = vmax.f32 %v439, 0.0
  %v504 = vmax.f32 %v440, 0.0
  %v505 = vmax.f32 %v441, 0.0
  %v506 = vmax.f32 %v442, 0.0
  %v507 = vmax.f32 %v443, 0.0
  %v508 = vmax.f32 %v444, 0.0
  %v509 = vmax.f32 %v445, 0.0
  %v510 = vmax.f32 %v446, 0.0
  %v511 = vmax.f32 %v447, 0.0
  %v512 = vmax.f32 %v448, 0.0
  %v513 = vmax.f32 %v449, 0.0
  %v514 = vmax.f32 %v450, 0.0
  %v515 = vmax.f32 %v451, 0.0
  %v516 = vmax.f32 %v452, 0.0
  %v517 = vmax.f32 %v453, 0.0
  %v518 = vmax.f32 %v454, 0.0
  %v519 = vmax.f32 %v455, 0.0
  %v520 = vmax.f32 %v456, 0.0
  %v521 = vmax.f32 %v457, 0.0
  %v522 = vmax.f32 %v458, 0.0
  %v523 = vmax.f32 %v459, 0.0
  %v524 = vmax.f32 %v460, 0.0
  %v525 = vmax.f32 %v461, 0.0
  %v526 = vmax.f32 %v462, 0.0
  %v527 = vmax.f32 %v463, 0.0
  %v528 = vmax.f32 %v464, 0.0
  %v529 = vmax.f32 %v465, 0.0
  %v530 = vmax.f32 %v466, 0.0
  %v531 = vmax.f32 %v467, 0.0
  %v532 = vmax.f32 %v468, 0.0
  %v533 = vmax.f32 %v469, 0.0
  %v534 = vmax.f32 %v470, 0.0
  %v535 = vmax.f32 %v471, 0.0
  %v536 = vmax.f32 %v472, 0.0
  %v537 = vpack.c.bf16 %v474, %v473
  %v538 = vpack.c.bf16 %v476, %v475
  %v539 = vpack.c.bf16 %v478, %v477
  %v540 = vpack.c.bf16 %v480, %v479
  %v541 = vpack.c.bf16 %v482, %v481
  %v542 = vpack.c.bf16 %v484, %v483
  %v543 = vpack.c.bf16 %v486, %v485
  %v544 = vpack.c.bf16 %v488, %v487
  %v545 = vpack.c.bf16 %v490, %v489
  %v546 = vpack.c.bf16 %v492, %v491
  %v547 = vpack.c.bf16 %v494, %v493
  %v548 = vpack.c.bf16 %v496, %v495
  %v549 = vpack.c.bf16 %v498, %v497
  %v550 = vpack.c.bf16 %v500, %v499
  %v551 = vpack.c.bf16 %v502, %v501
  %v552 = vpack.c.bf16 %v504, %v503
  %v553 = vpack.c.bf16 %v506, %v505
  %v554 = vpack.c.bf16 %v508, %v507
  %v555 = vpack.c.bf16 %v510, %v509
  %v556 = vpack.c.bf16 %v512, %v511
  %v557 = vpack.c.bf16 %v514, %v513
  %v558 = vpack.c.bf16 %v516, %v515
  %v559 = vpack.c.bf16 %v518, %v517
  %v560 = vpack.c.bf16 %v520, %v519
  %v561 = vpack.c.bf16 %v522, %v521
  %v562 = vpack.c.bf16 %v524, %v523
  %v563 = vpack.c.bf16 %v526, %v525
  %v564 = vpack.c.bf16 %v528, %v527
  %v565 = vpack.c.bf16 %v530, %v529
  %v566 = vpack.c.bf16 %v532, %v531
  %v567 = vpack.c.bf16 %v534, %v533
  %v568 = vpack.c.bf16 %v536, %v535
  %v569 = vld [vmem:[%s3] sm:$0x3]
  %vm570 = vcmask 31744
  %v572 = vsel %vm570, %v299, 0
  %v575 = vsel %vm570, %v300, 0
  %v578 = vsel %vm570, %v301, 0
  %v581 = vsel %vm570, %v302, 0
  %v584 = vsel %vm570, %v303, 0
  %v587 = vsel %vm570, %v304, 0
  %v590 = vsel %vm570, %v305, 0
  %v593 = vsel %vm570, %v306, 0
  %v596 = vsel %vm570, %v307, 0
  %v599 = vsel %vm570, %v308, 0
  %v602 = vsel %vm570, %v309, 0
  %v605 = vsel %vm570, %v310, 0
  %v608 = vsel %vm570, %v311, 0
  %v611 = vsel %vm570, %v312, 0
  %v614 = vsel %vm570, %v313, 0
  %v617 = vsel %vm570, %v314, 0
  %v620 = vsel %vm570, %v315, 0
  %v623 = vsel %vm570, %v316, 0
  %v626 = vsel %vm570, %v317, 0
  %v629 = vsel %vm570, %v318, 0
  %v632 = vsel %vm570, %v319, 0
  %v635 = vsel %vm570, %v320, 0
  %v638 = vsel %vm570, %v321, 0
  %v641 = vsel %vm570, %v322, 0
  %v644 = vsel %vm570, %v323, 0
  %v647 = vsel %vm570, %v324, 0
  %v650 = vsel %vm570, %v325, 0
  %v653 = vsel %vm570, %v326, 0
  %v656 = vsel %vm570, %v327, 0
  %v659 = vsel %vm570, %v328, 0
  %v662 = vsel %vm570, %v329, 0
  %v665 = vsel %vm570, %v330, 0
  %vm667 = vcmask 1041408
  %v669 = vsel %vm667, %v569, 0
  %671 = vmatprep.subr.bf16.mxu0 0
  %672 = vmatpush1.bf16.msra.mxu0 %v669
  %673 = vmatprep.subr.bf16.mxu0 0
  %674 = vmatpush1.bf16.msra.mxu0 0
  %675 = vmatprep.subr.bf16.mxu0 0
  %676 = vmatpush1.bf16.msra.mxu0 0
  %677 = vmatprep.subr.bf16.mxu0 0
  %678 = vmatpush1.bf16.msra.mxu0 0
  %679 = vmatprep.subr.bf16.mxu0 0
  %680 = vmatpush1.bf16.msra.mxu0 0
  %681 = vmatprep.subr.bf16.mxu0 0
  %682 = vmatpush1.bf16.msra.mxu0 0
  %683 = vmatprep.subr.bf16.mxu0 0
  %684 = vmatpush1.bf16.msra.mxu0 0
  %685 = vmatprep.subr.bf16.mxu0 0
  %686 = vmatpush1.bf16.msra.mxu0 0
  %687 = vmatprep.subr.bf16.mxu0 0
  %688 = vmatpush1.bf16.msra.mxu0 0
  %689 = vmatprep.subr.bf16.mxu0 0
  %690 = vmatpush1.bf16.msra.mxu0 0
  %691 = vmatprep.subr.bf16.mxu0 0
  %692 = vmatpush1.bf16.msra.mxu0 0
  %693 = vmatprep.subr.bf16.mxu0 0
  %694 = vmatpush1.bf16.msra.mxu0 0
  %695 = vmatprep.subr.bf16.mxu0 0
  %696 = vmatpush1.bf16.msra.mxu0 0
  %697 = vmatprep.subr.bf16.mxu0 0
  %698 = vmatpush1.bf16.msra.mxu0 0
  %699 = vmatprep.subr.bf16.mxu0 0
  %700 = vmatpush1.bf16.msra.mxu0 0
  %701 = vmatprep.subr.bf16.mxu0 0
  %702 = vmatpush1.bf16.msra.mxu0 0
  %703 = vmatprep.mubr.bf16.mxu0 0
  %704 = vmatmul.mubr.bf16.gmra.mrb[0].mxu0 %v572
  %v705 = vpop.f32.mrb[0].mxu0
  %v706 = vadd.f32 0.0, %v705
  %v707 = vpop.f32.mrb[0].mxu0
  %v708 = vpop.f32.mrb[0].mxu0
  %v709 = vadd.f32 0.0, %v708
  %v710 = vpop.f32.mrb[0].mxu0
  %711 = vmatprep.mubr.bf16.mxu0 0
  %712 = vmatmul.mubr.bf16.gmra.mrb[0].mxu0 %v575
  %v713 = vpop.f32.mrb[0].mxu0
  %v714 = vadd.f32 0.0, %v713
  %v715 = vpop.f32.mrb[0].mxu0
  %v716 = vpop.f32.mrb[0].mxu0
  %v717 = vadd.f32 0.0, %v716
  %v718 = vpop.f32.mrb[0].mxu0
  %719 = vmatprep.mubr.bf16.mxu0 0
  %720 = vmatmul.mubr.bf16.gmra.mrb[0].mxu0 %v578
  %v721 = vpop.f32.mrb[0].mxu0
  %v722 = vadd.f32 0.0, %v721
  %v723 = vpop.f32.mrb[0].mxu0
  %v724 = vpop.f32.mrb[0].mxu0
  %v725 = vadd.f32 0.0, %v724
  %v726 = vpop.f32.mrb[0].mxu0
  %727 = vmatprep.mubr.bf16.mxu0 0
  %728 = vmatmul.mubr.bf16.gmra.mrb[0].mxu0 %v581
  %v729 = vpop.f32.mrb[0].mxu0
  %v730 = vadd.f32 0.0, %v729
  %v731 = vpop.f32.mrb[0].mxu0
  %v732 = vpop.f32.mrb[0].mxu0
  %v733 = vadd.f32 0.0, %v732
  %v734 = vpop.f32.mrb[0].mxu0
  %735 = vmatprep.mubr.bf16.mxu0 0
  %736 = vmatmul.mubr.bf16.gmra.mrb[0].mxu0 %v584
  %v737 = vpop.f32.mrb[0].mxu0
  %v738 = vadd.f32 0.0, %v737
  %v739 = vpop.f32.mrb[0].mxu0
  %v740 = vpop.f32.mrb[0].mxu0
  %v741 = vadd.f32 0.0, %v740
  %v742 = vpop.f32.mrb[0].mxu0
  %743 = vmatprep.mubr.bf16.mxu0 0
  %744 = vmatmul.mubr.bf16.gmra.mrb[0].mxu0 %v587
  %v745 = vpop.f32.mrb[0].mxu0
  %v746 = vadd.f32 0.0, %v745
  %v747 = vpop.f32.mrb[0].mxu0
  %v748 = vpop.f32.mrb[0].mxu0
  %v749 = vadd.f32 0.0, %v748
  %v750 = vpop.f32.mrb[0].mxu0
  %751 = vmatprep.mubr.bf16.mxu0 0
  %752 = vmatmul.mubr.bf16.gmra.mrb[0].mxu0 %v590
  %v753 = vpop.f32.mrb[0].mxu0
  %v754 = vadd.f32 0.0, %v753
  %v755 = vpop.f32.mrb[0].mxu0
  %v756 = vpop.f32.mrb[0].mxu0
  %v757 = vadd.f32 0.0, %v756
  %v758 = vpop.f32.mrb[0].mxu0
  %759 = vmatprep.mubr.bf16.mxu0 0
  %760 = vmatmul.mubr.bf16.gmra.mrb[0].mxu0 %v593
  %v761 = vpop.f32.mrb[0].mxu0
  %v762 = vadd.f32 0.0, %v761
  %v763 = vpop.f32.mrb[0].mxu0
  %v764 = vpop.f32.mrb[0].mxu0
  %v765 = vadd.f32 0.0, %v764
  %v766 = vpop.f32.mrb[0].mxu0
  %767 = vmatprep.mubr.bf16.mxu0 0
  %768 = vmatmul.mubr.bf16.gmra.mrb[0].mxu0 %v596
  %v769 = vpop.f32.mrb[0].mxu0
  %v770 = vadd.f32 0.0, %v769
  %v771 = vpop.f32.mrb[0].mxu0
  %v772 = vpop.f32.mrb[0].mxu0
  %v773 = vadd.f32 0.0, %v772
  %v774 = vpop.f32.mrb[0].mxu0
  %775 = vmatprep.mubr.bf16.mxu0 0
  %776 = vmatmul.mubr.bf16.gmra.mrb[0].mxu0 %v599
  %v777 = vpop.f32.mrb[0].mxu0
  %v778 = vadd.f32 0.0, %v777
  %v779 = vpop.f32.mrb[0].mxu0
  %v780 = vpop.f32.mrb[0].mxu0
  %v781 = vadd.f32 0.0, %v780
  %v782 = vpop.f32.mrb[0].mxu0
  %783 = vmatprep.mubr.bf16.mxu0 0
  %784 = vmatmul.mubr.bf16.gmra.mrb[0].mxu0 %v602
  %v785 = vpop.f32.mrb[0].mxu0
  %v786 = vadd.f32 0.0, %v785
  %v787 = vpop.f32.mrb[0].mxu0
  %v788 = vpop.f32.mrb[0].mxu0
  %v789 = vadd.f32 0.0, %v788
  %v790 = vpop.f32.mrb[0].mxu0
  %791 = vmatprep.mubr.bf16.mxu0 0
  %792 = vmatmul.mubr.bf16.gmra.mrb[0].mxu0 %v605
  %v793 = vpop.f32.mrb[0].mxu0
  %v794 = vadd.f32 0.0, %v793
  %v795 = vpop.f32.mrb[0].mxu0
  %v796 = vpop.f32.mrb[0].mxu0
  %v797 = vadd.f32 0.0, %v796
  %v798 = vpop.f32.mrb[0].mxu0
  %799 = vmatprep.mubr.bf16.mxu0 0
  %800 = vmatmul.mubr.bf16.gmra.mrb[0].mxu0 %v608
  %v801 = vpop.f32.mrb[0].mxu0
  %v802 = vadd.f32 0.0, %v801
  %v803 = vpop.f32.mrb[0].mxu0
  %v804 = vpop.f32.mrb[0].mxu0
  %v805 = vadd.f32 0.0, %v804
  %v806 = vpop.f32.mrb[0].mxu0
  %807 = vmatprep.mubr.bf16.mxu0 0
  %808 = vmatmul.mubr.bf16.gmra.mrb[0].mxu0 %v611
  %v809 = vpop.f32.mrb[0].mxu0
  %v810 = vadd.f32 0.0, %v809
  %v811 = vpop.f32.mrb[0].mxu0
  %v812 = vpop.f32.mrb[0].mxu0
  %v813 = vadd.f32 0.0, %v812
  %v814 = vpop.f32.mrb[0].mxu0
  %815 = vmatprep.mubr.bf16.mxu0 0
  %816 = vmatmul.mubr.bf16.gmra.mrb[0].mxu0 %v614
  %v817 = vpop.f32.mrb[0].mxu0
  %v818 = vadd.f32 0.0, %v817
  %v819 = vpop.f32.mrb[0].mxu0
  %v820 = vpop.f32.mrb[0].mxu0
  %v821 = vadd.f32 0.0, %v820
  %v822 = vpop.f32.mrb[0].mxu0
  %823 = vmatprep.mubr.bf16.mxu0 0
  %824 = vmatmul.mubr.bf16.gmra.mrb[0].mxu0 %v617
  %v825 = vpop.f32.mrb[0].mxu0
  %v826 = vadd.f32 0.0, %v825
  %v827 = vpop.f32.mrb[0].mxu0
  %v828 = vpop.f32.mrb[0].mxu0
  %v829 = vadd.f32 0.0, %v828
  %v830 = vpop.f32.mrb[0].mxu0
  %831 = vmatprep.mubr.bf16.mxu0 0
  %832 = vmatmul.mubr.bf16.gmra.mrb[0].mxu0 %v620
  %v833 = vpop.f32.mrb[0].mxu0
  %v834 = vadd.f32 0.0, %v833
  %v835 = vpop.f32.mrb[0].mxu0
  %v836 = vpop.f32.mrb[0].mxu0
  %v837 = vadd.f32 0.0, %v836
  %v838 = vpop.f32.mrb[0].mxu0
  %839 = vmatprep.mubr.bf16.mxu0 0
  %840 = vmatmul.mubr.bf16.gmra.mrb[0].mxu0 %v623
  %v841 = vpop.f32.mrb[0].mxu0
  %v842 = vadd.f32 0.0, %v841
  %v843 = vpop.f32.mrb[0].mxu0
  %v844 = vpop.f32.mrb[0].mxu0
  %v845 = vadd.f32 0.0, %v844
  %v846 = vpop.f32.mrb[0].mxu0
  %847 = vmatprep.mubr.bf16.mxu0 0
  %848 = vmatmul.mubr.bf16.gmra.mrb[0].mxu0 %v626
  %v849 = vpop.f32.mrb[0].mxu0
  %v850 = vadd.f32 0.0, %v849
  %v851 = vpop.f32.mrb[0].mxu0
  %v852 = vpop.f32.mrb[0].mxu0
  %v853 = vadd.f32 0.0, %v852
  %v854 = vpop.f32.mrb[0].mxu0
  %855 = vmatprep.mubr.bf16.mxu0 0
  %856 = vmatmul.mubr.bf16.gmra.mrb[0].mxu0 %v629
  %v857 = vpop.f32.mrb[0].mxu0
  %v858 = vadd.f32 0.0, %v857
  %v859 = vpop.f32.mrb[0].mxu0
  %v860 = vpop.f32.mrb[0].mxu0
  %v861 = vadd.f32 0.0, %v860
  %v862 = vpop.f32.mrb[0].mxu0
  %863 = vmatprep.mubr.bf16.mxu0 0
  %864 = vmatmul.mubr.bf16.gmra.mrb[0].mxu0 %v632
  %v865 = vpop.f32.mrb[0].mxu0
  %v866 = vadd.f32 0.0, %v865
  %v867 = vpop.f32.mrb[0].mxu0
  %v868 = vpop.f32.mrb[0].mxu0
  %v869 = vadd.f32 0.0, %v868
  %v870 = vpop.f32.mrb[0].mxu0
  %871 = vmatprep.mubr.bf16.mxu0 0
  %872 = vmatmul.mubr.bf16.gmra.mrb[0].mxu0 %v635
  %v873 = vpop.f32.mrb[0].mxu0
  %v874 = vadd.f32 0.0, %v873
  %v875 = vpop.f32.mrb[0].mxu0
  %v876 = vpop.f32.mrb[0].mxu0
  %v877 = vadd.f32 0.0, %v876
  %v878 = vpop.f32.mrb[0].mxu0
  %879 = vmatprep.mubr.bf16.mxu0 0
  %880 = vmatmul.mubr.bf16.gmra.mrb[0].mxu0 %v638
  %v881 = vpop.f32.mrb[0].mxu0
  %v882 = vadd.f32 0.0, %v881
  %v883 = vpop.f32.mrb[0].mxu0
  %v884 = vpop.f32.mrb[0].mxu0
  %v885 = vadd.f32 0.0, %v884
  %v886 = vpop.f32.mrb[0].mxu0
  %887 = vmatprep.mubr.bf16.mxu0 0
  %888 = vmatmul.mubr.bf16.gmra.mrb[0].mxu0 %v641
  %v889 = vpop.f32.mrb[0].mxu0
  %v890 = vadd.f32 0.0, %v889
  %v891 = vpop.f32.mrb[0].mxu0
  %v892 = vpop.f32.mrb[0].mxu0
  %v893 = vadd.f32 0.0, %v892
  %v894 = vpop.f32.mrb[0].mxu0
  %895 = vmatprep.mubr.bf16.mxu0 0
  %896 = vmatmul.mubr.bf16.gmra.mrb[0].mxu0 %v644
  %v897 = vpop.f32.mrb[0].mxu0
  %v898 = vadd.f32 0.0, %v897
  %v899 = vpop.f32.mrb[0].mxu0
  %v900 = vpop.f32.mrb[0].mxu0
  %v901 = vadd.f32 0.0, %v900
  %v902 = vpop.f32.mrb[0].mxu0
  %903 = vmatprep.mubr.bf16.mxu0 0
  %904 = vmatmul.mubr.bf16.gmra.mrb[0].mxu0 %v647
  %v905 = vpop.f32.mrb[0].mxu0
  %v906 = vadd.f32 0.0, %v905
  %v907 = vpop.f32.mrb[0].mxu0
  %v908 = vpop.f32.mrb[0].mxu0
  %v909 = vadd.f32 0.0, %v908
  %v910 = vpop.f32.mrb[0].mxu0
  %911 = vmatprep.mubr.bf16.mxu0 0
  %912 = vmatmul.mubr.bf16.gmra.mrb[0].mxu0 %v650
  %v913 = vpop.f32.mrb[0].mxu0
  %v914 = vadd.f32 0.0, %v913
  %v915 = vpop.f32.mrb[0].mxu0
  %v916 = vpop.f32.mrb[0].mxu0
  %v917 = vadd.f32 0.0, %v916
  %v918 = vpop.f32.mrb[0].mxu0
  %919 = vmatprep.mubr.bf16.mxu0 0
  %920 = vmatmul.mubr.bf16.gmra.mrb[0].mxu0 %v653
  %v921 = vpop.f32.mrb[0].mxu0
  %v922 = vadd.f32 0.0, %v921
  %v923 = vpop.f32.mrb[0].mxu0
  %v924 = vpop.f32.mrb[0].mxu0
  %v925 = vadd.f32 0.0, %v924
  %v926 = vpop.f32.mrb[0].mxu0
  %927 = vmatprep.mubr.bf16.mxu0 0
  %928 = vmatmul.mubr.bf16.gmra.mrb[0].mxu0 %v656
  %v929 = vpop.f32.mrb[0].mxu0
  %v930 = vadd.f32 0.0, %v929
  %v931 = vpop.f32.mrb[0].mxu0
  %v932 = vpop.f32.mrb[0].mxu0
  %v933 = vadd.f32 0.0, %v932
  %v934 = vpop.f32.mrb[0].mxu0
  %935 = vmatprep.mubr.bf16.mxu0 0
  %936 = vmatmul.mubr.bf16.gmra.mrb[0].mxu0 %v659
  %v937 = vpop.f32.mrb[0].mxu0
  %v938 = vadd.f32 0.0, %v937
  %v939 = vpop.f32.mrb[0].mxu0
  %v940 = vpop.f32.mrb[0].mxu0
  %v941 = vadd.f32 0.0, %v940
  %v942 = vpop.f32.mrb[0].mxu0
  %943 = vmatprep.mubr.bf16.mxu0 0
  %944 = vmatmul.mubr.bf16.gmra.mrb[0].mxu0 %v662
  %v945 = vpop.f32.mrb[0].mxu0
  %v946 = vadd.f32 0.0, %v945
  %v947 = vpop.f32.mrb[0].mxu0
  %v948 = vpop.f32.mrb[0].mxu0
  %v949 = vadd.f32 0.0, %v948
  %v950 = vpop.f32.mrb[0].mxu0
  %951 = vmatprep.mubr.bf16.mxu0 0
  %952 = vmatmul.mubr.bf16.gmra.mrb[0].mxu0 %v665
  %v953 = vpop.f32.mrb[0].mxu0
  %v954 = vadd.f32 0.0, %v953
  %v955 = vpop.f32.mrb[0].mxu0
  %v956 = vpop.f32.mrb[0].mxu0
  %v957 = vadd.f32 0.0, %v956
  %v958 = vpop.f32.mrb[0].mxu0
  %959 = vdwg.mxu0
  %v960 = vpack.c.bf16 %v709, %v706
  %v961 = vpack.c.bf16 %v717, %v714
  %v962 = vpack.c.bf16 %v725, %v722
  %v963 = vpack.c.bf16 %v733, %v730
  %v964 = vpack.c.bf16 %v741, %v738
  %v965 = vpack.c.bf16 %v749, %v746
  %v966 = vpack.c.bf16 %v757, %v754
  %v967 = vpack.c.bf16 %v765, %v762
  %v968 = vpack.c.bf16 %v773, %v770
  %v969 = vpack.c.bf16 %v781, %v778
  %v970 = vpack.c.bf16 %v789, %v786
  %v971 = vpack.c.bf16 %v797, %v794
  %v972 = vpack.c.bf16 %v805, %v802
  %v973 = vpack.c.bf16 %v813, %v810
  %v974 = vpack.c.bf16 %v821, %v818
  %v975 = vpack.c.bf16 %v829, %v826
  %v976 = vpack.c.bf16 %v837, %v834
  %v977 = vpack.c.bf16 %v845, %v842
  %v978 = vpack.c.bf16 %v853, %v850
  %v979 = vpack.c.bf16 %v861, %v858
  %v980 = vpack.c.bf16 %v869, %v866
  %v981 = vpack.c.bf16 %v877, %v874
  %v982 = vpack.c.bf16 %v885, %v882
  %v983 = vpack.c.bf16 %v893, %v890
  %v984 = vpack.c.bf16 %v901, %v898
  %v985 = vpack.c.bf16 %v909, %v906
  %v986 = vpack.c.bf16 %v917, %v914
  %v987 = vpack.c.bf16 %v925, %v922
  %v988 = vpack.c.bf16 %v933, %v930
  %v989 = vpack.c.bf16 %v941, %v938
  %v990 = vpack.c.bf16 %v949, %v946
  %v991 = vpack.c.bf16 %v957, %v954
  %v1024 = vunpack.c.l.b16 %v960
  %v1025 = vunpack.c.h.b16 %v960
  %v1026 = vunpack.c.l.b16 %v961
  %v1027 = vunpack.c.h.b16 %v961
  %v1028 = vunpack.c.l.b16 %v962
  %v1029 = vunpack.c.h.b16 %v962
  %v1030 = vunpack.c.l.b16 %v963
  %v1031 = vunpack.c.h.b16 %v963
  %v1032 = vunpack.c.l.b16 %v964
  %v1033 = vunpack.c.h.b16 %v964
  %v1034 = vunpack.c.l.b16 %v965
  %v1035 = vunpack.c.h.b16 %v965
  %v1036 = vunpack.c.l.b16 %v966
  %v1037 = vunpack.c.h.b16 %v966
  %v1038 = vunpack.c.l.b16 %v967
  %v1039 = vunpack.c.h.b16 %v967
  %v1040 = vunpack.c.l.b16 %v968
  %v1041 = vunpack.c.h.b16 %v968
  %v1042 = vunpack.c.l.b16 %v969
  %v1043 = vunpack.c.h.b16 %v969
  %v1044 = vunpack.c.l.b16 %v970
  %v1045 = vunpack.c.h.b16 %v970
  %v1046 = vunpack.c.l.b16 %v971
  %v1047 = vunpack.c.h.b16 %v971
  %v1048 = vunpack.c.l.b16 %v972
  %v1049 = vunpack.c.h.b16 %v972
  %v1050 = vunpack.c.l.b16 %v973
  %v1051 = vunpack.c.h.b16 %v973
  %v1052 = vunpack.c.l.b16 %v974
  %v1053 = vunpack.c.h.b16 %v974
  %v1054 = vunpack.c.l.b16 %v975
  %v1055 = vunpack.c.h.b16 %v975
  %v1056 = vunpack.c.l.b16 %v976
  %v1057 = vunpack.c.h.b16 %v976
  %v1058 = vunpack.c.l.b16 %v977
  %v1059 = vunpack.c.h.b16 %v977
  %v1060 = vunpack.c.l.b16 %v978
  %v1061 = vunpack.c.h.b16 %v978
  %v1062 = vunpack.c.l.b16 %v979
  %v1063 = vunpack.c.h.b16 %v979
  %v1064 = vunpack.c.l.b16 %v980
  %v1065 = vunpack.c.h.b16 %v980
  %v1066 = vunpack.c.l.b16 %v981
  %v1067 = vunpack.c.h.b16 %v981
  %v1068 = vunpack.c.l.b16 %v982
  %v1069 = vunpack.c.h.b16 %v982
  %v1070 = vunpack.c.l.b16 %v983
  %v1071 = vunpack.c.h.b16 %v983
  %v1072 = vunpack.c.l.b16 %v984
  %v1073 = vunpack.c.h.b16 %v984
  %v1074 = vunpack.c.l.b16 %v985
  %v1075 = vunpack.c.h.b16 %v985
  %v1076 = vunpack.c.l.b16 %v986
  %v1077 = vunpack.c.h.b16 %v986
  %v1078 = vunpack.c.l.b16 %v987
  %v1079 = vunpack.c.h.b16 %v987
  %v1080 = vunpack.c.l.b16 %v988
  %v1081 = vunpack.c.h.b16 %v988
  %v1082 = vunpack.c.l.b16 %v989
  %v1083 = vunpack.c.h.b16 %v989
  %v1084 = vunpack.c.l.b16 %v990
  %v1085 = vunpack.c.h.b16 %v990
  %v1086 = vunpack.c.l.b16 %v991
  %v1087 = vunpack.c.h.b16 %v991
  %v1088 = vpack.c.b16 %v1024, %v1024
  %v1089 = vpack.c.b16 %v1025, %v1025
  %v1090 = vpack.c.b16 %v1026, %v1026
  %v1091 = vpack.c.b16 %v1027, %v1027
  %v1092 = vpack.c.b16 %v1028, %v1028
  %v1093 = vpack.c.b16 %v1029, %v1029
  %v1094 = vpack.c.b16 %v1030, %v1030
  %v1095 = vpack.c.b16 %v1031, %v1031
  %v1096 = vpack.c.b16 %v1032, %v1032
  %v1097 = vpack.c.b16 %v1033, %v1033
  %v1098 = vpack.c.b16 %v1034, %v1034
  %v1099 = vpack.c.b16 %v1035, %v1035
  %v1100 = vpack.c.b16 %v1036, %v1036
  %v1101 = vpack.c.b16 %v1037, %v1037
  %v1102 = vpack.c.b16 %v1038, %v1038
  %v1103 = vpack.c.b16 %v1039, %v1039
  %v1104 = vpack.c.b16 %v1040, %v1040
  %v1105 = vpack.c.b16 %v1041, %v1041
  %v1106 = vpack.c.b16 %v1042, %v1042
  %v1107 = vpack.c.b16 %v1043, %v1043
  %v1108 = vpack.c.b16 %v1044, %v1044
  %v1109 = vpack.c.b16 %v1045, %v1045
  %v1110 = vpack.c.b16 %v1046, %v1046
  %v1111 = vpack.c.b16 %v1047, %v1047
  %v1112 = vpack.c.b16 %v1048, %v1048
  %v1113 = vpack.c.b16 %v1049, %v1049
  %v1114 = vpack.c.b16 %v1050, %v1050
  %v1115 = vpack.c.b16 %v1051, %v1051
  %v1116 = vpack.c.b16 %v1052, %v1052
  %v1117 = vpack.c.b16 %v1053, %v1053
  %v1118 = vpack.c.b16 %v1054, %v1054
  %v1119 = vpack.c.b16 %v1055, %v1055
  %v1120 = vpack.c.b16 %v1056, %v1056
  %v1121 = vpack.c.b16 %v1057, %v1057
  %v1122 = vpack.c.b16 %v1058, %v1058
  %v1123 = vpack.c.b16 %v1059, %v1059
  %v1124 = vpack.c.b16 %v1060, %v1060
  %v1125 = vpack.c.b16 %v1061, %v1061
  %v1126 = vpack.c.b16 %v1062, %v1062
  %v1127 = vpack.c.b16 %v1063, %v1063
  %v1128 = vpack.c.b16 %v1064, %v1064
  %v1129 = vpack.c.b16 %v1065, %v1065
  %v1130 = vpack.c.b16 %v1066, %v1066
  %v1131 = vpack.c.b16 %v1067, %v1067
  %v1132 = vpack.c.b16 %v1068, %v1068
  %v1133 = vpack.c.b16 %v1069, %v1069
  %v1134 = vpack.c.b16 %v1070, %v1070
  %v1135 = vpack.c.b16 %v1071, %v1071
  %v1136 = vpack.c.b16 %v1072, %v1072
  %v1137 = vpack.c.b16 %v1073, %v1073
  %v1138 = vpack.c.b16 %v1074, %v1074
  %v1139 = vpack.c.b16 %v1075, %v1075
  %v1140 = vpack.c.b16 %v1076, %v1076
  %v1141 = vpack.c.b16 %v1077, %v1077
  %v1142 = vpack.c.b16 %v1078, %v1078
  %v1143 = vpack.c.b16 %v1079, %v1079
  %v1144 = vpack.c.b16 %v1080, %v1080
  %v1145 = vpack.c.b16 %v1081, %v1081
  %v1146 = vpack.c.b16 %v1082, %v1082
  %v1147 = vpack.c.b16 %v1083, %v1083
  %v1148 = vpack.c.b16 %v1084, %v1084
  %v1149 = vpack.c.b16 %v1085, %v1085
  %v1150 = vpack.c.b16 %v1086, %v1086
  %v1151 = vpack.c.b16 %v1087, %v1087
  %1216 = vst [vmem:[%s7] sm:$0xf] %v1088
  %1217 = vst [vmem:[%s7 + $0x4] sm:$0xf] %v1089
  %1218 = vst [vmem:[%s7 + $0x8] sm:$0xf] %v1090
  %1219 = vst [vmem:[%s7 + $0xc] sm:$0xf] %v1091
  %1220 = vst [vmem:[%s7 + $0x10] sm:$0xf] %v1092
  %1221 = vst [vmem:[%s7 + $0x14] sm:$0xf] %v1093
  %1222 = vst [vmem:[%s7 + $0x18] sm:$0xf] %v1094
  %1223 = vst [vmem:[%s7 + $0x1c] sm:$0xf] %v1095
  %1224 = vst [vmem:[%s7 + $0x20] sm:$0xf] %v1096
  %1225 = vst [vmem:[%s7 + $0x24] sm:$0xf] %v1097
  %1226 = vst [vmem:[%s7 + $0x28] sm:$0xf] %v1098
  %1227 = vst [vmem:[%s7 + $0x2c] sm:$0xf] %v1099
  %1228 = vst [vmem:[%s7 + $0x30] sm:$0xf] %v1100
  %1229 = vst [vmem:[%s7 + $0x34] sm:$0xf] %v1101
  %1230 = vst [vmem:[%s7 + $0x38] sm:$0xf] %v1102
  %1231 = vst [vmem:[%s7 + $0x3c] sm:$0xf] %v1103
  %1232 = vst [vmem:[%s7 + $0x40] sm:$0xf] %v1104
  %1233 = vst [vmem:[%s7 + $0x44] sm:$0xf] %v1105
  %1234 = vst [vmem:[%s7 + $0x48] sm:$0xf] %v1106
  %1235 = vst [vmem:[%s7 + $0x4c] sm:$0xf] %v1107
  %1236 = vst [vmem:[%s7 + $0x50] sm:$0xf] %v1108
  %1237 = vst [vmem:[%s7 + $0x54] sm:$0xf] %v1109
  %1238 = vst [vmem:[%s7 + $0x58] sm:$0xf] %v1110
  %1239 = vst [vmem:[%s7 + $0x5c] sm:$0xf] %v1111
  %1240 = vst [vmem:[%s7 + $0x60] sm:$0xf] %v1112
  %1241 = vst [vmem:[%s7 + $0x64] sm:$0xf] %v1113
  %1242 = vst [vmem:[%s7 + $0x68] sm:$0xf] %v1114
  %1243 = vst [vmem:[%s7 + $0x6c] sm:$0xf] %v1115
  %1244 = vst [vmem:[%s7 + $0x70] sm:$0xf] %v1116
  %1245 = vst [vmem:[%s7 + $0x74] sm:$0xf] %v1117
  %1246 = vst [vmem:[%s7 + $0x78] sm:$0xf] %v1118
  %1247 = vst [vmem:[%s7 + $0x7c] sm:$0xf] %v1119
  %1248 = vst [vmem:[%s7 + $0x80] sm:$0xf] %v1120
  %1249 = vst [vmem:[%s7 + $0x84] sm:$0xf] %v1121
  %1250 = vst [vmem:[%s7 + $0x88] sm:$0xf] %v1122
  %1251 = vst [vmem:[%s7 + $0x8c] sm:$0xf] %v1123
  %1252 = vst [vmem:[%s7 + $0x90] sm:$0xf] %v1124
  %1253 = vst [vmem:[%s7 + $0x94] sm:$0xf] %v1125
  %1254 = vst [vmem:[%s7 + $0x98] sm:$0xf] %v1126
  %1255 = vst [vmem:[%s7 + $0x9c] sm:$0xf] %v1127
  %1256 = vst [vmem:[%s7 + $0xa0] sm:$0xf] %v1128
  %1257 = vst [vmem:[%s7 + $0xa4] sm:$0xf] %v1129
  %1258 = vst [vmem:[%s7 + $0xa8] sm:$0xf] %v1130
  %1259 = vst [vmem:[%s7 + $0xac] sm:$0xf] %v1131
  %1260 = vst [vmem:[%s7 + $0xb0] sm:$0xf] %v1132
  %1261 = vst [vmem:[%s7 + $0xb4] sm:$0xf] %v1133
  %1262 = vst [vmem:[%s7 + $0xb8] sm:$0xf] %v1134
  %1263 = vst [vmem:[%s7 + $0xbc] sm:$0xf] %v1135
  %1264 = vst [vmem:[%s7 + $0xc0] sm:$0xf] %v1136
  %1265 = vst [vmem:[%s7 + $0xc4] sm:$0xf] %v1137
  %1266 = vst [vmem:[%s7 + $0xc8] sm:$0xf] %v1138
  %1267 = vst [vmem:[%s7 + $0xcc] sm:$0xf] %v1139
  %1268 = vst [vmem:[%s7 + $0xd0] sm:$0xf] %v1140
  %1269 = vst [vmem:[%s7 + $0xd4] sm:$0xf] %v1141
  %1270 = vst [vmem:[%s7 + $0xd8] sm:$0xf] %v1142
  %1271 = vst [vmem:[%s7 + $0xdc] sm:$0xf] %v1143
  %1272 = vst [vmem:[%s7 + $0xe0] sm:$0xf] %v1144
  %1273 = vst [vmem:[%s7 + $0xe4] sm:$0xf] %v1145
  %1274 = vst [vmem:[%s7 + $0xe8] sm:$0xf] %v1146
  %1275 = vst [vmem:[%s7 + $0xec] sm:$0xf] %v1147
  %1276 = vst [vmem:[%s7 + $0xf0] sm:$0xf] %v1148
  %1277 = vst [vmem:[%s7 + $0xf4] sm:$0xf] %v1149
  %1278 = vst [vmem:[%s7 + $0xf8] sm:$0xf] %v1150
  %1279 = vst [vmem:[%s7 + $0xfc] sm:$0xf] %v1151
  %v1280 = vld [vmem:[%s6] sm:$0x3]
  %v1282 = vsel %vm570, %v537, 0
  %v1285 = vsel %vm570, %v538, 0
  %v1288 = vsel %vm570, %v539, 0
  %v1291 = vsel %vm570, %v540, 0
  %v1294 = vsel %vm570, %v541, 0
  %v1297 = vsel %vm570, %v542, 0
  %v1300 = vsel %vm570, %v543, 0
  %v1303 = vsel %vm570, %v544, 0
  %v1306 = vsel %vm570, %v545, 0
  %v1309 = vsel %vm570, %v546, 0
  %v1312 = vsel %vm570, %v547, 0
  %v1315 = vsel %vm570, %v548, 0
  %v1318 = vsel %vm570, %v549, 0
  %v1321 = vsel %vm570, %v550, 0
  %v1324 = vsel %vm570, %v551, 0
  %v1327 = vsel %vm570, %v552, 0
  %v1330 = vsel %vm570, %v553, 0
  %v1333 = vsel %vm570, %v554, 0
  %v1336 = vsel %vm570, %v555, 0
  %v1339 = vsel %vm570, %v556, 0
  %v1342 = vsel %vm570, %v557, 0
  %v1345 = vsel %vm570, %v558, 0
  %v1348 = vsel %vm570, %v559, 0
  %v1351 = vsel %vm570, %v560, 0
  %v1354 = vsel %vm570, %v561, 0
  %v1357 = vsel %vm570, %v562, 0
  %v1360 = vsel %vm570, %v563, 0
  %v1363 = vsel %vm570, %v564, 0
  %v1366 = vsel %vm570, %v565, 0
  %v1369 = vsel %vm570, %v566, 0
  %v1372 = vsel %vm570, %v567, 0
  %v1375 = vsel %vm570, %v568, 0
  %v1378 = vsel %vm667, %v1280, 0
  %1380 = vmatprep.subr.bf16.mxu0 0
  %1381 = vmatpush1.bf16.msra.mxu0 %v1378
  %1382 = vmatprep.subr.bf16.mxu0 0
  %1383 = vmatpush1.bf16.msra.mxu0 0
  %1384 = vmatprep.subr.bf16.mxu0 0
  %1385 = vmatpush1.bf16.msra.mxu0 0
  %1386 = vmatprep.subr.bf16.mxu0 0
  %1387 = vmatpush1.bf16.msra.mxu0 0
  %1388 = vmatprep.subr.bf16.mxu0 0
  %1389 = vmatpush1.bf16.msra.mxu0 0
  %1390 = vmatprep.subr.bf16.mxu0 0
  %1391 = vmatpush1.bf16.msra.mxu0 0
  %1392 = vmatprep.subr.bf16.mxu0 0
  %1393 = vmatpush1.bf16.msra.mxu0 0
  %1394 = vmatprep.subr.bf16.mxu0 0
  %1395 = vmatpush1.bf16.msra.mxu0 0
  %1396 = vmatprep.subr.bf16.mxu0 0
  %1397 = vmatpush1.bf16.msra.mxu0 0
  %1398 = vmatprep.subr.bf16.mxu0 0
  %1399 = vmatpush1.bf16.msra.mxu0 0
  %1400 = vmatprep.subr.bf16.mxu0 0
  %1401 = vmatpush1.bf16.msra.mxu0 0
  %1402 = vmatprep.subr.bf16.mxu0 0
  %1403 = vmatpush1.bf16.msra.mxu0 0
  %1404 = vmatprep.subr.bf16.mxu0 0
  %1405 = vmatpush1.bf16.msra.mxu0 0
  %1406 = vmatprep.subr.bf16.mxu0 0
  %1407 = vmatpush1.bf16.msra.mxu0 0
  %1408 = vmatprep.subr.bf16.mxu0 0
  %1409 = vmatpush1.bf16.msra.mxu0 0
  %1410 = vmatprep.subr.bf16.mxu0 0
  %1411 = vmatpush1.bf16.msra.mxu0 0
  %1412 = vmatprep.mubr.bf16.mxu0 0
  %1413 = vmatmul.mubr.bf16.gmra.mrb[0].mxu0 %v1282
  %v1414 = vpop.f32.mrb[0].mxu0
  %v1415 = vadd.f32 0.0, %v1414
  %v1416 = vpop.f32.mrb[0].mxu0
  %v1417 = vpop.f32.mrb[0].mxu0
  %v1418 = vadd.f32 0.0, %v1417
  %v1419 = vpop.f32.mrb[0].mxu0
  %1420 = vmatprep.mubr.bf16.mxu0 0
  %1421 = vmatmul.mubr.bf16.gmra.mrb[0].mxu0 %v1285
  %v1422 = vpop.f32.mrb[0].mxu0
  %v1423 = vadd.f32 0.0, %v1422
  %v1424 = vpop.f32.mrb[0].mxu0
  %v1425 = vpop.f32.mrb[0].mxu0
  %v1426 = vadd.f32 0.0, %v1425
  %v1427 = vpop.f32.mrb[0].mxu0
  %1428 = vmatprep.mubr.bf16.mxu0 0
  %1429 = vmatmul.mubr.bf16.gmra.mrb[0].mxu0 %v1288
  %v1430 = vpop.f32.mrb[0].mxu0
  %v1431 = vadd.f32 0.0, %v1430
  %v1432 = vpop.f32.mrb[0].mxu0
  %v1433 = vpop.f32.mrb[0].mxu0
  %v1434 = vadd.f32 0.0, %v1433
  %v1435 = vpop.f32.mrb[0].mxu0
  %1436 = vmatprep.mubr.bf16.mxu0 0
  %1437 = vmatmul.mubr.bf16.gmra.mrb[0].mxu0 %v1291
  %v1438 = vpop.f32.mrb[0].mxu0
  %v1439 = vadd.f32 0.0, %v1438
  %v1440 = vpop.f32.mrb[0].mxu0
  %v1441 = vpop.f32.mrb[0].mxu0
  %v1442 = vadd.f32 0.0, %v1441
  %v1443 = vpop.f32.mrb[0].mxu0
  %1444 = vmatprep.mubr.bf16.mxu0 0
  %1445 = vmatmul.mubr.bf16.gmra.mrb[0].mxu0 %v1294
  %v1446 = vpop.f32.mrb[0].mxu0
  %v1447 = vadd.f32 0.0, %v1446
  %v1448 = vpop.f32.mrb[0].mxu0
  %v1449 = vpop.f32.mrb[0].mxu0
  %v1450 = vadd.f32 0.0, %v1449
  %v1451 = vpop.f32.mrb[0].mxu0
  %1452 = vmatprep.mubr.bf16.mxu0 0
  %1453 = vmatmul.mubr.bf16.gmra.mrb[0].mxu0 %v1297
  %v1454 = vpop.f32.mrb[0].mxu0
  %v1455 = vadd.f32 0.0, %v1454
  %v1456 = vpop.f32.mrb[0].mxu0
  %v1457 = vpop.f32.mrb[0].mxu0
  %v1458 = vadd.f32 0.0, %v1457
  %v1459 = vpop.f32.mrb[0].mxu0
  %1460 = vmatprep.mubr.bf16.mxu0 0
  %1461 = vmatmul.mubr.bf16.gmra.mrb[0].mxu0 %v1300
  %v1462 = vpop.f32.mrb[0].mxu0
  %v1463 = vadd.f32 0.0, %v1462
  %v1464 = vpop.f32.mrb[0].mxu0
  %v1465 = vpop.f32.mrb[0].mxu0
  %v1466 = vadd.f32 0.0, %v1465
  %v1467 = vpop.f32.mrb[0].mxu0
  %1468 = vmatprep.mubr.bf16.mxu0 0
  %1469 = vmatmul.mubr.bf16.gmra.mrb[0].mxu0 %v1303
  %v1470 = vpop.f32.mrb[0].mxu0
  %v1471 = vadd.f32 0.0, %v1470
  %v1472 = vpop.f32.mrb[0].mxu0
  %v1473 = vpop.f32.mrb[0].mxu0
  %v1474 = vadd.f32 0.0, %v1473
  %v1475 = vpop.f32.mrb[0].mxu0
  %1476 = vmatprep.mubr.bf16.mxu0 0
  %1477 = vmatmul.mubr.bf16.gmra.mrb[0].mxu0 %v1306
  %v1478 = vpop.f32.mrb[0].mxu0
  %v1479 = vadd.f32 0.0, %v1478
  %v1480 = vpop.f32.mrb[0].mxu0
  %v1481 = vpop.f32.mrb[0].mxu0
  %v1482 = vadd.f32 0.0, %v1481
  %v1483 = vpop.f32.mrb[0].mxu0
  %1484 = vmatprep.mubr.bf16.mxu0 0
  %1485 = vmatmul.mubr.bf16.gmra.mrb[0].mxu0 %v1309
  %v1486 = vpop.f32.mrb[0].mxu0
  %v1487 = vadd.f32 0.0, %v1486
  %v1488 = vpop.f32.mrb[0].mxu0
  %v1489 = vpop.f32.mrb[0].mxu0
  %v1490 = vadd.f32 0.0, %v1489
  %v1491 = vpop.f32.mrb[0].mxu0
  %1492 = vmatprep.mubr.bf16.mxu0 0
  %1493 = vmatmul.mubr.bf16.gmra.mrb[0].mxu0 %v1312
  %v1494 = vpop.f32.mrb[0].mxu0
  %v1495 = vadd.f32 0.0, %v1494
  %v1496 = vpop.f32.mrb[0].mxu0
  %v1497 = vpop.f32.mrb[0].mxu0
  %v1498 = vadd.f32 0.0, %v1497
  %v1499 = vpop.f32.mrb[0].mxu0
  %1500 = vmatprep.mubr.bf16.mxu0 0
  %1501 = vmatmul.mubr.bf16.gmra.mrb[0].mxu0 %v1315
  %v1502 = vpop.f32.mrb[0].mxu0
  %v1503 = vadd.f32 0.0, %v1502
  %v1504 = vpop.f32.mrb[0].mxu0
  %v1505 = vpop.f32.mrb[0].mxu0
  %v1506 = vadd.f32 0.0, %v1505
  %v1507 = vpop.f32.mrb[0].mxu0
  %1508 = vmatprep.mubr.bf16.mxu0 0
  %1509 = vmatmul.mubr.bf16.gmra.mrb[0].mxu0 %v1318
  %v1510 = vpop.f32.mrb[0].mxu0
  %v1511 = vadd.f32 0.0, %v1510
  %v1512 = vpop.f32.mrb[0].mxu0
  %v1513 = vpop.f32.mrb[0].mxu0
  %v1514 = vadd.f32 0.0, %v1513
  %v1515 = vpop.f32.mrb[0].mxu0
  %1516 = vmatprep.mubr.bf16.mxu0 0
  %1517 = vmatmul.mubr.bf16.gmra.mrb[0].mxu0 %v1321
  %v1518 = vpop.f32.mrb[0].mxu0
  %v1519 = vadd.f32 0.0, %v1518
  %v1520 = vpop.f32.mrb[0].mxu0
  %v1521 = vpop.f32.mrb[0].mxu0
  %v1522 = vadd.f32 0.0, %v1521
  %v1523 = vpop.f32.mrb[0].mxu0
  %1524 = vmatprep.mubr.bf16.mxu0 0
  %1525 = vmatmul.mubr.bf16.gmra.mrb[0].mxu0 %v1324
  %v1526 = vpop.f32.mrb[0].mxu0
  %v1527 = vadd.f32 0.0, %v1526
  %v1528 = vpop.f32.mrb[0].mxu0
  %v1529 = vpop.f32.mrb[0].mxu0
  %v1530 = vadd.f32 0.0, %v1529
  %v1531 = vpop.f32.mrb[0].mxu0
  %1532 = vmatprep.mubr.bf16.mxu0 0
  %1533 = vmatmul.mubr.bf16.gmra.mrb[0].mxu0 %v1327
  %v1534 = vpop.f32.mrb[0].mxu0
  %v1535 = vadd.f32 0.0, %v1534
  %v1536 = vpop.f32.mrb[0].mxu0
  %v1537 = vpop.f32.mrb[0].mxu0
  %v1538 = vadd.f32 0.0, %v1537
  %v1539 = vpop.f32.mrb[0].mxu0
  %1540 = vmatprep.mubr.bf16.mxu0 0
  %1541 = vmatmul.mubr.bf16.gmra.mrb[0].mxu0 %v1330
  %v1542 = vpop.f32.mrb[0].mxu0
  %v1543 = vadd.f32 0.0, %v1542
  %v1544 = vpop.f32.mrb[0].mxu0
  %v1545 = vpop.f32.mrb[0].mxu0
  %v1546 = vadd.f32 0.0, %v1545
  %v1547 = vpop.f32.mrb[0].mxu0
  %1548 = vmatprep.mubr.bf16.mxu0 0
  %1549 = vmatmul.mubr.bf16.gmra.mrb[0].mxu0 %v1333
  %v1550 = vpop.f32.mrb[0].mxu0
  %v1551 = vadd.f32 0.0, %v1550
  %v1552 = vpop.f32.mrb[0].mxu0
  %v1553 = vpop.f32.mrb[0].mxu0
  %v1554 = vadd.f32 0.0, %v1553
  %v1555 = vpop.f32.mrb[0].mxu0
  %1556 = vmatprep.mubr.bf16.mxu0 0
  %1557 = vmatmul.mubr.bf16.gmra.mrb[0].mxu0 %v1336
  %v1558 = vpop.f32.mrb[0].mxu0
  %v1559 = vadd.f32 0.0, %v1558
  %v1560 = vpop.f32.mrb[0].mxu0
  %v1561 = vpop.f32.mrb[0].mxu0
  %v1562 = vadd.f32 0.0, %v1561
  %v1563 = vpop.f32.mrb[0].mxu0
  %1564 = vmatprep.mubr.bf16.mxu0 0
  %1565 = vmatmul.mubr.bf16.gmra.mrb[0].mxu0 %v1339
  %v1566 = vpop.f32.mrb[0].mxu0
  %v1567 = vadd.f32 0.0, %v1566
  %v1568 = vpop.f32.mrb[0].mxu0
  %v1569 = vpop.f32.mrb[0].mxu0
  %v1570 = vadd.f32 0.0, %v1569
  %v1571 = vpop.f32.mrb[0].mxu0
  %1572 = vmatprep.mubr.bf16.mxu0 0
  %1573 = vmatmul.mubr.bf16.gmra.mrb[0].mxu0 %v1342
  %v1574 = vpop.f32.mrb[0].mxu0
  %v1575 = vadd.f32 0.0, %v1574
  %v1576 = vpop.f32.mrb[0].mxu0
  %v1577 = vpop.f32.mrb[0].mxu0
  %v1578 = vadd.f32 0.0, %v1577
  %v1579 = vpop.f32.mrb[0].mxu0
  %1580 = vmatprep.mubr.bf16.mxu0 0
  %1581 = vmatmul.mubr.bf16.gmra.mrb[0].mxu0 %v1345
  %v1582 = vpop.f32.mrb[0].mxu0
  %v1583 = vadd.f32 0.0, %v1582
  %v1584 = vpop.f32.mrb[0].mxu0
  %v1585 = vpop.f32.mrb[0].mxu0
  %v1586 = vadd.f32 0.0, %v1585
  %v1587 = vpop.f32.mrb[0].mxu0
  %1588 = vmatprep.mubr.bf16.mxu0 0
  %1589 = vmatmul.mubr.bf16.gmra.mrb[0].mxu0 %v1348
  %v1590 = vpop.f32.mrb[0].mxu0
  %v1591 = vadd.f32 0.0, %v1590
  %v1592 = vpop.f32.mrb[0].mxu0
  %v1593 = vpop.f32.mrb[0].mxu0
  %v1594 = vadd.f32 0.0, %v1593
  %v1595 = vpop.f32.mrb[0].mxu0
  %1596 = vmatprep.mubr.bf16.mxu0 0
  %1597 = vmatmul.mubr.bf16.gmra.mrb[0].mxu0 %v1351
  %v1598 = vpop.f32.mrb[0].mxu0
  %v1599 = vadd.f32 0.0, %v1598
  %v1600 = vpop.f32.mrb[0].mxu0
  %v1601 = vpop.f32.mrb[0].mxu0
  %v1602 = vadd.f32 0.0, %v1601
  %v1603 = vpop.f32.mrb[0].mxu0
  %1604 = vmatprep.mubr.bf16.mxu0 0
  %1605 = vmatmul.mubr.bf16.gmra.mrb[0].mxu0 %v1354
  %v1606 = vpop.f32.mrb[0].mxu0
  %v1607 = vadd.f32 0.0, %v1606
  %v1608 = vpop.f32.mrb[0].mxu0
  %v1609 = vpop.f32.mrb[0].mxu0
  %v1610 = vadd.f32 0.0, %v1609
  %v1611 = vpop.f32.mrb[0].mxu0
  %1612 = vmatprep.mubr.bf16.mxu0 0
  %1613 = vmatmul.mubr.bf16.gmra.mrb[0].mxu0 %v1357
  %v1614 = vpop.f32.mrb[0].mxu0
  %v1615 = vadd.f32 0.0, %v1614
  %v1616 = vpop.f32.mrb[0].mxu0
  %v1617 = vpop.f32.mrb[0].mxu0
  %v1618 = vadd.f32 0.0, %v1617
  %v1619 = vpop.f32.mrb[0].mxu0
  %1620 = vmatprep.mubr.bf16.mxu0 0
  %1621 = vmatmul.mubr.bf16.gmra.mrb[0].mxu0 %v1360
  %v1622 = vpop.f32.mrb[0].mxu0
  %v1623 = vadd.f32 0.0, %v1622
  %v1624 = vpop.f32.mrb[0].mxu0
  %v1625 = vpop.f32.mrb[0].mxu0
  %v1626 = vadd.f32 0.0, %v1625
  %v1627 = vpop.f32.mrb[0].mxu0
  %1628 = vmatprep.mubr.bf16.mxu0 0
  %1629 = vmatmul.mubr.bf16.gmra.mrb[0].mxu0 %v1363
  %v1630 = vpop.f32.mrb[0].mxu0
  %v1631 = vadd.f32 0.0, %v1630
  %v1632 = vpop.f32.mrb[0].mxu0
  %v1633 = vpop.f32.mrb[0].mxu0
  %v1634 = vadd.f32 0.0, %v1633
  %v1635 = vpop.f32.mrb[0].mxu0
  %1636 = vmatprep.mubr.bf16.mxu0 0
  %1637 = vmatmul.mubr.bf16.gmra.mrb[0].mxu0 %v1366
  %v1638 = vpop.f32.mrb[0].mxu0
  %v1639 = vadd.f32 0.0, %v1638
  %v1640 = vpop.f32.mrb[0].mxu0
  %v1641 = vpop.f32.mrb[0].mxu0
  %v1642 = vadd.f32 0.0, %v1641
  %v1643 = vpop.f32.mrb[0].mxu0
  %1644 = vmatprep.mubr.bf16.mxu0 0
  %1645 = vmatmul.mubr.bf16.gmra.mrb[0].mxu0 %v1369
  %v1646 = vpop.f32.mrb[0].mxu0
  %v1647 = vadd.f32 0.0, %v1646
  %v1648 = vpop.f32.mrb[0].mxu0
  %v1649 = vpop.f32.mrb[0].mxu0
  %v1650 = vadd.f32 0.0, %v1649
  %v1651 = vpop.f32.mrb[0].mxu0
  %1652 = vmatprep.mubr.bf16.mxu0 0
  %1653 = vmatmul.mubr.bf16.gmra.mrb[0].mxu0 %v1372
  %v1654 = vpop.f32.mrb[0].mxu0
  %v1655 = vadd.f32 0.0, %v1654
  %v1656 = vpop.f32.mrb[0].mxu0
  %v1657 = vpop.f32.mrb[0].mxu0
  %v1658 = vadd.f32 0.0, %v1657
  %v1659 = vpop.f32.mrb[0].mxu0
  %1660 = vmatprep.mubr.bf16.mxu0 0
  %1661 = vmatmul.mubr.bf16.gmra.mrb[0].mxu0 %v1375
  %v1662 = vpop.f32.mrb[0].mxu0
  %v1663 = vadd.f32 0.0, %v1662
  %v1664 = vpop.f32.mrb[0].mxu0
  %v1665 = vpop.f32.mrb[0].mxu0
  %v1666 = vadd.f32 0.0, %v1665
  %v1667 = vpop.f32.mrb[0].mxu0
  %1668 = vdwg.mxu0
  %v1669 = vpack.c.bf16 %v1418, %v1415
  %v1670 = vpack.c.bf16 %v1426, %v1423
  %v1671 = vpack.c.bf16 %v1434, %v1431
  %v1672 = vpack.c.bf16 %v1442, %v1439
  %v1673 = vpack.c.bf16 %v1450, %v1447
  %v1674 = vpack.c.bf16 %v1458, %v1455
  %v1675 = vpack.c.bf16 %v1466, %v1463
  %v1676 = vpack.c.bf16 %v1474, %v1471
  %v1677 = vpack.c.bf16 %v1482, %v1479
  %v1678 = vpack.c.bf16 %v1490, %v1487
  %v1679 = vpack.c.bf16 %v1498, %v1495
  %v1680 = vpack.c.bf16 %v1506, %v1503
  %v1681 = vpack.c.bf16 %v1514, %v1511
  %v1682 = vpack.c.bf16 %v1522, %v1519
  %v1683 = vpack.c.bf16 %v1530, %v1527
  %v1684 = vpack.c.bf16 %v1538, %v1535
  %v1685 = vpack.c.bf16 %v1546, %v1543
  %v1686 = vpack.c.bf16 %v1554, %v1551
  %v1687 = vpack.c.bf16 %v1562, %v1559
  %v1688 = vpack.c.bf16 %v1570, %v1567
  %v1689 = vpack.c.bf16 %v1578, %v1575
  %v1690 = vpack.c.bf16 %v1586, %v1583
  %v1691 = vpack.c.bf16 %v1594, %v1591
  %v1692 = vpack.c.bf16 %v1602, %v1599
  %v1693 = vpack.c.bf16 %v1610, %v1607
  %v1694 = vpack.c.bf16 %v1618, %v1615
  %v1695 = vpack.c.bf16 %v1626, %v1623
  %v1696 = vpack.c.bf16 %v1634, %v1631
  %v1697 = vpack.c.bf16 %v1642, %v1639
  %v1698 = vpack.c.bf16 %v1650, %v1647
  %v1699 = vpack.c.bf16 %v1658, %v1655
  %v1700 = vpack.c.bf16 %v1666, %v1663
  %v1733 = vunpack.c.l.b16 %v1669
  %v1734 = vunpack.c.h.b16 %v1669
  %v1735 = vunpack.c.l.b16 %v1670
  %v1736 = vunpack.c.h.b16 %v1670
  %v1737 = vunpack.c.l.b16 %v1671
  %v1738 = vunpack.c.h.b16 %v1671
  %v1739 = vunpack.c.l.b16 %v1672
  %v1740 = vunpack.c.h.b16 %v1672
  %v1741 = vunpack.c.l.b16 %v1673
  %v1742 = vunpack.c.h.b16 %v1673
  %v1743 = vunpack.c.l.b16 %v1674
  %v1744 = vunpack.c.h.b16 %v1674
  %v1745 = vunpack.c.l.b16 %v1675
  %v1746 = vunpack.c.h.b16 %v1675
  %v1747 = vunpack.c.l.b16 %v1676
  %v1748 = vunpack.c.h.b16 %v1676
  %v1749 = vunpack.c.l.b16 %v1677
  %v1750 = vunpack.c.h.b16 %v1677
  %v1751 = vunpack.c.l.b16 %v1678
  %v1752 = vunpack.c.h.b16 %v1678
  %v1753 = vunpack.c.l.b16 %v1679
  %v1754 = vunpack.c.h.b16 %v1679
  %v1755 = vunpack.c.l.b16 %v1680
  %v1756 = vunpack.c.h.b16 %v1680
  %v1757 = vunpack.c.l.b16 %v1681
  %v1758 = vunpack.c.h.b16 %v1681
  %v1759 = vunpack.c.l.b16 %v1682
  %v1760 = vunpack.c.h.b16 %v1682
  %v1761 = vunpack.c.l.b16 %v1683
  %v1762 = vunpack.c.h.b16 %v1683
  %v1763 = vunpack.c.l.b16 %v1684
  %v1764 = vunpack.c.h.b16 %v1684
  %v1765 = vunpack.c.l.b16 %v1685
  %v1766 = vunpack.c.h.b16 %v1685
  %v1767 = vunpack.c.l.b16 %v1686
  %v1768 = vunpack.c.h.b16 %v1686
  %v1769 = vunpack.c.l.b16 %v1687
  %v1770 = vunpack.c.h.b16 %v1687
  %v1771 = vunpack.c.l.b16 %v1688
  %v1772 = vunpack.c.h.b16 %v1688
  %v1773 = vunpack.c.l.b16 %v1689
  %v1774 = vunpack.c.h.b16 %v1689
  %v1775 = vunpack.c.l.b16 %v1690
  %v1776 = vunpack.c.h.b16 %v1690
  %v1777 = vunpack.c.l.b16 %v1691
  %v1778 = vunpack.c.h.b16 %v1691
  %v1779 = vunpack.c.l.b16 %v1692
  %v1780 = vunpack.c.h.b16 %v1692
  %v1781 = vunpack.c.l.b16 %v1693
  %v1782 = vunpack.c.h.b16 %v1693
  %v1783 = vunpack.c.l.b16 %v1694
  %v1784 = vunpack.c.h.b16 %v1694
  %v1785 = vunpack.c.l.b16 %v1695
  %v1786 = vunpack.c.h.b16 %v1695
  %v1787 = vunpack.c.l.b16 %v1696
  %v1788 = vunpack.c.h.b16 %v1696
  %v1789 = vunpack.c.l.b16 %v1697
  %v1790 = vunpack.c.h.b16 %v1697
  %v1791 = vunpack.c.l.b16 %v1698
  %v1792 = vunpack.c.h.b16 %v1698
  %v1793 = vunpack.c.l.b16 %v1699
  %v1794 = vunpack.c.h.b16 %v1699
  %v1795 = vunpack.c.l.b16 %v1700
  %v1796 = vunpack.c.h.b16 %v1700
  %v1797 = vpack.c.b16 %v1733, %v1733
  %v1798 = vpack.c.b16 %v1734, %v1734
  %v1799 = vpack.c.b16 %v1735, %v1735
  %v1800 = vpack.c.b16 %v1736, %v1736
  %v1801 = vpack.c.b16 %v1737, %v1737
  %v1802 = vpack.c.b16 %v1738, %v1738
  %v1803 = vpack.c.b16 %v1739, %v1739
  %v1804 = vpack.c.b16 %v1740, %v1740
  %v1805 = vpack.c.b16 %v1741, %v1741
  %v1806 = vpack.c.b16 %v1742, %v1742
  %v1807 = vpack.c.b16 %v1743, %v1743
  %v1808 = vpack.c.b16 %v1744, %v1744
  %v1809 = vpack.c.b16 %v1745, %v1745
  %v1810 = vpack.c.b16 %v1746, %v1746
  %v1811 = vpack.c.b16 %v1747, %v1747
  %v1812 = vpack.c.b16 %v1748, %v1748
  %v1813 = vpack.c.b16 %v1749, %v1749
  %v1814 = vpack.c.b16 %v1750, %v1750
  %v1815 = vpack.c.b16 %v1751, %v1751
  %v1816 = vpack.c.b16 %v1752, %v1752
  %v1817 = vpack.c.b16 %v1753, %v1753
  %v1818 = vpack.c.b16 %v1754, %v1754
  %v1819 = vpack.c.b16 %v1755, %v1755
  %v1820 = vpack.c.b16 %v1756, %v1756
  %v1821 = vpack.c.b16 %v1757, %v1757
  %v1822 = vpack.c.b16 %v1758, %v1758
  %v1823 = vpack.c.b16 %v1759, %v1759
  %v1824 = vpack.c.b16 %v1760, %v1760
  %v1825 = vpack.c.b16 %v1761, %v1761
  %v1826 = vpack.c.b16 %v1762, %v1762
  %v1827 = vpack.c.b16 %v1763, %v1763
  %v1828 = vpack.c.b16 %v1764, %v1764
  %v1829 = vpack.c.b16 %v1765, %v1765
  %v1830 = vpack.c.b16 %v1766, %v1766
  %v1831 = vpack.c.b16 %v1767, %v1767
  %v1832 = vpack.c.b16 %v1768, %v1768
  %v1833 = vpack.c.b16 %v1769, %v1769
  %v1834 = vpack.c.b16 %v1770, %v1770
  %v1835 = vpack.c.b16 %v1771, %v1771
  %v1836 = vpack.c.b16 %v1772, %v1772
  %v1837 = vpack.c.b16 %v1773, %v1773
  %v1838 = vpack.c.b16 %v1774, %v1774
  %v1839 = vpack.c.b16 %v1775, %v1775
  %v1840 = vpack.c.b16 %v1776, %v1776
  %v1841 = vpack.c.b16 %v1777, %v1777
  %v1842 = vpack.c.b16 %v1778, %v1778
  %v1843 = vpack.c.b16 %v1779, %v1779
  %v1844 = vpack.c.b16 %v1780, %v1780
  %v1845 = vpack.c.b16 %v1781, %v1781
  %v1846 = vpack.c.b16 %v1782, %v1782
  %v1847 = vpack.c.b16 %v1783, %v1783
  %v1848 = vpack.c.b16 %v1784, %v1784
  %v1849 = vpack.c.b16 %v1785, %v1785
  %v1850 = vpack.c.b16 %v1786, %v1786
  %v1851 = vpack.c.b16 %v1787, %v1787
  %v1852 = vpack.c.b16 %v1788, %v1788
  %v1853 = vpack.c.b16 %v1789, %v1789
  %v1854 = vpack.c.b16 %v1790, %v1790
  %v1855 = vpack.c.b16 %v1791, %v1791
  %v1856 = vpack.c.b16 %v1792, %v1792
  %v1857 = vpack.c.b16 %v1793, %v1793
  %v1858 = vpack.c.b16 %v1794, %v1794
  %v1859 = vpack.c.b16 %v1795, %v1795
  %v1860 = vpack.c.b16 %v1796, %v1796
  %1925 = vst [vmem:[%s8] sm:$0xf] %v1797
  %1926 = vst [vmem:[%s8 + $0x4] sm:$0xf] %v1798
  %1927 = vst [vmem:[%s8 + $0x8] sm:$0xf] %v1799
  %1928 = vst [vmem:[%s8 + $0xc] sm:$0xf] %v1800
  %1929 = vst [vmem:[%s8 + $0x10] sm:$0xf] %v1801
  %1930 = vst [vmem:[%s8 + $0x14] sm:$0xf] %v1802
  %1931 = vst [vmem:[%s8 + $0x18] sm:$0xf] %v1803
  %1932 = vst [vmem:[%s8 + $0x1c] sm:$0xf] %v1804
  %1933 = vst [vmem:[%s8 + $0x20] sm:$0xf] %v1805
  %1934 = vst [vmem:[%s8 + $0x24] sm:$0xf] %v1806
  %1935 = vst [vmem:[%s8 + $0x28] sm:$0xf] %v1807
  %1936 = vst [vmem:[%s8 + $0x2c] sm:$0xf] %v1808
  %1937 = vst [vmem:[%s8 + $0x30] sm:$0xf] %v1809
  %1938 = vst [vmem:[%s8 + $0x34] sm:$0xf] %v1810
  %1939 = vst [vmem:[%s8 + $0x38] sm:$0xf] %v1811
  %1940 = vst [vmem:[%s8 + $0x3c] sm:$0xf] %v1812
  %1941 = vst [vmem:[%s8 + $0x40] sm:$0xf] %v1813
  %1942 = vst [vmem:[%s8 + $0x44] sm:$0xf] %v1814
  %1943 = vst [vmem:[%s8 + $0x48] sm:$0xf] %v1815
  %1944 = vst [vmem:[%s8 + $0x4c] sm:$0xf] %v1816
  %1945 = vst [vmem:[%s8 + $0x50] sm:$0xf] %v1817
  %1946 = vst [vmem:[%s8 + $0x54] sm:$0xf] %v1818
  %1947 = vst [vmem:[%s8 + $0x58] sm:$0xf] %v1819
  %1948 = vst [vmem:[%s8 + $0x5c] sm:$0xf] %v1820
  %1949 = vst [vmem:[%s8 + $0x60] sm:$0xf] %v1821
  %1950 = vst [vmem:[%s8 + $0x64] sm:$0xf] %v1822
  %1951 = vst [vmem:[%s8 + $0x68] sm:$0xf] %v1823
  %1952 = vst [vmem:[%s8 + $0x6c] sm:$0xf] %v1824
  %1953 = vst [vmem:[%s8 + $0x70] sm:$0xf] %v1825
  %1954 = vst [vmem:[%s8 + $0x74] sm:$0xf] %v1826
  %1955 = vst [vmem:[%s8 + $0x78] sm:$0xf] %v1827
  %1956 = vst [vmem:[%s8 + $0x7c] sm:$0xf] %v1828
  %1957 = vst [vmem:[%s8 + $0x80] sm:$0xf] %v1829
  %1958 = vst [vmem:[%s8 + $0x84] sm:$0xf] %v1830
  %1959 = vst [vmem:[%s8 + $0x88] sm:$0xf] %v1831
  %1960 = vst [vmem:[%s8 + $0x8c] sm:$0xf] %v1832
  %1961 = vst [vmem:[%s8 + $0x90] sm:$0xf] %v1833
  %1962 = vst [vmem:[%s8 + $0x94] sm:$0xf] %v1834
  %1963 = vst [vmem:[%s8 + $0x98] sm:$0xf] %v1835
  %1964 = vst [vmem:[%s8 + $0x9c] sm:$0xf] %v1836
  %1965 = vst [vmem:[%s8 + $0xa0] sm:$0xf] %v1837
  %1966 = vst [vmem:[%s8 + $0xa4] sm:$0xf] %v1838
  %1967 = vst [vmem:[%s8 + $0xa8] sm:$0xf] %v1839
  %1968 = vst [vmem:[%s8 + $0xac] sm:$0xf] %v1840
  %1969 = vst [vmem:[%s8 + $0xb0] sm:$0xf] %v1841
  %1970 = vst [vmem:[%s8 + $0xb4] sm:$0xf] %v1842
  %1971 = vst [vmem:[%s8 + $0xb8] sm:$0xf] %v1843
  %1972 = vst [vmem:[%s8 + $0xbc] sm:$0xf] %v1844
  %1973 = vst [vmem:[%s8 + $0xc0] sm:$0xf] %v1845
  %1974 = vst [vmem:[%s8 + $0xc4] sm:$0xf] %v1846
  %1975 = vst [vmem:[%s8 + $0xc8] sm:$0xf] %v1847
  %1976 = vst [vmem:[%s8 + $0xcc] sm:$0xf] %v1848
  %1977 = vst [vmem:[%s8 + $0xd0] sm:$0xf] %v1849
  %1978 = vst [vmem:[%s8 + $0xd4] sm:$0xf] %v1850
  %1979 = vst [vmem:[%s8 + $0xd8] sm:$0xf] %v1851
  %1980 = vst [vmem:[%s8 + $0xdc] sm:$0xf] %v1852
  %1981 = vst [vmem:[%s8 + $0xe0] sm:$0xf] %v1853
  %1982 = vst [vmem:[%s8 + $0xe4] sm:$0xf] %v1854
  %1983 = vst [vmem:[%s8 + $0xe8] sm:$0xf] %v1855
  %1984 = vst [vmem:[%s8 + $0xec] sm:$0xf] %v1856
  %1985 = vst [vmem:[%s8 + $0xf0] sm:$0xf] %v1857
  %1986 = vst [vmem:[%s8 + $0xf4] sm:$0xf] %v1858
  %1987 = vst [vmem:[%s8 + $0xf8] sm:$0xf] %v1859
  %1988 = vst [vmem:[%s8 + $0xfc] sm:$0xf] %v1860
  // Predicated region
  $region30: #{dappm_forward.10} parent=0 // pred_check
    _
  $region31: #{dappm_forward.10} parent=0 // pred_check_branch
    %1990 = sbr.rel (0) target = $region33
  $region32: #{dappm_forward.10} parent=0 // pred_region
    _
  $region33: #{dappm_forward.10} parent=0 // pred_fallthru
    _
  // Predicated region
  $region34: #{dappm_forward.10} parent=0 // pred_check
    _
  $region35: #{dappm_forward.10} parent=0 // pred_check_branch
    %1992 = sbr.rel (0) target = $region37
  $region36: #{dappm_forward.10} parent=0 // pred_region
    _
  $region37: #{dappm_forward.10} parent=0 // pred_fallthru
    _
  // Predicated region
  $region38: #{dappm_forward.10} parent=0 // pred_check
    _
  $region39: #{dappm_forward.10} parent=0 // pred_check_branch
    %1994 = sbr.rel (0) target = $region41
  $region40: #{dappm_forward.10} parent=0 // pred_region
    _
  $region41: #{dappm_forward.10} parent=0 // pred_fallthru
    _
  // Predicated region
  $region42: #{dappm_forward.10} parent=0 // pred_check
    _
  $region43: #{dappm_forward.10} parent=0 // pred_check_branch
    %1996 = sbr.rel (0) target = $region45
  $region44: #{dappm_forward.10} parent=0 // pred_region
    _
  $region45: #{dappm_forward.10} parent=0 // pred_fallthru
    _

// kernel: dappm_forward.19
$region0: #{dappm_forward.19}
  #allocation0 [shape = 'u32[]', space=smem, size = 0x4, offset = 0x4, fixed_abs, tag = 'smem constant byte address 0x4 - core index']
  #allocation1 [shape = 'u32[144,128]{1,0:T(1,128)}', space=vmem, size = 0x12000, scoped, tag = 'internal scratch']
  %s0 = inlined_call_operand.vmem [shape: bf16[512,128], index: 0, kind: input, shape index: {}]
  %s1 = inlined_call_operand.vmem [shape: bf16[512,128], index: 1, kind: input, shape index: {}]
  %s2 = inlined_call_operand.vmem [shape: bf16[512,128], index: 2, kind: input, shape index: {}]
  %s3 = inlined_call_operand.vmem [shape: bf16[512,128], index: 3, kind: input, shape index: {}]
  %s4 = inlined_call_operand.vmem [shape: bf16[512,128], index: 4, kind: input, shape index: {}]
  %s5 = inlined_call_operand.vmem [shape: bf16[512,128], index: 5, kind: input, shape index: {}]
  %s6 = inlined_call_operand.vmem [shape: f32[5,128], index: 6, kind: input, shape index: {}]
  %s7 = inlined_call_operand.vmem [shape: f32[5,128], index: 7, kind: input, shape index: {}]
  %s8 = inlined_call_operand.vmem [shape: bf16[5,128,128], index: 8, kind: input, shape index: {}]
  %s9 = inlined_call_operand.vmem [shape: f32[512,128], index: 9, kind: output, shape index: {}]
  %s10 = sld [smem:[#allocation0]]
  $region46: #{dappm_forward.19} parent=0
    _
  %s12 = ssub.s32 1, %s10
  %s13 = scalar_select 0, %s12, %s10
  // Predicated region
  $region2: #{dappm_forward.19} parent=0 // pred_check
    _
  $region3: #{dappm_forward.19} parent=0 // pred_check_branch
    %15 = sbr.rel (0) target = $region5
  $region4: #{dappm_forward.19} parent=0 // pred_region
    _
  $region5: #{dappm_forward.19} parent=0 // pred_fallthru
    _
  // Predicated region
  $region6: #{dappm_forward.19} parent=0 // pred_check
    _
  $region7: #{dappm_forward.19} parent=0 // pred_check_branch
    %17 = sbr.rel (0) target = $region9
  $region8: #{dappm_forward.19} parent=0 // pred_region
    _
  $region9: #{dappm_forward.19} parent=0 // pred_fallthru
    _
  // Predicated region
  $region10: #{dappm_forward.19} parent=0 // pred_check
    _
  $region11: #{dappm_forward.19} parent=0 // pred_check_branch
    %19 = sbr.rel (0) target = $region13
  $region12: #{dappm_forward.19} parent=0 // pred_region
    _
  $region13: #{dappm_forward.19} parent=0 // pred_fallthru
    _
  // Predicated region
  $region14: #{dappm_forward.19} parent=0 // pred_check
    _
  $region15: #{dappm_forward.19} parent=0 // pred_check_branch
    %21 = sbr.rel (0) target = $region17
  $region16: #{dappm_forward.19} parent=0 // pred_region
    _
  $region17: #{dappm_forward.19} parent=0 // pred_fallthru
    _
  // Predicated region
  $region18: #{dappm_forward.19} parent=0 // pred_check
    _
  $region19: #{dappm_forward.19} parent=0 // pred_check_branch
    %23 = sbr.rel (0) target = $region21
  $region20: #{dappm_forward.19} parent=0 // pred_region
    _
  $region21: #{dappm_forward.19} parent=0 // pred_fallthru
    _
  // Predicated region
  $region22: #{dappm_forward.19} parent=0 // pred_check
    _
  $region23: #{dappm_forward.19} parent=0 // pred_check_branch
    %25 = sbr.rel (0) target = $region25
  $region24: #{dappm_forward.19} parent=0 // pred_region
    _
  $region25: #{dappm_forward.19} parent=0 // pred_fallthru
    _
  // Predicated region
  $region26: #{dappm_forward.19} parent=0 // pred_check
    _
  $region27: #{dappm_forward.19} parent=0 // pred_check_branch
    %27 = sbr.rel (0) target = $region29
  $region28: #{dappm_forward.19} parent=0 // pred_region
    _
  $region29: #{dappm_forward.19} parent=0 // pred_fallthru
    _
  // Predicated region
  $region30: #{dappm_forward.19} parent=0 // pred_check
    _
  $region31: #{dappm_forward.19} parent=0 // pred_check_branch
    %29 = sbr.rel (0) target = $region33
  $region32: #{dappm_forward.19} parent=0 // pred_region
    _
  $region33: #{dappm_forward.19} parent=0 // pred_fallthru
    _
  // Predicated region
  $region34: #{dappm_forward.19} parent=0 // pred_check
    _
  $region35: #{dappm_forward.19} parent=0 // pred_check_branch
    %31 = sbr.rel (0) target = $region37
  $region36: #{dappm_forward.19} parent=0 // pred_region
    _
  $region37: #{dappm_forward.19} parent=0 // pred_fallthru
    _
  %v33 = vld [vmem:[%s5] sm:$0xf]
  %v34 = vld [vmem:[%s5 + $0x4] sm:$0xf]
  %v35 = vld [vmem:[%s5 + $0x8] sm:$0xf]
  %v36 = vld [vmem:[%s5 + $0xc] sm:$0xf]
  %v37 = vld [vmem:[%s5 + $0x10] sm:$0xf]
  %v38 = vld [vmem:[%s5 + $0x14] sm:$0xf]
  %v39 = vld [vmem:[%s5 + $0x18] sm:$0xf]
  %v40 = vld [vmem:[%s5 + $0x1c] sm:$0xf]
  %v41 = vld [vmem:[%s5 + $0x20] sm:$0xf]
  %v42 = vld [vmem:[%s5 + $0x24] sm:$0xf]
  %v43 = vld [vmem:[%s5 + $0x28] sm:$0xf]
  %v44 = vld [vmem:[%s5 + $0x2c] sm:$0xf]
  %v45 = vld [vmem:[%s5 + $0x30] sm:$0xf]
  %v46 = vld [vmem:[%s5 + $0x34] sm:$0xf]
  %v47 = vld [vmem:[%s5 + $0x38] sm:$0xf]
  %v48 = vld [vmem:[%s5 + $0x3c] sm:$0xf]
  %v49 = vld [vmem:[%s5 + $0x40] sm:$0xf]
  %v50 = vld [vmem:[%s5 + $0x44] sm:$0xf]
  %v51 = vld [vmem:[%s5 + $0x48] sm:$0xf]
  %v52 = vld [vmem:[%s5 + $0x4c] sm:$0xf]
  %v53 = vld [vmem:[%s5 + $0x50] sm:$0xf]
  %v54 = vld [vmem:[%s5 + $0x54] sm:$0xf]
  %v55 = vld [vmem:[%s5 + $0x58] sm:$0xf]
  %v56 = vld [vmem:[%s5 + $0x5c] sm:$0xf]
  %v57 = vld [vmem:[%s5 + $0x60] sm:$0xf]
  %v58 = vld [vmem:[%s5 + $0x64] sm:$0xf]
  %v59 = vld [vmem:[%s5 + $0x68] sm:$0xf]
  %v60 = vld [vmem:[%s5 + $0x6c] sm:$0xf]
  %v61 = vld [vmem:[%s5 + $0x70] sm:$0xf]
  %v62 = vld [vmem:[%s5 + $0x74] sm:$0xf]
  %v63 = vld [vmem:[%s5 + $0x78] sm:$0xf]
  %v64 = vld [vmem:[%s5 + $0x7c] sm:$0xf]
  %v65 = vld [vmem:[%s5 + $0x80] sm:$0xf]
  %v66 = vld [vmem:[%s5 + $0x84] sm:$0xf]
  %v67 = vld [vmem:[%s5 + $0x88] sm:$0xf]
  %v68 = vld [vmem:[%s5 + $0x8c] sm:$0xf]
  %v69 = vld [vmem:[%s5 + $0x90] sm:$0xf]
  %v70 = vld [vmem:[%s5 + $0x94] sm:$0xf]
  %v71 = vld [vmem:[%s5 + $0x98] sm:$0xf]
  %v72 = vld [vmem:[%s5 + $0x9c] sm:$0xf]
  %v73 = vld [vmem:[%s5 + $0xa0] sm:$0xf]
  %v74 = vld [vmem:[%s5 + $0xa4] sm:$0xf]
  %v75 = vld [vmem:[%s5 + $0xa8] sm:$0xf]
  %v76 = vld [vmem:[%s5 + $0xac] sm:$0xf]
  %v77 = vld [vmem:[%s5 + $0xb0] sm:$0xf]
  %v78 = vld [vmem:[%s5 + $0xb4] sm:$0xf]
  %v79 = vld [vmem:[%s5 + $0xb8] sm:$0xf]
  %v80 = vld [vmem:[%s5 + $0xbc] sm:$0xf]
  %v81 = vld [vmem:[%s5 + $0xc0] sm:$0xf]
  %v82 = vld [vmem:[%s5 + $0xc4] sm:$0xf]
  %v83 = vld [vmem:[%s5 + $0xc8] sm:$0xf]
  %v84 = vld [vmem:[%s5 + $0xcc] sm:$0xf]
  %v85 = vld [vmem:[%s5 + $0xd0] sm:$0xf]
  %v86 = vld [vmem:[%s5 + $0xd4] sm:$0xf]
  %v87 = vld [vmem:[%s5 + $0xd8] sm:$0xf]
  %v88 = vld [vmem:[%s5 + $0xdc] sm:$0xf]
  %v89 = vld [vmem:[%s5 + $0xe0] sm:$0xf]
  %v90 = vld [vmem:[%s5 + $0xe4] sm:$0xf]
  %v91 = vld [vmem:[%s5 + $0xe8] sm:$0xf]
  %v92 = vld [vmem:[%s5 + $0xec] sm:$0xf]
  %v93 = vld [vmem:[%s5 + $0xf0] sm:$0xf]
  %v94 = vld [vmem:[%s5 + $0xf4] sm:$0xf]
  %v95 = vld [vmem:[%s5 + $0xf8] sm:$0xf]
  %v96 = vld [vmem:[%s5 + $0xfc] sm:$0xf]
  %v97 = vunpack.c.l.bf16 %v33
  %v98 = vunpack.c.l.bf16 %v34
  %v99 = vunpack.c.l.bf16 %v35
  %v100 = vunpack.c.l.bf16 %v36
  %v101 = vunpack.c.l.bf16 %v37
  %v102 = vunpack.c.l.bf16 %v38
  %v103 = vunpack.c.l.bf16 %v39
  %v104 = vunpack.c.l.bf16 %v40
  %v105 = vunpack.c.l.bf16 %v41
  %v106 = vunpack.c.l.bf16 %v42
  %v107 = vunpack.c.l.bf16 %v43
  %v108 = vunpack.c.l.bf16 %v44
  %v109 = vunpack.c.l.bf16 %v45
  %v110 = vunpack.c.l.bf16 %v46
  %v111 = vunpack.c.l.bf16 %v47
  %v112 = vunpack.c.l.bf16 %v48
  %v113 = vunpack.c.l.bf16 %v49
  %v114 = vunpack.c.l.bf16 %v50
  %v115 = vunpack.c.l.bf16 %v51
  %v116 = vunpack.c.l.bf16 %v52
  %v117 = vunpack.c.l.bf16 %v53
  %v118 = vunpack.c.l.bf16 %v54
  %v119 = vunpack.c.l.bf16 %v55
  %v120 = vunpack.c.l.bf16 %v56
  %v121 = vunpack.c.l.bf16 %v57
  %v122 = vunpack.c.l.bf16 %v58
  %v123 = vunpack.c.l.bf16 %v59
  %v124 = vunpack.c.l.bf16 %v60
  %v125 = vunpack.c.l.bf16 %v61
  %v126 = vunpack.c.l.bf16 %v62
  %v127 = vunpack.c.l.bf16 %v63
  %v128 = vunpack.c.l.bf16 %v64
  %v129 = vunpack.c.l.bf16 %v65
  %v130 = vunpack.c.l.bf16 %v66
  %v131 = vunpack.c.l.bf16 %v67
  %v132 = vunpack.c.l.bf16 %v68
  %v133 = vunpack.c.l.bf16 %v69
  %v134 = vunpack.c.l.bf16 %v70
  %v135 = vunpack.c.l.bf16 %v71
  %v136 = vunpack.c.l.bf16 %v72
  %v137 = vunpack.c.l.bf16 %v73
  %v138 = vunpack.c.l.bf16 %v74
  %v139 = vunpack.c.l.bf16 %v75
  %v140 = vunpack.c.l.bf16 %v76
  %v141 = vunpack.c.l.bf16 %v77
  %v142 = vunpack.c.l.bf16 %v78
  %v143 = vunpack.c.l.bf16 %v79
  %v144 = vunpack.c.l.bf16 %v80
  %v145 = vunpack.c.l.bf16 %v81
  %v146 = vunpack.c.l.bf16 %v82
  %v147 = vunpack.c.l.bf16 %v83
  %v148 = vunpack.c.l.bf16 %v84
  %v149 = vunpack.c.l.bf16 %v85
  %v150 = vunpack.c.l.bf16 %v86
  %v151 = vunpack.c.l.bf16 %v87
  %v152 = vunpack.c.l.bf16 %v88
  %v153 = vunpack.c.l.bf16 %v89
  %v154 = vunpack.c.l.bf16 %v90
  %v155 = vunpack.c.l.bf16 %v91
  %v156 = vunpack.c.l.bf16 %v92
  %v157 = vunpack.c.l.bf16 %v93
  %v158 = vunpack.c.l.bf16 %v94
  %v159 = vunpack.c.l.bf16 %v95
  %v160 = vunpack.c.l.bf16 %v96
  %v161 = vld [vmem:[%s0] sm:$0xf]
  %v162 = vld [vmem:[%s0 + $0x4] sm:$0xf]
  %v163 = vld [vmem:[%s0 + $0x8] sm:$0xf]
  %v164 = vld [vmem:[%s0 + $0xc] sm:$0xf]
  %v165 = vld [vmem:[%s0 + $0x10] sm:$0xf]
  %v166 = vld [vmem:[%s0 + $0x14] sm:$0xf]
  %v167 = vld [vmem:[%s0 + $0x18] sm:$0xf]
  %v168 = vld [vmem:[%s0 + $0x1c] sm:$0xf]
  %v169 = vld [vmem:[%s0 + $0x20] sm:$0xf]
  %v170 = vld [vmem:[%s0 + $0x24] sm:$0xf]
  %v171 = vld [vmem:[%s0 + $0x28] sm:$0xf]
  %v172 = vld [vmem:[%s0 + $0x2c] sm:$0xf]
  %v173 = vld [vmem:[%s0 + $0x30] sm:$0xf]
  %v174 = vld [vmem:[%s0 + $0x34] sm:$0xf]
  %v175 = vld [vmem:[%s0 + $0x38] sm:$0xf]
  %v176 = vld [vmem:[%s0 + $0x3c] sm:$0xf]
  %v177 = vld [vmem:[%s0 + $0x40] sm:$0xf]
  %v178 = vld [vmem:[%s0 + $0x44] sm:$0xf]
  %v179 = vld [vmem:[%s0 + $0x48] sm:$0xf]
  %v180 = vld [vmem:[%s0 + $0x4c] sm:$0xf]
  %v181 = vld [vmem:[%s0 + $0x50] sm:$0xf]
  %v182 = vld [vmem:[%s0 + $0x54] sm:$0xf]
  %v183 = vld [vmem:[%s0 + $0x58] sm:$0xf]
  %v184 = vld [vmem:[%s0 + $0x5c] sm:$0xf]
  %v185 = vld [vmem:[%s0 + $0x60] sm:$0xf]
  %v186 = vld [vmem:[%s0 + $0x64] sm:$0xf]
  %v187 = vld [vmem:[%s0 + $0x68] sm:$0xf]
  %v188 = vld [vmem:[%s0 + $0x6c] sm:$0xf]
  %v189 = vld [vmem:[%s0 + $0x70] sm:$0xf]
  %v190 = vld [vmem:[%s0 + $0x74] sm:$0xf]
  %v191 = vld [vmem:[%s0 + $0x78] sm:$0xf]
  %v192 = vld [vmem:[%s0 + $0x7c] sm:$0xf]
  %v193 = vld [vmem:[%s0 + $0x80] sm:$0xf]
  %v194 = vld [vmem:[%s0 + $0x84] sm:$0xf]
  %v195 = vld [vmem:[%s0 + $0x88] sm:$0xf]
  %v196 = vld [vmem:[%s0 + $0x8c] sm:$0xf]
  %v197 = vld [vmem:[%s0 + $0x90] sm:$0xf]
  %v198 = vld [vmem:[%s0 + $0x94] sm:$0xf]
  %v199 = vld [vmem:[%s0 + $0x98] sm:$0xf]
  %v200 = vld [vmem:[%s0 + $0x9c] sm:$0xf]
  %v201 = vld [vmem:[%s0 + $0xa0] sm:$0xf]
  %v202 = vld [vmem:[%s0 + $0xa4] sm:$0xf]
  %v203 = vld [vmem:[%s0 + $0xa8] sm:$0xf]
  %v204 = vld [vmem:[%s0 + $0xac] sm:$0xf]
  %v205 = vld [vmem:[%s0 + $0xb0] sm:$0xf]
  %v206 = vld [vmem:[%s0 + $0xb4] sm:$0xf]
  %v207 = vld [vmem:[%s0 + $0xb8] sm:$0xf]
  %v208 = vld [vmem:[%s0 + $0xbc] sm:$0xf]
  %v209 = vld [vmem:[%s0 + $0xc0] sm:$0xf]
  %v210 = vld [vmem:[%s0 + $0xc4] sm:$0xf]
  %v211 = vld [vmem:[%s0 + $0xc8] sm:$0xf]
  %v212 = vld [vmem:[%s0 + $0xcc] sm:$0xf]
  %v213 = vld [vmem:[%s0 + $0xd0] sm:$0xf]
  %v214 = vld [vmem:[%s0 + $0xd4] sm:$0xf]
  %v215 = vld [vmem:[%s0 + $0xd8] sm:$0xf]
  %v216 = vld [vmem:[%s0 + $0xdc] sm:$0xf]
  %v217 = vld [vmem:[%s0 + $0xe0] sm:$0xf]
  %v218 = vld [vmem:[%s0 + $0xe4] sm:$0xf]
  %v219 = vld [vmem:[%s0 + $0xe8] sm:$0xf]
  %v220 = vld [vmem:[%s0 + $0xec] sm:$0xf]
  %v221 = vld [vmem:[%s0 + $0xf0] sm:$0xf]
  %v222 = vld [vmem:[%s0 + $0xf4] sm:$0xf]
  %v223 = vld [vmem:[%s0 + $0xf8] sm:$0xf]
  %v224 = vld [vmem:[%s0 + $0xfc] sm:$0xf]
  %v225 = vunpack.c.l.bf16 %v161
  %v226 = vunpack.c.l.bf16 %v162
  %v227 = vunpack.c.l.bf16 %v163
  %v228 = vunpack.c.l.bf16 %v164
  %v229 = vunpack.c.l.bf16 %v165
  %v230 = vunpack.c.l.bf16 %v166
  %v231 = vunpack.c.l.bf16 %v167
  %v232 = vunpack.c.l.bf16 %v168
  %v233 = vunpack.c.l.bf16 %v169
  %v234 = vunpack.c.l.bf16 %v170
  %v235 = vunpack.c.l.bf16 %v171
  %v236 = vunpack.c.l.bf16 %v172
  %v237 = vunpack.c.l.bf16 %v173
  %v238 = vunpack.c.l.bf16 %v174
  %v239 = vunpack.c.l.bf16 %v175
  %v240 = vunpack.c.l.bf16 %v176
  %v241 = vunpack.c.l.bf16 %v177
  %v242 = vunpack.c.l.bf16 %v178
  %v243 = vunpack.c.l.bf16 %v179
  %v244 = vunpack.c.l.bf16 %v180
  %v245 = vunpack.c.l.bf16 %v181
  %v246 = vunpack.c.l.bf16 %v182
  %v247 = vunpack.c.l.bf16 %v183
  %v248 = vunpack.c.l.bf16 %v184
  %v249 = vunpack.c.l.bf16 %v185
  %v250 = vunpack.c.l.bf16 %v186
  %v251 = vunpack.c.l.bf16 %v187
  %v252 = vunpack.c.l.bf16 %v188
  %v253 = vunpack.c.l.bf16 %v189
  %v254 = vunpack.c.l.bf16 %v190
  %v255 = vunpack.c.l.bf16 %v191
  %v256 = vunpack.c.l.bf16 %v192
  %v257 = vunpack.c.l.bf16 %v193
  %v258 = vunpack.c.l.bf16 %v194
  %v259 = vunpack.c.l.bf16 %v195
  %v260 = vunpack.c.l.bf16 %v196
  %v261 = vunpack.c.l.bf16 %v197
  %v262 = vunpack.c.l.bf16 %v198
  %v263 = vunpack.c.l.bf16 %v199
  %v264 = vunpack.c.l.bf16 %v200
  %v265 = vunpack.c.l.bf16 %v201
  %v266 = vunpack.c.l.bf16 %v202
  %v267 = vunpack.c.l.bf16 %v203
  %v268 = vunpack.c.l.bf16 %v204
  %v269 = vunpack.c.l.bf16 %v205
  %v270 = vunpack.c.l.bf16 %v206
  %v271 = vunpack.c.l.bf16 %v207
  %v272 = vunpack.c.l.bf16 %v208
  %v273 = vunpack.c.l.bf16 %v209
  %v274 = vunpack.c.l.bf16 %v210
  %v275 = vunpack.c.l.bf16 %v211
  %v276 = vunpack.c.l.bf16 %v212
  %v277 = vunpack.c.l.bf16 %v213
  %v278 = vunpack.c.l.bf16 %v214
  %v279 = vunpack.c.l.bf16 %v215
  %v280 = vunpack.c.l.bf16 %v216
  %v281 = vunpack.c.l.bf16 %v217
  %v282 = vunpack.c.l.bf16 %v218
  %v283 = vunpack.c.l.bf16 %v219
  %v284 = vunpack.c.l.bf16 %v220
  %v285 = vunpack.c.l.bf16 %v221
  %v286 = vunpack.c.l.bf16 %v222
  %v287 = vunpack.c.l.bf16 %v223
  %v288 = vunpack.c.l.bf16 %v224
  %v289 = vld [vmem:[%s6] sm:$0x1]
  %v290 = vlaneseq
  %v291 = vshrl.u32 %v290, 7
  %v292 = vsub.s32 0, %v291
  %v293 = vrot.slane %v289, %v292
  %v294 = vmul.f32 %v225, %v293
  %v295 = vmul.f32 %v226, %v293
  %v296 = vmul.f32 %v227, %v293
  %v297 = vmul.f32 %v228, %v293
  %v298 = vmul.f32 %v229, %v293
  %v299 = vmul.f32 %v230, %v293
  %v300 = vmul.f32 %v231, %v293
  %v301 = vmul.f32 %v232, %v293
  %v302 = vmul.f32 %v233, %v293
  %v303 = vmul.f32 %v234, %v293
  %v304 = vmul.f32 %v235, %v293
  %v305 = vmul.f32 %v236, %v293
  %v306 = vmul.f32 %v237, %v293
  %v307 = vmul.f32 %v238, %v293
  %v308 = vmul.f32 %v239, %v293
  %v309 = vmul.f32 %v240, %v293
  %v310 = vmul.f32 %v241, %v293
  %v311 = vmul.f32 %v242, %v293
  %v312 = vmul.f32 %v243, %v293
  %v313 = vmul.f32 %v244, %v293
  %v314 = vmul.f32 %v245, %v293
  %v315 = vmul.f32 %v246, %v293
  %v316 = vmul.f32 %v247, %v293
  %v317 = vmul.f32 %v248, %v293
  %v318 = vmul.f32 %v249, %v293
  %v319 = vmul.f32 %v250, %v293
  %v320 = vmul.f32 %v251, %v293
  %v321 = vmul.f32 %v252, %v293
  %v322 = vmul.f32 %v253, %v293
  %v323 = vmul.f32 %v254, %v293
  %v324 = vmul.f32 %v255, %v293
  %v325 = vmul.f32 %v256, %v293
  %v326 = vmul.f32 %v257, %v293
  %v327 = vmul.f32 %v258, %v293
  %v328 = vmul.f32 %v259, %v293
  %v329 = vmul.f32 %v260, %v293
  %v330 = vmul.f32 %v261, %v293
  %v331 = vmul.f32 %v262, %v293
  %v332 = vmul.f32 %v263, %v293
  %v333 = vmul.f32 %v264, %v293
  %v334 = vmul.f32 %v265, %v293
  %v335 = vmul.f32 %v266, %v293
  %v336 = vmul.f32 %v267, %v293
  %v337 = vmul.f32 %v268, %v293
  %v338 = vmul.f32 %v269, %v293
  %v339 = vmul.f32 %v270, %v293
  %v340 = vmul.f32 %v271, %v293
  %v341 = vmul.f32 %v272, %v293
  %v342 = vmul.f32 %v273, %v293
  %v343 = vmul.f32 %v274, %v293
  %v344 = vmul.f32 %v275, %v293
  %v345 = vmul.f32 %v276, %v293
  %v346 = vmul.f32 %v277, %v293
  %v347 = vmul.f32 %v278, %v293
  %v348 = vmul.f32 %v279, %v293
  %v349 = vmul.f32 %v280, %v293
  %v350 = vmul.f32 %v281, %v293
  %v351 = vmul.f32 %v282, %v293
  %v352 = vmul.f32 %v283, %v293
  %v353 = vmul.f32 %v284, %v293
  %v354 = vmul.f32 %v285, %v293
  %v355 = vmul.f32 %v286, %v293
  %v356 = vmul.f32 %v287, %v293
  %v357 = vmul.f32 %v288, %v293
  %v358 = vld [vmem:[%s7] sm:$0x1]
  %v359 = vlaneseq
  %v360 = vshrl.u32 %v359, 7
  %v361 = vsub.s32 0, %v360
  %v362 = vrot.slane %v358, %v361
  %v363 = vadd.f32 %v294, %v362
  %v364 = vadd.f32 %v295, %v362
  %v365 = vadd.f32 %v296, %v362
  %v366 = vadd.f32 %v297, %v362
  %v367 = vadd.f32 %v298, %v362
  %v368 = vadd.f32 %v299, %v362
  %v369 = vadd.f32 %v300, %v362
  %v370 = vadd.f32 %v301, %v362
  %v371 = vadd.f32 %v302, %v362
  %v372 = vadd.f32 %v303, %v362
  %v373 = vadd.f32 %v304, %v362
  %v374 = vadd.f32 %v305, %v362
  %v375 = vadd.f32 %v306, %v362
  %v376 = vadd.f32 %v307, %v362
  %v377 = vadd.f32 %v308, %v362
  %v378 = vadd.f32 %v309, %v362
  %v379 = vadd.f32 %v310, %v362
  %v380 = vadd.f32 %v311, %v362
  %v381 = vadd.f32 %v312, %v362
  %v382 = vadd.f32 %v313, %v362
  %v383 = vadd.f32 %v314, %v362
  %v384 = vadd.f32 %v315, %v362
  %v385 = vadd.f32 %v316, %v362
  %v386 = vadd.f32 %v317, %v362
  %v387 = vadd.f32 %v318, %v362
  %v388 = vadd.f32 %v319, %v362
  %v389 = vadd.f32 %v320, %v362
  %v390 = vadd.f32 %v321, %v362
  %v391 = vadd.f32 %v322, %v362
  %v392 = vadd.f32 %v323, %v362
  %v393 = vadd.f32 %v324, %v362
  %v394 = vadd.f32 %v325, %v362
  %v395 = vadd.f32 %v326, %v362
  %v396 = vadd.f32 %v327, %v362
  %v397 = vadd.f32 %v328, %v362
  %v398 = vadd.f32 %v329, %v362
  %v399 = vadd.f32 %v330, %v362
  %v400 = vadd.f32 %v331, %v362
  %v401 = vadd.f32 %v332, %v362
  %v402 = vadd.f32 %v333, %v362
  %v403 = vadd.f32 %v334, %v362
  %v404 = vadd.f32 %v335, %v362
  %v405 = vadd.f32 %v336, %v362
  %v406 = vadd.f32 %v337, %v362
  %v407 = vadd.f32 %v338, %v362
  %v408 = vadd.f32 %v339, %v362
  %v409 = vadd.f32 %v340, %v362
  %v410 = vadd.f32 %v341, %v362
  %v411 = vadd.f32 %v342, %v362
  %v412 = vadd.f32 %v343, %v362
  %v413 = vadd.f32 %v344, %v362
  %v414 = vadd.f32 %v345, %v362
  %v415 = vadd.f32 %v346, %v362
  %v416 = vadd.f32 %v347, %v362
  %v417 = vadd.f32 %v348, %v362
  %v418 = vadd.f32 %v349, %v362
  %v419 = vadd.f32 %v350, %v362
  %v420 = vadd.f32 %v351, %v362
  %v421 = vadd.f32 %v352, %v362
  %v422 = vadd.f32 %v353, %v362
  %v423 = vadd.f32 %v354, %v362
  %v424 = vadd.f32 %v355, %v362
  %v425 = vadd.f32 %v356, %v362
  %v426 = vadd.f32 %v357, %v362
  %v427 = vmax.f32 %v363, 0.0
  %v428 = vmax.f32 %v364, 0.0
  %v429 = vmax.f32 %v365, 0.0
  %v430 = vmax.f32 %v366, 0.0
  %v431 = vmax.f32 %v367, 0.0
  %v432 = vmax.f32 %v368, 0.0
  %v433 = vmax.f32 %v369, 0.0
  %v434 = vmax.f32 %v370, 0.0
  %v435 = vmax.f32 %v371, 0.0
  %v436 = vmax.f32 %v372, 0.0
  %v437 = vmax.f32 %v373, 0.0
  %v438 = vmax.f32 %v374, 0.0
  %v439 = vmax.f32 %v375, 0.0
  %v440 = vmax.f32 %v376, 0.0
  %v441 = vmax.f32 %v377, 0.0
  %v442 = vmax.f32 %v378, 0.0
  %v443 = vmax.f32 %v379, 0.0
  %v444 = vmax.f32 %v380, 0.0
  %v445 = vmax.f32 %v381, 0.0
  %v446 = vmax.f32 %v382, 0.0
  %v447 = vmax.f32 %v383, 0.0
  %v448 = vmax.f32 %v384, 0.0
  %v449 = vmax.f32 %v385, 0.0
  %v450 = vmax.f32 %v386, 0.0
  %v451 = vmax.f32 %v387, 0.0
  %v452 = vmax.f32 %v388, 0.0
  %v453 = vmax.f32 %v389, 0.0
  %v454 = vmax.f32 %v390, 0.0
  %v455 = vmax.f32 %v391, 0.0
  %v456 = vmax.f32 %v392, 0.0
  %v457 = vmax.f32 %v393, 0.0
  %v458 = vmax.f32 %v394, 0.0
  %v459 = vmax.f32 %v395, 0.0
  %v460 = vmax.f32 %v396, 0.0
  %v461 = vmax.f32 %v397, 0.0
  %v462 = vmax.f32 %v398, 0.0
  %v463 = vmax.f32 %v399, 0.0
  %v464 = vmax.f32 %v400, 0.0
  %v465 = vmax.f32 %v401, 0.0
  %v466 = vmax.f32 %v402, 0.0
  %v467 = vmax.f32 %v403, 0.0
  %v468 = vmax.f32 %v404, 0.0
  %v469 = vmax.f32 %v405, 0.0
  %v470 = vmax.f32 %v406, 0.0
  %v471 = vmax.f32 %v407, 0.0
  %v472 = vmax.f32 %v408, 0.0
  %v473 = vmax.f32 %v409, 0.0
  %v474 = vmax.f32 %v410, 0.0
  %v475 = vmax.f32 %v411, 0.0
  %v476 = vmax.f32 %v412, 0.0
  %v477 = vmax.f32 %v413, 0.0
  %v478 = vmax.f32 %v414, 0.0
  %v479 = vmax.f32 %v415, 0.0
  %v480 = vmax.f32 %v416, 0.0
  %v481 = vmax.f32 %v417, 0.0
  %v482 = vmax.f32 %v418, 0.0
  %v483 = vmax.f32 %v419, 0.0
  %v484 = vmax.f32 %v420, 0.0
  %v485 = vmax.f32 %v421, 0.0
  %v486 = vmax.f32 %v422, 0.0
  %v487 = vmax.f32 %v423, 0.0
  %v488 = vmax.f32 %v424, 0.0
  %v489 = vmax.f32 %v425, 0.0
  %v490 = vmax.f32 %v426, 0.0
  %v491 = vpack.c.bf16 %v428, %v427
  %v492 = vpack.c.bf16 %v430, %v429
  %v493 = vpack.c.bf16 %v432, %v431
  %v494 = vpack.c.bf16 %v434, %v433
  %v495 = vpack.c.bf16 %v436, %v435
  %v496 = vpack.c.bf16 %v438, %v437
  %v497 = vpack.c.bf16 %v440, %v439
  %v498 = vpack.c.bf16 %v442, %v441
  %v499 = vpack.c.bf16 %v444, %v443
  %v500 = vpack.c.bf16 %v446, %v445
  %v501 = vpack.c.bf16 %v448, %v447
  %v502 = vpack.c.bf16 %v450, %v449
  %v503 = vpack.c.bf16 %v452, %v451
  %v504 = vpack.c.bf16 %v454, %v453
  %v505 = vpack.c.bf16 %v456, %v455
  %v506 = vpack.c.bf16 %v458, %v457
  %v507 = vpack.c.bf16 %v460, %v459
  %v508 = vpack.c.bf16 %v462, %v461
  %v509 = vpack.c.bf16 %v464, %v463
  %v510 = vpack.c.bf16 %v466, %v465
  %v511 = vpack.c.bf16 %v468, %v467
  %v512 = vpack.c.bf16 %v470, %v469
  %v513 = vpack.c.bf16 %v472, %v471
  %v514 = vpack.c.bf16 %v474, %v473
  %v515 = vpack.c.bf16 %v476, %v475
  %v516 = vpack.c.bf16 %v478, %v477
  %v517 = vpack.c.bf16 %v480, %v479
  %v518 = vpack.c.bf16 %v482, %v481
  %v519 = vpack.c.bf16 %v484, %v483
  %v520 = vpack.c.bf16 %v486, %v485
  %v521 = vpack.c.bf16 %v488, %v487
  %v522 = vpack.c.bf16 %v490, %v489
  %v523 = vld [vmem:[%s8] sm:$0xf]
  %v524 = vld [vmem:[%s8 + $0x4] sm:$0xf]
  %v525 = vld [vmem:[%s8 + $0x8] sm:$0xf]
  %v526 = vld [vmem:[%s8 + $0xc] sm:$0xf]
  %v527 = vld [vmem:[%s8 + $0x10] sm:$0xf]
  %v528 = vld [vmem:[%s8 + $0x14] sm:$0xf]
  %v529 = vld [vmem:[%s8 + $0x18] sm:$0xf]
  %v530 = vld [vmem:[%s8 + $0x1c] sm:$0xf]
  %v531 = vld [vmem:[%s8 + $0x20] sm:$0xf]
  %v532 = vld [vmem:[%s8 + $0x24] sm:$0xf]
  %v533 = vld [vmem:[%s8 + $0x28] sm:$0xf]
  %v534 = vld [vmem:[%s8 + $0x2c] sm:$0xf]
  %v535 = vld [vmem:[%s8 + $0x30] sm:$0xf]
  %v536 = vld [vmem:[%s8 + $0x34] sm:$0xf]
  %v537 = vld [vmem:[%s8 + $0x38] sm:$0xf]
  %v538 = vld [vmem:[%s8 + $0x3c] sm:$0xf]
  %v555 = vunpack.c.l.b16 %v523
  %v556 = vunpack.c.l.b16 %v524
  %v557 = vunpack.c.l.b16 %v525
  %v558 = vunpack.c.l.b16 %v526
  %v559 = vunpack.c.l.b16 %v527
  %v560 = vunpack.c.l.b16 %v528
  %v561 = vunpack.c.l.b16 %v529
  %v562 = vunpack.c.l.b16 %v530
  %v563 = vunpack.c.l.b16 %v531
  %v564 = vunpack.c.l.b16 %v532
  %v565 = vunpack.c.l.b16 %v533
  %v566 = vunpack.c.l.b16 %v534
  %v567 = vunpack.c.l.b16 %v535
  %v568 = vunpack.c.l.b16 %v536
  %v569 = vunpack.c.l.b16 %v537
  %v570 = vunpack.c.l.b16 %v538
  %v571 = vpack.c.b16 %v556, %v555
  %v572 = vpack.c.b16 %v558, %v557
  %v573 = vpack.c.b16 %v560, %v559
  %v574 = vpack.c.b16 %v562, %v561
  %v575 = vpack.c.b16 %v564, %v563
  %v576 = vpack.c.b16 %v566, %v565
  %v577 = vpack.c.b16 %v568, %v567
  %v578 = vpack.c.b16 %v570, %v569
  %587 = vmatprep.subr.bf16.mxu0 0
  %588 = vmatpush1.bf16.msra.mxu0 %v571
  %589 = vmatprep.subr.bf16.mxu0 0
  %590 = vmatpush1.bf16.msra.mxu0 %v572
  %591 = vmatprep.subr.bf16.mxu0 0
  %592 = vmatpush1.bf16.msra.mxu0 %v573
  %593 = vmatprep.subr.bf16.mxu0 0
  %594 = vmatpush1.bf16.msra.mxu0 %v574
  %595 = vmatprep.subr.bf16.mxu0 0
  %596 = vmatpush1.bf16.msra.mxu0 %v575
  %597 = vmatprep.subr.bf16.mxu0 0
  %598 = vmatpush1.bf16.msra.mxu0 %v576
  %599 = vmatprep.subr.bf16.mxu0 0
  %600 = vmatpush1.bf16.msra.mxu0 %v577
  %601 = vmatprep.subr.bf16.mxu0 0
  %602 = vmatpush1.bf16.msra.mxu0 %v578
  %603 = vmatprep.subr.bf16.mxu0 0
  %604 = vmatpush1.bf16.msra.mxu0 0
  %605 = vmatprep.subr.bf16.mxu0 0
  %606 = vmatpush1.bf16.msra.mxu0 0
  %607 = vmatprep.subr.bf16.mxu0 0
  %608 = vmatpush1.bf16.msra.mxu0 0
  %609 = vmatprep.subr.bf16.mxu0 0
  %610 = vmatpush1.bf16.msra.mxu0 0
  %611 = vmatprep.subr.bf16.mxu0 0
  %612 = vmatpush1.bf16.msra.mxu0 0
  %613 = vmatprep.subr.bf16.mxu0 0
  %614 = vmatpush1.bf16.msra.mxu0 0
  %615 = vmatprep.subr.bf16.mxu0 0
  %616 = vmatpush1.bf16.msra.mxu0 0
  %617 = vmatprep.subr.bf16.mxu0 0
  %618 = vmatpush1.bf16.msra.mxu0 0
  %619 = vmatprep.mubr.bf16.mxu0 0
  %620 = vmatmul.mubr.bf16.gmra.mrb[0].mxu0 %v491
  %v621 = vpop.f32.mrb[0].mxu0
  %v622 = vadd.f32 0.0, %v621
  %v623 = vpop.f32.mrb[0].mxu0
  %v624 = vpop.f32.mrb[0].mxu0
  %v625 = vadd.f32 0.0, %v624
  %v626 = vpop.f32.mrb[0].mxu0
  %627 = vmatprep.mubr.bf16.mxu0 0
  %628 = vmatmul.mubr.bf16.gmra.mrb[0].mxu0 %v492
  %v629 = vpop.f32.mrb[0].mxu0
  %v630 = vadd.f32 0.0, %v629
  %v631 = vpop.f32.mrb[0].mxu0
  %v632 = vpop.f32.mrb[0].mxu0
  %v633 = vadd.f32 0.0, %v632
  %v634 = vpop.f32.mrb[0].mxu0
  %635 = vmatprep.mubr.bf16.mxu0 0
  %636 = vmatmul.mubr.bf16.gmra.mrb[0].mxu0 %v493
  %v637 = vpop.f32.mrb[0].mxu0
  %v638 = vadd.f32 0.0, %v637
  %v639 = vpop.f32.mrb[0].mxu0
  %v640 = vpop.f32.mrb[0].mxu0
  %v641 = vadd.f32 0.0, %v640
  %v642 = vpop.f32.mrb[0].mxu0
  %643 = vmatprep.mubr.bf16.mxu0 0
  %644 = vmatmul.mubr.bf16.gmra.mrb[0].mxu0 %v494
  %v645 = vpop.f32.mrb[0].mxu0
  %v646 = vadd.f32 0.0, %v645
  %v647 = vpop.f32.mrb[0].mxu0
  %v648 = vpop.f32.mrb[0].mxu0
  %v649 = vadd.f32 0.0, %v648
  %v650 = vpop.f32.mrb[0].mxu0
  %651 = vmatprep.mubr.bf16.mxu0 0
  %652 = vmatmul.mubr.bf16.gmra.mrb[0].mxu0 %v495
  %v653 = vpop.f32.mrb[0].mxu0
  %v654 = vadd.f32 0.0, %v653
  %v655 = vpop.f32.mrb[0].mxu0
  %v656 = vpop.f32.mrb[0].mxu0
  %v657 = vadd.f32 0.0, %v656
  %v658 = vpop.f32.mrb[0].mxu0
  %659 = vmatprep.mubr.bf16.mxu0 0
  %660 = vmatmul.mubr.bf16.gmra.mrb[0].mxu0 %v496
  %v661 = vpop.f32.mrb[0].mxu0
  %v662 = vadd.f32 0.0, %v661
  %v663 = vpop.f32.mrb[0].mxu0
  %v664 = vpop.f32.mrb[0].mxu0
  %v665 = vadd.f32 0.0, %v664
  %v666 = vpop.f32.mrb[0].mxu0
  %667 = vmatprep.mubr.bf16.mxu0 0
  %668 = vmatmul.mubr.bf16.gmra.mrb[0].mxu0 %v497
  %v669 = vpop.f32.mrb[0].mxu0
  %v670 = vadd.f32 0.0, %v669
  %v671 = vpop.f32.mrb[0].mxu0
  %v672 = vpop.f32.mrb[0].mxu0
  %v673 = vadd.f32 0.0, %v672
  %v674 = vpop.f32.mrb[0].mxu0
  %675 = vmatprep.mubr.bf16.mxu0 0
  %676 = vmatmul.mubr.bf16.gmra.mrb[0].mxu0 %v498
  %v677 = vpop.f32.mrb[0].mxu0
  %v678 = vadd.f32 0.0, %v677
  %v679 = vpop.f32.mrb[0].mxu0
  %v680 = vpop.f32.mrb[0].mxu0
  %v681 = vadd.f32 0.0, %v680
  %v682 = vpop.f32.mrb[0].mxu0
  %683 = vmatprep.mubr.bf16.mxu0 0
  %684 = vmatmul.mubr.bf16.gmra.mrb[0].mxu0 %v499
  %v685 = vpop.f32.mrb[0].mxu0
  %v686 = vadd.f32 0.0, %v685
  %v687 = vpop.f32.mrb[0].mxu0
  %v688 = vpop.f32.mrb[0].mxu0
  %v689 = vadd.f32 0.0, %v688
  %v690 = vpop.f32.mrb[0].mxu0
  %691 = vmatprep.mubr.bf16.mxu0 0
  %692 = vmatmul.mubr.bf16.gmra.mrb[0].mxu0 %v500
  %v693 = vpop.f32.mrb[0].mxu0
  %v694 = vadd.f32 0.0, %v693
  %v695 = vpop.f32.mrb[0].mxu0
  %v696 = vpop.f32.mrb[0].mxu0
  %v697 = vadd.f32 0.0, %v696
  %v698 = vpop.f32.mrb[0].mxu0
  %699 = vmatprep.mubr.bf16.mxu0 0
  %700 = vmatmul.mubr.bf16.gmra.mrb[0].mxu0 %v501
  %v701 = vpop.f32.mrb[0].mxu0
  %v702 = vadd.f32 0.0, %v701
  %v703 = vpop.f32.mrb[0].mxu0
  %v704 = vpop.f32.mrb[0].mxu0
  %v705 = vadd.f32 0.0, %v704
  %v706 = vpop.f32.mrb[0].mxu0
  %707 = vmatprep.mubr.bf16.mxu0 0
  %708 = vmatmul.mubr.bf16.gmra.mrb[0].mxu0 %v502
  %v709 = vpop.f32.mrb[0].mxu0
  %v710 = vadd.f32 0.0, %v709
  %v711 = vpop.f32.mrb[0].mxu0
  %v712 = vpop.f32.mrb[0].mxu0
  %v713 = vadd.f32 0.0, %v712
  %v714 = vpop.f32.mrb[0].mxu0
  %715 = vmatprep.mubr.bf16.mxu0 0
  %716 = vmatmul.mubr.bf16.gmra.mrb[0].mxu0 %v503
  %v717 = vpop.f32.mrb[0].mxu0
  %v718 = vadd.f32 0.0, %v717
  %v719 = vpop.f32.mrb[0].mxu0
  %v720 = vpop.f32.mrb[0].mxu0
  %v721 = vadd.f32 0.0, %v720
  %v722 = vpop.f32.mrb[0].mxu0
  %723 = vmatprep.mubr.bf16.mxu0 0
  %724 = vmatmul.mubr.bf16.gmra.mrb[0].mxu0 %v504
  %v725 = vpop.f32.mrb[0].mxu0
  %v726 = vadd.f32 0.0, %v725
  %v727 = vpop.f32.mrb[0].mxu0
  %v728 = vpop.f32.mrb[0].mxu0
  %v729 = vadd.f32 0.0, %v728
  %v730 = vpop.f32.mrb[0].mxu0
  %731 = vmatprep.mubr.bf16.mxu0 0
  %732 = vmatmul.mubr.bf16.gmra.mrb[0].mxu0 %v505
  %v733 = vpop.f32.mrb[0].mxu0
  %v734 = vadd.f32 0.0, %v733
  %v735 = vpop.f32.mrb[0].mxu0
  %v736 = vpop.f32.mrb[0].mxu0
  %v737 = vadd.f32 0.0, %v736
  %v738 = vpop.f32.mrb[0].mxu0
  %739 = vmatprep.mubr.bf16.mxu0 0
  %740 = vmatmul.mubr.bf16.gmra.mrb[0].mxu0 %v506
  %v741 = vpop.f32.mrb[0].mxu0
  %v742 = vadd.f32 0.0, %v741
  %v743 = vpop.f32.mrb[0].mxu0
  %v744 = vpop.f32.mrb[0].mxu0
  %v745 = vadd.f32 0.0, %v744
  %v746 = vpop.f32.mrb[0].mxu0
  %747 = vmatprep.mubr.bf16.mxu0 0
  %748 = vmatmul.mubr.bf16.gmra.mrb[0].mxu0 %v507
  %v749 = vpop.f32.mrb[0].mxu0
  %v750 = vadd.f32 0.0, %v749
  %v751 = vpop.f32.mrb[0].mxu0
  %v752 = vpop.f32.mrb[0].mxu0
  %v753 = vadd.f32 0.0, %v752
  %v754 = vpop.f32.mrb[0].mxu0
  %755 = vmatprep.mubr.bf16.mxu0 0
  %756 = vmatmul.mubr.bf16.gmra.mrb[0].mxu0 %v508
  %v757 = vpop.f32.mrb[0].mxu0
  %v758 = vadd.f32 0.0, %v757
  %v759 = vpop.f32.mrb[0].mxu0
  %v760 = vpop.f32.mrb[0].mxu0
  %v761 = vadd.f32 0.0, %v760
  %v762 = vpop.f32.mrb[0].mxu0
  %763 = vmatprep.mubr.bf16.mxu0 0
  %764 = vmatmul.mubr.bf16.gmra.mrb[0].mxu0 %v509
  %v765 = vpop.f32.mrb[0].mxu0
  %v766 = vadd.f32 0.0, %v765
  %v767 = vpop.f32.mrb[0].mxu0
  %v768 = vpop.f32.mrb[0].mxu0
  %v769 = vadd.f32 0.0, %v768
  %v770 = vpop.f32.mrb[0].mxu0
  %771 = vmatprep.mubr.bf16.mxu0 0
  %772 = vmatmul.mubr.bf16.gmra.mrb[0].mxu0 %v510
  %v773 = vpop.f32.mrb[0].mxu0
  %v774 = vadd.f32 0.0, %v773
  %v775 = vpop.f32.mrb[0].mxu0
  %v776 = vpop.f32.mrb[0].mxu0
  %v777 = vadd.f32 0.0, %v776
  %v778 = vpop.f32.mrb[0].mxu0
  %779 = vmatprep.mubr.bf16.mxu0 0
  %780 = vmatmul.mubr.bf16.gmra.mrb[0].mxu0 %v511
  %v781 = vpop.f32.mrb[0].mxu0
  %v782 = vadd.f32 0.0, %v781
  %v783 = vpop.f32.mrb[0].mxu0
  %v784 = vpop.f32.mrb[0].mxu0
  %v785 = vadd.f32 0.0, %v784
  %v786 = vpop.f32.mrb[0].mxu0
  %787 = vmatprep.mubr.bf16.mxu0 0
  %788 = vmatmul.mubr.bf16.gmra.mrb[0].mxu0 %v512
  %v789 = vpop.f32.mrb[0].mxu0
  %v790 = vadd.f32 0.0, %v789
  %v791 = vpop.f32.mrb[0].mxu0
  %v792 = vpop.f32.mrb[0].mxu0
  %v793 = vadd.f32 0.0, %v792
  %v794 = vpop.f32.mrb[0].mxu0
  %795 = vmatprep.mubr.bf16.mxu0 0
  %796 = vmatmul.mubr.bf16.gmra.mrb[0].mxu0 %v513
  %v797 = vpop.f32.mrb[0].mxu0
  %v798 = vadd.f32 0.0, %v797
  %v799 = vpop.f32.mrb[0].mxu0
  %v800 = vpop.f32.mrb[0].mxu0
  %v801 = vadd.f32 0.0, %v800
  %v802 = vpop.f32.mrb[0].mxu0
  %803 = vmatprep.mubr.bf16.mxu0 0
  %804 = vmatmul.mubr.bf16.gmra.mrb[0].mxu0 %v514
  %v805 = vpop.f32.mrb[0].mxu0
  %v806 = vadd.f32 0.0, %v805
  %v807 = vpop.f32.mrb[0].mxu0
  %v808 = vpop.f32.mrb[0].mxu0
  %v809 = vadd.f32 0.0, %v808
  %v810 = vpop.f32.mrb[0].mxu0
  %811 = vmatprep.mubr.bf16.mxu0 0
  %812 = vmatmul.mubr.bf16.gmra.mrb[0].mxu0 %v515
  %v813 = vpop.f32.mrb[0].mxu0
  %v814 = vadd.f32 0.0, %v813
  %v815 = vpop.f32.mrb[0].mxu0
  %v816 = vpop.f32.mrb[0].mxu0
  %v817 = vadd.f32 0.0, %v816
  %v818 = vpop.f32.mrb[0].mxu0
  %819 = vmatprep.mubr.bf16.mxu0 0
  %820 = vmatmul.mubr.bf16.gmra.mrb[0].mxu0 %v516
  %v821 = vpop.f32.mrb[0].mxu0
  %v822 = vadd.f32 0.0, %v821
  %v823 = vpop.f32.mrb[0].mxu0
  %v824 = vpop.f32.mrb[0].mxu0
  %v825 = vadd.f32 0.0, %v824
  %v826 = vpop.f32.mrb[0].mxu0
  %827 = vmatprep.mubr.bf16.mxu0 0
  %828 = vmatmul.mubr.bf16.gmra.mrb[0].mxu0 %v517
  %v829 = vpop.f32.mrb[0].mxu0
  %v830 = vadd.f32 0.0, %v829
  %v831 = vpop.f32.mrb[0].mxu0
  %v832 = vpop.f32.mrb[0].mxu0
  %v833 = vadd.f32 0.0, %v832
  %v834 = vpop.f32.mrb[0].mxu0
  %835 = vmatprep.mubr.bf16.mxu0 0
  %836 = vmatmul.mubr.bf16.gmra.mrb[0].mxu0 %v518
  %v837 = vpop.f32.mrb[0].mxu0
  %v838 = vadd.f32 0.0, %v837
  %v839 = vpop.f32.mrb[0].mxu0
  %v840 = vpop.f32.mrb[0].mxu0
  %v841 = vadd.f32 0.0, %v840
  %v842 = vpop.f32.mrb[0].mxu0
  %843 = vmatprep.mubr.bf16.mxu0 0
  %844 = vmatmul.mubr.bf16.gmra.mrb[0].mxu0 %v519
  %v845 = vpop.f32.mrb[0].mxu0
  %v846 = vadd.f32 0.0, %v845
  %v847 = vpop.f32.mrb[0].mxu0
  %v848 = vpop.f32.mrb[0].mxu0
  %v849 = vadd.f32 0.0, %v848
  %v850 = vpop.f32.mrb[0].mxu0
  %851 = vmatprep.mubr.bf16.mxu0 0
  %852 = vmatmul.mubr.bf16.gmra.mrb[0].mxu0 %v520
  %v853 = vpop.f32.mrb[0].mxu0
  %v854 = vadd.f32 0.0, %v853
  %v855 = vpop.f32.mrb[0].mxu0
  %v856 = vpop.f32.mrb[0].mxu0
  %v857 = vadd.f32 0.0, %v856
  %v858 = vpop.f32.mrb[0].mxu0
  %859 = vmatprep.mubr.bf16.mxu0 0
  %860 = vmatmul.mubr.bf16.gmra.mrb[0].mxu0 %v521
  %v861 = vpop.f32.mrb[0].mxu0
  %v862 = vadd.f32 0.0, %v861
  %v863 = vpop.f32.mrb[0].mxu0
  %v864 = vpop.f32.mrb[0].mxu0
  %v865 = vadd.f32 0.0, %v864
  %v866 = vpop.f32.mrb[0].mxu0
  %867 = vmatprep.mubr.bf16.mxu0 0
  %868 = vmatmul.mubr.bf16.gmra.mrb[0].mxu0 %v522
  %v869 = vpop.f32.mrb[0].mxu0
  %v870 = vadd.f32 0.0, %v869
  %v871 = vpop.f32.mrb[0].mxu0
  %v872 = vpop.f32.mrb[0].mxu0
  %v873 = vadd.f32 0.0, %v872
  %v874 = vpop.f32.mrb[0].mxu0
  %875 = vdwg.mxu0
  %v876 = vadd.f32 %v97, %v622
  %v877 = vadd.f32 %v98, %v625
  %v878 = vadd.f32 %v99, %v630
  %v879 = vadd.f32 %v100, %v633
  %v880 = vadd.f32 %v101, %v638
  %v881 = vadd.f32 %v102, %v641
  %v882 = vadd.f32 %v103, %v646
  %v883 = vadd.f32 %v104, %v649
  %v884 = vadd.f32 %v105, %v654
  %v885 = vadd.f32 %v106, %v657
  %v886 = vadd.f32 %v107, %v662
  %v887 = vadd.f32 %v108, %v665
  %v888 = vadd.f32 %v109, %v670
  %v889 = vadd.f32 %v110, %v673
  %v890 = vadd.f32 %v111, %v678
  %v891 = vadd.f32 %v112, %v681
  %v892 = vadd.f32 %v113, %v686
  %v893 = vadd.f32 %v114, %v689
  %v894 = vadd.f32 %v115, %v694
  %v895 = vadd.f32 %v116, %v697
  %v896 = vadd.f32 %v117, %v702
  %v897 = vadd.f32 %v118, %v705
  %v898 = vadd.f32 %v119, %v710
  %v899 = vadd.f32 %v120, %v713
  %v900 = vadd.f32 %v121, %v718
  %v901 = vadd.f32 %v122, %v721
  %v902 = vadd.f32 %v123, %v726
  %v903 = vadd.f32 %v124, %v729
  %v904 = vadd.f32 %v125, %v734
  %v905 = vadd.f32 %v126, %v737
  %v906 = vadd.f32 %v127, %v742
  %v907 = vadd.f32 %v128, %v745
  %v908 = vadd.f32 %v129, %v750
  %v909 = vadd.f32 %v130, %v753
  %v910 = vadd.f32 %v131, %v758
  %v911 = vadd.f32 %v132, %v761
  %v912 = vadd.f32 %v133, %v766
  %v913 = vadd.f32 %v134, %v769
  %v914 = vadd.f32 %v135, %v774
  %v915 = vadd.f32 %v136, %v777
  %v916 = vadd.f32 %v137, %v782
  %v917 = vadd.f32 %v138, %v785
  %v918 = vadd.f32 %v139, %v790
  %v919 = vadd.f32 %v140, %v793
  %v920 = vadd.f32 %v141, %v798
  %v921 = vadd.f32 %v142, %v801
  %v922 = vadd.f32 %v143, %v806
  %v923 = vadd.f32 %v144, %v809
  %v924 = vadd.f32 %v145, %v814
  %v925 = vadd.f32 %v146, %v817
  %v926 = vadd.f32 %v147, %v822
  %v927 = vadd.f32 %v148, %v825
  %v928 = vadd.f32 %v149, %v830
  %v929 = vadd.f32 %v150, %v833
  %v930 = vadd.f32 %v151, %v838
  %v931 = vadd.f32 %v152, %v841
  %v932 = vadd.f32 %v153, %v846
  %v933 = vadd.f32 %v154, %v849
  %v934 = vadd.f32 %v155, %v854
  %v935 = vadd.f32 %v156, %v857
  %v936 = vadd.f32 %v157, %v862
  %v937 = vadd.f32 %v158, %v865
  %v938 = vadd.f32 %v159, %v870
  %v939 = vadd.f32 %v160, %v873
  %v940 = vld [vmem:[%s1] sm:$0xf]
  %v941 = vld [vmem:[%s1 + $0x4] sm:$0xf]
  %v942 = vld [vmem:[%s1 + $0x8] sm:$0xf]
  %v943 = vld [vmem:[%s1 + $0xc] sm:$0xf]
  %v944 = vld [vmem:[%s1 + $0x10] sm:$0xf]
  %v945 = vld [vmem:[%s1 + $0x14] sm:$0xf]
  %v946 = vld [vmem:[%s1 + $0x18] sm:$0xf]
  %v947 = vld [vmem:[%s1 + $0x1c] sm:$0xf]
  %v948 = vld [vmem:[%s1 + $0x20] sm:$0xf]
  %v949 = vld [vmem:[%s1 + $0x24] sm:$0xf]
  %v950 = vld [vmem:[%s1 + $0x28] sm:$0xf]
  %v951 = vld [vmem:[%s1 + $0x2c] sm:$0xf]
  %v952 = vld [vmem:[%s1 + $0x30] sm:$0xf]
  %v953 = vld [vmem:[%s1 + $0x34] sm:$0xf]
  %v954 = vld [vmem:[%s1 + $0x38] sm:$0xf]
  %v955 = vld [vmem:[%s1 + $0x3c] sm:$0xf]
  %v956 = vld [vmem:[%s1 + $0x40] sm:$0xf]
  %v957 = vld [vmem:[%s1 + $0x44] sm:$0xf]
  %v958 = vld [vmem:[%s1 + $0x48] sm:$0xf]
  %v959 = vld [vmem:[%s1 + $0x4c] sm:$0xf]
  %v960 = vld [vmem:[%s1 + $0x50] sm:$0xf]
  %v961 = vld [vmem:[%s1 + $0x54] sm:$0xf]
  %v962 = vld [vmem:[%s1 + $0x58] sm:$0xf]
  %v963 = vld [vmem:[%s1 + $0x5c] sm:$0xf]
  %v964 = vld [vmem:[%s1 + $0x60] sm:$0xf]
  %v965 = vld [vmem:[%s1 + $0x64] sm:$0xf]
  %v966 = vld [vmem:[%s1 + $0x68] sm:$0xf]
  %v967 = vld [vmem:[%s1 + $0x6c] sm:$0xf]
  %v968 = vld [vmem:[%s1 + $0x70] sm:$0xf]
  %v969 = vld [vmem:[%s1 + $0x74] sm:$0xf]
  %v970 = vld [vmem:[%s1 + $0x78] sm:$0xf]
  %v971 = vld [vmem:[%s1 + $0x7c] sm:$0xf]
  %v972 = vld [vmem:[%s1 + $0x80] sm:$0xf]
  %v973 = vld [vmem:[%s1 + $0x84] sm:$0xf]
  %v974 = vld [vmem:[%s1 + $0x88] sm:$0xf]
  %v975 = vld [vmem:[%s1 + $0x8c] sm:$0xf]
  %v976 = vld [vmem:[%s1 + $0x90] sm:$0xf]
  %v977 = vld [vmem:[%s1 + $0x94] sm:$0xf]
  %v978 = vld [vmem:[%s1 + $0x98] sm:$0xf]
  %v979 = vld [vmem:[%s1 + $0x9c] sm:$0xf]
  %v980 = vld [vmem:[%s1 + $0xa0] sm:$0xf]
  %v981 = vld [vmem:[%s1 + $0xa4] sm:$0xf]
  %v982 = vld [vmem:[%s1 + $0xa8] sm:$0xf]
  %v983 = vld [vmem:[%s1 + $0xac] sm:$0xf]
  %v984 = vld [vmem:[%s1 + $0xb0] sm:$0xf]
  %v985 = vld [vmem:[%s1 + $0xb4] sm:$0xf]
  %v986 = vld [vmem:[%s1 + $0xb8] sm:$0xf]
  %v987 = vld [vmem:[%s1 + $0xbc] sm:$0xf]
  %v988 = vld [vmem:[%s1 + $0xc0] sm:$0xf]
  %v989 = vld [vmem:[%s1 + $0xc4] sm:$0xf]
  %v990 = vld [vmem:[%s1 + $0xc8] sm:$0xf]
  %v991 = vld [vmem:[%s1 + $0xcc] sm:$0xf]
  %v992 = vld [vmem:[%s1 + $0xd0] sm:$0xf]
  %v993 = vld [vmem:[%s1 + $0xd4] sm:$0xf]
  %v994 = vld [vmem:[%s1 + $0xd8] sm:$0xf]
  %v995 = vld [vmem:[%s1 + $0xdc] sm:$0xf]
  %v996 = vld [vmem:[%s1 + $0xe0] sm:$0xf]
  %v997 = vld [vmem:[%s1 + $0xe4] sm:$0xf]
  %v998 = vld [vmem:[%s1 + $0xe8] sm:$0xf]
  %v999 = vld [vmem:[%s1 + $0xec] sm:$0xf]
  %v1000 = vld [vmem:[%s1 + $0xf0] sm:$0xf]
  %v1001 = vld [vmem:[%s1 + $0xf4] sm:$0xf]
  %v1002 = vld [vmem:[%s1 + $0xf8] sm:$0xf]
  %v1003 = vld [vmem:[%s1 + $0xfc] sm:$0xf]
  %v1004 = vunpack.c.l.bf16 %v940
  %v1005 = vunpack.c.l.bf16 %v941
  %v1006 = vunpack.c.l.bf16 %v942
  %v1007 = vunpack.c.l.bf16 %v943
  %v1008 = vunpack.c.l.bf16 %v944
  %v1009 = vunpack.c.l.bf16 %v945
  %v1010 = vunpack.c.l.bf16 %v946
  %v1011 = vunpack.c.l.bf16 %v947
  %v1012 = vunpack.c.l.bf16 %v948
  %v1013 = vunpack.c.l.bf16 %v949
  %v1014 = vunpack.c.l.bf16 %v950
  %v1015 = vunpack.c.l.bf16 %v951
  %v1016 = vunpack.c.l.bf16 %v952
  %v1017 = vunpack.c.l.bf16 %v953
  %v1018 = vunpack.c.l.bf16 %v954
  %v1019 = vunpack.c.l.bf16 %v955
  %v1020 = vunpack.c.l.bf16 %v956
  %v1021 = vunpack.c.l.bf16 %v957
  %v1022 = vunpack.c.l.bf16 %v958
  %v1023 = vunpack.c.l.bf16 %v959
  %v1024 = vunpack.c.l.bf16 %v960
  %v1025 = vunpack.c.l.bf16 %v961
  %v1026 = vunpack.c.l.bf16 %v962
  %v1027 = vunpack.c.l.bf16 %v963
  %v1028 = vunpack.c.l.bf16 %v964
  %v1029 = vunpack.c.l.bf16 %v965
  %v1030 = vunpack.c.l.bf16 %v966
  %v1031 = vunpack.c.l.bf16 %v967
  %v1032 = vunpack.c.l.bf16 %v968
  %v1033 = vunpack.c.l.bf16 %v969
  %v1034 = vunpack.c.l.bf16 %v970
  %v1035 = vunpack.c.l.bf16 %v971
  %v1036 = vunpack.c.l.bf16 %v972
  %v1037 = vunpack.c.l.bf16 %v973
  %v1038 = vunpack.c.l.bf16 %v974
  %v1039 = vunpack.c.l.bf16 %v975
  %v1040 = vunpack.c.l.bf16 %v976
  %v1041 = vunpack.c.l.bf16 %v977
  %v1042 = vunpack.c.l.bf16 %v978
  %v1043 = vunpack.c.l.bf16 %v979
  %v1044 = vunpack.c.l.bf16 %v980
  %v1045 = vunpack.c.l.bf16 %v981
  %v1046 = vunpack.c.l.bf16 %v982
  %v1047 = vunpack.c.l.bf16 %v983
  %v1048 = vunpack.c.l.bf16 %v984
  %v1049 = vunpack.c.l.bf16 %v985
  %v1050 = vunpack.c.l.bf16 %v986
  %v1051 = vunpack.c.l.bf16 %v987
  %v1052 = vunpack.c.l.bf16 %v988
  %v1053 = vunpack.c.l.bf16 %v989
  %v1054 = vunpack.c.l.bf16 %v990
  %v1055 = vunpack.c.l.bf16 %v991
  %v1056 = vunpack.c.l.bf16 %v992
  %v1057 = vunpack.c.l.bf16 %v993
  %v1058 = vunpack.c.l.bf16 %v994
  %v1059 = vunpack.c.l.bf16 %v995
  %v1060 = vunpack.c.l.bf16 %v996
  %v1061 = vunpack.c.l.bf16 %v997
  %v1062 = vunpack.c.l.bf16 %v998
  %v1063 = vunpack.c.l.bf16 %v999
  %v1064 = vunpack.c.l.bf16 %v1000
  %v1065 = vunpack.c.l.bf16 %v1001
  %v1066 = vunpack.c.l.bf16 %v1002
  %v1067 = vunpack.c.l.bf16 %v1003
  %v1068 = vld [vmem:[%s6 + $0x1] sm:$0x1]
  %v1069 = vlaneseq
  %v1070 = vshrl.u32 %v1069, 7
  %v1071 = vsub.s32 0, %v1070
  %v1072 = vrot.slane %v1068, %v1071
  %v1073 = vmul.f32 %v1004, %v1072
  %v1074 = vmul.f32 %v1005, %v1072
  %v1075 = vmul.f32 %v1006, %v1072
  %v1076 = vmul.f32 %v1007, %v1072
  %v1077 = vmul.f32 %v1008, %v1072
  %v1078 = vmul.f32 %v1009, %v1072
  %v1079 = vmul.f32 %v1010, %v1072
  %v1080 = vmul.f32 %v1011, %v1072
  %v1081 = vmul.f32 %v1012, %v1072
  %v1082 = vmul.f32 %v1013, %v1072
  %v1083 = vmul.f32 %v1014, %v1072
  %v1084 = vmul.f32 %v1015, %v1072
  %v1085 = vmul.f32 %v1016, %v1072
  %v1086 = vmul.f32 %v1017, %v1072
  %v1087 = vmul.f32 %v1018, %v1072
  %v1088 = vmul.f32 %v1019, %v1072
  %v1089 = vmul.f32 %v1020, %v1072
  %v1090 = vmul.f32 %v1021, %v1072
  %v1091 = vmul.f32 %v1022, %v1072
  %v1092 = vmul.f32 %v1023, %v1072
  %v1093 = vmul.f32 %v1024, %v1072
  %v1094 = vmul.f32 %v1025, %v1072
  %v1095 = vmul.f32 %v1026, %v1072
  %v1096 = vmul.f32 %v1027, %v1072
  %v1097 = vmul.f32 %v1028, %v1072
  %v1098 = vmul.f32 %v1029, %v1072
  %v1099 = vmul.f32 %v1030, %v1072
  %v1100 = vmul.f32 %v1031, %v1072
  %v1101 = vmul.f32 %v1032, %v1072
  %v1102 = vmul.f32 %v1033, %v1072
  %v1103 = vmul.f32 %v1034, %v1072
  %v1104 = vmul.f32 %v1035, %v1072
  %v1105 = vmul.f32 %v1036, %v1072
  %v1106 = vmul.f32 %v1037, %v1072
  %v1107 = vmul.f32 %v1038, %v1072
  %v1108 = vmul.f32 %v1039, %v1072
  %v1109 = vmul.f32 %v1040, %v1072
  %v1110 = vmul.f32 %v1041, %v1072
  %v1111 = vmul.f32 %v1042, %v1072
  %v1112 = vmul.f32 %v1043, %v1072
  %v1113 = vmul.f32 %v1044, %v1072
  %v1114 = vmul.f32 %v1045, %v1072
  %v1115 = vmul.f32 %v1046, %v1072
  %v1116 = vmul.f32 %v1047, %v1072
  %v1117 = vmul.f32 %v1048, %v1072
  %v1118 = vmul.f32 %v1049, %v1072
  %v1119 = vmul.f32 %v1050, %v1072
  %v1120 = vmul.f32 %v1051, %v1072
  %v1121 = vmul.f32 %v1052, %v1072
  %v1122 = vmul.f32 %v1053, %v1072
  %v1123 = vmul.f32 %v1054, %v1072
  %v1124 = vmul.f32 %v1055, %v1072
  %v1125 = vmul.f32 %v1056, %v1072
  %v1126 = vmul.f32 %v1057, %v1072
  %v1127 = vmul.f32 %v1058, %v1072
  %v1128 = vmul.f32 %v1059, %v1072
  %v1129 = vmul.f32 %v1060, %v1072
  %v1130 = vmul.f32 %v1061, %v1072
  %v1131 = vmul.f32 %v1062, %v1072
  %v1132 = vmul.f32 %v1063, %v1072
  %v1133 = vmul.f32 %v1064, %v1072
  %v1134 = vmul.f32 %v1065, %v1072
  %v1135 = vmul.f32 %v1066, %v1072
  %v1136 = vmul.f32 %v1067, %v1072
  %v1137 = vld [vmem:[%s7 + $0x1] sm:$0x1]
  %v1138 = vlaneseq
  %v1139 = vshrl.u32 %v1138, 7
  %v1140 = vsub.s32 0, %v1139
  %v1141 = vrot.slane %v1137, %v1140
  %v1142 = vadd.f32 %v1073, %v1141
  %v1143 = vadd.f32 %v1074, %v1141
  %v1144 = vadd.f32 %v1075, %v1141
  %v1145 = vadd.f32 %v1076, %v1141
  %v1146 = vadd.f32 %v1077, %v1141
  %v1147 = vadd.f32 %v1078, %v1141
  %v1148 = vadd.f32 %v1079, %v1141
  %v1149 = vadd.f32 %v1080, %v1141
  %v1150 = vadd.f32 %v1081, %v1141
  %v1151 = vadd.f32 %v1082, %v1141
  %v1152 = vadd.f32 %v1083, %v1141
  %v1153 = vadd.f32 %v1084, %v1141
  %v1154 = vadd.f32 %v1085, %v1141
  %v1155 = vadd.f32 %v1086, %v1141
  %v1156 = vadd.f32 %v1087, %v1141
  %v1157 = vadd.f32 %v1088, %v1141
  %v1158 = vadd.f32 %v1089, %v1141
  %v1159 = vadd.f32 %v1090, %v1141
  %v1160 = vadd.f32 %v1091, %v1141
  %v1161 = vadd.f32 %v1092, %v1141
  %v1162 = vadd.f32 %v1093, %v1141
  %v1163 = vadd.f32 %v1094, %v1141
  %v1164 = vadd.f32 %v1095, %v1141
  %v1165 = vadd.f32 %v1096, %v1141
  %v1166 = vadd.f32 %v1097, %v1141
  %v1167 = vadd.f32 %v1098, %v1141
  %v1168 = vadd.f32 %v1099, %v1141
  %v1169 = vadd.f32 %v1100, %v1141
  %v1170 = vadd.f32 %v1101, %v1141
  %v1171 = vadd.f32 %v1102, %v1141
  %v1172 = vadd.f32 %v1103, %v1141
  %v1173 = vadd.f32 %v1104, %v1141
  %v1174 = vadd.f32 %v1105, %v1141
  %v1175 = vadd.f32 %v1106, %v1141
  %v1176 = vadd.f32 %v1107, %v1141
  %v1177 = vadd.f32 %v1108, %v1141
  %v1178 = vadd.f32 %v1109, %v1141
  %v1179 = vadd.f32 %v1110, %v1141
  %v1180 = vadd.f32 %v1111, %v1141
  %v1181 = vadd.f32 %v1112, %v1141
  %v1182 = vadd.f32 %v1113, %v1141
  %v1183 = vadd.f32 %v1114, %v1141
  %v1184 = vadd.f32 %v1115, %v1141
  %v1185 = vadd.f32 %v1116, %v1141
  %v1186 = vadd.f32 %v1117, %v1141
  %v1187 = vadd.f32 %v1118, %v1141
  %v1188 = vadd.f32 %v1119, %v1141
  %v1189 = vadd.f32 %v1120, %v1141
  %v1190 = vadd.f32 %v1121, %v1141
  %v1191 = vadd.f32 %v1122, %v1141
  %v1192 = vadd.f32 %v1123, %v1141
  %v1193 = vadd.f32 %v1124, %v1141
  %v1194 = vadd.f32 %v1125, %v1141
  %v1195 = vadd.f32 %v1126, %v1141
  %v1196 = vadd.f32 %v1127, %v1141
  %v1197 = vadd.f32 %v1128, %v1141
  %v1198 = vadd.f32 %v1129, %v1141
  %v1199 = vadd.f32 %v1130, %v1141
  %v1200 = vadd.f32 %v1131, %v1141
  %v1201 = vadd.f32 %v1132, %v1141
  %v1202 = vadd.f32 %v1133, %v1141
  %v1203 = vadd.f32 %v1134, %v1141
  %v1204 = vadd.f32 %v1135, %v1141
  %v1205 = vadd.f32 %v1136, %v1141
  %v1206 = vmax.f32 %v1142, 0.0
  %v1207 = vmax.f32 %v1143, 0.0
  %v1208 = vmax.f32 %v1144, 0.0
  %v1209 = vmax.f32 %v1145, 0.0
  %v1210 = vmax.f32 %v1146, 0.0
  %v1211 = vmax.f32 %v1147, 0.0
  %v1212 = vmax.f32 %v1148, 0.0
  %v1213 = vmax.f32 %v1149, 0.0
  %v1214 = vmax.f32 %v1150, 0.0
  %v1215 = vmax.f32 %v1151, 0.0
  %v1216 = vmax.f32 %v1152, 0.0
  %v1217 = vmax.f32 %v1153, 0.0
  %v1218 = vmax.f32 %v1154, 0.0
  %v1219 = vmax.f32 %v1155, 0.0
  %v1220 = vmax.f32 %v1156, 0.0
  %v1221 = vmax.f32 %v1157, 0.0
  %v1222 = vmax.f32 %v1158, 0.0
  %v1223 = vmax.f32 %v1159, 0.0
  %v1224 = vmax.f32 %v1160, 0.0
  %v1225 = vmax.f32 %v1161, 0.0
  %v1226 = vmax.f32 %v1162, 0.0
  %v1227 = vmax.f32 %v1163, 0.0
  %v1228 = vmax.f32 %v1164, 0.0
  %v1229 = vmax.f32 %v1165, 0.0
  %v1230 = vmax.f32 %v1166, 0.0
  %v1231 = vmax.f32 %v1167, 0.0
  %v1232 = vmax.f32 %v1168, 0.0
  %v1233 = vmax.f32 %v1169, 0.0
  %v1234 = vmax.f32 %v1170, 0.0
  %v1235 = vmax.f32 %v1171, 0.0
  %v1236 = vmax.f32 %v1172, 0.0
  %v1237 = vmax.f32 %v1173, 0.0
  %v1238 = vmax.f32 %v1174, 0.0
  %v1239 = vmax.f32 %v1175, 0.0
  %v1240 = vmax.f32 %v1176, 0.0
  %v1241 = vmax.f32 %v1177, 0.0
  %v1242 = vmax.f32 %v1178, 0.0
  %v1243 = vmax.f32 %v1179, 0.0
  %v1244 = vmax.f32 %v1180, 0.0
  %v1245 = vmax.f32 %v1181, 0.0
  %v1246 = vmax.f32 %v1182, 0.0
  %v1247 = vmax.f32 %v1183, 0.0
  %v1248 = vmax.f32 %v1184, 0.0
  %v1249 = vmax.f32 %v1185, 0.0
  %v1250 = vmax.f32 %v1186, 0.0
  %v1251 = vmax.f32 %v1187, 0.0
  %v1252 = vmax.f32 %v1188, 0.0
  %v1253 = vmax.f32 %v1189, 0.0
  %v1254 = vmax.f32 %v1190, 0.0
  %v1255 = vmax.f32 %v1191, 0.0
  %v1256 = vmax.f32 %v1192, 0.0
  %v1257 = vmax.f32 %v1193, 0.0
  %v1258 = vmax.f32 %v1194, 0.0
  %v1259 = vmax.f32 %v1195, 0.0
  %v1260 = vmax.f32 %v1196, 0.0
  %v1261 = vmax.f32 %v1197, 0.0
  %v1262 = vmax.f32 %v1198, 0.0
  %v1263 = vmax.f32 %v1199, 0.0
  %v1264 = vmax.f32 %v1200, 0.0
  %v1265 = vmax.f32 %v1201, 0.0
  %v1266 = vmax.f32 %v1202, 0.0
  %v1267 = vmax.f32 %v1203, 0.0
  %v1268 = vmax.f32 %v1204, 0.0
  %v1269 = vmax.f32 %v1205, 0.0
  %v1270 = vpack.c.bf16 %v1207, %v1206
  %v1271 = vpack.c.bf16 %v1209, %v1208
  %v1272 = vpack.c.bf16 %v1211, %v1210
  %v1273 = vpack.c.bf16 %v1213, %v1212
  %v1274 = vpack.c.bf16 %v1215, %v1214
  %v1275 = vpack.c.bf16 %v1217, %v1216
  %v1276 = vpack.c.bf16 %v1219, %v1218
  %v1277 = vpack.c.bf16 %v1221, %v1220
  %v1278 = vpack.c.bf16 %v1223, %v1222
  %v1279 = vpack.c.bf16 %v1225, %v1224
  %v1280 = vpack.c.bf16 %v1227, %v1226
  %v1281 = vpack.c.bf16 %v1229, %v1228
  %v1282 = vpack.c.bf16 %v1231, %v1230
  %v1283 = vpack.c.bf16 %v1233, %v1232
  %v1284 = vpack.c.bf16 %v1235, %v1234
  %v1285 = vpack.c.bf16 %v1237, %v1236
  %v1286 = vpack.c.bf16 %v1239, %v1238
  %v1287 = vpack.c.bf16 %v1241, %v1240
  %v1288 = vpack.c.bf16 %v1243, %v1242
  %v1289 = vpack.c.bf16 %v1245, %v1244
  %v1290 = vpack.c.bf16 %v1247, %v1246
  %v1291 = vpack.c.bf16 %v1249, %v1248
  %v1292 = vpack.c.bf16 %v1251, %v1250
  %v1293 = vpack.c.bf16 %v1253, %v1252
  %v1294 = vpack.c.bf16 %v1255, %v1254
  %v1295 = vpack.c.bf16 %v1257, %v1256
  %v1296 = vpack.c.bf16 %v1259, %v1258
  %v1297 = vpack.c.bf16 %v1261, %v1260
  %v1298 = vpack.c.bf16 %v1263, %v1262
  %v1299 = vpack.c.bf16 %v1265, %v1264
  %v1300 = vpack.c.bf16 %v1267, %v1266
  %v1301 = vpack.c.bf16 %v1269, %v1268
  %s1302 = scalar_lea.vmem %s8, 64
  %v1303 = vld [vmem:[%s1302] sm:$0xf]
  %v1304 = vld [vmem:[%s1302 + $0x4] sm:$0xf]
  %v1305 = vld [vmem:[%s1302 + $0x8] sm:$0xf]
  %v1306 = vld [vmem:[%s1302 + $0xc] sm:$0xf]
  %v1307 = vld [vmem:[%s1302 + $0x10] sm:$0xf]
  %v1308 = vld [vmem:[%s1302 + $0x14] sm:$0xf]
  %v1309 = vld [vmem:[%s1302 + $0x18] sm:$0xf]
  %v1310 = vld [vmem:[%s1302 + $0x1c] sm:$0xf]
  %v1311 = vld [vmem:[%s1302 + $0x20] sm:$0xf]
  %v1312 = vld [vmem:[%s1302 + $0x24] sm:$0xf]
  %v1313 = vld [vmem:[%s1302 + $0x28] sm:$0xf]
  %v1314 = vld [vmem:[%s1302 + $0x2c] sm:$0xf]
  %v1315 = vld [vmem:[%s1302 + $0x30] sm:$0xf]
  %v1316 = vld [vmem:[%s1302 + $0x34] sm:$0xf]
  %v1317 = vld [vmem:[%s1302 + $0x38] sm:$0xf]
  %v1318 = vld [vmem:[%s1302 + $0x3c] sm:$0xf]
  %v1335 = vunpack.c.l.b16 %v1303
  %v1336 = vunpack.c.l.b16 %v1304
  %v1337 = vunpack.c.l.b16 %v1305
  %v1338 = vunpack.c.l.b16 %v1306
  %v1339 = vunpack.c.l.b16 %v1307
  %v1340 = vunpack.c.l.b16 %v1308
  %v1341 = vunpack.c.l.b16 %v1309
  %v1342 = vunpack.c.l.b16 %v1310
  %v1343 = vunpack.c.l.b16 %v1311
  %v1344 = vunpack.c.l.b16 %v1312
  %v1345 = vunpack.c.l.b16 %v1313
  %v1346 = vunpack.c.l.b16 %v1314
  %v1347 = vunpack.c.l.b16 %v1315
  %v1348 = vunpack.c.l.b16 %v1316
  %v1349 = vunpack.c.l.b16 %v1317
  %v1350 = vunpack.c.l.b16 %v1318
  %v1351 = vpack.c.b16 %v1336, %v1335
  %v1352 = vpack.c.b16 %v1338, %v1337
  %v1353 = vpack.c.b16 %v1340, %v1339
  %v1354 = vpack.c.b16 %v1342, %v1341
  %v1355 = vpack.c.b16 %v1344, %v1343
  %v1356 = vpack.c.b16 %v1346, %v1345
  %v1357 = vpack.c.b16 %v1348, %v1347
  %v1358 = vpack.c.b16 %v1350, %v1349
  %1367 = vmatprep.subr.bf16.mxu0 0
  %1368 = vmatpush1.bf16.msra.mxu0 %v1351
  %1369 = vmatprep.subr.bf16.mxu0 0
  %1370 = vmatpush1.bf16.msra.mxu0 %v1352
  %1371 = vmatprep.subr.bf16.mxu0 0
  %1372 = vmatpush1.bf16.msra.mxu0 %v1353
  %1373 = vmatprep.subr.bf16.mxu0 0
  %1374 = vmatpush1.bf16.msra.mxu0 %v1354
  %1375 = vmatprep.subr.bf16.mxu0 0
  %1376 = vmatpush1.bf16.msra.mxu0 %v1355
  %1377 = vmatprep.subr.bf16.mxu0 0
  %1378 = vmatpush1.bf16.msra.mxu0 %v1356
  %1379 = vmatprep.subr.bf16.mxu0 0
  %1380 = vmatpush1.bf16.msra.mxu0 %v1357
  %1381 = vmatprep.subr.bf16.mxu0 0
  %1382 = vmatpush1.bf16.msra.mxu0 %v1358
  %1383 = vmatprep.subr.bf16.mxu0 0
  %1384 = vmatpush1.bf16.msra.mxu0 0
  %1385 = vmatprep.subr.bf16.mxu0 0
  %1386 = vmatpush1.bf16.msra.mxu0 0
  %1387 = vmatprep.subr.bf16.mxu0 0
  %1388 = vmatpush1.bf16.msra.mxu0 0
  %1389 = vmatprep.subr.bf16.mxu0 0
  %1390 = vmatpush1.bf16.msra.mxu0 0
  %1391 = vmatprep.subr.bf16.mxu0 0
  %1392 = vmatpush1.bf16.msra.mxu0 0
  %1393 = vmatprep.subr.bf16.mxu0 0
  %1394 = vmatpush1.bf16.msra.mxu0 0
  %1395 = vmatprep.subr.bf16.mxu0 0
  %1396 = vmatpush1.bf16.msra.mxu0 0
  %1397 = vmatprep.subr.bf16.mxu0 0
  %1398 = vmatpush1.bf16.msra.mxu0 0
  %1399 = vmatprep.mubr.bf16.mxu0 0
  %1400 = vmatmul.mubr.bf16.gmra.mrb[0].mxu0 %v1270
  %v1401 = vpop.f32.mrb[0].mxu0
  %v1402 = vadd.f32 0.0, %v1401
  %v1403 = vpop.f32.mrb[0].mxu0
  %v1404 = vpop.f32.mrb[0].mxu0
  %v1405 = vadd.f32 0.0, %v1404
  %v1406 = vpop.f32.mrb[0].mxu0
  %1407 = vmatprep.mubr.bf16.mxu0 0
  %1408 = vmatmul.mubr.bf16.gmra.mrb[0].mxu0 %v1271
  %v1409 = vpop.f32.mrb[0].mxu0
  %v1410 = vadd.f32 0.0, %v1409
  %v1411 = vpop.f32.mrb[0].mxu0
  %v1412 = vpop.f32.mrb[0].mxu0
  %v1413 = vadd.f32 0.0, %v1412
  %v1414 = vpop.f32.mrb[0].mxu0
  %1415 = vmatprep.mubr.bf16.mxu0 0
  %1416 = vmatmul.mubr.bf16.gmra.mrb[0].mxu0 %v1272
  %v1417 = vpop.f32.mrb[0].mxu0
  %v1418 = vadd.f32 0.0, %v1417
  %v1419 = vpop.f32.mrb[0].mxu0
  %v1420 = vpop.f32.mrb[0].mxu0
  %v1421 = vadd.f32 0.0, %v1420
  %v1422 = vpop.f32.mrb[0].mxu0
  %1423 = vmatprep.mubr.bf16.mxu0 0
  %1424 = vmatmul.mubr.bf16.gmra.mrb[0].mxu0 %v1273
  %v1425 = vpop.f32.mrb[0].mxu0
  %v1426 = vadd.f32 0.0, %v1425
  %v1427 = vpop.f32.mrb[0].mxu0
  %v1428 = vpop.f32.mrb[0].mxu0
  %v1429 = vadd.f32 0.0, %v1428
  %v1430 = vpop.f32.mrb[0].mxu0
  %1431 = vmatprep.mubr.bf16.mxu0 0
  %1432 = vmatmul.mubr.bf16.gmra.mrb[0].mxu0 %v1274
  %v1433 = vpop.f32.mrb[0].mxu0
  %v1434 = vadd.f32 0.0, %v1433
  %v1435 = vpop.f32.mrb[0].mxu0
  %v1436 = vpop.f32.mrb[0].mxu0
  %v1437 = vadd.f32 0.0, %v1436
  %v1438 = vpop.f32.mrb[0].mxu0
  %1439 = vmatprep.mubr.bf16.mxu0 0
  %1440 = vmatmul.mubr.bf16.gmra.mrb[0].mxu0 %v1275
  %v1441 = vpop.f32.mrb[0].mxu0
  %v1442 = vadd.f32 0.0, %v1441
  %v1443 = vpop.f32.mrb[0].mxu0
  %v1444 = vpop.f32.mrb[0].mxu0
  %v1445 = vadd.f32 0.0, %v1444
  %v1446 = vpop.f32.mrb[0].mxu0
  %1447 = vmatprep.mubr.bf16.mxu0 0
  %1448 = vmatmul.mubr.bf16.gmra.mrb[0].mxu0 %v1276
  %v1449 = vpop.f32.mrb[0].mxu0
  %v1450 = vadd.f32 0.0, %v1449
  %v1451 = vpop.f32.mrb[0].mxu0
  %v1452 = vpop.f32.mrb[0].mxu0
  %v1453 = vadd.f32 0.0, %v1452
  %v1454 = vpop.f32.mrb[0].mxu0
  %1455 = vmatprep.mubr.bf16.mxu0 0
  %1456 = vmatmul.mubr.bf16.gmra.mrb[0].mxu0 %v1277
  %v1457 = vpop.f32.mrb[0].mxu0
  %v1458 = vadd.f32 0.0, %v1457
  %v1459 = vpop.f32.mrb[0].mxu0
  %v1460 = vpop.f32.mrb[0].mxu0
  %v1461 = vadd.f32 0.0, %v1460
  %v1462 = vpop.f32.mrb[0].mxu0
  %1463 = vmatprep.mubr.bf16.mxu0 0
  %1464 = vmatmul.mubr.bf16.gmra.mrb[0].mxu0 %v1278
  %v1465 = vpop.f32.mrb[0].mxu0
  %v1466 = vadd.f32 0.0, %v1465
  %v1467 = vpop.f32.mrb[0].mxu0
  %v1468 = vpop.f32.mrb[0].mxu0
  %v1469 = vadd.f32 0.0, %v1468
  %v1470 = vpop.f32.mrb[0].mxu0
  %1471 = vmatprep.mubr.bf16.mxu0 0
  %1472 = vmatmul.mubr.bf16.gmra.mrb[0].mxu0 %v1279
  %v1473 = vpop.f32.mrb[0].mxu0
  %v1474 = vadd.f32 0.0, %v1473
  %v1475 = vpop.f32.mrb[0].mxu0
  %v1476 = vpop.f32.mrb[0].mxu0
  %v1477 = vadd.f32 0.0, %v1476
  %v1478 = vpop.f32.mrb[0].mxu0
  %1479 = vmatprep.mubr.bf16.mxu0 0
  %1480 = vmatmul.mubr.bf16.gmra.mrb[0].mxu0 %v1280
  %v1481 = vpop.f32.mrb[0].mxu0
  %v1482 = vadd.f32 0.0, %v1481
  %v1483 = vpop.f32.mrb[0].mxu0
  %v1484 = vpop.f32.mrb[0].mxu0
  %v1485 = vadd.f32 0.0, %v1484
  %v1486 = vpop.f32.mrb[0].mxu0
  %1487 = vmatprep.mubr.bf16.mxu0 0
  %1488 = vmatmul.mubr.bf16.gmra.mrb[0].mxu0 %v1281
  %v1489 = vpop.f32.mrb[0].mxu0
  %v1490 = vadd.f32 0.0, %v1489
  %v1491 = vpop.f32.mrb[0].mxu0
  %v1492 = vpop.f32.mrb[0].mxu0
  %v1493 = vadd.f32 0.0, %v1492
  %v1494 = vpop.f32.mrb[0].mxu0
  %1495 = vmatprep.mubr.bf16.mxu0 0
  %1496 = vmatmul.mubr.bf16.gmra.mrb[0].mxu0 %v1282
  %v1497 = vpop.f32.mrb[0].mxu0
  %v1498 = vadd.f32 0.0, %v1497
  %v1499 = vpop.f32.mrb[0].mxu0
  %v1500 = vpop.f32.mrb[0].mxu0
  %v1501 = vadd.f32 0.0, %v1500
  %v1502 = vpop.f32.mrb[0].mxu0
  %1503 = vmatprep.mubr.bf16.mxu0 0
  %1504 = vmatmul.mubr.bf16.gmra.mrb[0].mxu0 %v1283
  %v1505 = vpop.f32.mrb[0].mxu0
  %v1506 = vadd.f32 0.0, %v1505
  %v1507 = vpop.f32.mrb[0].mxu0
  %v1508 = vpop.f32.mrb[0].mxu0
  %v1509 = vadd.f32 0.0, %v1508
  %v1510 = vpop.f32.mrb[0].mxu0
  %1511 = vmatprep.mubr.bf16.mxu0 0
  %1512 = vmatmul.mubr.bf16.gmra.mrb[0].mxu0 %v1284
  %v1513 = vpop.f32.mrb[0].mxu0
  %v1514 = vadd.f32 0.0, %v1513
  %v1515 = vpop.f32.mrb[0].mxu0
  %v1516 = vpop.f32.mrb[0].mxu0
  %v1517 = vadd.f32 0.0, %v1516
  %v1518 = vpop.f32.mrb[0].mxu0
  %1519 = vmatprep.mubr.bf16.mxu0 0
  %1520 = vmatmul.mubr.bf16.gmra.mrb[0].mxu0 %v1285
  %v1521 = vpop.f32.mrb[0].mxu0
  %v1522 = vadd.f32 0.0, %v1521
  %v1523 = vpop.f32.mrb[0].mxu0
  %v1524 = vpop.f32.mrb[0].mxu0
  %v1525 = vadd.f32 0.0, %v1524
  %v1526 = vpop.f32.mrb[0].mxu0
  %1527 = vmatprep.mubr.bf16.mxu0 0
  %1528 = vmatmul.mubr.bf16.gmra.mrb[0].mxu0 %v1286
  %v1529 = vpop.f32.mrb[0].mxu0
  %v1530 = vadd.f32 0.0, %v1529
  %v1531 = vpop.f32.mrb[0].mxu0
  %v1532 = vpop.f32.mrb[0].mxu0
  %v1533 = vadd.f32 0.0, %v1532
  %v1534 = vpop.f32.mrb[0].mxu0
  %1535 = vmatprep.mubr.bf16.mxu0 0
  %1536 = vmatmul.mubr.bf16.gmra.mrb[0].mxu0 %v1287
  %v1537 = vpop.f32.mrb[0].mxu0
  %v1538 = vadd.f32 0.0, %v1537
  %v1539 = vpop.f32.mrb[0].mxu0
  %v1540 = vpop.f32.mrb[0].mxu0
  %v1541 = vadd.f32 0.0, %v1540
  %v1542 = vpop.f32.mrb[0].mxu0
  %1543 = vmatprep.mubr.bf16.mxu0 0
  %1544 = vmatmul.mubr.bf16.gmra.mrb[0].mxu0 %v1288
  %v1545 = vpop.f32.mrb[0].mxu0
  %v1546 = vadd.f32 0.0, %v1545
  %v1547 = vpop.f32.mrb[0].mxu0
  %v1548 = vpop.f32.mrb[0].mxu0
  %v1549 = vadd.f32 0.0, %v1548
  %v1550 = vpop.f32.mrb[0].mxu0
  %1551 = vmatprep.mubr.bf16.mxu0 0
  %1552 = vmatmul.mubr.bf16.gmra.mrb[0].mxu0 %v1289
  %v1553 = vpop.f32.mrb[0].mxu0
  %v1554 = vadd.f32 0.0, %v1553
  %v1555 = vpop.f32.mrb[0].mxu0
  %v1556 = vpop.f32.mrb[0].mxu0
  %v1557 = vadd.f32 0.0, %v1556
  %v1558 = vpop.f32.mrb[0].mxu0
  %1559 = vmatprep.mubr.bf16.mxu0 0
  %1560 = vmatmul.mubr.bf16.gmra.mrb[0].mxu0 %v1290
  %v1561 = vpop.f32.mrb[0].mxu0
  %v1562 = vadd.f32 0.0, %v1561
  %v1563 = vpop.f32.mrb[0].mxu0
  %v1564 = vpop.f32.mrb[0].mxu0
  %v1565 = vadd.f32 0.0, %v1564
  %v1566 = vpop.f32.mrb[0].mxu0
  %1567 = vmatprep.mubr.bf16.mxu0 0
  %1568 = vmatmul.mubr.bf16.gmra.mrb[0].mxu0 %v1291
  %v1569 = vpop.f32.mrb[0].mxu0
  %v1570 = vadd.f32 0.0, %v1569
  %v1571 = vpop.f32.mrb[0].mxu0
  %v1572 = vpop.f32.mrb[0].mxu0
  %v1573 = vadd.f32 0.0, %v1572
  %v1574 = vpop.f32.mrb[0].mxu0
  %1575 = vmatprep.mubr.bf16.mxu0 0
  %1576 = vmatmul.mubr.bf16.gmra.mrb[0].mxu0 %v1292
  %v1577 = vpop.f32.mrb[0].mxu0
  %v1578 = vadd.f32 0.0, %v1577
  %v1579 = vpop.f32.mrb[0].mxu0
  %v1580 = vpop.f32.mrb[0].mxu0
  %v1581 = vadd.f32 0.0, %v1580
  %v1582 = vpop.f32.mrb[0].mxu0
  %1583 = vmatprep.mubr.bf16.mxu0 0
  %1584 = vmatmul.mubr.bf16.gmra.mrb[0].mxu0 %v1293
  %v1585 = vpop.f32.mrb[0].mxu0
  %v1586 = vadd.f32 0.0, %v1585
  %v1587 = vpop.f32.mrb[0].mxu0
  %v1588 = vpop.f32.mrb[0].mxu0
  %v1589 = vadd.f32 0.0, %v1588
  %v1590 = vpop.f32.mrb[0].mxu0
  %1591 = vmatprep.mubr.bf16.mxu0 0
  %1592 = vmatmul.mubr.bf16.gmra.mrb[0].mxu0 %v1294
  %v1593 = vpop.f32.mrb[0].mxu0
  %v1594 = vadd.f32 0.0, %v1593
  %v1595 = vpop.f32.mrb[0].mxu0
  %v1596 = vpop.f32.mrb[0].mxu0
  %v1597 = vadd.f32 0.0, %v1596
  %v1598 = vpop.f32.mrb[0].mxu0
  %1599 = vmatprep.mubr.bf16.mxu0 0
  %1600 = vmatmul.mubr.bf16.gmra.mrb[0].mxu0 %v1295
  %v1601 = vpop.f32.mrb[0].mxu0
  %v1602 = vadd.f32 0.0, %v1601
  %v1603 = vpop.f32.mrb[0].mxu0
  %v1604 = vpop.f32.mrb[0].mxu0
  %v1605 = vadd.f32 0.0, %v1604
  %v1606 = vpop.f32.mrb[0].mxu0
  %1607 = vmatprep.mubr.bf16.mxu0 0
  %1608 = vmatmul.mubr.bf16.gmra.mrb[0].mxu0 %v1296
  %v1609 = vpop.f32.mrb[0].mxu0
  %v1610 = vadd.f32 0.0, %v1609
  %v1611 = vpop.f32.mrb[0].mxu0
  %v1612 = vpop.f32.mrb[0].mxu0
  %v1613 = vadd.f32 0.0, %v1612
  %v1614 = vpop.f32.mrb[0].mxu0
  %1615 = vmatprep.mubr.bf16.mxu0 0
  %1616 = vmatmul.mubr.bf16.gmra.mrb[0].mxu0 %v1297
  %v1617 = vpop.f32.mrb[0].mxu0
  %v1618 = vadd.f32 0.0, %v1617
  %v1619 = vpop.f32.mrb[0].mxu0
  %v1620 = vpop.f32.mrb[0].mxu0
  %v1621 = vadd.f32 0.0, %v1620
  %v1622 = vpop.f32.mrb[0].mxu0
  %1623 = vmatprep.mubr.bf16.mxu0 0
  %1624 = vmatmul.mubr.bf16.gmra.mrb[0].mxu0 %v1298
  %v1625 = vpop.f32.mrb[0].mxu0
  %v1626 = vadd.f32 0.0, %v1625
  %v1627 = vpop.f32.mrb[0].mxu0
  %v1628 = vpop.f32.mrb[0].mxu0
  %v1629 = vadd.f32 0.0, %v1628
  %v1630 = vpop.f32.mrb[0].mxu0
  %1631 = vmatprep.mubr.bf16.mxu0 0
  %1632 = vmatmul.mubr.bf16.gmra.mrb[0].mxu0 %v1299
  %v1633 = vpop.f32.mrb[0].mxu0
  %v1634 = vadd.f32 0.0, %v1633
  %v1635 = vpop.f32.mrb[0].mxu0
  %v1636 = vpop.f32.mrb[0].mxu0
  %v1637 = vadd.f32 0.0, %v1636
  %v1638 = vpop.f32.mrb[0].mxu0
  %1639 = vmatprep.mubr.bf16.mxu0 0
  %1640 = vmatmul.mubr.bf16.gmra.mrb[0].mxu0 %v1300
  %v1641 = vpop.f32.mrb[0].mxu0
  %v1642 = vadd.f32 0.0, %v1641
  %v1643 = vpop.f32.mrb[0].mxu0
  %v1644 = vpop.f32.mrb[0].mxu0
  %v1645 = vadd.f32 0.0, %v1644
  %v1646 = vpop.f32.mrb[0].mxu0
  %1647 = vmatprep.mubr.bf16.mxu0 0
  %1648 = vmatmul.mubr.bf16.gmra.mrb[0].mxu0 %v1301
  %v1649 = vpop.f32.mrb[0].mxu0
  %v1650 = vadd.f32 0.0, %v1649
  %v1651 = vpop.f32.mrb[0].mxu0
  %v1652 = vpop.f32.mrb[0].mxu0
  %v1653 = vadd.f32 0.0, %v1652
  %v1654 = vpop.f32.mrb[0].mxu0
  %1655 = vdwg.mxu0
  %v1656 = vadd.f32 %v876, %v1402
  %v1657 = vadd.f32 %v877, %v1405
  %v1658 = vadd.f32 %v878, %v1410
  %v1659 = vadd.f32 %v879, %v1413
  %v1660 = vadd.f32 %v880, %v1418
  %v1661 = vadd.f32 %v881, %v1421
  %v1662 = vadd.f32 %v882, %v1426
  %v1663 = vadd.f32 %v883, %v1429
  %v1664 = vadd.f32 %v884, %v1434
  %v1665 = vadd.f32 %v885, %v1437
  %v1666 = vadd.f32 %v886, %v1442
  %v1667 = vadd.f32 %v887, %v1445
  %v1668 = vadd.f32 %v888, %v1450
  %v1669 = vadd.f32 %v889, %v1453
  %v1670 = vadd.f32 %v890, %v1458
  %v1671 = vadd.f32 %v891, %v1461
  %v1672 = vadd.f32 %v892, %v1466
  %v1673 = vadd.f32 %v893, %v1469
  %v1674 = vadd.f32 %v894, %v1474
  %v1675 = vadd.f32 %v895, %v1477
  %v1676 = vadd.f32 %v896, %v1482
  %v1677 = vadd.f32 %v897, %v1485
  %v1678 = vadd.f32 %v898, %v1490
  %v1679 = vadd.f32 %v899, %v1493
  %v1680 = vadd.f32 %v900, %v1498
  %v1681 = vadd.f32 %v901, %v1501
  %v1682 = vadd.f32 %v902, %v1506
  %v1683 = vadd.f32 %v903, %v1509
  %v1684 = vadd.f32 %v904, %v1514
  %v1685 = vadd.f32 %v905, %v1517
  %v1686 = vadd.f32 %v906, %v1522
  %v1687 = vadd.f32 %v907, %v1525
  %v1688 = vadd.f32 %v908, %v1530
  %v1689 = vadd.f32 %v909, %v1533
  %v1690 = vadd.f32 %v910, %v1538
  %v1691 = vadd.f32 %v911, %v1541
  %v1692 = vadd.f32 %v912, %v1546
  %v1693 = vadd.f32 %v913, %v1549
  %v1694 = vadd.f32 %v914, %v1554
  %v1695 = vadd.f32 %v915, %v1557
  %v1696 = vadd.f32 %v916, %v1562
  %v1697 = vadd.f32 %v917, %v1565
  %v1698 = vadd.f32 %v918, %v1570
  %v1699 = vadd.f32 %v919, %v1573
  %v1700 = vadd.f32 %v920, %v1578
  %v1701 = vadd.f32 %v921, %v1581
  %v1702 = vadd.f32 %v922, %v1586
  %v1703 = vadd.f32 %v923, %v1589
  %v1704 = vadd.f32 %v924, %v1594
  %v1705 = vadd.f32 %v925, %v1597
  %v1706 = vadd.f32 %v926, %v1602
  %v1707 = vadd.f32 %v927, %v1605
  %v1708 = vadd.f32 %v928, %v1610
  %v1709 = vadd.f32 %v929, %v1613
  %v1710 = vadd.f32 %v930, %v1618
  %v1711 = vadd.f32 %v931, %v1621
  %v1712 = vadd.f32 %v932, %v1626
  %v1713 = vadd.f32 %v933, %v1629
  %v1714 = vadd.f32 %v934, %v1634
  %v1715 = vadd.f32 %v935, %v1637
  %v1716 = vadd.f32 %v936, %v1642
  %v1717 = vadd.f32 %v937, %v1645
  %v1718 = vadd.f32 %v938, %v1650
  %v1719 = vadd.f32 %v939, %v1653
  %v1720 = vld [vmem:[%s2] sm:$0xf]
  %v1721 = vld [vmem:[%s2 + $0x4] sm:$0xf]
  %v1722 = vld [vmem:[%s2 + $0x8] sm:$0xf]
  %v1723 = vld [vmem:[%s2 + $0xc] sm:$0xf]
  %v1724 = vld [vmem:[%s2 + $0x10] sm:$0xf]
  %v1725 = vld [vmem:[%s2 + $0x14] sm:$0xf]
  %v1726 = vld [vmem:[%s2 + $0x18] sm:$0xf]
  %v1727 = vld [vmem:[%s2 + $0x1c] sm:$0xf]
  %v1728 = vld [vmem:[%s2 + $0x20] sm:$0xf]
  %v1729 = vld [vmem:[%s2 + $0x24] sm:$0xf]
  %v1730 = vld [vmem:[%s2 + $0x28] sm:$0xf]
  %v1731 = vld [vmem:[%s2 + $0x2c] sm:$0xf]
  %v1732 = vld [vmem:[%s2 + $0x30] sm:$0xf]
  %v1733 = vld [vmem:[%s2 + $0x34] sm:$0xf]
  %v1734 = vld [vmem:[%s2 + $0x38] sm:$0xf]
  %v1735 = vld [vmem:[%s2 + $0x3c] sm:$0xf]
  %v1736 = vld [vmem:[%s2 + $0x40] sm:$0xf]
  %v1737 = vld [vmem:[%s2 + $0x44] sm:$0xf]
  %v1738 = vld [vmem:[%s2 + $0x48] sm:$0xf]
  %v1739 = vld [vmem:[%s2 + $0x4c] sm:$0xf]
  %v1740 = vld [vmem:[%s2 + $0x50] sm:$0xf]
  %v1741 = vld [vmem:[%s2 + $0x54] sm:$0xf]
  %v1742 = vld [vmem:[%s2 + $0x58] sm:$0xf]
  %v1743 = vld [vmem:[%s2 + $0x5c] sm:$0xf]
  %v1744 = vld [vmem:[%s2 + $0x60] sm:$0xf]
  %v1745 = vld [vmem:[%s2 + $0x64] sm:$0xf]
  %v1746 = vld [vmem:[%s2 + $0x68] sm:$0xf]
  %v1747 = vld [vmem:[%s2 + $0x6c] sm:$0xf]
  %v1748 = vld [vmem:[%s2 + $0x70] sm:$0xf]
  %v1749 = vld [vmem:[%s2 + $0x74] sm:$0xf]
  %v1750 = vld [vmem:[%s2 + $0x78] sm:$0xf]
  %v1751 = vld [vmem:[%s2 + $0x7c] sm:$0xf]
  %v1752 = vld [vmem:[%s2 + $0x80] sm:$0xf]
  %v1753 = vld [vmem:[%s2 + $0x84] sm:$0xf]
  %v1754 = vld [vmem:[%s2 + $0x88] sm:$0xf]
  %v1755 = vld [vmem:[%s2 + $0x8c] sm:$0xf]
  %v1756 = vld [vmem:[%s2 + $0x90] sm:$0xf]
  %v1757 = vld [vmem:[%s2 + $0x94] sm:$0xf]
  %v1758 = vld [vmem:[%s2 + $0x98] sm:$0xf]
  %v1759 = vld [vmem:[%s2 + $0x9c] sm:$0xf]
  %v1760 = vld [vmem:[%s2 + $0xa0] sm:$0xf]
  %v1761 = vld [vmem:[%s2 + $0xa4] sm:$0xf]
  %v1762 = vld [vmem:[%s2 + $0xa8] sm:$0xf]
  %v1763 = vld [vmem:[%s2 + $0xac] sm:$0xf]
  %v1764 = vld [vmem:[%s2 + $0xb0] sm:$0xf]
  %v1765 = vld [vmem:[%s2 + $0xb4] sm:$0xf]
  %v1766 = vld [vmem:[%s2 + $0xb8] sm:$0xf]
  %v1767 = vld [vmem:[%s2 + $0xbc] sm:$0xf]
  %v1768 = vld [vmem:[%s2 + $0xc0] sm:$0xf]
  %v1769 = vld [vmem:[%s2 + $0xc4] sm:$0xf]
  %v1770 = vld [vmem:[%s2 + $0xc8] sm:$0xf]
  %v1771 = vld [vmem:[%s2 + $0xcc] sm:$0xf]
  %v1772 = vld [vmem:[%s2 + $0xd0] sm:$0xf]
  %v1773 = vld [vmem:[%s2 + $0xd4] sm:$0xf]
  %v1774 = vld [vmem:[%s2 + $0xd8] sm:$0xf]
  %v1775 = vld [vmem:[%s2 + $0xdc] sm:$0xf]
  %v1776 = vld [vmem:[%s2 + $0xe0] sm:$0xf]
  %v1777 = vld [vmem:[%s2 + $0xe4] sm:$0xf]
  %v1778 = vld [vmem:[%s2 + $0xe8] sm:$0xf]
  %v1779 = vld [vmem:[%s2 + $0xec] sm:$0xf]
  %v1780 = vld [vmem:[%s2 + $0xf0] sm:$0xf]
  %v1781 = vld [vmem:[%s2 + $0xf4] sm:$0xf]
  %v1782 = vld [vmem:[%s2 + $0xf8] sm:$0xf]
  %v1783 = vld [vmem:[%s2 + $0xfc] sm:$0xf]
  %v1784 = vunpack.c.l.bf16 %v1720
  %v1785 = vunpack.c.l.bf16 %v1721
  %v1786 = vunpack.c.l.bf16 %v1722
  %v1787 = vunpack.c.l.bf16 %v1723
  %v1788 = vunpack.c.l.bf16 %v1724
  %v1789 = vunpack.c.l.bf16 %v1725
  %v1790 = vunpack.c.l.bf16 %v1726
  %v1791 = vunpack.c.l.bf16 %v1727
  %v1792 = vunpack.c.l.bf16 %v1728
  %v1793 = vunpack.c.l.bf16 %v1729
  %v1794 = vunpack.c.l.bf16 %v1730
  %v1795 = vunpack.c.l.bf16 %v1731
  %v1796 = vunpack.c.l.bf16 %v1732
  %v1797 = vunpack.c.l.bf16 %v1733
  %v1798 = vunpack.c.l.bf16 %v1734
  %v1799 = vunpack.c.l.bf16 %v1735
  %v1800 = vunpack.c.l.bf16 %v1736
  %v1801 = vunpack.c.l.bf16 %v1737
  %v1802 = vunpack.c.l.bf16 %v1738
  %v1803 = vunpack.c.l.bf16 %v1739
  %v1804 = vunpack.c.l.bf16 %v1740
  %v1805 = vunpack.c.l.bf16 %v1741
  %v1806 = vunpack.c.l.bf16 %v1742
  %v1807 = vunpack.c.l.bf16 %v1743
  %v1808 = vunpack.c.l.bf16 %v1744
  %v1809 = vunpack.c.l.bf16 %v1745
  %v1810 = vunpack.c.l.bf16 %v1746
  %v1811 = vunpack.c.l.bf16 %v1747
  %v1812 = vunpack.c.l.bf16 %v1748
  %v1813 = vunpack.c.l.bf16 %v1749
  %v1814 = vunpack.c.l.bf16 %v1750
  %v1815 = vunpack.c.l.bf16 %v1751
  %v1816 = vunpack.c.l.bf16 %v1752
  %v1817 = vunpack.c.l.bf16 %v1753
  %v1818 = vunpack.c.l.bf16 %v1754
  %v1819 = vunpack.c.l.bf16 %v1755
  %v1820 = vunpack.c.l.bf16 %v1756
  %v1821 = vunpack.c.l.bf16 %v1757
  %v1822 = vunpack.c.l.bf16 %v1758
  %v1823 = vunpack.c.l.bf16 %v1759
  %v1824 = vunpack.c.l.bf16 %v1760
  %v1825 = vunpack.c.l.bf16 %v1761
  %v1826 = vunpack.c.l.bf16 %v1762
  %v1827 = vunpack.c.l.bf16 %v1763
  %v1828 = vunpack.c.l.bf16 %v1764
  %v1829 = vunpack.c.l.bf16 %v1765
  %v1830 = vunpack.c.l.bf16 %v1766
  %v1831 = vunpack.c.l.bf16 %v1767
  %v1832 = vunpack.c.l.bf16 %v1768
  %v1833 = vunpack.c.l.bf16 %v1769
  %v1834 = vunpack.c.l.bf16 %v1770
  %v1835 = vunpack.c.l.bf16 %v1771
  %v1836 = vunpack.c.l.bf16 %v1772
  %v1837 = vunpack.c.l.bf16 %v1773
  %v1838 = vunpack.c.l.bf16 %v1774
  %v1839 = vunpack.c.l.bf16 %v1775
  %v1840 = vunpack.c.l.bf16 %v1776
  %v1841 = vunpack.c.l.bf16 %v1777
  %v1842 = vunpack.c.l.bf16 %v1778
  %v1843 = vunpack.c.l.bf16 %v1779
  %v1844 = vunpack.c.l.bf16 %v1780
  %v1845 = vunpack.c.l.bf16 %v1781
  %v1846 = vunpack.c.l.bf16 %v1782
  %v1847 = vunpack.c.l.bf16 %v1783
  %v1848 = vld [vmem:[%s6 + $0x2] sm:$0x1]
  %v1849 = vlaneseq
  %v1850 = vshrl.u32 %v1849, 7
  %v1851 = vsub.s32 0, %v1850
  %v1852 = vrot.slane %v1848, %v1851
  %v1853 = vmul.f32 %v1784, %v1852
  %v1854 = vmul.f32 %v1785, %v1852
  %v1855 = vmul.f32 %v1786, %v1852
  %v1856 = vmul.f32 %v1787, %v1852
  %v1857 = vmul.f32 %v1788, %v1852
  %v1858 = vmul.f32 %v1789, %v1852
  %v1859 = vmul.f32 %v1790, %v1852
  %v1860 = vmul.f32 %v1791, %v1852
  %v1861 = vmul.f32 %v1792, %v1852
  %v1862 = vmul.f32 %v1793, %v1852
  %v1863 = vmul.f32 %v1794, %v1852
  %v1864 = vmul.f32 %v1795, %v1852
  %v1865 = vmul.f32 %v1796, %v1852
  %v1866 = vmul.f32 %v1797, %v1852
  %v1867 = vmul.f32 %v1798, %v1852
  %v1868 = vmul.f32 %v1799, %v1852
  %v1869 = vmul.f32 %v1800, %v1852
  %v1870 = vmul.f32 %v1801, %v1852
  %v1871 = vmul.f32 %v1802, %v1852
  %v1872 = vmul.f32 %v1803, %v1852
  %v1873 = vmul.f32 %v1804, %v1852
  %v1874 = vmul.f32 %v1805, %v1852
  %v1875 = vmul.f32 %v1806, %v1852
  %v1876 = vmul.f32 %v1807, %v1852
  %v1877 = vmul.f32 %v1808, %v1852
  %v1878 = vmul.f32 %v1809, %v1852
  %v1879 = vmul.f32 %v1810, %v1852
  %v1880 = vmul.f32 %v1811, %v1852
  %v1881 = vmul.f32 %v1812, %v1852
  %v1882 = vmul.f32 %v1813, %v1852
  %v1883 = vmul.f32 %v1814, %v1852
  %v1884 = vmul.f32 %v1815, %v1852
  %v1885 = vmul.f32 %v1816, %v1852
  %v1886 = vmul.f32 %v1817, %v1852
  %v1887 = vmul.f32 %v1818, %v1852
  %v1888 = vmul.f32 %v1819, %v1852
  %v1889 = vmul.f32 %v1820, %v1852
  %v1890 = vmul.f32 %v1821, %v1852
  %v1891 = vmul.f32 %v1822, %v1852
  %v1892 = vmul.f32 %v1823, %v1852
  %v1893 = vmul.f32 %v1824, %v1852
  %v1894 = vmul.f32 %v1825, %v1852
  %v1895 = vmul.f32 %v1826, %v1852
  %v1896 = vmul.f32 %v1827, %v1852
  %v1897 = vmul.f32 %v1828, %v1852
  %v1898 = vmul.f32 %v1829, %v1852
  %v1899 = vmul.f32 %v1830, %v1852
  %v1900 = vmul.f32 %v1831, %v1852
  %v1901 = vmul.f32 %v1832, %v1852
  %v1902 = vmul.f32 %v1833, %v1852
  %v1903 = vmul.f32 %v1834, %v1852
  %v1904 = vmul.f32 %v1835, %v1852
  %v1905 = vmul.f32 %v1836, %v1852
  %v1906 = vmul.f32 %v1837, %v1852
  %v1907 = vmul.f32 %v1838, %v1852
  %v1908 = vmul.f32 %v1839, %v1852
  %v1909 = vmul.f32 %v1840, %v1852
  %v1910 = vmul.f32 %v1841, %v1852
  %v1911 = vmul.f32 %v1842, %v1852
  %v1912 = vmul.f32 %v1843, %v1852
  %v1913 = vmul.f32 %v1844, %v1852
  %v1914 = vmul.f32 %v1845, %v1852
  %v1915 = vmul.f32 %v1846, %v1852
  %v1916 = vmul.f32 %v1847, %v1852
  %v1917 = vld [vmem:[%s7 + $0x2] sm:$0x1]
  %v1918 = vlaneseq
  %v1919 = vshrl.u32 %v1918, 7
  %v1920 = vsub.s32 0, %v1919
  %v1921 = vrot.slane %v1917, %v1920
  %v1922 = vadd.f32 %v1853, %v1921
  %v1923 = vadd.f32 %v1854, %v1921
  %v1924 = vadd.f32 %v1855, %v1921
  %v1925 = vadd.f32 %v1856, %v1921
  %v1926 = vadd.f32 %v1857, %v1921
  %v1927 = vadd.f32 %v1858, %v1921
  %v1928 = vadd.f32 %v1859, %v1921
  %v1929 = vadd.f32 %v1860, %v1921
  %v1930 = vadd.f32 %v1861, %v1921
  %v1931 = vadd.f32 %v1862, %v1921
  %v1932 = vadd.f32 %v1863, %v1921
  %v1933 = vadd.f32 %v1864, %v1921
  %v1934 = vadd.f32 %v1865, %v1921
  %v1935 = vadd.f32 %v1866, %v1921
  %v1936 = vadd.f32 %v1867, %v1921
  %v1937 = vadd.f32 %v1868, %v1921
  %v1938 = vadd.f32 %v1869, %v1921
  %v1939 = vadd.f32 %v1870, %v1921
  %v1940 = vadd.f32 %v1871, %v1921
  %v1941 = vadd.f32 %v1872, %v1921
  %v1942 = vadd.f32 %v1873, %v1921
  %v1943 = vadd.f32 %v1874, %v1921
  %v1944 = vadd.f32 %v1875, %v1921
  %v1945 = vadd.f32 %v1876, %v1921
  %v1946 = vadd.f32 %v1877, %v1921
  %v1947 = vadd.f32 %v1878, %v1921
  %v1948 = vadd.f32 %v1879, %v1921
  %v1949 = vadd.f32 %v1880, %v1921
  %v1950 = vadd.f32 %v1881, %v1921
  %v1951 = vadd.f32 %v1882, %v1921
  %v1952 = vadd.f32 %v1883, %v1921
  %v1953 = vadd.f32 %v1884, %v1921
  %v1954 = vadd.f32 %v1885, %v1921
  %v1955 = vadd.f32 %v1886, %v1921
  %v1956 = vadd.f32 %v1887, %v1921
  %v1957 = vadd.f32 %v1888, %v1921
  %v1958 = vadd.f32 %v1889, %v1921
  %v1959 = vadd.f32 %v1890, %v1921
  %v1960 = vadd.f32 %v1891, %v1921
  %v1961 = vadd.f32 %v1892, %v1921
  %v1962 = vadd.f32 %v1893, %v1921
  %v1963 = vadd.f32 %v1894, %v1921
  %v1964 = vadd.f32 %v1895, %v1921
  %v1965 = vadd.f32 %v1896, %v1921
  %v1966 = vadd.f32 %v1897, %v1921
  %v1967 = vadd.f32 %v1898, %v1921
  %v1968 = vadd.f32 %v1899, %v1921
  %v1969 = vadd.f32 %v1900, %v1921
  %v1970 = vadd.f32 %v1901, %v1921
  %v1971 = vadd.f32 %v1902, %v1921
  %v1972 = vadd.f32 %v1903, %v1921
  %v1973 = vadd.f32 %v1904, %v1921
  %v1974 = vadd.f32 %v1905, %v1921
  %v1975 = vadd.f32 %v1906, %v1921
  %v1976 = vadd.f32 %v1907, %v1921
  %v1977 = vadd.f32 %v1908, %v1921
  %v1978 = vadd.f32 %v1909, %v1921
  %v1979 = vadd.f32 %v1910, %v1921
  %v1980 = vadd.f32 %v1911, %v1921
  %v1981 = vadd.f32 %v1912, %v1921
  %v1982 = vadd.f32 %v1913, %v1921
  %v1983 = vadd.f32 %v1914, %v1921
  %v1984 = vadd.f32 %v1915, %v1921
  %v1985 = vadd.f32 %v1916, %v1921
  %v1986 = vmax.f32 %v1922, 0.0
  %v1987 = vmax.f32 %v1923, 0.0
  %v1988 = vmax.f32 %v1924, 0.0
  %v1989 = vmax.f32 %v1925, 0.0
  %v1990 = vmax.f32 %v1926, 0.0
  %v1991 = vmax.f32 %v1927, 0.0
  %v1992 = vmax.f32 %v1928, 0.0
  %v1993 = vmax.f32 %v1929, 0.0
  %v1994 = vmax.f32 %v1930, 0.0
  %v1995 = vmax.f32 %v1931, 0.0
  %v1996 = vmax.f32 %v1932, 0.0
  %v1997 = vmax.f32 %v1933, 0.0
  %v1998 = vmax.f32 %v1934, 0.0
  %v1999 = vmax.f32 %v1935, 0.0
  %v2000 = vmax.f32 %v1936, 0.0
  %v2001 = vmax.f32 %v1937, 0.0
  %v2002 = vmax.f32 %v1938, 0.0
  %v2003 = vmax.f32 %v1939, 0.0
  %v2004 = vmax.f32 %v1940, 0.0
  %v2005 = vmax.f32 %v1941, 0.0
  %v2006 = vmax.f32 %v1942, 0.0
  %v2007 = vmax.f32 %v1943, 0.0
  %v2008 = vmax.f32 %v1944, 0.0
  %v2009 = vmax.f32 %v1945, 0.0
  %v2010 = vmax.f32 %v1946, 0.0
  %v2011 = vmax.f32 %v1947, 0.0
  %v2012 = vmax.f32 %v1948, 0.0
  %v2013 = vmax.f32 %v1949, 0.0
  %v2014 = vmax.f32 %v1950, 0.0
  %v2015 = vmax.f32 %v1951, 0.0
  %v2016 = vmax.f32 %v1952, 0.0
  %v2017 = vmax.f32 %v1953, 0.0
  %v2018 = vmax.f32 %v1954, 0.0
  %v2019 = vmax.f32 %v1955, 0.0
  %v2020 = vmax.f32 %v1956, 0.0
  %v2021 = vmax.f32 %v1957, 0.0
  %v2022 = vmax.f32 %v1958, 0.0
  %v2023 = vmax.f32 %v1959, 0.0
  %v2024 = vmax.f32 %v1960, 0.0
  %v2025 = vmax.f32 %v1961, 0.0
  %v2026 = vmax.f32 %v1962, 0.0
  %v2027 = vmax.f32 %v1963, 0.0
  %v2028 = vmax.f32 %v1964, 0.0
  %v2029 = vmax.f32 %v1965, 0.0
  %v2030 = vmax.f32 %v1966, 0.0
  %v2031 = vmax.f32 %v1967, 0.0
  %v2032 = vmax.f32 %v1968, 0.0
  %v2033 = vmax.f32 %v1969, 0.0
  %v2034 = vmax.f32 %v1970, 0.0
  %v2035 = vmax.f32 %v1971, 0.0
  %v2036 = vmax.f32 %v1972, 0.0
  %v2037 = vmax.f32 %v1973, 0.0
  %v2038 = vmax.f32 %v1974, 0.0
  %v2039 = vmax.f32 %v1975, 0.0
  %v2040 = vmax.f32 %v1976, 0.0
  %v2041 = vmax.f32 %v1977, 0.0
  %v2042 = vmax.f32 %v1978, 0.0
  %v2043 = vmax.f32 %v1979, 0.0
  %v2044 = vmax.f32 %v1980, 0.0
  %v2045 = vmax.f32 %v1981, 0.0
  %v2046 = vmax.f32 %v1982, 0.0
  %v2047 = vmax.f32 %v1983, 0.0
  %v2048 = vmax.f32 %v1984, 0.0
  %v2049 = vmax.f32 %v1985, 0.0
  %v2050 = vpack.c.bf16 %v1987, %v1986
  %v2051 = vpack.c.bf16 %v1989, %v1988
  %v2052 = vpack.c.bf16 %v1991, %v1990
  %v2053 = vpack.c.bf16 %v1993, %v1992
  %v2054 = vpack.c.bf16 %v1995, %v1994
  %v2055 = vpack.c.bf16 %v1997, %v1996
  %v2056 = vpack.c.bf16 %v1999, %v1998
  %v2057 = vpack.c.bf16 %v2001, %v2000
  %v2058 = vpack.c.bf16 %v2003, %v2002
  %v2059 = vpack.c.bf16 %v2005, %v2004
  %v2060 = vpack.c.bf16 %v2007, %v2006
  %v2061 = vpack.c.bf16 %v2009, %v2008
  %v2062 = vpack.c.bf16 %v2011, %v2010
  %v2063 = vpack.c.bf16 %v2013, %v2012
  %v2064 = vpack.c.bf16 %v2015, %v2014
  %v2065 = vpack.c.bf16 %v2017, %v2016
  %v2066 = vpack.c.bf16 %v2019, %v2018
  %v2067 = vpack.c.bf16 %v2021, %v2020
  %v2068 = vpack.c.bf16 %v2023, %v2022
  %v2069 = vpack.c.bf16 %v2025, %v2024
  %v2070 = vpack.c.bf16 %v2027, %v2026
  %v2071 = vpack.c.bf16 %v2029, %v2028
  %v2072 = vpack.c.bf16 %v2031, %v2030
  %v2073 = vpack.c.bf16 %v2033, %v2032
  %v2074 = vpack.c.bf16 %v2035, %v2034
  %v2075 = vpack.c.bf16 %v2037, %v2036
  %v2076 = vpack.c.bf16 %v2039, %v2038
  %v2077 = vpack.c.bf16 %v2041, %v2040
  %v2078 = vpack.c.bf16 %v2043, %v2042
  %v2079 = vpack.c.bf16 %v2045, %v2044
  %v2080 = vpack.c.bf16 %v2047, %v2046
  %v2081 = vpack.c.bf16 %v2049, %v2048
  %s2082 = scalar_lea.vmem %s8, 128
  %v2083 = vld [vmem:[%s2082] sm:$0xf]
  %v2084 = vld [vmem:[%s2082 + $0x4] sm:$0xf]
  %v2085 = vld [vmem:[%s2082 + $0x8] sm:$0xf]
  %v2086 = vld [vmem:[%s2082 + $0xc] sm:$0xf]
  %v2087 = vld [vmem:[%s2082 + $0x10] sm:$0xf]
  %v2088 = vld [vmem:[%s2082 + $0x14] sm:$0xf]
  %v2089 = vld [vmem:[%s2082 + $0x18] sm:$0xf]
  %v2090 = vld [vmem:[%s2082 + $0x1c] sm:$0xf]
  %v2091 = vld [vmem:[%s2082 + $0x20] sm:$0xf]
  %v2092 = vld [vmem:[%s2082 + $0x24] sm:$0xf]
  %v2093 = vld [vmem:[%s2082 + $0x28] sm:$0xf]
  %v2094 = vld [vmem:[%s2082 + $0x2c] sm:$0xf]
  %v2095 = vld [vmem:[%s2082 + $0x30] sm:$0xf]
  %v2096 = vld [vmem:[%s2082 + $0x34] sm:$0xf]
  %v2097 = vld [vmem:[%s2082 + $0x38] sm:$0xf]
  %v2098 = vld [vmem:[%s2082 + $0x3c] sm:$0xf]
  %v2115 = vunpack.c.l.b16 %v2083
  %v2116 = vunpack.c.l.b16 %v2084
  %v2117 = vunpack.c.l.b16 %v2085
  %v2118 = vunpack.c.l.b16 %v2086
  %v2119 = vunpack.c.l.b16 %v2087
  %v2120 = vunpack.c.l.b16 %v2088
  %v2121 = vunpack.c.l.b16 %v2089
  %v2122 = vunpack.c.l.b16 %v2090
  %v2123 = vunpack.c.l.b16 %v2091
  %v2124 = vunpack.c.l.b16 %v2092
  %v2125 = vunpack.c.l.b16 %v2093
  %v2126 = vunpack.c.l.b16 %v2094
  %v2127 = vunpack.c.l.b16 %v2095
  %v2128 = vunpack.c.l.b16 %v2096
  %v2129 = vunpack.c.l.b16 %v2097
  %v2130 = vunpack.c.l.b16 %v2098
  %v2131 = vpack.c.b16 %v2116, %v2115
  %v2132 = vpack.c.b16 %v2118, %v2117
  %v2133 = vpack.c.b16 %v2120, %v2119
  %v2134 = vpack.c.b16 %v2122, %v2121
  %v2135 = vpack.c.b16 %v2124, %v2123
  %v2136 = vpack.c.b16 %v2126, %v2125
  %v2137 = vpack.c.b16 %v2128, %v2127
  %v2138 = vpack.c.b16 %v2130, %v2129
  %2147 = vmatprep.subr.bf16.mxu0 0
  %2148 = vmatpush1.bf16.msra.mxu0 %v2131
  %2149 = vmatprep.subr.bf16.mxu0 0
  %2150 = vmatpush1.bf16.msra.mxu0 %v2132
  %2151 = vmatprep.subr.bf16.mxu0 0
  %2152 = vmatpush1.bf16.msra.mxu0 %v2133
  %2153 = vmatprep.subr.bf16.mxu0 0
  %2154 = vmatpush1.bf16.msra.mxu0 %v2134
  %2155 = vmatprep.subr.bf16.mxu0 0
  %2156 = vmatpush1.bf16.msra.mxu0 %v2135
  %2157 = vmatprep.subr.bf16.mxu0 0
  %2158 = vmatpush1.bf16.msra.mxu0 %v2136
  %2159 = vmatprep.subr.bf16.mxu0 0
  %2160 = vmatpush1.bf16.msra.mxu0 %v2137
  %2161 = vmatprep.subr.bf16.mxu0 0
  %2162 = vmatpush1.bf16.msra.mxu0 %v2138
  %2163 = vmatprep.subr.bf16.mxu0 0
  %2164 = vmatpush1.bf16.msra.mxu0 0
  %2165 = vmatprep.subr.bf16.mxu0 0
  %2166 = vmatpush1.bf16.msra.mxu0 0
  %2167 = vmatprep.subr.bf16.mxu0 0
  %2168 = vmatpush1.bf16.msra.mxu0 0
  %2169 = vmatprep.subr.bf16.mxu0 0
  %2170 = vmatpush1.bf16.msra.mxu0 0
  %2171 = vmatprep.subr.bf16.mxu0 0
  %2172 = vmatpush1.bf16.msra.mxu0 0
  %2173 = vmatprep.subr.bf16.mxu0 0
  %2174 = vmatpush1.bf16.msra.mxu0 0
  %2175 = vmatprep.subr.bf16.mxu0 0
  %2176 = vmatpush1.bf16.msra.mxu0 0
  %2177 = vmatprep.subr.bf16.mxu0 0
  %2178 = vmatpush1.bf16.msra.mxu0 0
  %2179 = vmatprep.mubr.bf16.mxu0 0
  %2180 = vmatmul.mubr.bf16.gmra.mrb[0].mxu0 %v2050
  %v2181 = vpop.f32.mrb[0].mxu0
  %v2182 = vadd.f32 0.0, %v2181
  %v2183 = vpop.f32.mrb[0].mxu0
  %v2184 = vpop.f32.mrb[0].mxu0
  %v2185 = vadd.f32 0.0, %v2184
  %v2186 = vpop.f32.mrb[0].mxu0
  %2187 = vmatprep.mubr.bf16.mxu0 0
  %2188 = vmatmul.mubr.bf16.gmra.mrb[0].mxu0 %v2051
  %v2189 = vpop.f32.mrb[0].mxu0
  %v2190 = vadd.f32 0.0, %v2189
  %v2191 = vpop.f32.mrb[0].mxu0
  %v2192 = vpop.f32.mrb[0].mxu0
  %v2193 = vadd.f32 0.0, %v2192
  %v2194 = vpop.f32.mrb[0].mxu0
  %2195 = vmatprep.mubr.bf16.mxu0 0
  %2196 = vmatmul.mubr.bf16.gmra.mrb[0].mxu0 %v2052
  %v2197 = vpop.f32.mrb[0].mxu0
  %v2198 = vadd.f32 0.0, %v2197
  %v2199 = vpop.f32.mrb[0].mxu0
  %v2200 = vpop.f32.mrb[0].mxu0
  %v2201 = vadd.f32 0.0, %v2200
  %v2202 = vpop.f32.mrb[0].mxu0
  %2203 = vmatprep.mubr.bf16.mxu0 0
  %2204 = vmatmul.mubr.bf16.gmra.mrb[0].mxu0 %v2053
  %v2205 = vpop.f32.mrb[0].mxu0
  %v2206 = vadd.f32 0.0, %v2205
  %v2207 = vpop.f32.mrb[0].mxu0
  %v2208 = vpop.f32.mrb[0].mxu0
  %v2209 = vadd.f32 0.0, %v2208
  %v2210 = vpop.f32.mrb[0].mxu0
  %2211 = vmatprep.mubr.bf16.mxu0 0
  %2212 = vmatmul.mubr.bf16.gmra.mrb[0].mxu0 %v2054
  %v2213 = vpop.f32.mrb[0].mxu0
  %v2214 = vadd.f32 0.0, %v2213
  %v2215 = vpop.f32.mrb[0].mxu0
  %v2216 = vpop.f32.mrb[0].mxu0
  %v2217 = vadd.f32 0.0, %v2216
  %v2218 = vpop.f32.mrb[0].mxu0
  %2219 = vmatprep.mubr.bf16.mxu0 0
  %2220 = vmatmul.mubr.bf16.gmra.mrb[0].mxu0 %v2055
  %v2221 = vpop.f32.mrb[0].mxu0
  %v2222 = vadd.f32 0.0, %v2221
  %v2223 = vpop.f32.mrb[0].mxu0
  %v2224 = vpop.f32.mrb[0].mxu0
  %v2225 = vadd.f32 0.0, %v2224
  %v2226 = vpop.f32.mrb[0].mxu0
  %2227 = vmatprep.mubr.bf16.mxu0 0
  %2228 = vmatmul.mubr.bf16.gmra.mrb[0].mxu0 %v2056
  %v2229 = vpop.f32.mrb[0].mxu0
  %v2230 = vadd.f32 0.0, %v2229
  %v2231 = vpop.f32.mrb[0].mxu0
  %v2232 = vpop.f32.mrb[0].mxu0
  %v2233 = vadd.f32 0.0, %v2232
  %v2234 = vpop.f32.mrb[0].mxu0
  %2235 = vmatprep.mubr.bf16.mxu0 0
  %2236 = vmatmul.mubr.bf16.gmra.mrb[0].mxu0 %v2057
  %v2237 = vpop.f32.mrb[0].mxu0
  %v2238 = vadd.f32 0.0, %v2237
  %v2239 = vpop.f32.mrb[0].mxu0
  %v2240 = vpop.f32.mrb[0].mxu0
  %v2241 = vadd.f32 0.0, %v2240
  %v2242 = vpop.f32.mrb[0].mxu0
  %2243 = vmatprep.mubr.bf16.mxu0 0
  %2244 = vmatmul.mubr.bf16.gmra.mrb[0].mxu0 %v2058
  %v2245 = vpop.f32.mrb[0].mxu0
  %v2246 = vadd.f32 0.0, %v2245
  %v2247 = vpop.f32.mrb[0].mxu0
  %v2248 = vpop.f32.mrb[0].mxu0
  %v2249 = vadd.f32 0.0, %v2248
  %v2250 = vpop.f32.mrb[0].mxu0
  %2251 = vmatprep.mubr.bf16.mxu0 0
  %2252 = vmatmul.mubr.bf16.gmra.mrb[0].mxu0 %v2059
  %v2253 = vpop.f32.mrb[0].mxu0
  %v2254 = vadd.f32 0.0, %v2253
  %v2255 = vpop.f32.mrb[0].mxu0
  %v2256 = vpop.f32.mrb[0].mxu0
  %v2257 = vadd.f32 0.0, %v2256
  %v2258 = vpop.f32.mrb[0].mxu0
  %2259 = vmatprep.mubr.bf16.mxu0 0
  %2260 = vmatmul.mubr.bf16.gmra.mrb[0].mxu0 %v2060
  %v2261 = vpop.f32.mrb[0].mxu0
  %v2262 = vadd.f32 0.0, %v2261
  %v2263 = vpop.f32.mrb[0].mxu0
  %v2264 = vpop.f32.mrb[0].mxu0
  %v2265 = vadd.f32 0.0, %v2264
  %v2266 = vpop.f32.mrb[0].mxu0
  %2267 = vmatprep.mubr.bf16.mxu0 0
  %2268 = vmatmul.mubr.bf16.gmra.mrb[0].mxu0 %v2061
  %v2269 = vpop.f32.mrb[0].mxu0
  %v2270 = vadd.f32 0.0, %v2269
  %v2271 = vpop.f32.mrb[0].mxu0
  %v2272 = vpop.f32.mrb[0].mxu0
  %v2273 = vadd.f32 0.0, %v2272
  %v2274 = vpop.f32.mrb[0].mxu0
  %2275 = vmatprep.mubr.bf16.mxu0 0
  %2276 = vmatmul.mubr.bf16.gmra.mrb[0].mxu0 %v2062
  %v2277 = vpop.f32.mrb[0].mxu0
  %v2278 = vadd.f32 0.0, %v2277
  %v2279 = vpop.f32.mrb[0].mxu0
  %v2280 = vpop.f32.mrb[0].mxu0
  %v2281 = vadd.f32 0.0, %v2280
  %v2282 = vpop.f32.mrb[0].mxu0
  %2283 = vmatprep.mubr.bf16.mxu0 0
  %2284 = vmatmul.mubr.bf16.gmra.mrb[0].mxu0 %v2063
  %v2285 = vpop.f32.mrb[0].mxu0
  %v2286 = vadd.f32 0.0, %v2285
  %v2287 = vpop.f32.mrb[0].mxu0
  %v2288 = vpop.f32.mrb[0].mxu0
  %v2289 = vadd.f32 0.0, %v2288
  %v2290 = vpop.f32.mrb[0].mxu0
  %2291 = vmatprep.mubr.bf16.mxu0 0
  %2292 = vmatmul.mubr.bf16.gmra.mrb[0].mxu0 %v2064
  %v2293 = vpop.f32.mrb[0].mxu0
  %v2294 = vadd.f32 0.0, %v2293
  %v2295 = vpop.f32.mrb[0].mxu0
  %v2296 = vpop.f32.mrb[0].mxu0
  %v2297 = vadd.f32 0.0, %v2296
  %v2298 = vpop.f32.mrb[0].mxu0
  %2299 = vmatprep.mubr.bf16.mxu0 0
  %2300 = vmatmul.mubr.bf16.gmra.mrb[0].mxu0 %v2065
  %v2301 = vpop.f32.mrb[0].mxu0
  %v2302 = vadd.f32 0.0, %v2301
  %v2303 = vpop.f32.mrb[0].mxu0
  %v2304 = vpop.f32.mrb[0].mxu0
  %v2305 = vadd.f32 0.0, %v2304
  %v2306 = vpop.f32.mrb[0].mxu0
  %2307 = vmatprep.mubr.bf16.mxu0 0
  %2308 = vmatmul.mubr.bf16.gmra.mrb[0].mxu0 %v2066
  %v2309 = vpop.f32.mrb[0].mxu0
  %v2310 = vadd.f32 0.0, %v2309
  %v2311 = vpop.f32.mrb[0].mxu0
  %v2312 = vpop.f32.mrb[0].mxu0
  %v2313 = vadd.f32 0.0, %v2312
  %v2314 = vpop.f32.mrb[0].mxu0
  %2315 = vmatprep.mubr.bf16.mxu0 0
  %2316 = vmatmul.mubr.bf16.gmra.mrb[0].mxu0 %v2067
  %v2317 = vpop.f32.mrb[0].mxu0
  %v2318 = vadd.f32 0.0, %v2317
  %v2319 = vpop.f32.mrb[0].mxu0
  %v2320 = vpop.f32.mrb[0].mxu0
  %v2321 = vadd.f32 0.0, %v2320
  %v2322 = vpop.f32.mrb[0].mxu0
  %2323 = vmatprep.mubr.bf16.mxu0 0
  %2324 = vmatmul.mubr.bf16.gmra.mrb[0].mxu0 %v2068
  %v2325 = vpop.f32.mrb[0].mxu0
  %v2326 = vadd.f32 0.0, %v2325
  %v2327 = vpop.f32.mrb[0].mxu0
  %v2328 = vpop.f32.mrb[0].mxu0
  %v2329 = vadd.f32 0.0, %v2328
  %v2330 = vpop.f32.mrb[0].mxu0
  %2331 = vmatprep.mubr.bf16.mxu0 0
  %2332 = vmatmul.mubr.bf16.gmra.mrb[0].mxu0 %v2069
  %v2333 = vpop.f32.mrb[0].mxu0
  %v2334 = vadd.f32 0.0, %v2333
  %v2335 = vpop.f32.mrb[0].mxu0
  %v2336 = vpop.f32.mrb[0].mxu0
  %v2337 = vadd.f32 0.0, %v2336
  %v2338 = vpop.f32.mrb[0].mxu0
  %2339 = vmatprep.mubr.bf16.mxu0 0
  %2340 = vmatmul.mubr.bf16.gmra.mrb[0].mxu0 %v2070
  %v2341 = vpop.f32.mrb[0].mxu0
  %v2342 = vadd.f32 0.0, %v2341
  %v2343 = vpop.f32.mrb[0].mxu0
  %v2344 = vpop.f32.mrb[0].mxu0
  %v2345 = vadd.f32 0.0, %v2344
  %v2346 = vpop.f32.mrb[0].mxu0
  %2347 = vmatprep.mubr.bf16.mxu0 0
  %2348 = vmatmul.mubr.bf16.gmra.mrb[0].mxu0 %v2071
  %v2349 = vpop.f32.mrb[0].mxu0
  %v2350 = vadd.f32 0.0, %v2349
  %v2351 = vpop.f32.mrb[0].mxu0
  %v2352 = vpop.f32.mrb[0].mxu0
  %v2353 = vadd.f32 0.0, %v2352
  %v2354 = vpop.f32.mrb[0].mxu0
  %2355 = vmatprep.mubr.bf16.mxu0 0
  %2356 = vmatmul.mubr.bf16.gmra.mrb[0].mxu0 %v2072
  %v2357 = vpop.f32.mrb[0].mxu0
  %v2358 = vadd.f32 0.0, %v2357
  %v2359 = vpop.f32.mrb[0].mxu0
  %v2360 = vpop.f32.mrb[0].mxu0
  %v2361 = vadd.f32 0.0, %v2360
  %v2362 = vpop.f32.mrb[0].mxu0
  %2363 = vmatprep.mubr.bf16.mxu0 0
  %2364 = vmatmul.mubr.bf16.gmra.mrb[0].mxu0 %v2073
  %v2365 = vpop.f32.mrb[0].mxu0
  %v2366 = vadd.f32 0.0, %v2365
  %v2367 = vpop.f32.mrb[0].mxu0
  %v2368 = vpop.f32.mrb[0].mxu0
  %v2369 = vadd.f32 0.0, %v2368
  %v2370 = vpop.f32.mrb[0].mxu0
  %2371 = vmatprep.mubr.bf16.mxu0 0
  %2372 = vmatmul.mubr.bf16.gmra.mrb[0].mxu0 %v2074
  %v2373 = vpop.f32.mrb[0].mxu0
  %v2374 = vadd.f32 0.0, %v2373
  %v2375 = vpop.f32.mrb[0].mxu0
  %v2376 = vpop.f32.mrb[0].mxu0
  %v2377 = vadd.f32 0.0, %v2376
  %v2378 = vpop.f32.mrb[0].mxu0
  %2379 = vmatprep.mubr.bf16.mxu0 0
  %2380 = vmatmul.mubr.bf16.gmra.mrb[0].mxu0 %v2075
  %v2381 = vpop.f32.mrb[0].mxu0
  %v2382 = vadd.f32 0.0, %v2381
  %v2383 = vpop.f32.mrb[0].mxu0
  %v2384 = vpop.f32.mrb[0].mxu0
  %v2385 = vadd.f32 0.0, %v2384
  %v2386 = vpop.f32.mrb[0].mxu0
  %2387 = vmatprep.mubr.bf16.mxu0 0
  %2388 = vmatmul.mubr.bf16.gmra.mrb[0].mxu0 %v2076
  %v2389 = vpop.f32.mrb[0].mxu0
  %v2390 = vadd.f32 0.0, %v2389
  %v2391 = vpop.f32.mrb[0].mxu0
  %v2392 = vpop.f32.mrb[0].mxu0
  %v2393 = vadd.f32 0.0, %v2392
  %v2394 = vpop.f32.mrb[0].mxu0
  %2395 = vmatprep.mubr.bf16.mxu0 0
  %2396 = vmatmul.mubr.bf16.gmra.mrb[0].mxu0 %v2077
  %v2397 = vpop.f32.mrb[0].mxu0
  %v2398 = vadd.f32 0.0, %v2397
  %v2399 = vpop.f32.mrb[0].mxu0
  %v2400 = vpop.f32.mrb[0].mxu0
  %v2401 = vadd.f32 0.0, %v2400
  %v2402 = vpop.f32.mrb[0].mxu0
  %2403 = vmatprep.mubr.bf16.mxu0 0
  %2404 = vmatmul.mubr.bf16.gmra.mrb[0].mxu0 %v2078
  %v2405 = vpop.f32.mrb[0].mxu0
  %v2406 = vadd.f32 0.0, %v2405
  %v2407 = vpop.f32.mrb[0].mxu0
  %v2408 = vpop.f32.mrb[0].mxu0
  %v2409 = vadd.f32 0.0, %v2408
  %v2410 = vpop.f32.mrb[0].mxu0
  %2411 = vmatprep.mubr.bf16.mxu0 0
  %2412 = vmatmul.mubr.bf16.gmra.mrb[0].mxu0 %v2079
  %v2413 = vpop.f32.mrb[0].mxu0
  %v2414 = vadd.f32 0.0, %v2413
  %v2415 = vpop.f32.mrb[0].mxu0
  %v2416 = vpop.f32.mrb[0].mxu0
  %v2417 = vadd.f32 0.0, %v2416
  %v2418 = vpop.f32.mrb[0].mxu0
  %2419 = vmatprep.mubr.bf16.mxu0 0
  %2420 = vmatmul.mubr.bf16.gmra.mrb[0].mxu0 %v2080
  %v2421 = vpop.f32.mrb[0].mxu0
  %v2422 = vadd.f32 0.0, %v2421
  %v2423 = vpop.f32.mrb[0].mxu0
  %v2424 = vpop.f32.mrb[0].mxu0
  %v2425 = vadd.f32 0.0, %v2424
  %v2426 = vpop.f32.mrb[0].mxu0
  %2427 = vmatprep.mubr.bf16.mxu0 0
  %2428 = vmatmul.mubr.bf16.gmra.mrb[0].mxu0 %v2081
  %v2429 = vpop.f32.mrb[0].mxu0
  %v2430 = vadd.f32 0.0, %v2429
  %v2431 = vpop.f32.mrb[0].mxu0
  %v2432 = vpop.f32.mrb[0].mxu0
  %v2433 = vadd.f32 0.0, %v2432
  %v2434 = vpop.f32.mrb[0].mxu0
  %2435 = vdwg.mxu0
  %v2436 = vadd.f32 %v1656, %v2182
  %v2437 = vadd.f32 %v1657, %v2185
  %v2438 = vadd.f32 %v1658, %v2190
  %v2439 = vadd.f32 %v1659, %v2193
  %v2440 = vadd.f32 %v1660, %v2198
  %v2441 = vadd.f32 %v1661, %v2201
  %v2442 = vadd.f32 %v1662, %v2206
  %v2443 = vadd.f32 %v1663, %v2209
  %v2444 = vadd.f32 %v1664, %v2214
  %v2445 = vadd.f32 %v1665, %v2217
  %v2446 = vadd.f32 %v1666, %v2222
  %v2447 = vadd.f32 %v1667, %v2225
  %v2448 = vadd.f32 %v1668, %v2230
  %v2449 = vadd.f32 %v1669, %v2233
  %v2450 = vadd.f32 %v1670, %v2238
  %v2451 = vadd.f32 %v1671, %v2241
  %v2452 = vadd.f32 %v1672, %v2246
  %v2453 = vadd.f32 %v1673, %v2249
  %v2454 = vadd.f32 %v1674, %v2254
  %v2455 = vadd.f32 %v1675, %v2257
  %v2456 = vadd.f32 %v1676, %v2262
  %v2457 = vadd.f32 %v1677, %v2265
  %v2458 = vadd.f32 %v1678, %v2270
  %v2459 = vadd.f32 %v1679, %v2273
  %v2460 = vadd.f32 %v1680, %v2278
  %v2461 = vadd.f32 %v1681, %v2281
  %v2462 = vadd.f32 %v1682, %v2286
  %v2463 = vadd.f32 %v1683, %v2289
  %v2464 = vadd.f32 %v1684, %v2294
  %v2465 = vadd.f32 %v1685, %v2297
  %v2466 = vadd.f32 %v1686, %v2302
  %v2467 = vadd.f32 %v1687, %v2305
  %v2468 = vadd.f32 %v1688, %v2310
  %v2469 = vadd.f32 %v1689, %v2313
  %v2470 = vadd.f32 %v1690, %v2318
  %v2471 = vadd.f32 %v1691, %v2321
  %v2472 = vadd.f32 %v1692, %v2326
  %v2473 = vadd.f32 %v1693, %v2329
  %v2474 = vadd.f32 %v1694, %v2334
  %v2475 = vadd.f32 %v1695, %v2337
  %v2476 = vadd.f32 %v1696, %v2342
  %v2477 = vadd.f32 %v1697, %v2345
  %v2478 = vadd.f32 %v1698, %v2350
  %v2479 = vadd.f32 %v1699, %v2353
  %v2480 = vadd.f32 %v1700, %v2358
  %v2481 = vadd.f32 %v1701, %v2361
  %v2482 = vadd.f32 %v1702, %v2366
  %v2483 = vadd.f32 %v1703, %v2369
  %v2484 = vadd.f32 %v1704, %v2374
  %v2485 = vadd.f32 %v1705, %v2377
  %v2486 = vadd.f32 %v1706, %v2382
  %v2487 = vadd.f32 %v1707, %v2385
  %v2488 = vadd.f32 %v1708, %v2390
  %v2489 = vadd.f32 %v1709, %v2393
  %v2490 = vadd.f32 %v1710, %v2398
  %v2491 = vadd.f32 %v1711, %v2401
  %v2492 = vadd.f32 %v1712, %v2406
  %v2493 = vadd.f32 %v1713, %v2409
  %v2494 = vadd.f32 %v1714, %v2414
  %v2495 = vadd.f32 %v1715, %v2417
  %v2496 = vadd.f32 %v1716, %v2422
  %v2497 = vadd.f32 %v1717, %v2425
  %v2498 = vadd.f32 %v1718, %v2430
  %v2499 = vadd.f32 %v1719, %v2433
  %v2500 = vld [vmem:[%s3] sm:$0xf]
  %v2501 = vld [vmem:[%s3 + $0x4] sm:$0xf]
  %v2502 = vld [vmem:[%s3 + $0x8] sm:$0xf]
  %v2503 = vld [vmem:[%s3 + $0xc] sm:$0xf]
  %v2504 = vld [vmem:[%s3 + $0x10] sm:$0xf]
  %v2505 = vld [vmem:[%s3 + $0x14] sm:$0xf]
  %v2506 = vld [vmem:[%s3 + $0x18] sm:$0xf]
  %v2507 = vld [vmem:[%s3 + $0x1c] sm:$0xf]
  %v2508 = vld [vmem:[%s3 + $0x20] sm:$0xf]
  %v2509 = vld [vmem:[%s3 + $0x24] sm:$0xf]
  %v2510 = vld [vmem:[%s3 + $0x28] sm:$0xf]
  %v2511 = vld [vmem:[%s3 + $0x2c] sm:$0xf]
  %v2512 = vld [vmem:[%s3 + $0x30] sm:$0xf]
  %v2513 = vld [vmem:[%s3 + $0x34] sm:$0xf]
  %v2514 = vld [vmem:[%s3 + $0x38] sm:$0xf]
  %v2515 = vld [vmem:[%s3 + $0x3c] sm:$0xf]
  %v2516 = vld [vmem:[%s3 + $0x40] sm:$0xf]
  %v2517 = vld [vmem:[%s3 + $0x44] sm:$0xf]
  %v2518 = vld [vmem:[%s3 + $0x48] sm:$0xf]
  %v2519 = vld [vmem:[%s3 + $0x4c] sm:$0xf]
  %v2520 = vld [vmem:[%s3 + $0x50] sm:$0xf]
  %v2521 = vld [vmem:[%s3 + $0x54] sm:$0xf]
  %v2522 = vld [vmem:[%s3 + $0x58] sm:$0xf]
  %v2523 = vld [vmem:[%s3 + $0x5c] sm:$0xf]
  %v2524 = vld [vmem:[%s3 + $0x60] sm:$0xf]
  %v2525 = vld [vmem:[%s3 + $0x64] sm:$0xf]
  %v2526 = vld [vmem:[%s3 + $0x68] sm:$0xf]
  %v2527 = vld [vmem:[%s3 + $0x6c] sm:$0xf]
  %v2528 = vld [vmem:[%s3 + $0x70] sm:$0xf]
  %v2529 = vld [vmem:[%s3 + $0x74] sm:$0xf]
  %v2530 = vld [vmem:[%s3 + $0x78] sm:$0xf]
  %v2531 = vld [vmem:[%s3 + $0x7c] sm:$0xf]
  %v2532 = vld [vmem:[%s3 + $0x80] sm:$0xf]
  %v2533 = vld [vmem:[%s3 + $0x84] sm:$0xf]
  %v2534 = vld [vmem:[%s3 + $0x88] sm:$0xf]
  %v2535 = vld [vmem:[%s3 + $0x8c] sm:$0xf]
  %v2536 = vld [vmem:[%s3 + $0x90] sm:$0xf]
  %v2537 = vld [vmem:[%s3 + $0x94] sm:$0xf]
  %v2538 = vld [vmem:[%s3 + $0x98] sm:$0xf]
  %v2539 = vld [vmem:[%s3 + $0x9c] sm:$0xf]
  %v2540 = vld [vmem:[%s3 + $0xa0] sm:$0xf]
  %v2541 = vld [vmem:[%s3 + $0xa4] sm:$0xf]
  %v2542 = vld [vmem:[%s3 + $0xa8] sm:$0xf]
  %v2543 = vld [vmem:[%s3 + $0xac] sm:$0xf]
  %v2544 = vld [vmem:[%s3 + $0xb0] sm:$0xf]
  %v2545 = vld [vmem:[%s3 + $0xb4] sm:$0xf]
  %v2546 = vld [vmem:[%s3 + $0xb8] sm:$0xf]
  %v2547 = vld [vmem:[%s3 + $0xbc] sm:$0xf]
  %v2548 = vld [vmem:[%s3 + $0xc0] sm:$0xf]
  %v2549 = vld [vmem:[%s3 + $0xc4] sm:$0xf]
  %v2550 = vld [vmem:[%s3 + $0xc8] sm:$0xf]
  %v2551 = vld [vmem:[%s3 + $0xcc] sm:$0xf]
  %v2552 = vld [vmem:[%s3 + $0xd0] sm:$0xf]
  %v2553 = vld [vmem:[%s3 + $0xd4] sm:$0xf]
  %v2554 = vld [vmem:[%s3 + $0xd8] sm:$0xf]
  %v2555 = vld [vmem:[%s3 + $0xdc] sm:$0xf]
  %v2556 = vld [vmem:[%s3 + $0xe0] sm:$0xf]
  %v2557 = vld [vmem:[%s3 + $0xe4] sm:$0xf]
  %v2558 = vld [vmem:[%s3 + $0xe8] sm:$0xf]
  %v2559 = vld [vmem:[%s3 + $0xec] sm:$0xf]
  %v2560 = vld [vmem:[%s3 + $0xf0] sm:$0xf]
  %v2561 = vld [vmem:[%s3 + $0xf4] sm:$0xf]
  %v2562 = vld [vmem:[%s3 + $0xf8] sm:$0xf]
  %v2563 = vld [vmem:[%s3 + $0xfc] sm:$0xf]
  %v2564 = vunpack.c.l.bf16 %v2500
  %v2565 = vunpack.c.l.bf16 %v2501
  %v2566 = vunpack.c.l.bf16 %v2502
  %v2567 = vunpack.c.l.bf16 %v2503
  %v2568 = vunpack.c.l.bf16 %v2504
  %v2569 = vunpack.c.l.bf16 %v2505
  %v2570 = vunpack.c.l.bf16 %v2506
  %v2571 = vunpack.c.l.bf16 %v2507
  %v2572 = vunpack.c.l.bf16 %v2508
  %v2573 = vunpack.c.l.bf16 %v2509
  %v2574 = vunpack.c.l.bf16 %v2510
  %v2575 = vunpack.c.l.bf16 %v2511
  %v2576 = vunpack.c.l.bf16 %v2512
  %v2577 = vunpack.c.l.bf16 %v2513
  %v2578 = vunpack.c.l.bf16 %v2514
  %v2579 = vunpack.c.l.bf16 %v2515
  %v2580 = vunpack.c.l.bf16 %v2516
  %v2581 = vunpack.c.l.bf16 %v2517
  %v2582 = vunpack.c.l.bf16 %v2518
  %v2583 = vunpack.c.l.bf16 %v2519
  %v2584 = vunpack.c.l.bf16 %v2520
  %v2585 = vunpack.c.l.bf16 %v2521
  %v2586 = vunpack.c.l.bf16 %v2522
  %v2587 = vunpack.c.l.bf16 %v2523
  %v2588 = vunpack.c.l.bf16 %v2524
  %v2589 = vunpack.c.l.bf16 %v2525
  %v2590 = vunpack.c.l.bf16 %v2526
  %v2591 = vunpack.c.l.bf16 %v2527
  %v2592 = vunpack.c.l.bf16 %v2528
  %v2593 = vunpack.c.l.bf16 %v2529
  %v2594 = vunpack.c.l.bf16 %v2530
  %v2595 = vunpack.c.l.bf16 %v2531
  %v2596 = vunpack.c.l.bf16 %v2532
  %v2597 = vunpack.c.l.bf16 %v2533
  %v2598 = vunpack.c.l.bf16 %v2534
  %v2599 = vunpack.c.l.bf16 %v2535
  %v2600 = vunpack.c.l.bf16 %v2536
  %v2601 = vunpack.c.l.bf16 %v2537
  %v2602 = vunpack.c.l.bf16 %v2538
  %v2603 = vunpack.c.l.bf16 %v2539
  %v2604 = vunpack.c.l.bf16 %v2540
  %v2605 = vunpack.c.l.bf16 %v2541
  %v2606 = vunpack.c.l.bf16 %v2542
  %v2607 = vunpack.c.l.bf16 %v2543
  %v2608 = vunpack.c.l.bf16 %v2544
  %v2609 = vunpack.c.l.bf16 %v2545
  %v2610 = vunpack.c.l.bf16 %v2546
  %v2611 = vunpack.c.l.bf16 %v2547
  %v2612 = vunpack.c.l.bf16 %v2548
  %v2613 = vunpack.c.l.bf16 %v2549
  %v2614 = vunpack.c.l.bf16 %v2550
  %v2615 = vunpack.c.l.bf16 %v2551
  %v2616 = vunpack.c.l.bf16 %v2552
  %v2617 = vunpack.c.l.bf16 %v2553
  %v2618 = vunpack.c.l.bf16 %v2554
  %v2619 = vunpack.c.l.bf16 %v2555
  %v2620 = vunpack.c.l.bf16 %v2556
  %v2621 = vunpack.c.l.bf16 %v2557
  %v2622 = vunpack.c.l.bf16 %v2558
  %v2623 = vunpack.c.l.bf16 %v2559
  %v2624 = vunpack.c.l.bf16 %v2560
  %v2625 = vunpack.c.l.bf16 %v2561
  %v2626 = vunpack.c.l.bf16 %v2562
  %v2627 = vunpack.c.l.bf16 %v2563
  %v2628 = vld [vmem:[%s6 + $0x3] sm:$0x1]
  %v2629 = vlaneseq
  %v2630 = vshrl.u32 %v2629, 7
  %v2631 = vsub.s32 0, %v2630
  %v2632 = vrot.slane %v2628, %v2631
  %v2633 = vmul.f32 %v2564, %v2632
  %v2634 = vmul.f32 %v2565, %v2632
  %v2635 = vmul.f32 %v2566, %v2632
  %v2636 = vmul.f32 %v2567, %v2632
  %v2637 = vmul.f32 %v2568, %v2632
  %v2638 = vmul.f32 %v2569, %v2632
  %v2639 = vmul.f32 %v2570, %v2632
  %v2640 = vmul.f32 %v2571, %v2632
  %v2641 = vmul.f32 %v2572, %v2632
  %v2642 = vmul.f32 %v2573, %v2632
  %v2643 = vmul.f32 %v2574, %v2632
  %v2644 = vmul.f32 %v2575, %v2632
  %v2645 = vmul.f32 %v2576, %v2632
  %v2646 = vmul.f32 %v2577, %v2632
  %v2647 = vmul.f32 %v2578, %v2632
  %v2648 = vmul.f32 %v2579, %v2632
  %v2649 = vmul.f32 %v2580, %v2632
  %v2650 = vmul.f32 %v2581, %v2632
  %v2651 = vmul.f32 %v2582, %v2632
  %v2652 = vmul.f32 %v2583, %v2632
  %v2653 = vmul.f32 %v2584, %v2632
  %v2654 = vmul.f32 %v2585, %v2632
  %v2655 = vmul.f32 %v2586, %v2632
  %v2656 = vmul.f32 %v2587, %v2632
  %v2657 = vmul.f32 %v2588, %v2632
  %v2658 = vmul.f32 %v2589, %v2632
  %v2659 = vmul.f32 %v2590, %v2632
  %v2660 = vmul.f32 %v2591, %v2632
  %v2661 = vmul.f32 %v2592, %v2632
  %v2662 = vmul.f32 %v2593, %v2632
  %v2663 = vmul.f32 %v2594, %v2632
  %v2664 = vmul.f32 %v2595, %v2632
  %v2665 = vmul.f32 %v2596, %v2632
  %v2666 = vmul.f32 %v2597, %v2632
  %v2667 = vmul.f32 %v2598, %v2632
  %v2668 = vmul.f32 %v2599, %v2632
  %v2669 = vmul.f32 %v2600, %v2632
  %v2670 = vmul.f32 %v2601, %v2632
  %v2671 = vmul.f32 %v2602, %v2632
  %v2672 = vmul.f32 %v2603, %v2632
  %v2673 = vmul.f32 %v2604, %v2632
  %v2674 = vmul.f32 %v2605, %v2632
  %v2675 = vmul.f32 %v2606, %v2632
  %v2676 = vmul.f32 %v2607, %v2632
  %v2677 = vmul.f32 %v2608, %v2632
  %v2678 = vmul.f32 %v2609, %v2632
  %v2679 = vmul.f32 %v2610, %v2632
  %v2680 = vmul.f32 %v2611, %v2632
  %v2681 = vmul.f32 %v2612, %v2632
  %v2682 = vmul.f32 %v2613, %v2632
  %v2683 = vmul.f32 %v2614, %v2632
  %v2684 = vmul.f32 %v2615, %v2632
  %v2685 = vmul.f32 %v2616, %v2632
  %v2686 = vmul.f32 %v2617, %v2632
  %v2687 = vmul.f32 %v2618, %v2632
  %v2688 = vmul.f32 %v2619, %v2632
  %v2689 = vmul.f32 %v2620, %v2632
  %v2690 = vmul.f32 %v2621, %v2632
  %v2691 = vmul.f32 %v2622, %v2632
  %v2692 = vmul.f32 %v2623, %v2632
  %v2693 = vmul.f32 %v2624, %v2632
  %v2694 = vmul.f32 %v2625, %v2632
  %v2695 = vmul.f32 %v2626, %v2632
  %v2696 = vmul.f32 %v2627, %v2632
  %v2697 = vld [vmem:[%s7 + $0x3] sm:$0x1]
  %v2698 = vlaneseq
  %v2699 = vshrl.u32 %v2698, 7
  %v2700 = vsub.s32 0, %v2699
  %v2701 = vrot.slane %v2697, %v2700
  %v2702 = vadd.f32 %v2633, %v2701
  %v2703 = vadd.f32 %v2634, %v2701
  %v2704 = vadd.f32 %v2635, %v2701
  %v2705 = vadd.f32 %v2636, %v2701
  %v2706 = vadd.f32 %v2637, %v2701
  %v2707 = vadd.f32 %v2638, %v2701
  %v2708 = vadd.f32 %v2639, %v2701
  %v2709 = vadd.f32 %v2640, %v2701
  %v2710 = vadd.f32 %v2641, %v2701
  %v2711 = vadd.f32 %v2642, %v2701
  %v2712 = vadd.f32 %v2643, %v2701
  %v2713 = vadd.f32 %v2644, %v2701
  %v2714 = vadd.f32 %v2645, %v2701
  %v2715 = vadd.f32 %v2646, %v2701
  %v2716 = vadd.f32 %v2647, %v2701
  %v2717 = vadd.f32 %v2648, %v2701
  %v2718 = vadd.f32 %v2649, %v2701
  %v2719 = vadd.f32 %v2650, %v2701
  %v2720 = vadd.f32 %v2651, %v2701
  %v2721 = vadd.f32 %v2652, %v2701
  %v2722 = vadd.f32 %v2653, %v2701
  %v2723 = vadd.f32 %v2654, %v2701
  %v2724 = vadd.f32 %v2655, %v2701
  %v2725 = vadd.f32 %v2656, %v2701
  %v2726 = vadd.f32 %v2657, %v2701
  %v2727 = vadd.f32 %v2658, %v2701
  %v2728 = vadd.f32 %v2659, %v2701
  %v2729 = vadd.f32 %v2660, %v2701
  %v2730 = vadd.f32 %v2661, %v2701
  %v2731 = vadd.f32 %v2662, %v2701
  %v2732 = vadd.f32 %v2663, %v2701
  %v2733 = vadd.f32 %v2664, %v2701
  %v2734 = vadd.f32 %v2665, %v2701
  %v2735 = vadd.f32 %v2666, %v2701
  %v2736 = vadd.f32 %v2667, %v2701
  %v2737 = vadd.f32 %v2668, %v2701
  %v2738 = vadd.f32 %v2669, %v2701
  %v2739 = vadd.f32 %v2670, %v2701
  %v2740 = vadd.f32 %v2671, %v2701
  %v2741 = vadd.f32 %v2672, %v2701
  %v2742 = vadd.f32 %v2673, %v2701
  %v2743 = vadd.f32 %v2674, %v2701
  %v2744 = vadd.f32 %v2675, %v2701
  %v2745 = vadd.f32 %v2676, %v2701
  %v2746 = vadd.f32 %v2677, %v2701
  %v2747 = vadd.f32 %v2678, %v2701
  %v2748 = vadd.f32 %v2679, %v2701
  %v2749 = vadd.f32 %v2680, %v2701
  %v2750 = vadd.f32 %v2681, %v2701
  %v2751 = vadd.f32 %v2682, %v2701
  %v2752 = vadd.f32 %v2683, %v2701
  %v2753 = vadd.f32 %v2684, %v2701
  %v2754 = vadd.f32 %v2685, %v2701
  %v2755 = vadd.f32 %v2686, %v2701
  %v2756 = vadd.f32 %v2687, %v2701
  %v2757 = vadd.f32 %v2688, %v2701
  %v2758 = vadd.f32 %v2689, %v2701
  %v2759 = vadd.f32 %v2690, %v2701
  %v2760 = vadd.f32 %v2691, %v2701
  %v2761 = vadd.f32 %v2692, %v2701
  %v2762 = vadd.f32 %v2693, %v2701
  %v2763 = vadd.f32 %v2694, %v2701
  %v2764 = vadd.f32 %v2695, %v2701
  %v2765 = vadd.f32 %v2696, %v2701
  %v2766 = vmax.f32 %v2702, 0.0
  %v2767 = vmax.f32 %v2703, 0.0
  %v2768 = vmax.f32 %v2704, 0.0
  %v2769 = vmax.f32 %v2705, 0.0
  %v2770 = vmax.f32 %v2706, 0.0
  %v2771 = vmax.f32 %v2707, 0.0
  %v2772 = vmax.f32 %v2708, 0.0
  %v2773 = vmax.f32 %v2709, 0.0
  %v2774 = vmax.f32 %v2710, 0.0
  %v2775 = vmax.f32 %v2711, 0.0
  %v2776 = vmax.f32 %v2712, 0.0
  %v2777 = vmax.f32 %v2713, 0.0
  %v2778 = vmax.f32 %v2714, 0.0
  %v2779 = vmax.f32 %v2715, 0.0
  %v2780 = vmax.f32 %v2716, 0.0
  %v2781 = vmax.f32 %v2717, 0.0
  %v2782 = vmax.f32 %v2718, 0.0
  %v2783 = vmax.f32 %v2719, 0.0
  %v2784 = vmax.f32 %v2720, 0.0
  %v2785 = vmax.f32 %v2721, 0.0
  %v2786 = vmax.f32 %v2722, 0.0
  %v2787 = vmax.f32 %v2723, 0.0
  %v2788 = vmax.f32 %v2724, 0.0
  %v2789 = vmax.f32 %v2725, 0.0
  %v2790 = vmax.f32 %v2726, 0.0
  %v2791 = vmax.f32 %v2727, 0.0
  %v2792 = vmax.f32 %v2728, 0.0
  %v2793 = vmax.f32 %v2729, 0.0
  %v2794 = vmax.f32 %v2730, 0.0
  %v2795 = vmax.f32 %v2731, 0.0
  %v2796 = vmax.f32 %v2732, 0.0
  %v2797 = vmax.f32 %v2733, 0.0
  %v2798 = vmax.f32 %v2734, 0.0
  %v2799 = vmax.f32 %v2735, 0.0
  %v2800 = vmax.f32 %v2736, 0.0
  %v2801 = vmax.f32 %v2737, 0.0
  %v2802 = vmax.f32 %v2738, 0.0
  %v2803 = vmax.f32 %v2739, 0.0
  %v2804 = vmax.f32 %v2740, 0.0
  %v2805 = vmax.f32 %v2741, 0.0
  %v2806 = vmax.f32 %v2742, 0.0
  %v2807 = vmax.f32 %v2743, 0.0
  %v2808 = vmax.f32 %v2744, 0.0
  %v2809 = vmax.f32 %v2745, 0.0
  %v2810 = vmax.f32 %v2746, 0.0
  %v2811 = vmax.f32 %v2747, 0.0
  %v2812 = vmax.f32 %v2748, 0.0
  %v2813 = vmax.f32 %v2749, 0.0
  %v2814 = vmax.f32 %v2750, 0.0
  %v2815 = vmax.f32 %v2751, 0.0
  %v2816 = vmax.f32 %v2752, 0.0
  %v2817 = vmax.f32 %v2753, 0.0
  %v2818 = vmax.f32 %v2754, 0.0
  %v2819 = vmax.f32 %v2755, 0.0
  %v2820 = vmax.f32 %v2756, 0.0
  %v2821 = vmax.f32 %v2757, 0.0
  %v2822 = vmax.f32 %v2758, 0.0
  %v2823 = vmax.f32 %v2759, 0.0
  %v2824 = vmax.f32 %v2760, 0.0
  %v2825 = vmax.f32 %v2761, 0.0
  %v2826 = vmax.f32 %v2762, 0.0
  %v2827 = vmax.f32 %v2763, 0.0
  %v2828 = vmax.f32 %v2764, 0.0
  %v2829 = vmax.f32 %v2765, 0.0
  %v2830 = vpack.c.bf16 %v2767, %v2766
  %v2831 = vpack.c.bf16 %v2769, %v2768
  %v2832 = vpack.c.bf16 %v2771, %v2770
  %v2833 = vpack.c.bf16 %v2773, %v2772
  %v2834 = vpack.c.bf16 %v2775, %v2774
  %v2835 = vpack.c.bf16 %v2777, %v2776
  %v2836 = vpack.c.bf16 %v2779, %v2778
  %v2837 = vpack.c.bf16 %v2781, %v2780
  %v2838 = vpack.c.bf16 %v2783, %v2782
  %v2839 = vpack.c.bf16 %v2785, %v2784
  %v2840 = vpack.c.bf16 %v2787, %v2786
  %v2841 = vpack.c.bf16 %v2789, %v2788
  %v2842 = vpack.c.bf16 %v2791, %v2790
  %v2843 = vpack.c.bf16 %v2793, %v2792
  %v2844 = vpack.c.bf16 %v2795, %v2794
  %v2845 = vpack.c.bf16 %v2797, %v2796
  %v2846 = vpack.c.bf16 %v2799, %v2798
  %v2847 = vpack.c.bf16 %v2801, %v2800
  %v2848 = vpack.c.bf16 %v2803, %v2802
  %v2849 = vpack.c.bf16 %v2805, %v2804
  %v2850 = vpack.c.bf16 %v2807, %v2806
  %v2851 = vpack.c.bf16 %v2809, %v2808
  %v2852 = vpack.c.bf16 %v2811, %v2810
  %v2853 = vpack.c.bf16 %v2813, %v2812
  %v2854 = vpack.c.bf16 %v2815, %v2814
  %v2855 = vpack.c.bf16 %v2817, %v2816
  %v2856 = vpack.c.bf16 %v2819, %v2818
  %v2857 = vpack.c.bf16 %v2821, %v2820
  %v2858 = vpack.c.bf16 %v2823, %v2822
  %v2859 = vpack.c.bf16 %v2825, %v2824
  %v2860 = vpack.c.bf16 %v2827, %v2826
  %v2861 = vpack.c.bf16 %v2829, %v2828
  %s2862 = scalar_lea.vmem %s8, 192
  %v2863 = vld [vmem:[%s2862] sm:$0xf]
  %v2864 = vld [vmem:[%s2862 + $0x4] sm:$0xf]
  %v2865 = vld [vmem:[%s2862 + $0x8] sm:$0xf]
  %v2866 = vld [vmem:[%s2862 + $0xc] sm:$0xf]
  %v2867 = vld [vmem:[%s2862 + $0x10] sm:$0xf]
  %v2868 = vld [vmem:[%s2862 + $0x14] sm:$0xf]
  %v2869 = vld [vmem:[%s2862 + $0x18] sm:$0xf]
  %v2870 = vld [vmem:[%s2862 + $0x1c] sm:$0xf]
  %v2871 = vld [vmem:[%s2862 + $0x20] sm:$0xf]
  %v2872 = vld [vmem:[%s2862 + $0x24] sm:$0xf]
  %v2873 = vld [vmem:[%s2862 + $0x28] sm:$0xf]
  %v2874 = vld [vmem:[%s2862 + $0x2c] sm:$0xf]
  %v2875 = vld [vmem:[%s2862 + $0x30] sm:$0xf]
  %v2876 = vld [vmem:[%s2862 + $0x34] sm:$0xf]
  %v2877 = vld [vmem:[%s2862 + $0x38] sm:$0xf]
  %v2878 = vld [vmem:[%s2862 + $0x3c] sm:$0xf]
  %v2895 = vunpack.c.l.b16 %v2863
  %v2896 = vunpack.c.l.b16 %v2864
  %v2897 = vunpack.c.l.b16 %v2865
  %v2898 = vunpack.c.l.b16 %v2866
  %v2899 = vunpack.c.l.b16 %v2867
  %v2900 = vunpack.c.l.b16 %v2868
  %v2901 = vunpack.c.l.b16 %v2869
  %v2902 = vunpack.c.l.b16 %v2870
  %v2903 = vunpack.c.l.b16 %v2871
  %v2904 = vunpack.c.l.b16 %v2872
  %v2905 = vunpack.c.l.b16 %v2873
  %v2906 = vunpack.c.l.b16 %v2874
  %v2907 = vunpack.c.l.b16 %v2875
  %v2908 = vunpack.c.l.b16 %v2876
  %v2909 = vunpack.c.l.b16 %v2877
  %v2910 = vunpack.c.l.b16 %v2878
  %v2911 = vpack.c.b16 %v2896, %v2895
  %v2912 = vpack.c.b16 %v2898, %v2897
  %v2913 = vpack.c.b16 %v2900, %v2899
  %v2914 = vpack.c.b16 %v2902, %v2901
  %v2915 = vpack.c.b16 %v2904, %v2903
  %v2916 = vpack.c.b16 %v2906, %v2905
  %v2917 = vpack.c.b16 %v2908, %v2907
  %v2918 = vpack.c.b16 %v2910, %v2909
  %2927 = vmatprep.subr.bf16.mxu0 0
  %2928 = vmatpush1.bf16.msra.mxu0 %v2911
  %2929 = vmatprep.subr.bf16.mxu0 0
  %2930 = vmatpush1.bf16.msra.mxu0 %v2912
  %2931 = vmatprep.subr.bf16.mxu0 0
  %2932 = vmatpush1.bf16.msra.mxu0 %v2913
  %2933 = vmatprep.subr.bf16.mxu0 0
  %2934 = vmatpush1.bf16.msra.mxu0 %v2914
  %2935 = vmatprep.subr.bf16.mxu0 0
  %2936 = vmatpush1.bf16.msra.mxu0 %v2915
  %2937 = vmatprep.subr.bf16.mxu0 0
  %2938 = vmatpush1.bf16.msra.mxu0 %v2916
  %2939 = vmatprep.subr.bf16.mxu0 0
  %2940 = vmatpush1.bf16.msra.mxu0 %v2917
  %2941 = vmatprep.subr.bf16.mxu0 0
  %2942 = vmatpush1.bf16.msra.mxu0 %v2918
  %2943 = vmatprep.subr.bf16.mxu0 0
  %2944 = vmatpush1.bf16.msra.mxu0 0
  %2945 = vmatprep.subr.bf16.mxu0 0
  %2946 = vmatpush1.bf16.msra.mxu0 0
  %2947 = vmatprep.subr.bf16.mxu0 0
  %2948 = vmatpush1.bf16.msra.mxu0 0
  %2949 = vmatprep.subr.bf16.mxu0 0
  %2950 = vmatpush1.bf16.msra.mxu0 0
  %2951 = vmatprep.subr.bf16.mxu0 0
  %2952 = vmatpush1.bf16.msra.mxu0 0
  %2953 = vmatprep.subr.bf16.mxu0 0
  %2954 = vmatpush1.bf16.msra.mxu0 0
  %2955 = vmatprep.subr.bf16.mxu0 0
  %2956 = vmatpush1.bf16.msra.mxu0 0
  %2957 = vmatprep.subr.bf16.mxu0 0
  %2958 = vmatpush1.bf16.msra.mxu0 0
  %2959 = vmatprep.mubr.bf16.mxu0 0
  %2960 = vmatmul.mubr.bf16.gmra.mrb[0].mxu0 %v2830
  %v2961 = vpop.f32.mrb[0].mxu0
  %v2962 = vadd.f32 0.0, %v2961
  %v2963 = vpop.f32.mrb[0].mxu0
  %v2964 = vpop.f32.mrb[0].mxu0
  %v2965 = vadd.f32 0.0, %v2964
  %v2966 = vpop.f32.mrb[0].mxu0
  %2967 = vmatprep.mubr.bf16.mxu0 0
  %2968 = vmatmul.mubr.bf16.gmra.mrb[0].mxu0 %v2831
  %v2969 = vpop.f32.mrb[0].mxu0
  %v2970 = vadd.f32 0.0, %v2969
  %v2971 = vpop.f32.mrb[0].mxu0
  %v2972 = vpop.f32.mrb[0].mxu0
  %v2973 = vadd.f32 0.0, %v2972
  %v2974 = vpop.f32.mrb[0].mxu0
  %2975 = vmatprep.mubr.bf16.mxu0 0
  %2976 = vmatmul.mubr.bf16.gmra.mrb[0].mxu0 %v2832
  %v2977 = vpop.f32.mrb[0].mxu0
  %v2978 = vadd.f32 0.0, %v2977
  %v2979 = vpop.f32.mrb[0].mxu0
  %v2980 = vpop.f32.mrb[0].mxu0
  %v2981 = vadd.f32 0.0, %v2980
  %v2982 = vpop.f32.mrb[0].mxu0
  %2983 = vmatprep.mubr.bf16.mxu0 0
  %2984 = vmatmul.mubr.bf16.gmra.mrb[0].mxu0 %v2833
  %v2985 = vpop.f32.mrb[0].mxu0
  %v2986 = vadd.f32 0.0, %v2985
  %v2987 = vpop.f32.mrb[0].mxu0
  %v2988 = vpop.f32.mrb[0].mxu0
  %v2989 = vadd.f32 0.0, %v2988
  %v2990 = vpop.f32.mrb[0].mxu0
  %2991 = vmatprep.mubr.bf16.mxu0 0
  %2992 = vmatmul.mubr.bf16.gmra.mrb[0].mxu0 %v2834
  %v2993 = vpop.f32.mrb[0].mxu0
  %v2994 = vadd.f32 0.0, %v2993
  %v2995 = vpop.f32.mrb[0].mxu0
  %v2996 = vpop.f32.mrb[0].mxu0
  %v2997 = vadd.f32 0.0, %v2996
  %v2998 = vpop.f32.mrb[0].mxu0
  %2999 = vmatprep.mubr.bf16.mxu0 0
  %3000 = vmatmul.mubr.bf16.gmra.mrb[0].mxu0 %v2835
  %v3001 = vpop.f32.mrb[0].mxu0
  %v3002 = vadd.f32 0.0, %v3001
  %v3003 = vpop.f32.mrb[0].mxu0
  %v3004 = vpop.f32.mrb[0].mxu0
  %v3005 = vadd.f32 0.0, %v3004
  %v3006 = vpop.f32.mrb[0].mxu0
  %3007 = vmatprep.mubr.bf16.mxu0 0
  %3008 = vmatmul.mubr.bf16.gmra.mrb[0].mxu0 %v2836
  %v3009 = vpop.f32.mrb[0].mxu0
  %v3010 = vadd.f32 0.0, %v3009
  %v3011 = vpop.f32.mrb[0].mxu0
  %v3012 = vpop.f32.mrb[0].mxu0
  %v3013 = vadd.f32 0.0, %v3012
  %v3014 = vpop.f32.mrb[0].mxu0
  %3015 = vmatprep.mubr.bf16.mxu0 0
  %3016 = vmatmul.mubr.bf16.gmra.mrb[0].mxu0 %v2837
  %v3017 = vpop.f32.mrb[0].mxu0
  %v3018 = vadd.f32 0.0, %v3017
  %v3019 = vpop.f32.mrb[0].mxu0
  %v3020 = vpop.f32.mrb[0].mxu0
  %v3021 = vadd.f32 0.0, %v3020
  %v3022 = vpop.f32.mrb[0].mxu0
  %3023 = vmatprep.mubr.bf16.mxu0 0
  %3024 = vmatmul.mubr.bf16.gmra.mrb[0].mxu0 %v2838
  %v3025 = vpop.f32.mrb[0].mxu0
  %v3026 = vadd.f32 0.0, %v3025
  %v3027 = vpop.f32.mrb[0].mxu0
  %v3028 = vpop.f32.mrb[0].mxu0
  %v3029 = vadd.f32 0.0, %v3028
  %v3030 = vpop.f32.mrb[0].mxu0
  %3031 = vmatprep.mubr.bf16.mxu0 0
  %3032 = vmatmul.mubr.bf16.gmra.mrb[0].mxu0 %v2839
  %v3033 = vpop.f32.mrb[0].mxu0
  %v3034 = vadd.f32 0.0, %v3033
  %v3035 = vpop.f32.mrb[0].mxu0
  %v3036 = vpop.f32.mrb[0].mxu0
  %v3037 = vadd.f32 0.0, %v3036
  %v3038 = vpop.f32.mrb[0].mxu0
  %3039 = vmatprep.mubr.bf16.mxu0 0
  %3040 = vmatmul.mubr.bf16.gmra.mrb[0].mxu0 %v2840
  %v3041 = vpop.f32.mrb[0].mxu0
  %v3042 = vadd.f32 0.0, %v3041
  %v3043 = vpop.f32.mrb[0].mxu0
  %v3044 = vpop.f32.mrb[0].mxu0
  %v3045 = vadd.f32 0.0, %v3044
  %v3046 = vpop.f32.mrb[0].mxu0
  %3047 = vmatprep.mubr.bf16.mxu0 0
  %3048 = vmatmul.mubr.bf16.gmra.mrb[0].mxu0 %v2841
  %v3049 = vpop.f32.mrb[0].mxu0
  %v3050 = vadd.f32 0.0, %v3049
  %v3051 = vpop.f32.mrb[0].mxu0
  %v3052 = vpop.f32.mrb[0].mxu0
  %v3053 = vadd.f32 0.0, %v3052
  %v3054 = vpop.f32.mrb[0].mxu0
  %3055 = vmatprep.mubr.bf16.mxu0 0
  %3056 = vmatmul.mubr.bf16.gmra.mrb[0].mxu0 %v2842
  %v3057 = vpop.f32.mrb[0].mxu0
  %v3058 = vadd.f32 0.0, %v3057
  %v3059 = vpop.f32.mrb[0].mxu0
  %v3060 = vpop.f32.mrb[0].mxu0
  %v3061 = vadd.f32 0.0, %v3060
  %v3062 = vpop.f32.mrb[0].mxu0
  %3063 = vmatprep.mubr.bf16.mxu0 0
  %3064 = vmatmul.mubr.bf16.gmra.mrb[0].mxu0 %v2843
  %v3065 = vpop.f32.mrb[0].mxu0
  %v3066 = vadd.f32 0.0, %v3065
  %v3067 = vpop.f32.mrb[0].mxu0
  %v3068 = vpop.f32.mrb[0].mxu0
  %v3069 = vadd.f32 0.0, %v3068
  %v3070 = vpop.f32.mrb[0].mxu0
  %3071 = vmatprep.mubr.bf16.mxu0 0
  %3072 = vmatmul.mubr.bf16.gmra.mrb[0].mxu0 %v2844
  %v3073 = vpop.f32.mrb[0].mxu0
  %v3074 = vadd.f32 0.0, %v3073
  %v3075 = vpop.f32.mrb[0].mxu0
  %v3076 = vpop.f32.mrb[0].mxu0
  %v3077 = vadd.f32 0.0, %v3076
  %v3078 = vpop.f32.mrb[0].mxu0
  %3079 = vmatprep.mubr.bf16.mxu0 0
  %3080 = vmatmul.mubr.bf16.gmra.mrb[0].mxu0 %v2845
  %v3081 = vpop.f32.mrb[0].mxu0
  %v3082 = vadd.f32 0.0, %v3081
  %v3083 = vpop.f32.mrb[0].mxu0
  %v3084 = vpop.f32.mrb[0].mxu0
  %v3085 = vadd.f32 0.0, %v3084
  %v3086 = vpop.f32.mrb[0].mxu0
  %3087 = vmatprep.mubr.bf16.mxu0 0
  %3088 = vmatmul.mubr.bf16.gmra.mrb[0].mxu0 %v2846
  %v3089 = vpop.f32.mrb[0].mxu0
  %v3090 = vadd.f32 0.0, %v3089
  %v3091 = vpop.f32.mrb[0].mxu0
  %v3092 = vpop.f32.mrb[0].mxu0
  %v3093 = vadd.f32 0.0, %v3092
  %v3094 = vpop.f32.mrb[0].mxu0
  %3095 = vmatprep.mubr.bf16.mxu0 0
  %3096 = vmatmul.mubr.bf16.gmra.mrb[0].mxu0 %v2847
  %v3097 = vpop.f32.mrb[0].mxu0
  %v3098 = vadd.f32 0.0, %v3097
  %v3099 = vpop.f32.mrb[0].mxu0
  %v3100 = vpop.f32.mrb[0].mxu0
  %v3101 = vadd.f32 0.0, %v3100
  %v3102 = vpop.f32.mrb[0].mxu0
  %3103 = vmatprep.mubr.bf16.mxu0 0
  %3104 = vmatmul.mubr.bf16.gmra.mrb[0].mxu0 %v2848
  %v3105 = vpop.f32.mrb[0].mxu0
  %v3106 = vadd.f32 0.0, %v3105
  %v3107 = vpop.f32.mrb[0].mxu0
  %v3108 = vpop.f32.mrb[0].mxu0
  %v3109 = vadd.f32 0.0, %v3108
  %v3110 = vpop.f32.mrb[0].mxu0
  %3111 = vmatprep.mubr.bf16.mxu0 0
  %3112 = vmatmul.mubr.bf16.gmra.mrb[0].mxu0 %v2849
  %v3113 = vpop.f32.mrb[0].mxu0
  %v3114 = vadd.f32 0.0, %v3113
  %v3115 = vpop.f32.mrb[0].mxu0
  %v3116 = vpop.f32.mrb[0].mxu0
  %v3117 = vadd.f32 0.0, %v3116
  %v3118 = vpop.f32.mrb[0].mxu0
  %3119 = vmatprep.mubr.bf16.mxu0 0
  %3120 = vmatmul.mubr.bf16.gmra.mrb[0].mxu0 %v2850
  %v3121 = vpop.f32.mrb[0].mxu0
  %v3122 = vadd.f32 0.0, %v3121
  %v3123 = vpop.f32.mrb[0].mxu0
  %v3124 = vpop.f32.mrb[0].mxu0
  %v3125 = vadd.f32 0.0, %v3124
  %v3126 = vpop.f32.mrb[0].mxu0
  %3127 = vmatprep.mubr.bf16.mxu0 0
  %3128 = vmatmul.mubr.bf16.gmra.mrb[0].mxu0 %v2851
  %v3129 = vpop.f32.mrb[0].mxu0
  %v3130 = vadd.f32 0.0, %v3129
  %v3131 = vpop.f32.mrb[0].mxu0
  %v3132 = vpop.f32.mrb[0].mxu0
  %v3133 = vadd.f32 0.0, %v3132
  %v3134 = vpop.f32.mrb[0].mxu0
  %3135 = vmatprep.mubr.bf16.mxu0 0
  %3136 = vmatmul.mubr.bf16.gmra.mrb[0].mxu0 %v2852
  %v3137 = vpop.f32.mrb[0].mxu0
  %v3138 = vadd.f32 0.0, %v3137
  %v3139 = vpop.f32.mrb[0].mxu0
  %v3140 = vpop.f32.mrb[0].mxu0
  %v3141 = vadd.f32 0.0, %v3140
  %v3142 = vpop.f32.mrb[0].mxu0
  %3143 = vmatprep.mubr.bf16.mxu0 0
  %3144 = vmatmul.mubr.bf16.gmra.mrb[0].mxu0 %v2853
  %v3145 = vpop.f32.mrb[0].mxu0
  %v3146 = vadd.f32 0.0, %v3145
  %v3147 = vpop.f32.mrb[0].mxu0
  %v3148 = vpop.f32.mrb[0].mxu0
  %v3149 = vadd.f32 0.0, %v3148
  %v3150 = vpop.f32.mrb[0].mxu0
  %3151 = vmatprep.mubr.bf16.mxu0 0
  %3152 = vmatmul.mubr.bf16.gmra.mrb[0].mxu0 %v2854
  %v3153 = vpop.f32.mrb[0].mxu0
  %v3154 = vadd.f32 0.0, %v3153
  %v3155 = vpop.f32.mrb[0].mxu0
  %v3156 = vpop.f32.mrb[0].mxu0
  %v3157 = vadd.f32 0.0, %v3156
  %v3158 = vpop.f32.mrb[0].mxu0
  %3159 = vmatprep.mubr.bf16.mxu0 0
  %3160 = vmatmul.mubr.bf16.gmra.mrb[0].mxu0 %v2855
  %v3161 = vpop.f32.mrb[0].mxu0
  %v3162 = vadd.f32 0.0, %v3161
  %v3163 = vpop.f32.mrb[0].mxu0
  %v3164 = vpop.f32.mrb[0].mxu0
  %v3165 = vadd.f32 0.0, %v3164
  %v3166 = vpop.f32.mrb[0].mxu0
  %3167 = vmatprep.mubr.bf16.mxu0 0
  %3168 = vmatmul.mubr.bf16.gmra.mrb[0].mxu0 %v2856
  %v3169 = vpop.f32.mrb[0].mxu0
  %v3170 = vadd.f32 0.0, %v3169
  %v3171 = vpop.f32.mrb[0].mxu0
  %v3172 = vpop.f32.mrb[0].mxu0
  %v3173 = vadd.f32 0.0, %v3172
  %v3174 = vpop.f32.mrb[0].mxu0
  %3175 = vmatprep.mubr.bf16.mxu0 0
  %3176 = vmatmul.mubr.bf16.gmra.mrb[0].mxu0 %v2857
  %v3177 = vpop.f32.mrb[0].mxu0
  %v3178 = vadd.f32 0.0, %v3177
  %v3179 = vpop.f32.mrb[0].mxu0
  %v3180 = vpop.f32.mrb[0].mxu0
  %v3181 = vadd.f32 0.0, %v3180
  %v3182 = vpop.f32.mrb[0].mxu0
  %3183 = vmatprep.mubr.bf16.mxu0 0
  %3184 = vmatmul.mubr.bf16.gmra.mrb[0].mxu0 %v2858
  %v3185 = vpop.f32.mrb[0].mxu0
  %v3186 = vadd.f32 0.0, %v3185
  %v3187 = vpop.f32.mrb[0].mxu0
  %v3188 = vpop.f32.mrb[0].mxu0
  %v3189 = vadd.f32 0.0, %v3188
  %v3190 = vpop.f32.mrb[0].mxu0
  %3191 = vmatprep.mubr.bf16.mxu0 0
  %3192 = vmatmul.mubr.bf16.gmra.mrb[0].mxu0 %v2859
  %v3193 = vpop.f32.mrb[0].mxu0
  %v3194 = vadd.f32 0.0, %v3193
  %v3195 = vpop.f32.mrb[0].mxu0
  %v3196 = vpop.f32.mrb[0].mxu0
  %v3197 = vadd.f32 0.0, %v3196
  %v3198 = vpop.f32.mrb[0].mxu0
  %3199 = vmatprep.mubr.bf16.mxu0 0
  %3200 = vmatmul.mubr.bf16.gmra.mrb[0].mxu0 %v2860
  %v3201 = vpop.f32.mrb[0].mxu0
  %v3202 = vadd.f32 0.0, %v3201
  %v3203 = vpop.f32.mrb[0].mxu0
  %v3204 = vpop.f32.mrb[0].mxu0
  %v3205 = vadd.f32 0.0, %v3204
  %v3206 = vpop.f32.mrb[0].mxu0
  %3207 = vmatprep.mubr.bf16.mxu0 0
  %3208 = vmatmul.mubr.bf16.gmra.mrb[0].mxu0 %v2861
  %v3209 = vpop.f32.mrb[0].mxu0
  %v3210 = vadd.f32 0.0, %v3209
  %v3211 = vpop.f32.mrb[0].mxu0
  %v3212 = vpop.f32.mrb[0].mxu0
  %v3213 = vadd.f32 0.0, %v3212
  %v3214 = vpop.f32.mrb[0].mxu0
  %3215 = vdwg.mxu0
  %v3216 = vadd.f32 %v2436, %v2962
  %v3217 = vadd.f32 %v2437, %v2965
  %v3218 = vadd.f32 %v2438, %v2970
  %v3219 = vadd.f32 %v2439, %v2973
  %v3220 = vadd.f32 %v2440, %v2978
  %v3221 = vadd.f32 %v2441, %v2981
  %v3222 = vadd.f32 %v2442, %v2986
  %v3223 = vadd.f32 %v2443, %v2989
  %v3224 = vadd.f32 %v2444, %v2994
  %v3225 = vadd.f32 %v2445, %v2997
  %v3226 = vadd.f32 %v2446, %v3002
  %v3227 = vadd.f32 %v2447, %v3005
  %v3228 = vadd.f32 %v2448, %v3010
  %v3229 = vadd.f32 %v2449, %v3013
  %v3230 = vadd.f32 %v2450, %v3018
  %v3231 = vadd.f32 %v2451, %v3021
  %v3232 = vadd.f32 %v2452, %v3026
  %v3233 = vadd.f32 %v2453, %v3029
  %v3234 = vadd.f32 %v2454, %v3034
  %v3235 = vadd.f32 %v2455, %v3037
  %v3236 = vadd.f32 %v2456, %v3042
  %v3237 = vadd.f32 %v2457, %v3045
  %v3238 = vadd.f32 %v2458, %v3050
  %v3239 = vadd.f32 %v2459, %v3053
  %v3240 = vadd.f32 %v2460, %v3058
  %v3241 = vadd.f32 %v2461, %v3061
  %v3242 = vadd.f32 %v2462, %v3066
  %v3243 = vadd.f32 %v2463, %v3069
  %v3244 = vadd.f32 %v2464, %v3074
  %v3245 = vadd.f32 %v2465, %v3077
  %v3246 = vadd.f32 %v2466, %v3082
  %v3247 = vadd.f32 %v2467, %v3085
  %v3248 = vadd.f32 %v2468, %v3090
  %v3249 = vadd.f32 %v2469, %v3093
  %v3250 = vadd.f32 %v2470, %v3098
  %v3251 = vadd.f32 %v2471, %v3101
  %v3252 = vadd.f32 %v2472, %v3106
  %v3253 = vadd.f32 %v2473, %v3109
  %v3254 = vadd.f32 %v2474, %v3114
  %v3255 = vadd.f32 %v2475, %v3117
  %v3256 = vadd.f32 %v2476, %v3122
  %v3257 = vadd.f32 %v2477, %v3125
  %v3258 = vadd.f32 %v2478, %v3130
  %v3259 = vadd.f32 %v2479, %v3133
  %v3260 = vadd.f32 %v2480, %v3138
  %v3261 = vadd.f32 %v2481, %v3141
  %v3262 = vadd.f32 %v2482, %v3146
  %v3263 = vadd.f32 %v2483, %v3149
  %v3264 = vadd.f32 %v2484, %v3154
  %v3265 = vadd.f32 %v2485, %v3157
  %v3266 = vadd.f32 %v2486, %v3162
  %v3267 = vadd.f32 %v2487, %v3165
  %v3268 = vadd.f32 %v2488, %v3170
  %v3269 = vadd.f32 %v2489, %v3173
  %v3270 = vadd.f32 %v2490, %v3178
  %v3271 = vadd.f32 %v2491, %v3181
  %v3272 = vadd.f32 %v2492, %v3186
  %v3273 = vadd.f32 %v2493, %v3189
  %v3274 = vadd.f32 %v2494, %v3194
  %v3275 = vadd.f32 %v2495, %v3197
  %v3276 = vadd.f32 %v2496, %v3202
  %v3277 = vadd.f32 %v2497, %v3205
  %v3278 = vadd.f32 %v2498, %v3210
  %v3279 = vadd.f32 %v2499, %v3213
  %v3280 = vld [vmem:[%s4] sm:$0xf]
  %v3281 = vld [vmem:[%s4 + $0x4] sm:$0xf]
  %v3282 = vld [vmem:[%s4 + $0x8] sm:$0xf]
  %v3283 = vld [vmem:[%s4 + $0xc] sm:$0xf]
  %v3284 = vld [vmem:[%s4 + $0x10] sm:$0xf]
  %v3285 = vld [vmem:[%s4 + $0x14] sm:$0xf]
  %v3286 = vld [vmem:[%s4 + $0x18] sm:$0xf]
  %v3287 = vld [vmem:[%s4 + $0x1c] sm:$0xf]
  %v3288 = vld [vmem:[%s4 + $0x20] sm:$0xf]
  %v3289 = vld [vmem:[%s4 + $0x24] sm:$0xf]
  %v3290 = vld [vmem:[%s4 + $0x28] sm:$0xf]
  %v3291 = vld [vmem:[%s4 + $0x2c] sm:$0xf]
  %v3292 = vld [vmem:[%s4 + $0x30] sm:$0xf]
  %v3293 = vld [vmem:[%s4 + $0x34] sm:$0xf]
  %v3294 = vld [vmem:[%s4 + $0x38] sm:$0xf]
  %v3295 = vld [vmem:[%s4 + $0x3c] sm:$0xf]
  %v3296 = vld [vmem:[%s4 + $0x40] sm:$0xf]
  %v3297 = vld [vmem:[%s4 + $0x44] sm:$0xf]
  %v3298 = vld [vmem:[%s4 + $0x48] sm:$0xf]
  %v3299 = vld [vmem:[%s4 + $0x4c] sm:$0xf]
  %v3300 = vld [vmem:[%s4 + $0x50] sm:$0xf]
  %v3301 = vld [vmem:[%s4 + $0x54] sm:$0xf]
  %v3302 = vld [vmem:[%s4 + $0x58] sm:$0xf]
  %v3303 = vld [vmem:[%s4 + $0x5c] sm:$0xf]
  %v3304 = vld [vmem:[%s4 + $0x60] sm:$0xf]
  %v3305 = vld [vmem:[%s4 + $0x64] sm:$0xf]
  %v3306 = vld [vmem:[%s4 + $0x68] sm:$0xf]
  %v3307 = vld [vmem:[%s4 + $0x6c] sm:$0xf]
  %v3308 = vld [vmem:[%s4 + $0x70] sm:$0xf]
  %v3309 = vld [vmem:[%s4 + $0x74] sm:$0xf]
  %v3310 = vld [vmem:[%s4 + $0x78] sm:$0xf]
  %v3311 = vld [vmem:[%s4 + $0x7c] sm:$0xf]
  %v3312 = vld [vmem:[%s4 + $0x80] sm:$0xf]
  %v3313 = vld [vmem:[%s4 + $0x84] sm:$0xf]
  %v3314 = vld [vmem:[%s4 + $0x88] sm:$0xf]
  %v3315 = vld [vmem:[%s4 + $0x8c] sm:$0xf]
  %v3316 = vld [vmem:[%s4 + $0x90] sm:$0xf]
  %v3317 = vld [vmem:[%s4 + $0x94] sm:$0xf]
  %v3318 = vld [vmem:[%s4 + $0x98] sm:$0xf]
  %v3319 = vld [vmem:[%s4 + $0x9c] sm:$0xf]
  %v3320 = vld [vmem:[%s4 + $0xa0] sm:$0xf]
  %v3321 = vld [vmem:[%s4 + $0xa4] sm:$0xf]
  %v3322 = vld [vmem:[%s4 + $0xa8] sm:$0xf]
  %v3323 = vld [vmem:[%s4 + $0xac] sm:$0xf]
  %v3324 = vld [vmem:[%s4 + $0xb0] sm:$0xf]
  %v3325 = vld [vmem:[%s4 + $0xb4] sm:$0xf]
  %v3326 = vld [vmem:[%s4 + $0xb8] sm:$0xf]
  %v3327 = vld [vmem:[%s4 + $0xbc] sm:$0xf]
  %v3328 = vld [vmem:[%s4 + $0xc0] sm:$0xf]
  %v3329 = vld [vmem:[%s4 + $0xc4] sm:$0xf]
  %v3330 = vld [vmem:[%s4 + $0xc8] sm:$0xf]
  %v3331 = vld [vmem:[%s4 + $0xcc] sm:$0xf]
  %v3332 = vld [vmem:[%s4 + $0xd0] sm:$0xf]
  %v3333 = vld [vmem:[%s4 + $0xd4] sm:$0xf]
  %v3334 = vld [vmem:[%s4 + $0xd8] sm:$0xf]
  %v3335 = vld [vmem:[%s4 + $0xdc] sm:$0xf]
  %v3336 = vld [vmem:[%s4 + $0xe0] sm:$0xf]
  %v3337 = vld [vmem:[%s4 + $0xe4] sm:$0xf]
  %v3338 = vld [vmem:[%s4 + $0xe8] sm:$0xf]
  %v3339 = vld [vmem:[%s4 + $0xec] sm:$0xf]
  %v3340 = vld [vmem:[%s4 + $0xf0] sm:$0xf]
  %v3341 = vld [vmem:[%s4 + $0xf4] sm:$0xf]
  %v3342 = vld [vmem:[%s4 + $0xf8] sm:$0xf]
  %v3343 = vld [vmem:[%s4 + $0xfc] sm:$0xf]
  %v3344 = vunpack.c.l.bf16 %v3280
  %v3345 = vunpack.c.l.bf16 %v3281
  %v3346 = vunpack.c.l.bf16 %v3282
  %v3347 = vunpack.c.l.bf16 %v3283
  %v3348 = vunpack.c.l.bf16 %v3284
  %v3349 = vunpack.c.l.bf16 %v3285
  %v3350 = vunpack.c.l.bf16 %v3286
  %v3351 = vunpack.c.l.bf16 %v3287
  %v3352 = vunpack.c.l.bf16 %v3288
  %v3353 = vunpack.c.l.bf16 %v3289
  %v3354 = vunpack.c.l.bf16 %v3290
  %v3355 = vunpack.c.l.bf16 %v3291
  %v3356 = vunpack.c.l.bf16 %v3292
  %v3357 = vunpack.c.l.bf16 %v3293
  %v3358 = vunpack.c.l.bf16 %v3294
  %v3359 = vunpack.c.l.bf16 %v3295
  %v3360 = vunpack.c.l.bf16 %v3296
  %v3361 = vunpack.c.l.bf16 %v3297
  %v3362 = vunpack.c.l.bf16 %v3298
  %v3363 = vunpack.c.l.bf16 %v3299
  %v3364 = vunpack.c.l.bf16 %v3300
  %v3365 = vunpack.c.l.bf16 %v3301
  %v3366 = vunpack.c.l.bf16 %v3302
  %v3367 = vunpack.c.l.bf16 %v3303
  %v3368 = vunpack.c.l.bf16 %v3304
  %v3369 = vunpack.c.l.bf16 %v3305
  %v3370 = vunpack.c.l.bf16 %v3306
  %v3371 = vunpack.c.l.bf16 %v3307
  %v3372 = vunpack.c.l.bf16 %v3308
  %v3373 = vunpack.c.l.bf16 %v3309
  %v3374 = vunpack.c.l.bf16 %v3310
  %v3375 = vunpack.c.l.bf16 %v3311
  %v3376 = vunpack.c.l.bf16 %v3312
  %v3377 = vunpack.c.l.bf16 %v3313
  %v3378 = vunpack.c.l.bf16 %v3314
  %v3379 = vunpack.c.l.bf16 %v3315
  %v3380 = vunpack.c.l.bf16 %v3316
  %v3381 = vunpack.c.l.bf16 %v3317
  %v3382 = vunpack.c.l.bf16 %v3318
  %v3383 = vunpack.c.l.bf16 %v3319
  %v3384 = vunpack.c.l.bf16 %v3320
  %v3385 = vunpack.c.l.bf16 %v3321
  %v3386 = vunpack.c.l.bf16 %v3322
  %v3387 = vunpack.c.l.bf16 %v3323
  %v3388 = vunpack.c.l.bf16 %v3324
  %v3389 = vunpack.c.l.bf16 %v3325
  %v3390 = vunpack.c.l.bf16 %v3326
  %v3391 = vunpack.c.l.bf16 %v3327
  %v3392 = vunpack.c.l.bf16 %v3328
  %v3393 = vunpack.c.l.bf16 %v3329
  %v3394 = vunpack.c.l.bf16 %v3330
  %v3395 = vunpack.c.l.bf16 %v3331
  %v3396 = vunpack.c.l.bf16 %v3332
  %v3397 = vunpack.c.l.bf16 %v3333
  %v3398 = vunpack.c.l.bf16 %v3334
  %v3399 = vunpack.c.l.bf16 %v3335
  %v3400 = vunpack.c.l.bf16 %v3336
  %v3401 = vunpack.c.l.bf16 %v3337
  %v3402 = vunpack.c.l.bf16 %v3338
  %v3403 = vunpack.c.l.bf16 %v3339
  %v3404 = vunpack.c.l.bf16 %v3340
  %v3405 = vunpack.c.l.bf16 %v3341
  %v3406 = vunpack.c.l.bf16 %v3342
  %v3407 = vunpack.c.l.bf16 %v3343
  %v3408 = vld [vmem:[%s6 + $0x4] sm:$0x1]
  %v3409 = vlaneseq
  %v3410 = vshrl.u32 %v3409, 7
  %v3411 = vsub.s32 0, %v3410
  %v3412 = vrot.slane %v3408, %v3411
  %v3413 = vmul.f32 %v3344, %v3412
  %v3414 = vmul.f32 %v3345, %v3412
  %v3415 = vmul.f32 %v3346, %v3412
  %v3416 = vmul.f32 %v3347, %v3412
  %v3417 = vmul.f32 %v3348, %v3412
  %v3418 = vmul.f32 %v3349, %v3412
  %v3419 = vmul.f32 %v3350, %v3412
  %v3420 = vmul.f32 %v3351, %v3412
  %v3421 = vmul.f32 %v3352, %v3412
  %v3422 = vmul.f32 %v3353, %v3412
  %v3423 = vmul.f32 %v3354, %v3412
  %v3424 = vmul.f32 %v3355, %v3412
  %v3425 = vmul.f32 %v3356, %v3412
  %v3426 = vmul.f32 %v3357, %v3412
  %v3427 = vmul.f32 %v3358, %v3412
  %v3428 = vmul.f32 %v3359, %v3412
  %v3429 = vmul.f32 %v3360, %v3412
  %v3430 = vmul.f32 %v3361, %v3412
  %v3431 = vmul.f32 %v3362, %v3412
  %v3432 = vmul.f32 %v3363, %v3412
  %v3433 = vmul.f32 %v3364, %v3412
  %v3434 = vmul.f32 %v3365, %v3412
  %v3435 = vmul.f32 %v3366, %v3412
  %v3436 = vmul.f32 %v3367, %v3412
  %v3437 = vmul.f32 %v3368, %v3412
  %v3438 = vmul.f32 %v3369, %v3412
  %v3439 = vmul.f32 %v3370, %v3412
  %v3440 = vmul.f32 %v3371, %v3412
  %v3441 = vmul.f32 %v3372, %v3412
  %v3442 = vmul.f32 %v3373, %v3412
  %v3443 = vmul.f32 %v3374, %v3412
  %v3444 = vmul.f32 %v3375, %v3412
  %v3445 = vmul.f32 %v3376, %v3412
  %v3446 = vmul.f32 %v3377, %v3412
  %v3447 = vmul.f32 %v3378, %v3412
  %v3448 = vmul.f32 %v3379, %v3412
  %v3449 = vmul.f32 %v3380, %v3412
  %v3450 = vmul.f32 %v3381, %v3412
  %v3451 = vmul.f32 %v3382, %v3412
  %v3452 = vmul.f32 %v3383, %v3412
  %v3453 = vmul.f32 %v3384, %v3412
  %v3454 = vmul.f32 %v3385, %v3412
  %v3455 = vmul.f32 %v3386, %v3412
  %v3456 = vmul.f32 %v3387, %v3412
  %v3457 = vmul.f32 %v3388, %v3412
  %v3458 = vmul.f32 %v3389, %v3412
  %v3459 = vmul.f32 %v3390, %v3412
  %v3460 = vmul.f32 %v3391, %v3412
  %v3461 = vmul.f32 %v3392, %v3412
  %v3462 = vmul.f32 %v3393, %v3412
  %v3463 = vmul.f32 %v3394, %v3412
  %v3464 = vmul.f32 %v3395, %v3412
  %v3465 = vmul.f32 %v3396, %v3412
  %v3466 = vmul.f32 %v3397, %v3412
  %v3467 = vmul.f32 %v3398, %v3412
  %v3468 = vmul.f32 %v3399, %v3412
  %v3469 = vmul.f32 %v3400, %v3412
  %v3470 = vmul.f32 %v3401, %v3412
  %v3471 = vmul.f32 %v3402, %v3412
  %v3472 = vmul.f32 %v3403, %v3412
  %v3473 = vmul.f32 %v3404, %v3412
  %v3474 = vmul.f32 %v3405, %v3412
  %v3475 = vmul.f32 %v3406, %v3412
  %v3476 = vmul.f32 %v3407, %v3412
  %v3477 = vld [vmem:[%s7 + $0x4] sm:$0x1]
  %v3478 = vlaneseq
  %v3479 = vshrl.u32 %v3478, 7
  %v3480 = vsub.s32 0, %v3479
  %v3481 = vrot.slane %v3477, %v3480
  %v3482 = vadd.f32 %v3413, %v3481
  %v3483 = vadd.f32 %v3414, %v3481
  %v3484 = vadd.f32 %v3415, %v3481
  %v3485 = vadd.f32 %v3416, %v3481
  %v3486 = vadd.f32 %v3417, %v3481
  %v3487 = vadd.f32 %v3418, %v3481
  %v3488 = vadd.f32 %v3419, %v3481
  %v3489 = vadd.f32 %v3420, %v3481
  %v3490 = vadd.f32 %v3421, %v3481
  %v3491 = vadd.f32 %v3422, %v3481
  %v3492 = vadd.f32 %v3423, %v3481
  %v3493 = vadd.f32 %v3424, %v3481
  %v3494 = vadd.f32 %v3425, %v3481
  %v3495 = vadd.f32 %v3426, %v3481
  %v3496 = vadd.f32 %v3427, %v3481
  %v3497 = vadd.f32 %v3428, %v3481
  %v3498 = vadd.f32 %v3429, %v3481
  %v3499 = vadd.f32 %v3430, %v3481
  %v3500 = vadd.f32 %v3431, %v3481
  %v3501 = vadd.f32 %v3432, %v3481
  %v3502 = vadd.f32 %v3433, %v3481
  %v3503 = vadd.f32 %v3434, %v3481
  %v3504 = vadd.f32 %v3435, %v3481
  %v3505 = vadd.f32 %v3436, %v3481
  %v3506 = vadd.f32 %v3437, %v3481
  %v3507 = vadd.f32 %v3438, %v3481
  %v3508 = vadd.f32 %v3439, %v3481
  %v3509 = vadd.f32 %v3440, %v3481
  %v3510 = vadd.f32 %v3441, %v3481
  %v3511 = vadd.f32 %v3442, %v3481
  %v3512 = vadd.f32 %v3443, %v3481
  %v3513 = vadd.f32 %v3444, %v3481
  %v3514 = vadd.f32 %v3445, %v3481
  %v3515 = vadd.f32 %v3446, %v3481
  %v3516 = vadd.f32 %v3447, %v3481
  %v3517 = vadd.f32 %v3448, %v3481
  %v3518 = vadd.f32 %v3449, %v3481
  %v3519 = vadd.f32 %v3450, %v3481
  %v3520 = vadd.f32 %v3451, %v3481
  %v3521 = vadd.f32 %v3452, %v3481
  %v3522 = vadd.f32 %v3453, %v3481
  %v3523 = vadd.f32 %v3454, %v3481
  %v3524 = vadd.f32 %v3455, %v3481
  %v3525 = vadd.f32 %v3456, %v3481
  %v3526 = vadd.f32 %v3457, %v3481
  %v3527 = vadd.f32 %v3458, %v3481
  %v3528 = vadd.f32 %v3459, %v3481
  %v3529 = vadd.f32 %v3460, %v3481
  %v3530 = vadd.f32 %v3461, %v3481
  %v3531 = vadd.f32 %v3462, %v3481
  %v3532 = vadd.f32 %v3463, %v3481
  %v3533 = vadd.f32 %v3464, %v3481
  %v3534 = vadd.f32 %v3465, %v3481
  %v3535 = vadd.f32 %v3466, %v3481
  %v3536 = vadd.f32 %v3467, %v3481
  %v3537 = vadd.f32 %v3468, %v3481
  %v3538 = vadd.f32 %v3469, %v3481
  %v3539 = vadd.f32 %v3470, %v3481
  %v3540 = vadd.f32 %v3471, %v3481
  %v3541 = vadd.f32 %v3472, %v3481
  %v3542 = vadd.f32 %v3473, %v3481
  %v3543 = vadd.f32 %v3474, %v3481
  %v3544 = vadd.f32 %v3475, %v3481
  %v3545 = vadd.f32 %v3476, %v3481
  %v3546 = vmax.f32 %v3482, 0.0
  %v3547 = vmax.f32 %v3483, 0.0
  %v3548 = vmax.f32 %v3484, 0.0
  %v3549 = vmax.f32 %v3485, 0.0
  %v3550 = vmax.f32 %v3486, 0.0
  %v3551 = vmax.f32 %v3487, 0.0
  %v3552 = vmax.f32 %v3488, 0.0
  %v3553 = vmax.f32 %v3489, 0.0
  %v3554 = vmax.f32 %v3490, 0.0
  %v3555 = vmax.f32 %v3491, 0.0
  %v3556 = vmax.f32 %v3492, 0.0
  %v3557 = vmax.f32 %v3493, 0.0
  %v3558 = vmax.f32 %v3494, 0.0
  %v3559 = vmax.f32 %v3495, 0.0
  %v3560 = vmax.f32 %v3496, 0.0
  %v3561 = vmax.f32 %v3497, 0.0
  %v3562 = vmax.f32 %v3498, 0.0
  %v3563 = vmax.f32 %v3499, 0.0
  %v3564 = vmax.f32 %v3500, 0.0
  %v3565 = vmax.f32 %v3501, 0.0
  %v3566 = vmax.f32 %v3502, 0.0
  %v3567 = vmax.f32 %v3503, 0.0
  %v3568 = vmax.f32 %v3504, 0.0
  %v3569 = vmax.f32 %v3505, 0.0
  %v3570 = vmax.f32 %v3506, 0.0
  %v3571 = vmax.f32 %v3507, 0.0
  %v3572 = vmax.f32 %v3508, 0.0
  %v3573 = vmax.f32 %v3509, 0.0
  %v3574 = vmax.f32 %v3510, 0.0
  %v3575 = vmax.f32 %v3511, 0.0
  %v3576 = vmax.f32 %v3512, 0.0
  %v3577 = vmax.f32 %v3513, 0.0
  %v3578 = vmax.f32 %v3514, 0.0
  %v3579 = vmax.f32 %v3515, 0.0
  %v3580 = vmax.f32 %v3516, 0.0
  %v3581 = vmax.f32 %v3517, 0.0
  %v3582 = vmax.f32 %v3518, 0.0
  %v3583 = vmax.f32 %v3519, 0.0
  %v3584 = vmax.f32 %v3520, 0.0
  %v3585 = vmax.f32 %v3521, 0.0
  %v3586 = vmax.f32 %v3522, 0.0
  %v3587 = vmax.f32 %v3523, 0.0
  %v3588 = vmax.f32 %v3524, 0.0
  %v3589 = vmax.f32 %v3525, 0.0
  %v3590 = vmax.f32 %v3526, 0.0
  %v3591 = vmax.f32 %v3527, 0.0
  %v3592 = vmax.f32 %v3528, 0.0
  %v3593 = vmax.f32 %v3529, 0.0
  %v3594 = vmax.f32 %v3530, 0.0
  %v3595 = vmax.f32 %v3531, 0.0
  %v3596 = vmax.f32 %v3532, 0.0
  %v3597 = vmax.f32 %v3533, 0.0
  %v3598 = vmax.f32 %v3534, 0.0
  %v3599 = vmax.f32 %v3535, 0.0
  %v3600 = vmax.f32 %v3536, 0.0
  %v3601 = vmax.f32 %v3537, 0.0
  %v3602 = vmax.f32 %v3538, 0.0
  %v3603 = vmax.f32 %v3539, 0.0
  %v3604 = vmax.f32 %v3540, 0.0
  %v3605 = vmax.f32 %v3541, 0.0
  %v3606 = vmax.f32 %v3542, 0.0
  %v3607 = vmax.f32 %v3543, 0.0
  %v3608 = vmax.f32 %v3544, 0.0
  %v3609 = vmax.f32 %v3545, 0.0
  %v3610 = vpack.c.bf16 %v3547, %v3546
  %v3611 = vpack.c.bf16 %v3549, %v3548
  %v3612 = vpack.c.bf16 %v3551, %v3550
  %v3613 = vpack.c.bf16 %v3553, %v3552
  %v3614 = vpack.c.bf16 %v3555, %v3554
  %v3615 = vpack.c.bf16 %v3557, %v3556
  %v3616 = vpack.c.bf16 %v3559, %v3558
  %v3617 = vpack.c.bf16 %v3561, %v3560
  %v3618 = vpack.c.bf16 %v3563, %v3562
  %v3619 = vpack.c.bf16 %v3565, %v3564
  %v3620 = vpack.c.bf16 %v3567, %v3566
  %v3621 = vpack.c.bf16 %v3569, %v3568
  %v3622 = vpack.c.bf16 %v3571, %v3570
  %v3623 = vpack.c.bf16 %v3573, %v3572
  %v3624 = vpack.c.bf16 %v3575, %v3574
  %v3625 = vpack.c.bf16 %v3577, %v3576
  %v3626 = vpack.c.bf16 %v3579, %v3578
  %v3627 = vpack.c.bf16 %v3581, %v3580
  %v3628 = vpack.c.bf16 %v3583, %v3582
  %v3629 = vpack.c.bf16 %v3585, %v3584
  %v3630 = vpack.c.bf16 %v3587, %v3586
  %v3631 = vpack.c.bf16 %v3589, %v3588
  %v3632 = vpack.c.bf16 %v3591, %v3590
  %v3633 = vpack.c.bf16 %v3593, %v3592
  %v3634 = vpack.c.bf16 %v3595, %v3594
  %v3635 = vpack.c.bf16 %v3597, %v3596
  %v3636 = vpack.c.bf16 %v3599, %v3598
  %v3637 = vpack.c.bf16 %v3601, %v3600
  %v3638 = vpack.c.bf16 %v3603, %v3602
  %v3639 = vpack.c.bf16 %v3605, %v3604
  %v3640 = vpack.c.bf16 %v3607, %v3606
  %v3641 = vpack.c.bf16 %v3609, %v3608
  %s3642 = scalar_lea.vmem %s8, 256
  %v3643 = vld [vmem:[%s3642] sm:$0xf]
  %v3644 = vld [vmem:[%s3642 + $0x4] sm:$0xf]
  %v3645 = vld [vmem:[%s3642 + $0x8] sm:$0xf]
  %v3646 = vld [vmem:[%s3642 + $0xc] sm:$0xf]
  %v3647 = vld [vmem:[%s3642 + $0x10] sm:$0xf]
  %v3648 = vld [vmem:[%s3642 + $0x14] sm:$0xf]
  %v3649 = vld [vmem:[%s3642 + $0x18] sm:$0xf]
  %v3650 = vld [vmem:[%s3642 + $0x1c] sm:$0xf]
  %v3651 = vld [vmem:[%s3642 + $0x20] sm:$0xf]
  %v3652 = vld [vmem:[%s3642 + $0x24] sm:$0xf]
  %v3653 = vld [vmem:[%s3642 + $0x28] sm:$0xf]
  %v3654 = vld [vmem:[%s3642 + $0x2c] sm:$0xf]
  %v3655 = vld [vmem:[%s3642 + $0x30] sm:$0xf]
  %v3656 = vld [vmem:[%s3642 + $0x34] sm:$0xf]
  %v3657 = vld [vmem:[%s3642 + $0x38] sm:$0xf]
  %v3658 = vld [vmem:[%s3642 + $0x3c] sm:$0xf]
  %v3675 = vunpack.c.l.b16 %v3643
  %v3676 = vunpack.c.l.b16 %v3644
  %v3677 = vunpack.c.l.b16 %v3645
  %v3678 = vunpack.c.l.b16 %v3646
  %v3679 = vunpack.c.l.b16 %v3647
  %v3680 = vunpack.c.l.b16 %v3648
  %v3681 = vunpack.c.l.b16 %v3649
  %v3682 = vunpack.c.l.b16 %v3650
  %v3683 = vunpack.c.l.b16 %v3651
  %v3684 = vunpack.c.l.b16 %v3652
  %v3685 = vunpack.c.l.b16 %v3653
  %v3686 = vunpack.c.l.b16 %v3654
  %v3687 = vunpack.c.l.b16 %v3655
  %v3688 = vunpack.c.l.b16 %v3656
  %v3689 = vunpack.c.l.b16 %v3657
  %v3690 = vunpack.c.l.b16 %v3658
  %v3691 = vpack.c.b16 %v3676, %v3675
  %v3692 = vpack.c.b16 %v3678, %v3677
  %v3693 = vpack.c.b16 %v3680, %v3679
  %v3694 = vpack.c.b16 %v3682, %v3681
  %v3695 = vpack.c.b16 %v3684, %v3683
  %v3696 = vpack.c.b16 %v3686, %v3685
  %v3697 = vpack.c.b16 %v3688, %v3687
  %v3698 = vpack.c.b16 %v3690, %v3689
  %3707 = vmatprep.subr.bf16.mxu0 0
  %3708 = vmatpush1.bf16.msra.mxu0 %v3691
  %3709 = vmatprep.subr.bf16.mxu0 0
  %3710 = vmatpush1.bf16.msra.mxu0 %v3692
  %3711 = vmatprep.subr.bf16.mxu0 0
  %3712 = vmatpush1.bf16.msra.mxu0 %v3693
  %3713 = vmatprep.subr.bf16.mxu0 0
  %3714 = vmatpush1.bf16.msra.mxu0 %v3694
  %3715 = vmatprep.subr.bf16.mxu0 0
  %3716 = vmatpush1.bf16.msra.mxu0 %v3695
  %3717 = vmatprep.subr.bf16.mxu0 0
  %3718 = vmatpush1.bf16.msra.mxu0 %v3696
  %3719 = vmatprep.subr.bf16.mxu0 0
  %3720 = vmatpush1.bf16.msra.mxu0 %v3697
  %3721 = vmatprep.subr.bf16.mxu0 0
  %3722 = vmatpush1.bf16.msra.mxu0 %v3698
  %3723 = vmatprep.subr.bf16.mxu0 0
  %3724 = vmatpush1.bf16.msra.mxu0 0
  %3725 = vmatprep.subr.bf16.mxu0 0
  %3726 = vmatpush1.bf16.msra.mxu0 0
  %3727 = vmatprep.subr.bf16.mxu0 0
  %3728 = vmatpush1.bf16.msra.mxu0 0
  %3729 = vmatprep.subr.bf16.mxu0 0
  %3730 = vmatpush1.bf16.msra.mxu0 0
  %3731 = vmatprep.subr.bf16.mxu0 0
  %3732 = vmatpush1.bf16.msra.mxu0 0
  %3733 = vmatprep.subr.bf16.mxu0 0
  %3734 = vmatpush1.bf16.msra.mxu0 0
  %3735 = vmatprep.subr.bf16.mxu0 0
  %3736 = vmatpush1.bf16.msra.mxu0 0
  %3737 = vmatprep.subr.bf16.mxu0 0
  %3738 = vmatpush1.bf16.msra.mxu0 0
  %3739 = vmatprep.mubr.bf16.mxu0 0
  %3740 = vmatmul.mubr.bf16.gmra.mrb[0].mxu0 %v3610
  %v3741 = vpop.f32.mrb[0].mxu0
  %v3742 = vadd.f32 0.0, %v3741
  %v3743 = vpop.f32.mrb[0].mxu0
  %v3744 = vpop.f32.mrb[0].mxu0
  %v3745 = vadd.f32 0.0, %v3744
  %v3746 = vpop.f32.mrb[0].mxu0
  %3747 = vmatprep.mubr.bf16.mxu0 0
  %3748 = vmatmul.mubr.bf16.gmra.mrb[0].mxu0 %v3611
  %v3749 = vpop.f32.mrb[0].mxu0
  %v3750 = vadd.f32 0.0, %v3749
  %v3751 = vpop.f32.mrb[0].mxu0
  %v3752 = vpop.f32.mrb[0].mxu0
  %v3753 = vadd.f32 0.0, %v3752
  %v3754 = vpop.f32.mrb[0].mxu0
  %3755 = vmatprep.mubr.bf16.mxu0 0
  %3756 = vmatmul.mubr.bf16.gmra.mrb[0].mxu0 %v3612
  %v3757 = vpop.f32.mrb[0].mxu0
  %v3758 = vadd.f32 0.0, %v3757
  %v3759 = vpop.f32.mrb[0].mxu0
  %v3760 = vpop.f32.mrb[0].mxu0
  %v3761 = vadd.f32 0.0, %v3760
  %v3762 = vpop.f32.mrb[0].mxu0
  %3763 = vmatprep.mubr.bf16.mxu0 0
  %3764 = vmatmul.mubr.bf16.gmra.mrb[0].mxu0 %v3613
  %v3765 = vpop.f32.mrb[0].mxu0
  %v3766 = vadd.f32 0.0, %v3765
  %v3767 = vpop.f32.mrb[0].mxu0
  %v3768 = vpop.f32.mrb[0].mxu0
  %v3769 = vadd.f32 0.0, %v3768
  %v3770 = vpop.f32.mrb[0].mxu0
  %3771 = vmatprep.mubr.bf16.mxu0 0
  %3772 = vmatmul.mubr.bf16.gmra.mrb[0].mxu0 %v3614
  %v3773 = vpop.f32.mrb[0].mxu0
  %v3774 = vadd.f32 0.0, %v3773
  %v3775 = vpop.f32.mrb[0].mxu0
  %v3776 = vpop.f32.mrb[0].mxu0
  %v3777 = vadd.f32 0.0, %v3776
  %v3778 = vpop.f32.mrb[0].mxu0
  %3779 = vmatprep.mubr.bf16.mxu0 0
  %3780 = vmatmul.mubr.bf16.gmra.mrb[0].mxu0 %v3615
  %v3781 = vpop.f32.mrb[0].mxu0
  %v3782 = vadd.f32 0.0, %v3781
  %v3783 = vpop.f32.mrb[0].mxu0
  %v3784 = vpop.f32.mrb[0].mxu0
  %v3785 = vadd.f32 0.0, %v3784
  %v3786 = vpop.f32.mrb[0].mxu0
  %3787 = vmatprep.mubr.bf16.mxu0 0
  %3788 = vmatmul.mubr.bf16.gmra.mrb[0].mxu0 %v3616
  %v3789 = vpop.f32.mrb[0].mxu0
  %v3790 = vadd.f32 0.0, %v3789
  %v3791 = vpop.f32.mrb[0].mxu0
  %v3792 = vpop.f32.mrb[0].mxu0
  %v3793 = vadd.f32 0.0, %v3792
  %v3794 = vpop.f32.mrb[0].mxu0
  %3795 = vmatprep.mubr.bf16.mxu0 0
  %3796 = vmatmul.mubr.bf16.gmra.mrb[0].mxu0 %v3617
  %v3797 = vpop.f32.mrb[0].mxu0
  %v3798 = vadd.f32 0.0, %v3797
  %v3799 = vpop.f32.mrb[0].mxu0
  %v3800 = vpop.f32.mrb[0].mxu0
  %v3801 = vadd.f32 0.0, %v3800
  %v3802 = vpop.f32.mrb[0].mxu0
  %3803 = vmatprep.mubr.bf16.mxu0 0
  %3804 = vmatmul.mubr.bf16.gmra.mrb[0].mxu0 %v3618
  %v3805 = vpop.f32.mrb[0].mxu0
  %v3806 = vadd.f32 0.0, %v3805
  %v3807 = vpop.f32.mrb[0].mxu0
  %v3808 = vpop.f32.mrb[0].mxu0
  %v3809 = vadd.f32 0.0, %v3808
  %v3810 = vpop.f32.mrb[0].mxu0
  %3811 = vmatprep.mubr.bf16.mxu0 0
  %3812 = vmatmul.mubr.bf16.gmra.mrb[0].mxu0 %v3619
  %v3813 = vpop.f32.mrb[0].mxu0
  %v3814 = vadd.f32 0.0, %v3813
  %v3815 = vpop.f32.mrb[0].mxu0
  %v3816 = vpop.f32.mrb[0].mxu0
  %v3817 = vadd.f32 0.0, %v3816
  %v3818 = vpop.f32.mrb[0].mxu0
  %3819 = vmatprep.mubr.bf16.mxu0 0
  %3820 = vmatmul.mubr.bf16.gmra.mrb[0].mxu0 %v3620
  %v3821 = vpop.f32.mrb[0].mxu0
  %v3822 = vadd.f32 0.0, %v3821
  %v3823 = vpop.f32.mrb[0].mxu0
  %v3824 = vpop.f32.mrb[0].mxu0
  %v3825 = vadd.f32 0.0, %v3824
  %v3826 = vpop.f32.mrb[0].mxu0
  %3827 = vmatprep.mubr.bf16.mxu0 0
  %3828 = vmatmul.mubr.bf16.gmra.mrb[0].mxu0 %v3621
  %v3829 = vpop.f32.mrb[0].mxu0
  %v3830 = vadd.f32 0.0, %v3829
  %v3831 = vpop.f32.mrb[0].mxu0
  %v3832 = vpop.f32.mrb[0].mxu0
  %v3833 = vadd.f32 0.0, %v3832
  %v3834 = vpop.f32.mrb[0].mxu0
  %3835 = vmatprep.mubr.bf16.mxu0 0
  %3836 = vmatmul.mubr.bf16.gmra.mrb[0].mxu0 %v3622
  %v3837 = vpop.f32.mrb[0].mxu0
  %v3838 = vadd.f32 0.0, %v3837
  %v3839 = vpop.f32.mrb[0].mxu0
  %v3840 = vpop.f32.mrb[0].mxu0
  %v3841 = vadd.f32 0.0, %v3840
  %v3842 = vpop.f32.mrb[0].mxu0
  %3843 = vmatprep.mubr.bf16.mxu0 0
  %3844 = vmatmul.mubr.bf16.gmra.mrb[0].mxu0 %v3623
  %v3845 = vpop.f32.mrb[0].mxu0
  %v3846 = vadd.f32 0.0, %v3845
  %v3847 = vpop.f32.mrb[0].mxu0
  %v3848 = vpop.f32.mrb[0].mxu0
  %v3849 = vadd.f32 0.0, %v3848
  %v3850 = vpop.f32.mrb[0].mxu0
  %3851 = vmatprep.mubr.bf16.mxu0 0
  %3852 = vmatmul.mubr.bf16.gmra.mrb[0].mxu0 %v3624
  %v3853 = vpop.f32.mrb[0].mxu0
  %v3854 = vadd.f32 0.0, %v3853
  %v3855 = vpop.f32.mrb[0].mxu0
  %v3856 = vpop.f32.mrb[0].mxu0
  %v3857 = vadd.f32 0.0, %v3856
  %v3858 = vpop.f32.mrb[0].mxu0
  %3859 = vmatprep.mubr.bf16.mxu0 0
  %3860 = vmatmul.mubr.bf16.gmra.mrb[0].mxu0 %v3625
  %v3861 = vpop.f32.mrb[0].mxu0
  %v3862 = vadd.f32 0.0, %v3861
  %v3863 = vpop.f32.mrb[0].mxu0
  %v3864 = vpop.f32.mrb[0].mxu0
  %v3865 = vadd.f32 0.0, %v3864
  %v3866 = vpop.f32.mrb[0].mxu0
  %3867 = vmatprep.mubr.bf16.mxu0 0
  %3868 = vmatmul.mubr.bf16.gmra.mrb[0].mxu0 %v3626
  %v3869 = vpop.f32.mrb[0].mxu0
  %v3870 = vadd.f32 0.0, %v3869
  %v3871 = vpop.f32.mrb[0].mxu0
  %v3872 = vpop.f32.mrb[0].mxu0
  %v3873 = vadd.f32 0.0, %v3872
  %v3874 = vpop.f32.mrb[0].mxu0
  %3875 = vmatprep.mubr.bf16.mxu0 0
  %3876 = vmatmul.mubr.bf16.gmra.mrb[0].mxu0 %v3627
  %v3877 = vpop.f32.mrb[0].mxu0
  %v3878 = vadd.f32 0.0, %v3877
  %v3879 = vpop.f32.mrb[0].mxu0
  %v3880 = vpop.f32.mrb[0].mxu0
  %v3881 = vadd.f32 0.0, %v3880
  %v3882 = vpop.f32.mrb[0].mxu0
  %3883 = vmatprep.mubr.bf16.mxu0 0
  %3884 = vmatmul.mubr.bf16.gmra.mrb[0].mxu0 %v3628
  %v3885 = vpop.f32.mrb[0].mxu0
  %v3886 = vadd.f32 0.0, %v3885
  %v3887 = vpop.f32.mrb[0].mxu0
  %v3888 = vpop.f32.mrb[0].mxu0
  %v3889 = vadd.f32 0.0, %v3888
  %v3890 = vpop.f32.mrb[0].mxu0
  %3891 = vmatprep.mubr.bf16.mxu0 0
  %3892 = vmatmul.mubr.bf16.gmra.mrb[0].mxu0 %v3629
  %v3893 = vpop.f32.mrb[0].mxu0
  %v3894 = vadd.f32 0.0, %v3893
  %v3895 = vpop.f32.mrb[0].mxu0
  %v3896 = vpop.f32.mrb[0].mxu0
  %v3897 = vadd.f32 0.0, %v3896
  %v3898 = vpop.f32.mrb[0].mxu0
  %3899 = vmatprep.mubr.bf16.mxu0 0
  %3900 = vmatmul.mubr.bf16.gmra.mrb[0].mxu0 %v3630
  %v3901 = vpop.f32.mrb[0].mxu0
  %v3902 = vadd.f32 0.0, %v3901
  %v3903 = vpop.f32.mrb[0].mxu0
  %v3904 = vpop.f32.mrb[0].mxu0
  %v3905 = vadd.f32 0.0, %v3904
  %v3906 = vpop.f32.mrb[0].mxu0
  %3907 = vmatprep.mubr.bf16.mxu0 0
  %3908 = vmatmul.mubr.bf16.gmra.mrb[0].mxu0 %v3631
  %v3909 = vpop.f32.mrb[0].mxu0
  %v3910 = vadd.f32 0.0, %v3909
  %v3911 = vpop.f32.mrb[0].mxu0
  %v3912 = vpop.f32.mrb[0].mxu0
  %v3913 = vadd.f32 0.0, %v3912
  %v3914 = vpop.f32.mrb[0].mxu0
  %3915 = vmatprep.mubr.bf16.mxu0 0
  %3916 = vmatmul.mubr.bf16.gmra.mrb[0].mxu0 %v3632
  %v3917 = vpop.f32.mrb[0].mxu0
  %v3918 = vadd.f32 0.0, %v3917
  %v3919 = vpop.f32.mrb[0].mxu0
  %v3920 = vpop.f32.mrb[0].mxu0
  %v3921 = vadd.f32 0.0, %v3920
  %v3922 = vpop.f32.mrb[0].mxu0
  %3923 = vmatprep.mubr.bf16.mxu0 0
  %3924 = vmatmul.mubr.bf16.gmra.mrb[0].mxu0 %v3633
  %v3925 = vpop.f32.mrb[0].mxu0
  %v3926 = vadd.f32 0.0, %v3925
  %v3927 = vpop.f32.mrb[0].mxu0
  %v3928 = vpop.f32.mrb[0].mxu0
  %v3929 = vadd.f32 0.0, %v3928
  %v3930 = vpop.f32.mrb[0].mxu0
  %3931 = vmatprep.mubr.bf16.mxu0 0
  %3932 = vmatmul.mubr.bf16.gmra.mrb[0].mxu0 %v3634
  %v3933 = vpop.f32.mrb[0].mxu0
  %v3934 = vadd.f32 0.0, %v3933
  %v3935 = vpop.f32.mrb[0].mxu0
  %v3936 = vpop.f32.mrb[0].mxu0
  %v3937 = vadd.f32 0.0, %v3936
  %v3938 = vpop.f32.mrb[0].mxu0
  %3939 = vmatprep.mubr.bf16.mxu0 0
  %3940 = vmatmul.mubr.bf16.gmra.mrb[0].mxu0 %v3635
  %v3941 = vpop.f32.mrb[0].mxu0
  %v3942 = vadd.f32 0.0, %v3941
  %v3943 = vpop.f32.mrb[0].mxu0
  %v3944 = vpop.f32.mrb[0].mxu0
  %v3945 = vadd.f32 0.0, %v3944
  %v3946 = vpop.f32.mrb[0].mxu0
  %3947 = vmatprep.mubr.bf16.mxu0 0
  %3948 = vmatmul.mubr.bf16.gmra.mrb[0].mxu0 %v3636
  %v3949 = vpop.f32.mrb[0].mxu0
  %v3950 = vadd.f32 0.0, %v3949
  %v3951 = vpop.f32.mrb[0].mxu0
  %v3952 = vpop.f32.mrb[0].mxu0
  %v3953 = vadd.f32 0.0, %v3952
  %v3954 = vpop.f32.mrb[0].mxu0
  %3955 = vmatprep.mubr.bf16.mxu0 0
  %3956 = vmatmul.mubr.bf16.gmra.mrb[0].mxu0 %v3637
  %v3957 = vpop.f32.mrb[0].mxu0
  %v3958 = vadd.f32 0.0, %v3957
  %v3959 = vpop.f32.mrb[0].mxu0
  %v3960 = vpop.f32.mrb[0].mxu0
  %v3961 = vadd.f32 0.0, %v3960
  %v3962 = vpop.f32.mrb[0].mxu0
  %3963 = vmatprep.mubr.bf16.mxu0 0
  %3964 = vmatmul.mubr.bf16.gmra.mrb[0].mxu0 %v3638
  %v3965 = vpop.f32.mrb[0].mxu0
  %v3966 = vadd.f32 0.0, %v3965
  %v3967 = vpop.f32.mrb[0].mxu0
  %v3968 = vpop.f32.mrb[0].mxu0
  %v3969 = vadd.f32 0.0, %v3968
  %v3970 = vpop.f32.mrb[0].mxu0
  %3971 = vmatprep.mubr.bf16.mxu0 0
  %3972 = vmatmul.mubr.bf16.gmra.mrb[0].mxu0 %v3639
  %v3973 = vpop.f32.mrb[0].mxu0
  %v3974 = vadd.f32 0.0, %v3973
  %v3975 = vpop.f32.mrb[0].mxu0
  %v3976 = vpop.f32.mrb[0].mxu0
  %v3977 = vadd.f32 0.0, %v3976
  %v3978 = vpop.f32.mrb[0].mxu0
  %3979 = vmatprep.mubr.bf16.mxu0 0
  %3980 = vmatmul.mubr.bf16.gmra.mrb[0].mxu0 %v3640
  %v3981 = vpop.f32.mrb[0].mxu0
  %v3982 = vadd.f32 0.0, %v3981
  %v3983 = vpop.f32.mrb[0].mxu0
  %v3984 = vpop.f32.mrb[0].mxu0
  %v3985 = vadd.f32 0.0, %v3984
  %v3986 = vpop.f32.mrb[0].mxu0
  %3987 = vmatprep.mubr.bf16.mxu0 0
  %3988 = vmatmul.mubr.bf16.gmra.mrb[0].mxu0 %v3641
  %v3989 = vpop.f32.mrb[0].mxu0
  %v3990 = vadd.f32 0.0, %v3989
  %v3991 = vpop.f32.mrb[0].mxu0
  %v3992 = vpop.f32.mrb[0].mxu0
  %v3993 = vadd.f32 0.0, %v3992
  %v3994 = vpop.f32.mrb[0].mxu0
  %3995 = vdwg.mxu0
  %v3996 = vadd.f32 %v3216, %v3742
  %v3997 = vadd.f32 %v3217, %v3745
  %v3998 = vadd.f32 %v3218, %v3750
  %v3999 = vadd.f32 %v3219, %v3753
  %v4000 = vadd.f32 %v3220, %v3758
  %v4001 = vadd.f32 %v3221, %v3761
  %v4002 = vadd.f32 %v3222, %v3766
  %v4003 = vadd.f32 %v3223, %v3769
  %v4004 = vadd.f32 %v3224, %v3774
  %v4005 = vadd.f32 %v3225, %v3777
  %v4006 = vadd.f32 %v3226, %v3782
  %v4007 = vadd.f32 %v3227, %v3785
  %v4008 = vadd.f32 %v3228, %v3790
  %v4009 = vadd.f32 %v3229, %v3793
  %v4010 = vadd.f32 %v3230, %v3798
  %v4011 = vadd.f32 %v3231, %v3801
  %v4012 = vadd.f32 %v3232, %v3806
  %v4013 = vadd.f32 %v3233, %v3809
  %v4014 = vadd.f32 %v3234, %v3814
  %v4015 = vadd.f32 %v3235, %v3817
  %v4016 = vadd.f32 %v3236, %v3822
  %v4017 = vadd.f32 %v3237, %v3825
  %v4018 = vadd.f32 %v3238, %v3830
  %v4019 = vadd.f32 %v3239, %v3833
  %v4020 = vadd.f32 %v3240, %v3838
  %v4021 = vadd.f32 %v3241, %v3841
  %v4022 = vadd.f32 %v3242, %v3846
  %v4023 = vadd.f32 %v3243, %v3849
  %v4024 = vadd.f32 %v3244, %v3854
  %v4025 = vadd.f32 %v3245, %v3857
  %v4026 = vadd.f32 %v3246, %v3862
  %v4027 = vadd.f32 %v3247, %v3865
  %v4028 = vadd.f32 %v3248, %v3870
  %v4029 = vadd.f32 %v3249, %v3873
  %v4030 = vadd.f32 %v3250, %v3878
  %v4031 = vadd.f32 %v3251, %v3881
  %v4032 = vadd.f32 %v3252, %v3886
  %v4033 = vadd.f32 %v3253, %v3889
  %v4034 = vadd.f32 %v3254, %v3894
  %v4035 = vadd.f32 %v3255, %v3897
  %v4036 = vadd.f32 %v3256, %v3902
  %v4037 = vadd.f32 %v3257, %v3905
  %v4038 = vadd.f32 %v3258, %v3910
  %v4039 = vadd.f32 %v3259, %v3913
  %v4040 = vadd.f32 %v3260, %v3918
  %v4041 = vadd.f32 %v3261, %v3921
  %v4042 = vadd.f32 %v3262, %v3926
  %v4043 = vadd.f32 %v3263, %v3929
  %v4044 = vadd.f32 %v3264, %v3934
  %v4045 = vadd.f32 %v3265, %v3937
  %v4046 = vadd.f32 %v3266, %v3942
  %v4047 = vadd.f32 %v3267, %v3945
  %v4048 = vadd.f32 %v3268, %v3950
  %v4049 = vadd.f32 %v3269, %v3953
  %v4050 = vadd.f32 %v3270, %v3958
  %v4051 = vadd.f32 %v3271, %v3961
  %v4052 = vadd.f32 %v3272, %v3966
  %v4053 = vadd.f32 %v3273, %v3969
  %v4054 = vadd.f32 %v3274, %v3974
  %v4055 = vadd.f32 %v3275, %v3977
  %v4056 = vadd.f32 %v3276, %v3982
  %v4057 = vadd.f32 %v3277, %v3985
  %v4058 = vadd.f32 %v3278, %v3990
  %v4059 = vadd.f32 %v3279, %v3993
  %4060 = vst [vmem:[%s9] sm:$0xff] %v3996
  %4061 = vst [vmem:[%s9 + $0x8] sm:$0xff] %v3997
  %4062 = vst [vmem:[%s9 + $0x10] sm:$0xff] %v3998
  %4063 = vst [vmem:[%s9 + $0x18] sm:$0xff] %v3999
  %4064 = vst [vmem:[%s9 + $0x20] sm:$0xff] %v4000
  %4065 = vst [vmem:[%s9 + $0x28] sm:$0xff] %v4001
  %4066 = vst [vmem:[%s9 + $0x30] sm:$0xff] %v4002
  %4067 = vst [vmem:[%s9 + $0x38] sm:$0xff] %v4003
  %4068 = vst [vmem:[%s9 + $0x40] sm:$0xff] %v4004
  %4069 = vst [vmem:[%s9 + $0x48] sm:$0xff] %v4005
  %4070 = vst [vmem:[%s9 + $0x50] sm:$0xff] %v4006
  %4071 = vst [vmem:[%s9 + $0x58] sm:$0xff] %v4007
  %4072 = vst [vmem:[%s9 + $0x60] sm:$0xff] %v4008
  %4073 = vst [vmem:[%s9 + $0x68] sm:$0xff] %v4009
  %4074 = vst [vmem:[%s9 + $0x70] sm:$0xff] %v4010
  %4075 = vst [vmem:[%s9 + $0x78] sm:$0xff] %v4011
  %4076 = vst [vmem:[%s9 + $0x80] sm:$0xff] %v4012
  %4077 = vst [vmem:[%s9 + $0x88] sm:$0xff] %v4013
  %4078 = vst [vmem:[%s9 + $0x90] sm:$0xff] %v4014
  %4079 = vst [vmem:[%s9 + $0x98] sm:$0xff] %v4015
  %4080 = vst [vmem:[%s9 + $0xa0] sm:$0xff] %v4016
  %4081 = vst [vmem:[%s9 + $0xa8] sm:$0xff] %v4017
  %4082 = vst [vmem:[%s9 + $0xb0] sm:$0xff] %v4018
  %4083 = vst [vmem:[%s9 + $0xb8] sm:$0xff] %v4019
  %4084 = vst [vmem:[%s9 + $0xc0] sm:$0xff] %v4020
  %4085 = vst [vmem:[%s9 + $0xc8] sm:$0xff] %v4021
  %4086 = vst [vmem:[%s9 + $0xd0] sm:$0xff] %v4022
  %4087 = vst [vmem:[%s9 + $0xd8] sm:$0xff] %v4023
  %4088 = vst [vmem:[%s9 + $0xe0] sm:$0xff] %v4024
  %4089 = vst [vmem:[%s9 + $0xe8] sm:$0xff] %v4025
  %4090 = vst [vmem:[%s9 + $0xf0] sm:$0xff] %v4026
  %4091 = vst [vmem:[%s9 + $0xf8] sm:$0xff] %v4027
  %4092 = vst [vmem:[%s9 + $0x100] sm:$0xff] %v4028
  %4093 = vst [vmem:[%s9 + $0x108] sm:$0xff] %v4029
  %4094 = vst [vmem:[%s9 + $0x110] sm:$0xff] %v4030
  %4095 = vst [vmem:[%s9 + $0x118] sm:$0xff] %v4031
  %4096 = vst [vmem:[%s9 + $0x120] sm:$0xff] %v4032
  %4097 = vst [vmem:[%s9 + $0x128] sm:$0xff] %v4033
  %4098 = vst [vmem:[%s9 + $0x130] sm:$0xff] %v4034
  %4099 = vst [vmem:[%s9 + $0x138] sm:$0xff] %v4035
  %4100 = vst [vmem:[%s9 + $0x140] sm:$0xff] %v4036
  %4101 = vst [vmem:[%s9 + $0x148] sm:$0xff] %v4037
  %4102 = vst [vmem:[%s9 + $0x150] sm:$0xff] %v4038
  %4103 = vst [vmem:[%s9 + $0x158] sm:$0xff] %v4039
  %4104 = vst [vmem:[%s9 + $0x160] sm:$0xff] %v4040
  %4105 = vst [vmem:[%s9 + $0x168] sm:$0xff] %v4041
  %4106 = vst [vmem:[%s9 + $0x170] sm:$0xff] %v4042
  %4107 = vst [vmem:[%s9 + $0x178] sm:$0xff] %v4043
  %4108 = vst [vmem:[%s9 + $0x180] sm:$0xff] %v4044
  %4109 = vst [vmem:[%s9 + $0x188] sm:$0xff] %v4045
  %4110 = vst [vmem:[%s9 + $0x190] sm:$0xff] %v4046
  %4111 = vst [vmem:[%s9 + $0x198] sm:$0xff] %v4047
  %4112 = vst [vmem:[%s9 + $0x1a0] sm:$0xff] %v4048
  %4113 = vst [vmem:[%s9 + $0x1a8] sm:$0xff] %v4049
  %4114 = vst [vmem:[%s9 + $0x1b0] sm:$0xff] %v4050
  %4115 = vst [vmem:[%s9 + $0x1b8] sm:$0xff] %v4051
  %4116 = vst [vmem:[%s9 + $0x1c0] sm:$0xff] %v4052
  %4117 = vst [vmem:[%s9 + $0x1c8] sm:$0xff] %v4053
  %4118 = vst [vmem:[%s9 + $0x1d0] sm:$0xff] %v4054
  %4119 = vst [vmem:[%s9 + $0x1d8] sm:$0xff] %v4055
  %4120 = vst [vmem:[%s9 + $0x1e0] sm:$0xff] %v4056
  %4121 = vst [vmem:[%s9 + $0x1e8] sm:$0xff] %v4057
  %4122 = vst [vmem:[%s9 + $0x1f0] sm:$0xff] %v4058
  %4123 = vst [vmem:[%s9 + $0x1f8] sm:$0xff] %v4059
  // Predicated region
  $region38: #{dappm_forward.19} parent=0 // pred_check
    _
  $region39: #{dappm_forward.19} parent=0 // pred_check_branch
    %4125 = sbr.rel (0) target = $region41
  $region40: #{dappm_forward.19} parent=0 // pred_region
    _
  $region41: #{dappm_forward.19} parent=0 // pred_fallthru
    _
  // Predicated region
  $region42: #{dappm_forward.19} parent=0 // pred_check
    _
  $region43: #{dappm_forward.19} parent=0 // pred_check_branch
    %4127 = sbr.rel (0) target = $region45
  $region44: #{dappm_forward.19} parent=0 // pred_region
    _
  $region45: #{dappm_forward.19} parent=0 // pred_fallthru
    _

// kernel: dappm_forward.12
$region0: #{dappm_forward.12}
  #allocation0 [shape = 'u32[]', space=smem, size = 0x4, offset = 0x4, fixed_abs, tag = 'smem constant byte address 0x4 - core index']
  #allocation1 [shape = 'u32[144,128]{1,0:T(1,128)}', space=vmem, size = 0x12000, scoped, tag = 'internal scratch']
  #allocation2 [shape = 'bf16[18,32,128]{2,1,0:T(16,128)(2,1)}', space=vmem, size = 0x24000, scoped, tag = 'scratch operand']
  %s0 = inlined_call_operand.vmem [shape: bf16[2,16,16,128], index: 0, kind: input, shape index: {}]
  %s1 = inlined_call_operand.vmem [shape: bf16[2,16,16,128], index: 1, kind: input, shape index: {}]
  %s2 = inlined_call_operand.vmem [shape: f32[1,128], index: 2, kind: input, shape index: {}]
  %s3 = inlined_call_operand.vmem [shape: f32[1,128], index: 3, kind: input, shape index: {}]
  %s4 = inlined_call_operand.vmem [shape: bf16[3,3,128,128], index: 4, kind: input, shape index: {}]
  %s5 = inlined_call_operand.vmem [shape: bf16[2,16,16,128], index: 5, kind: output, shape index: {}]
  %s6 = sld [smem:[#allocation0]]
  $region53: #{dappm_forward.12} parent=0
    _
  %s8 = ssub.s32 1, %s6
  %s9 = scalar_select 0, %s8, %s6
  loop: start=0, step=1, limit=4
  $region2: #{dappm_forward.12} parent=0 // loop_pre_header
    _
  $region3: #{dappm_forward.12} parent=0 // loop_header
    %s11 = sphi 0, %s15
    %p12 = scmp.ge.s32.totalorder %s11, 4
    %s21 = sphi 0, %s23
    %s24 = sphi 0, %s21
    %s25 = sphi 0, %s24
    %s41 = sphi 0, %s25
    %s47 = sphi 0, %s49
    %s50 = sphi 0, %s47
    %s51 = sphi 0, %s50
    %s67 = sphi 0, %s51
    %s71 = sphi 0, %s71
    %s73 = sphi 0, %s71
    %s74 = sphi 0, %s73
    %s88 = sphi 0, %s74
    %s92 = sphi 0, %s92
    %s94 = sphi 0, %s92
    %s95 = sphi 0, %s94
    %s109 = sphi 0, %s95
    %s113 = sphi 0, %s113
    %s115 = sphi 0, %s113
    %s116 = sphi 0, %s115
    %s130 = sphi 0, %s116
    %s136 = sphi 0, %s138
    %s139 = sphi 0, %s136
    %s140 = sphi 0, %s139
    %s156 = sphi 0, %s140
  $region4: #{dappm_forward.12} parent=0 // loop_header_branch
    %14 = sbr.rel (%p12) target = $region8
  $region5: #{dappm_forward.12} parent=0 // loop_body
    %s16 = ssub.s32 %s11, 1
    %s17 = ssub.s32 %s11, 2
    %s18 = sadd.s32 %s11, 1
    %s19 = ssub.s32 %s11, %s18
    %p20 = scmp.eq.s32.totalorder %s19, 0
    %s22 = sadd.s32 %s21, 1
    %s23 = scalar_select %p20, %s21, %s22
    %p26 = pneg %p20
    %p27 = scmp.eq.s32.totalorder %s11, 1
    %p28 = por %p26, %p27
    %p29 = scmp.ne.s32.totalorder %s21, %s24
    %p30 = scmp.eq.s32.totalorder %s11, 0
    %p31 = por %p29, %p30
    %p32 = scmp.ne.s32.totalorder %s21, %s24
    %p33 = scmp.eq.s32.totalorder %s16, 1
    %p34 = por %p32, %p33
    %p35 = scmp.ne.s32.totalorder %s24, %s25
    %p36 = scmp.eq.s32.totalorder %s16, 0
    %p37 = por %p35, %p36
    %p38 = scmp.ne.s32.totalorder %s24, %s25
    %p39 = scmp.eq.s32.totalorder %s17, 1
    %p40 = por %p38, %p39
    %p42 = scmp.ne.s32.totalorder %s25, %s41
    %p43 = scmp.eq.s32.totalorder %s17, 0
    %p44 = por %p42, %p43
    %s45 = ssub.s32 %s11, %s18
    %p46 = scmp.eq.s32.totalorder %s45, 0
    %s48 = sadd.s32 %s47, 1
    %s49 = scalar_select %p46, %s47, %s48
    %p52 = pneg %p46
    %p53 = scmp.eq.s32.totalorder %s11, 1
    %p54 = por %p52, %p53
    %p55 = scmp.ne.s32.totalorder %s47, %s50
    %p56 = scmp.eq.s32.totalorder %s11, 0
    %p57 = por %p55, %p56
    %p58 = scmp.ne.s32.totalorder %s47, %s50
    %p59 = scmp.eq.s32.totalorder %s16, 1
    %p60 = por %p58, %p59
    %p61 = scmp.ne.s32.totalorder %s50, %s51
    %p62 = scmp.eq.s32.totalorder %s16, 0
    %p63 = por %p61, %p62
    %p64 = scmp.ne.s32.totalorder %s50, %s51
    %p65 = scmp.eq.s32.totalorder %s17, 1
    %p66 = por %p64, %p65
    %p68 = scmp.ne.s32.totalorder %s51, %s67
    %p69 = scmp.eq.s32.totalorder %s17, 0
    %p70 = por %p68, %p69
    %s72 = sadd.s32 %s71, 1
    %p75 = scmp.eq.s32.totalorder %s11, 1
    %p76 = scmp.ne.s32.totalorder %s71, %s73
    %p77 = scmp.eq.s32.totalorder %s11, 0
    %p78 = por %p76, %p77
    %p79 = scmp.ne.s32.totalorder %s71, %s73
    %p80 = scmp.eq.s32.totalorder %s16, 1
    %p81 = por %p79, %p80
    %p82 = scmp.ne.s32.totalorder %s73, %s74
    %p83 = scmp.eq.s32.totalorder %s16, 0
    %p84 = por %p82, %p83
    %p85 = scmp.ne.s32.totalorder %s73, %s74
    %p86 = scmp.eq.s32.totalorder %s17, 1
    %p87 = por %p85, %p86
    %p89 = scmp.ne.s32.totalorder %s74, %s88
    %p90 = scmp.eq.s32.totalorder %s17, 0
    %p91 = por %p89, %p90
    %s93 = sadd.s32 %s92, 1
    %p96 = scmp.eq.s32.totalorder %s11, 1
    %p97 = scmp.ne.s32.totalorder %s92, %s94
    %p98 = scmp.eq.s32.totalorder %s11, 0
    %p99 = por %p97, %p98
    %p100 = scmp.ne.s32.totalorder %s92, %s94
    %p101 = scmp.eq.s32.totalorder %s16, 1
    %p102 = por %p100, %p101
    %p103 = scmp.ne.s32.totalorder %s94, %s95
    %p104 = scmp.eq.s32.totalorder %s16, 0
    %p105 = por %p103, %p104
    %p106 = scmp.ne.s32.totalorder %s94, %s95
    %p107 = scmp.eq.s32.totalorder %s17, 1
    %p108 = por %p106, %p107
    %p110 = scmp.ne.s32.totalorder %s95, %s109
    %p111 = scmp.eq.s32.totalorder %s17, 0
    %p112 = por %p110, %p111
    %s114 = sadd.s32 %s113, 1
    %p117 = scmp.eq.s32.totalorder %s11, 1
    %p118 = scmp.ne.s32.totalorder %s113, %s115
    %p119 = scmp.eq.s32.totalorder %s11, 0
    %p120 = por %p118, %p119
    %p121 = scmp.ne.s32.totalorder %s113, %s115
    %p122 = scmp.eq.s32.totalorder %s16, 1
    %p123 = por %p121, %p122
    %p124 = scmp.ne.s32.totalorder %s115, %s116
    %p125 = scmp.eq.s32.totalorder %s16, 0
    %p126 = por %p124, %p125
    %p127 = scmp.ne.s32.totalorder %s115, %s116
    %p128 = scmp.eq.s32.totalorder %s17, 1
    %p129 = por %p127, %p128
    %p131 = scmp.ne.s32.totalorder %s116, %s130
    %p132 = scmp.eq.s32.totalorder %s17, 0
    %p133 = por %p131, %p132
    %s134 = ssub.s32 %s11, %s18
    %p135 = scmp.eq.s32.totalorder %s134, 0
    %s137 = sadd.s32 %s136, 1
    %s138 = scalar_select %p135, %s136, %s137
    %p141 = pneg %p135
    %p142 = scmp.eq.s32.totalorder %s11, 1
    %p143 = por %p141, %p142
    %p144 = scmp.ne.s32.totalorder %s136, %s139
    %p145 = scmp.eq.s32.totalorder %s11, 0
    %p146 = por %p144, %p145
    %p147 = scmp.ne.s32.totalorder %s136, %s139
    %p148 = scmp.eq.s32.totalorder %s16, 1
    %p149 = por %p147, %p148
    %p150 = scmp.ne.s32.totalorder %s139, %s140
    %p151 = scmp.eq.s32.totalorder %s16, 0
    %p152 = por %p150, %p151
    %p153 = scmp.ne.s32.totalorder %s139, %s140
    %p154 = scmp.eq.s32.totalorder %s17, 1
    %p155 = por %p153, %p154
    %p157 = scmp.ne.s32.totalorder %s140, %s156
    %p158 = scmp.eq.s32.totalorder %s17, 0
    %p159 = por %p157, %p158
    %p160 = scmp.le.s32.totalorder 1, %s11
    %p161 = scmp.lt.s32.totalorder %s11, 3
    %p162 = pnand %p160, %p161
    %p163 = pneg %p162
    // Predicated region
    $region9: #{dappm_forward.12} parent=5 // pred_check
      _
    $region10: #{dappm_forward.12} parent=5 // pred_check_branch
      %165 = sbr.rel (%p162) target = $region12
    $region11: #{dappm_forward.12} parent=5 // pred_region
      %s166 = ssub.s32 %s11, 1
      // Predicated region
      $region13: #{dappm_forward.12} parent=11 // pred_check
        %p167 = pneg %p84
      $region14: #{dappm_forward.12} parent=11 // pred_check_branch
        %169 = sbr.rel (%p167) target = $region16
      $region15: #{dappm_forward.12} parent=11 // pred_region
        _
      $region16: #{dappm_forward.12} parent=11 // pred_fallthru
        _
      // Predicated region
      $region17: #{dappm_forward.12} parent=11 // pred_check
        %p170 = pneg %p105
      $region18: #{dappm_forward.12} parent=11 // pred_check_branch
        %172 = sbr.rel (%p170) target = $region20
      $region19: #{dappm_forward.12} parent=11 // pred_region
        _
      $region20: #{dappm_forward.12} parent=11 // pred_fallthru
        _
      // Predicated region
      $region21: #{dappm_forward.12} parent=11 // pred_check
        %p173 = pneg %p126
      $region22: #{dappm_forward.12} parent=11 // pred_check_branch
        %175 = sbr.rel (%p173) target = $region24
      $region23: #{dappm_forward.12} parent=11 // pred_region
        _
      $region24: #{dappm_forward.12} parent=11 // pred_fallthru
        _
    $region12: #{dappm_forward.12} parent=5 // pred_fallthru
      _
    %p176 = scmp.lt.s32.totalorder %s11, 2
    // Predicated region
    $region25: #{dappm_forward.12} parent=5 // pred_check
      %p177 = pneg %p176
    $region26: #{dappm_forward.12} parent=5 // pred_check_branch
      %179 = sbr.rel (%p177) target = $region28
    $region27: #{dappm_forward.12} parent=5 // pred_region
      // Predicated region
      $region29: #{dappm_forward.12} parent=27 // pred_check
        %p180 = pneg %p31
      $region30: #{dappm_forward.12} parent=27 // pred_check_branch
        %182 = sbr.rel (%p180) target = $region32
      $region31: #{dappm_forward.12} parent=27 // pred_region
        %p183 = scmp.lt.s32.totalorder %s11, 1
        %s184 = scalar_select %p183, %s11, 1
        %s185 = smul.addr %s184, 32
        %s186 = smul.addr %s185, 4
        %s187 = scalar_lea.vmem %s0, %s186
      $region32: #{dappm_forward.12} parent=27 // pred_fallthru
        _
      // Predicated region
      $region33: #{dappm_forward.12} parent=27 // pred_check
        %p188 = pneg %p57
      $region34: #{dappm_forward.12} parent=27 // pred_check_branch
        %190 = sbr.rel (%p188) target = $region36
      $region35: #{dappm_forward.12} parent=27 // pred_region
        %p191 = scmp.lt.s32.totalorder %s11, 1
        %s192 = scalar_select %p191, %s11, 1
        %s193 = smul.addr %s192, 32
        %s194 = smul.addr %s193, 4
        %s195 = scalar_lea.vmem %s1, %s194
      $region36: #{dappm_forward.12} parent=27 // pred_fallthru
        _
    $region28: #{dappm_forward.12} parent=5 // pred_fallthru
      _
    %p196 = scmp.le.s32.totalorder 1, %s11
    %p197 = scmp.lt.s32.totalorder %s11, 3
    %p198 = pnand %p196, %p197
    %p199 = pneg %p198
    // Predicated region
    $region37: #{dappm_forward.12} parent=5 // pred_check
      _
    $region38: #{dappm_forward.12} parent=5 // pred_check_branch
      %201 = sbr.rel (%p198) target = $region40
    $region39: #{dappm_forward.12} parent=5 // pred_region
      %s202 = ssub.s32 %s11, 1
      %p203 = scmp.lt.s32.totalorder %s16, 1
      %s204 = scalar_select %p203, %s16, 1
      %s205 = smul.addr %s204, 32
      %s206 = smul.addr %s205, 4
      %s207 = scalar_lea.vmem %s0, %s206
      %p208 = pneg %p37
      %p209 = pneg %p34
      %p210 = scmp.lt.s32.totalorder %s16, 1
      %s211 = scalar_select %p210, %s16, 1
      %s212 = smul.addr %s211, 32
      %s213 = smul.addr %s212, 4
      %s214 = scalar_lea.vmem %s1, %s213
      %p215 = pneg %p63
      %p216 = pneg %p60
      %p217 = pneg %p84
      %p218 = pneg %p81
      %p219 = pneg %p105
      %p220 = pneg %p102
      %p221 = pneg %p126
      %p222 = pneg %p123
      %p223 = pneg %p152
      %p224 = pneg %p149
      %p225 = scmp.lt.s32.totalorder %s16, 1
      %s226 = scalar_select %p225, %s16, 1
      %s227 = smul.addr %s226, 32
      %s228 = smul.addr %s227, 4
      %s229 = scalar_lea.vmem %s5, %s228
      %p230 = scmp.lt.s32.totalorder %s16, 1
      %s231 = scalar_select %p230, %s16, 1
      %s232 = smul.addr %s231, 32
      %s233 = smul.addr %s232, 4
      %s234 = scalar_lea.vmem %s0, %s233
      %p235 = scmp.lt.s32.totalorder %s16, 1
      %s236 = scalar_select %p235, %s16, 1
      %s237 = smul.addr %s236, 32
      %s238 = smul.addr %s237, 4
      %s239 = scalar_lea.vmem %s1, %s238
      %p240 = scmp.lt.s32.totalorder %s16, 1
      %s241 = scalar_select %p240, %s16, 1
      %s242 = smul.addr %s241, 32
      %s243 = smul.addr %s242, 4
      %s244 = scalar_lea.vmem %s5, %s243
      %246 = vst [vmem:[#allocation2] sm:$0xff] 0
      %247 = vst [vmem:[#allocation2 + $0x8] sm:$0xff] 0
      %s248 = scalar_lea.vmem [#allocation2], 272
      %249 = vst [vmem:[%s248] sm:$0xff] 0
      %250 = vst [vmem:[%s248 + $0x8] sm:$0xff] 0
      %251 = vst [vmem:[#allocation2] sm:$0xf] 0
      %252 = vst [vmem:[#allocation2 + $0x10] sm:$0xf] 0
      %253 = vst [vmem:[#allocation2 + $0x20] sm:$0xf] 0
      %254 = vst [vmem:[#allocation2 + $0x30] sm:$0xf] 0
      %255 = vst [vmem:[#allocation2 + $0x40] sm:$0xf] 0
      %256 = vst [vmem:[#allocation2 + $0x50] sm:$0xf] 0
      %257 = vst [vmem:[#allocation2 + $0x60] sm:$0xf] 0
      %258 = vst [vmem:[#allocation2 + $0x70] sm:$0xf] 0
      %259 = vst [vmem:[#allocation2 + $0x80] sm:$0xf] 0
      %260 = vst [vmem:[#allocation2 + $0x90] sm:$0xf] 0
      %261 = vst [vmem:[#allocation2 + $0xa0] sm:$0xf] 0
      %262 = vst [vmem:[#allocation2 + $0xb0] sm:$0xf] 0
      %263 = vst [vmem:[#allocation2 + $0xc0] sm:$0xf] 0
      %264 = vst [vmem:[#allocation2 + $0xd0] sm:$0xf] 0
      %265 = vst [vmem:[#allocation2 + $0xe0] sm:$0xf] 0
      %266 = vst [vmem:[#allocation2 + $0xf0] sm:$0xf] 0
      %267 = vst [vmem:[#allocation2 + $0x100] sm:$0xf] 0
      %268 = vst [vmem:[#allocation2 + $0x110] sm:$0xf] 0
      %269 = vst [vmem:[#allocation2 + $0x8] sm:$0xf0] 0
      %270 = vst [vmem:[#allocation2 + $0x18] sm:$0xf0] 0
      %271 = vst [vmem:[#allocation2 + $0x28] sm:$0xf0] 0
      %272 = vst [vmem:[#allocation2 + $0x38] sm:$0xf0] 0
      %273 = vst [vmem:[#allocation2 + $0x48] sm:$0xf0] 0
      %274 = vst [vmem:[#allocation2 + $0x58] sm:$0xf0] 0
      %275 = vst [vmem:[#allocation2 + $0x68] sm:$0xf0] 0
      %276 = vst [vmem:[#allocation2 + $0x78] sm:$0xf0] 0
      %277 = vst [vmem:[#allocation2 + $0x88] sm:$0xf0] 0
      %278 = vst [vmem:[#allocation2 + $0x98] sm:$0xf0] 0
      %279 = vst [vmem:[#allocation2 + $0xa8] sm:$0xf0] 0
      %280 = vst [vmem:[#allocation2 + $0xb8] sm:$0xf0] 0
      %281 = vst [vmem:[#allocation2 + $0xc8] sm:$0xf0] 0
      %282 = vst [vmem:[#allocation2 + $0xd8] sm:$0xf0] 0
      %283 = vst [vmem:[#allocation2 + $0xe8] sm:$0xf0] 0
      %284 = vst [vmem:[#allocation2 + $0xf8] sm:$0xf0] 0
      %285 = vst [vmem:[#allocation2 + $0x108] sm:$0xf0] 0
      %286 = vst [vmem:[#allocation2 + $0x118] sm:$0xf0] 0
      %v287 = vld [vmem:[%s234] sm:$0xf]
      %v288 = vld [vmem:[%s234 + $0x4] sm:$0xf]
      %v289 = vld [vmem:[%s234 + $0x8] sm:$0xf]
      %v290 = vld [vmem:[%s234 + $0xc] sm:$0xf]
      %v291 = vld [vmem:[%s234 + $0x10] sm:$0xf]
      %v292 = vld [vmem:[%s234 + $0x14] sm:$0xf]
      %v293 = vld [vmem:[%s234 + $0x18] sm:$0xf]
      %v294 = vld [vmem:[%s234 + $0x1c] sm:$0xf]
      %v295 = vld [vmem:[%s234 + $0x20] sm:$0xf]
      %v296 = vld [vmem:[%s234 + $0x24] sm:$0xf]
      %v297 = vld [vmem:[%s234 + $0x28] sm:$0xf]
      %v298 = vld [vmem:[%s234 + $0x2c] sm:$0xf]
      %v299 = vld [vmem:[%s234 + $0x30] sm:$0xf]
      %v300 = vld [vmem:[%s234 + $0x34] sm:$0xf]
      %v301 = vld [vmem:[%s234 + $0x38] sm:$0xf]
      %v302 = vld [vmem:[%s234 + $0x3c] sm:$0xf]
      %v303 = vld [vmem:[%s234 + $0x40] sm:$0xf]
      %v304 = vld [vmem:[%s234 + $0x44] sm:$0xf]
      %v305 = vld [vmem:[%s234 + $0x48] sm:$0xf]
      %v306 = vld [vmem:[%s234 + $0x4c] sm:$0xf]
      %v307 = vld [vmem:[%s234 + $0x50] sm:$0xf]
      %v308 = vld [vmem:[%s234 + $0x54] sm:$0xf]
      %v309 = vld [vmem:[%s234 + $0x58] sm:$0xf]
      %v310 = vld [vmem:[%s234 + $0x5c] sm:$0xf]
      %v311 = vld [vmem:[%s234 + $0x60] sm:$0xf]
      %v312 = vld [vmem:[%s234 + $0x64] sm:$0xf]
      %v313 = vld [vmem:[%s234 + $0x68] sm:$0xf]
      %v314 = vld [vmem:[%s234 + $0x6c] sm:$0xf]
      %v315 = vld [vmem:[%s234 + $0x70] sm:$0xf]
      %v316 = vld [vmem:[%s234 + $0x74] sm:$0xf]
      %v317 = vld [vmem:[%s234 + $0x78] sm:$0xf]
      %v318 = vld [vmem:[%s234 + $0x7c] sm:$0xf]
      %v319 = vunpack.c.l.bf16 %v287
      %v320 = vunpack.c.l.bf16 %v288
      %v321 = vunpack.c.l.bf16 %v289
      %v322 = vunpack.c.l.bf16 %v290
      %v323 = vunpack.c.l.bf16 %v291
      %v324 = vunpack.c.l.bf16 %v292
      %v325 = vunpack.c.l.bf16 %v293
      %v326 = vunpack.c.l.bf16 %v294
      %v327 = vunpack.c.l.bf16 %v295
      %v328 = vunpack.c.l.bf16 %v296
      %v329 = vunpack.c.l.bf16 %v297
      %v330 = vunpack.c.l.bf16 %v298
      %v331 = vunpack.c.l.bf16 %v299
      %v332 = vunpack.c.l.bf16 %v300
      %v333 = vunpack.c.l.bf16 %v301
      %v334 = vunpack.c.l.bf16 %v302
      %v335 = vunpack.c.l.bf16 %v303
      %v336 = vunpack.c.l.bf16 %v304
      %v337 = vunpack.c.l.bf16 %v305
      %v338 = vunpack.c.l.bf16 %v306
      %v339 = vunpack.c.l.bf16 %v307
      %v340 = vunpack.c.l.bf16 %v308
      %v341 = vunpack.c.l.bf16 %v309
      %v342 = vunpack.c.l.bf16 %v310
      %v343 = vunpack.c.l.bf16 %v311
      %v344 = vunpack.c.l.bf16 %v312
      %v345 = vunpack.c.l.bf16 %v313
      %v346 = vunpack.c.l.bf16 %v314
      %v347 = vunpack.c.l.bf16 %v315
      %v348 = vunpack.c.l.bf16 %v316
      %v349 = vunpack.c.l.bf16 %v317
      %v350 = vunpack.c.l.bf16 %v318
      %v351 = vld [vmem:[%s239] sm:$0xf]
      %v352 = vld [vmem:[%s239 + $0x4] sm:$0xf]
      %v353 = vld [vmem:[%s239 + $0x8] sm:$0xf]
      %v354 = vld [vmem:[%s239 + $0xc] sm:$0xf]
      %v355 = vld [vmem:[%s239 + $0x10] sm:$0xf]
      %v356 = vld [vmem:[%s239 + $0x14] sm:$0xf]
      %v357 = vld [vmem:[%s239 + $0x18] sm:$0xf]
      %v358 = vld [vmem:[%s239 + $0x1c] sm:$0xf]
      %v359 = vld [vmem:[%s239 + $0x20] sm:$0xf]
      %v360 = vld [vmem:[%s239 + $0x24] sm:$0xf]
      %v361 = vld [vmem:[%s239 + $0x28] sm:$0xf]
      %v362 = vld [vmem:[%s239 + $0x2c] sm:$0xf]
      %v363 = vld [vmem:[%s239 + $0x30] sm:$0xf]
      %v364 = vld [vmem:[%s239 + $0x34] sm:$0xf]
      %v365 = vld [vmem:[%s239 + $0x38] sm:$0xf]
      %v366 = vld [vmem:[%s239 + $0x3c] sm:$0xf]
      %v367 = vld [vmem:[%s239 + $0x40] sm:$0xf]
      %v368 = vld [vmem:[%s239 + $0x44] sm:$0xf]
      %v369 = vld [vmem:[%s239 + $0x48] sm:$0xf]
      %v370 = vld [vmem:[%s239 + $0x4c] sm:$0xf]
      %v371 = vld [vmem:[%s239 + $0x50] sm:$0xf]
      %v372 = vld [vmem:[%s239 + $0x54] sm:$0xf]
      %v373 = vld [vmem:[%s239 + $0x58] sm:$0xf]
      %v374 = vld [vmem:[%s239 + $0x5c] sm:$0xf]
      %v375 = vld [vmem:[%s239 + $0x60] sm:$0xf]
      %v376 = vld [vmem:[%s239 + $0x64] sm:$0xf]
      %v377 = vld [vmem:[%s239 + $0x68] sm:$0xf]
      %v378 = vld [vmem:[%s239 + $0x6c] sm:$0xf]
      %v379 = vld [vmem:[%s239 + $0x70] sm:$0xf]
      %v380 = vld [vmem:[%s239 + $0x74] sm:$0xf]
      %v381 = vld [vmem:[%s239 + $0x78] sm:$0xf]
      %v382 = vld [vmem:[%s239 + $0x7c] sm:$0xf]
      %v383 = vunpack.c.l.bf16 %v351
      %v384 = vunpack.c.l.bf16 %v352
      %v385 = vunpack.c.l.bf16 %v353
      %v386 = vunpack.c.l.bf16 %v354
      %v387 = vunpack.c.l.bf16 %v355
      %v388 = vunpack.c.l.bf16 %v356
      %v389 = vunpack.c.l.bf16 %v357
      %v390 = vunpack.c.l.bf16 %v358
      %v391 = vunpack.c.l.bf16 %v359
      %v392 = vunpack.c.l.bf16 %v360
      %v393 = vunpack.c.l.bf16 %v361
      %v394 = vunpack.c.l.bf16 %v362
      %v395 = vunpack.c.l.bf16 %v363
      %v396 = vunpack.c.l.bf16 %v364
      %v397 = vunpack.c.l.bf16 %v365
      %v398 = vunpack.c.l.bf16 %v366
      %v399 = vunpack.c.l.bf16 %v367
      %v400 = vunpack.c.l.bf16 %v368
      %v401 = vunpack.c.l.bf16 %v369
      %v402 = vunpack.c.l.bf16 %v370
      %v403 = vunpack.c.l.bf16 %v371
      %v404 = vunpack.c.l.bf16 %v372
      %v405 = vunpack.c.l.bf16 %v373
      %v406 = vunpack.c.l.bf16 %v374
      %v407 = vunpack.c.l.bf16 %v375
      %v408 = vunpack.c.l.bf16 %v376
      %v409 = vunpack.c.l.bf16 %v377
      %v410 = vunpack.c.l.bf16 %v378
      %v411 = vunpack.c.l.bf16 %v379
      %v412 = vunpack.c.l.bf16 %v380
      %v413 = vunpack.c.l.bf16 %v381
      %v414 = vunpack.c.l.bf16 %v382
      %v415 = vadd.f32 %v319, %v383
      %v416 = vadd.f32 %v320, %v384
      %v417 = vadd.f32 %v321, %v385
      %v418 = vadd.f32 %v322, %v386
      %v419 = vadd.f32 %v323, %v387
      %v420 = vadd.f32 %v324, %v388
      %v421 = vadd.f32 %v325, %v389
      %v422 = vadd.f32 %v326, %v390
      %v423 = vadd.f32 %v327, %v391
      %v424 = vadd.f32 %v328, %v392
      %v425 = vadd.f32 %v329, %v393
      %v426 = vadd.f32 %v330, %v394
      %v427 = vadd.f32 %v331, %v395
      %v428 = vadd.f32 %v332, %v396
      %v429 = vadd.f32 %v333, %v397
      %v430 = vadd.f32 %v334, %v398
      %v431 = vadd.f32 %v335, %v399
      %v432 = vadd.f32 %v336, %v400
      %v433 = vadd.f32 %v337, %v401
      %v434 = vadd.f32 %v338, %v402
      %v435 = vadd.f32 %v339, %v403
      %v436 = vadd.f32 %v340, %v404
      %v437 = vadd.f32 %v341, %v405
      %v438 = vadd.f32 %v342, %v406
      %v439 = vadd.f32 %v343, %v407
      %v440 = vadd.f32 %v344, %v408
      %v441 = vadd.f32 %v345, %v409
      %v442 = vadd.f32 %v346, %v410
      %v443 = vadd.f32 %v347, %v411
      %v444 = vadd.f32 %v348, %v412
      %v445 = vadd.f32 %v349, %v413
      %v446 = vadd.f32 %v350, %v414
      %v447 = vld [vmem:[%s2] sm:$0x1]
      %v449 = vlaneseq
      %v450 = vshrl.u32 %v449, 7
      %v451 = vsub.s32 0, %v450
      %v452 = vrot.slane %v447, %v451
      %v454 = vmul.f32 %v415, %v452
      %v455 = vmul.f32 %v416, %v452
      %v456 = vmul.f32 %v417, %v452
      %v457 = vmul.f32 %v418, %v452
      %v458 = vmul.f32 %v419, %v452
      %v459 = vmul.f32 %v420, %v452
      %v460 = vmul.f32 %v421, %v452
      %v461 = vmul.f32 %v422, %v452
      %v462 = vmul.f32 %v423, %v452
      %v463 = vmul.f32 %v424, %v452
      %v464 = vmul.f32 %v425, %v452
      %v465 = vmul.f32 %v426, %v452
      %v466 = vmul.f32 %v427, %v452
      %v467 = vmul.f32 %v428, %v452
      %v468 = vmul.f32 %v429, %v452
      %v469 = vmul.f32 %v430, %v452
      %v470 = vmul.f32 %v431, %v452
      %v471 = vmul.f32 %v432, %v452
      %v472 = vmul.f32 %v433, %v452
      %v473 = vmul.f32 %v434, %v452
      %v474 = vmul.f32 %v435, %v452
      %v475 = vmul.f32 %v436, %v452
      %v476 = vmul.f32 %v437, %v452
      %v477 = vmul.f32 %v438, %v452
      %v478 = vmul.f32 %v439, %v452
      %v479 = vmul.f32 %v440, %v452
      %v480 = vmul.f32 %v441, %v452
      %v481 = vmul.f32 %v442, %v452
      %v482 = vmul.f32 %v443, %v452
      %v483 = vmul.f32 %v444, %v452
      %v484 = vmul.f32 %v445, %v452
      %v485 = vmul.f32 %v446, %v452
      %v486 = vld [vmem:[%s3] sm:$0x1]
      %v488 = vlaneseq
      %v489 = vshrl.u32 %v488, 7
      %v490 = vsub.s32 0, %v489
      %v491 = vrot.slane %v486, %v490
      %v493 = vadd.f32 %v454, %v491
      %v494 = vadd.f32 %v455, %v491
      %v495 = vadd.f32 %v456, %v491
      %v496 = vadd.f32 %v457, %v491
      %v497 = vadd.f32 %v458, %v491
      %v498 = vadd.f32 %v459, %v491
      %v499 = vadd.f32 %v460, %v491
      %v500 = vadd.f32 %v461, %v491
      %v501 = vadd.f32 %v462, %v491
      %v502 = vadd.f32 %v463, %v491
      %v503 = vadd.f32 %v464, %v491
      %v504 = vadd.f32 %v465, %v491
      %v505 = vadd.f32 %v466, %v491
      %v506 = vadd.f32 %v467, %v491
      %v507 = vadd.f32 %v468, %v491
      %v508 = vadd.f32 %v469, %v491
      %v509 = vadd.f32 %v470, %v491
      %v510 = vadd.f32 %v471, %v491
      %v511 = vadd.f32 %v472, %v491
      %v512 = vadd.f32 %v473, %v491
      %v513 = vadd.f32 %v474, %v491
      %v514 = vadd.f32 %v475, %v491
      %v515 = vadd.f32 %v476, %v491
      %v516 = vadd.f32 %v477, %v491
      %v517 = vadd.f32 %v478, %v491
      %v518 = vadd.f32 %v479, %v491
      %v519 = vadd.f32 %v480, %v491
      %v520 = vadd.f32 %v481, %v491
      %v521 = vadd.f32 %v482, %v491
      %v522 = vadd.f32 %v483, %v491
      %v523 = vadd.f32 %v484, %v491
      %v524 = vadd.f32 %v485, %v491
      %v525 = vmax.f32 %v493, 0.0
      %v526 = vmax.f32 %v494, 0.0
      %v527 = vmax.f32 %v495, 0.0
      %v528 = vmax.f32 %v496, 0.0
      %v529 = vmax.f32 %v497, 0.0
      %v530 = vmax.f32 %v498, 0.0
      %v531 = vmax.f32 %v499, 0.0
      %v532 = vmax.f32 %v500, 0.0
      %v533 = vmax.f32 %v501, 0.0
      %v534 = vmax.f32 %v502, 0.0
      %v535 = vmax.f32 %v503, 0.0
      %v536 = vmax.f32 %v504, 0.0
      %v537 = vmax.f32 %v505, 0.0
      %v538 = vmax.f32 %v506, 0.0
      %v539 = vmax.f32 %v507, 0.0
      %v540 = vmax.f32 %v508, 0.0
      %v541 = vmax.f32 %v509, 0.0
      %v542 = vmax.f32 %v510, 0.0
      %v543 = vmax.f32 %v511, 0.0
      %v544 = vmax.f32 %v512, 0.0
      %v545 = vmax.f32 %v513, 0.0
      %v546 = vmax.f32 %v514, 0.0
      %v547 = vmax.f32 %v515, 0.0
      %v548 = vmax.f32 %v516, 0.0
      %v549 = vmax.f32 %v517, 0.0
      %v550 = vmax.f32 %v518, 0.0
      %v551 = vmax.f32 %v519, 0.0
      %v552 = vmax.f32 %v520, 0.0
      %v553 = vmax.f32 %v521, 0.0
      %v554 = vmax.f32 %v522, 0.0
      %v555 = vmax.f32 %v523, 0.0
      %v556 = vmax.f32 %v524, 0.0
      %v557 = vpack.c.bf16 %v526, %v525
      %v558 = vpack.c.bf16 %v528, %v527
      %v559 = vpack.c.bf16 %v530, %v529
      %v560 = vpack.c.bf16 %v532, %v531
      %v561 = vpack.c.bf16 %v534, %v533
      %v562 = vpack.c.bf16 %v536, %v535
      %v563 = vpack.c.bf16 %v538, %v537
      %v564 = vpack.c.bf16 %v540, %v539
      %v565 = vpack.c.bf16 %v542, %v541
      %v566 = vpack.c.bf16 %v544, %v543
      %v567 = vpack.c.bf16 %v546, %v545
      %v568 = vpack.c.bf16 %v548, %v547
      %v569 = vpack.c.bf16 %v550, %v549
      %v570 = vpack.c.bf16 %v552, %v551
      %v571 = vpack.c.bf16 %v554, %v553
      %v572 = vpack.c.bf16 %v556, %v555
      %v589 = vrot.slane %v557, 4
      %v590 = vrot.slane %v558, 4
      %v591 = vrot.slane %v559, 4
      %v592 = vrot.slane %v560, 4
      %v593 = vrot.slane %v561, 4
      %v594 = vrot.slane %v562, 4
      %v595 = vrot.slane %v563, 4
      %v596 = vrot.slane %v564, 4
      %v597 = vrot.slane %v565, 4
      %v598 = vrot.slane %v566, 4
      %v599 = vrot.slane %v567, 4
      %v600 = vrot.slane %v568, 4
      %v601 = vrot.slane %v569, 4
      %v602 = vrot.slane %v570, 4
      %v603 = vrot.slane %v571, 4
      %v604 = vrot.slane %v572, 4
      %s621 = scalar_lea.vmem [#allocation2], 16
      %622 = vst [vmem:[%s621] sm:$0xf0] %v589
      %623 = vst [vmem:[%s621 + $0x8] sm:$0xf] %v589
      %624 = vst [vmem:[%s621 + $0x10] sm:$0xf0] %v590
      %625 = vst [vmem:[%s621 + $0x18] sm:$0xf] %v590
      %626 = vst [vmem:[%s621 + $0x20] sm:$0xf0] %v591
      %627 = vst [vmem:[%s621 + $0x28] sm:$0xf] %v591
      %628 = vst [vmem:[%s621 + $0x30] sm:$0xf0] %v592
      %629 = vst [vmem:[%s621 + $0x38] sm:$0xf] %v592
      %630 = vst [vmem:[%s621 + $0x40] sm:$0xf0] %v593
      %631 = vst [vmem:[%s621 + $0x48] sm:$0xf] %v593
      %632 = vst [vmem:[%s621 + $0x50] sm:$0xf0] %v594
      %633 = vst [vmem:[%s621 + $0x58] sm:$0xf] %v594
      %634 = vst [vmem:[%s621 + $0x60] sm:$0xf0] %v595
      %635 = vst [vmem:[%s621 + $0x68] sm:$0xf] %v595
      %636 = vst [vmem:[%s621 + $0x70] sm:$0xf0] %v596
      %637 = vst [vmem:[%s621 + $0x78] sm:$0xf] %v596
      %638 = vst [vmem:[%s621 + $0x80] sm:$0xf0] %v597
      %639 = vst [vmem:[%s621 + $0x88] sm:$0xf] %v597
      %640 = vst [vmem:[%s621 + $0x90] sm:$0xf0] %v598
      %641 = vst [vmem:[%s621 + $0x98] sm:$0xf] %v598
      %642 = vst [vmem:[%s621 + $0xa0] sm:$0xf0] %v599
      %643 = vst [vmem:[%s621 + $0xa8] sm:$0xf] %v599
      %644 = vst [vmem:[%s621 + $0xb0] sm:$0xf0] %v600
      %645 = vst [vmem:[%s621 + $0xb8] sm:$0xf] %v600
      %646 = vst [vmem:[%s621 + $0xc0] sm:$0xf0] %v601
      %647 = vst [vmem:[%s621 + $0xc8] sm:$0xf] %v601
      %648 = vst [vmem:[%s621 + $0xd0] sm:$0xf0] %v602
      %649 = vst [vmem:[%s621 + $0xd8] sm:$0xf] %v602
      %650 = vst [vmem:[%s621 + $0xe0] sm:$0xf0] %v603
      %651 = vst [vmem:[%s621 + $0xe8] sm:$0xf] %v603
      %652 = vst [vmem:[%s621 + $0xf0] sm:$0xf0] %v604
      %653 = vst [vmem:[%s621 + $0xf8] sm:$0xf] %v604
      %v654 = vld [vmem:[#allocation2] sm:$0xff]
      %v655 = vld [vmem:[#allocation2 + $0x8] sm:$0xff]
      %v656 = vld [vmem:[#allocation2 + $0x10] sm:$0xff]
      %v657 = vld [vmem:[#allocation2 + $0x18] sm:$0xff]
      %v658 = vld [vmem:[#allocation2 + $0x20] sm:$0xff]
      %v659 = vld [vmem:[#allocation2 + $0x28] sm:$0xff]
      %v660 = vld [vmem:[#allocation2 + $0x30] sm:$0xff]
      %v661 = vld [vmem:[#allocation2 + $0x38] sm:$0xff]
      %v662 = vld [vmem:[#allocation2 + $0x40] sm:$0xff]
      %v663 = vld [vmem:[#allocation2 + $0x48] sm:$0xff]
      %v664 = vld [vmem:[#allocation2 + $0x50] sm:$0xff]
      %v665 = vld [vmem:[#allocation2 + $0x58] sm:$0xff]
      %v666 = vld [vmem:[#allocation2 + $0x60] sm:$0xff]
      %v667 = vld [vmem:[#allocation2 + $0x68] sm:$0xff]
      %v668 = vld [vmem:[#allocation2 + $0x70] sm:$0xff]
      %v669 = vld [vmem:[#allocation2 + $0x78] sm:$0xff]
      %v670 = vld [vmem:[#allocation2 + $0x80] sm:$0xff]
      %v671 = vld [vmem:[#allocation2 + $0x88] sm:$0xff]
      %v672 = vld [vmem:[#allocation2 + $0x90] sm:$0xff]
      %v673 = vld [vmem:[#allocation2 + $0x98] sm:$0xff]
      %v674 = vld [vmem:[#allocation2 + $0xa0] sm:$0xff]
      %v675 = vld [vmem:[#allocation2 + $0xa8] sm:$0xff]
      %v676 = vld [vmem:[#allocation2 + $0xb0] sm:$0xff]
      %v677 = vld [vmem:[#allocation2 + $0xb8] sm:$0xff]
      %v678 = vld [vmem:[#allocation2 + $0xc0] sm:$0xff]
      %v679 = vld [vmem:[#allocation2 + $0xc8] sm:$0xff]
      %v680 = vld [vmem:[#allocation2 + $0xd0] sm:$0xff]
      %v681 = vld [vmem:[#allocation2 + $0xd8] sm:$0xff]
      %v682 = vld [vmem:[#allocation2 + $0xe0] sm:$0xff]
      %v683 = vld [vmem:[#allocation2 + $0xe8] sm:$0xff]
      %v684 = vld [vmem:[#allocation2 + $0xf0] sm:$0xff]
      %v685 = vld [vmem:[#allocation2 + $0xf8] sm:$0xff]
      %v686 = vld [vmem:[#allocation2 + $0x100] sm:$0xff]
      %v687 = vld [vmem:[#allocation2 + $0x108] sm:$0xff]
      %v688 = vld [vmem:[#allocation2 + $0x110] sm:$0xff]
      %v689 = vld [vmem:[#allocation2 + $0x118] sm:$0xff]
      %v690 = vld [vmem:[%s4] sm:$0xf]
      %v691 = vld [vmem:[%s4 + $0x4] sm:$0xf]
      %v692 = vld [vmem:[%s4 + $0x8] sm:$0xf]
      %v693 = vld [vmem:[%s4 + $0xc] sm:$0xf]
      %v694 = vld [vmem:[%s4 + $0x10] sm:$0xf]
      %v695 = vld [vmem:[%s4 + $0x14] sm:$0xf]
      %v696 = vld [vmem:[%s4 + $0x18] sm:$0xf]
      %v697 = vld [vmem:[%s4 + $0x1c] sm:$0xf]
      %v698 = vld [vmem:[%s4 + $0x20] sm:$0xf]
      %v699 = vld [vmem:[%s4 + $0x24] sm:$0xf]
      %v700 = vld [vmem:[%s4 + $0x28] sm:$0xf]
      %v701 = vld [vmem:[%s4 + $0x2c] sm:$0xf]
      %v702 = vld [vmem:[%s4 + $0x30] sm:$0xf]
      %v703 = vld [vmem:[%s4 + $0x34] sm:$0xf]
      %v704 = vld [vmem:[%s4 + $0x38] sm:$0xf]
      %v705 = vld [vmem:[%s4 + $0x3c] sm:$0xf]
      %s706 = scalar_lea.vmem %s4, 192
      %v707 = vld [vmem:[%s706] sm:$0xf]
      %v708 = vld [vmem:[%s706 + $0x4] sm:$0xf]
      %v709 = vld [vmem:[%s706 + $0x8] sm:$0xf]
      %v710 = vld [vmem:[%s706 + $0xc] sm:$0xf]
      %v711 = vld [vmem:[%s706 + $0x10] sm:$0xf]
      %v712 = vld [vmem:[%s706 + $0x14] sm:$0xf]
      %v713 = vld [vmem:[%s706 + $0x18] sm:$0xf]
      %v714 = vld [vmem:[%s706 + $0x1c] sm:$0xf]
      %v715 = vld [vmem:[%s706 + $0x20] sm:$0xf]
      %v716 = vld [vmem:[%s706 + $0x24] sm:$0xf]
      %v717 = vld [vmem:[%s706 + $0x28] sm:$0xf]
      %v718 = vld [vmem:[%s706 + $0x2c] sm:$0xf]
      %v719 = vld [vmem:[%s706 + $0x30] sm:$0xf]
      %v720 = vld [vmem:[%s706 + $0x34] sm:$0xf]
      %v721 = vld [vmem:[%s706 + $0x38] sm:$0xf]
      %v722 = vld [vmem:[%s706 + $0x3c] sm:$0xf]
      %vm723 = vsmask.f32 4352
      %v725 = vshrl.u32 %v656, 16
      %v727 = vrot.slane %v725, 3
      %v728 = vshll.u32 %v656, 16
      %v730 = vrot.slane %v728, 4
      %v731 = vor.u32 %v727, %v730
      %v733 = vshrl.u32 %v657, 16
      %v735 = vrot.slane %v733, 3
      %v736 = vshll.u32 %v657, 16
      %v738 = vrot.slane %v736, 4
      %v739 = vor.u32 %v735, %v738
      %v740 = vsel %vm723, %v731, %v739
      %v742 = vshrl.u32 %v658, 16
      %v744 = vrot.slane %v742, 3
      %v745 = vshll.u32 %v658, 16
      %v747 = vrot.slane %v745, 4
      %v748 = vor.u32 %v744, %v747
      %v750 = vshrl.u32 %v659, 16
      %v752 = vrot.slane %v750, 3
      %v753 = vshll.u32 %v659, 16
      %v755 = vrot.slane %v753, 4
      %v756 = vor.u32 %v752, %v755
      %v757 = vsel %vm723, %v748, %v756
      %v759 = vshrl.u32 %v660, 16
      %v761 = vrot.slane %v759, 3
      %v762 = vshll.u32 %v660, 16
      %v764 = vrot.slane %v762, 4
      %v765 = vor.u32 %v761, %v764
      %v767 = vshrl.u32 %v661, 16
      %v769 = vrot.slane %v767, 3
      %v770 = vshll.u32 %v661, 16
      %v772 = vrot.slane %v770, 4
      %v773 = vor.u32 %v769, %v772
      %v774 = vsel %vm723, %v765, %v773
      %v776 = vshrl.u32 %v662, 16
      %v778 = vrot.slane %v776, 3
      %v779 = vshll.u32 %v662, 16
      %v781 = vrot.slane %v779, 4
      %v782 = vor.u32 %v778, %v781
      %v784 = vshrl.u32 %v663, 16
      %v786 = vrot.slane %v784, 3
      %v787 = vshll.u32 %v663, 16
      %v789 = vrot.slane %v787, 4
      %v790 = vor.u32 %v786, %v789
      %v791 = vsel %vm723, %v782, %v790
      %v793 = vshrl.u32 %v664, 16
      %v795 = vrot.slane %v793, 3
      %v796 = vshll.u32 %v664, 16
      %v798 = vrot.slane %v796, 4
      %v799 = vor.u32 %v795, %v798
      %v801 = vshrl.u32 %v665, 16
      %v803 = vrot.slane %v801, 3
      %v804 = vshll.u32 %v665, 16
      %v806 = vrot.slane %v804, 4
      %v807 = vor.u32 %v803, %v806
      %v808 = vsel %vm723, %v799, %v807
      %v810 = vshrl.u32 %v666, 16
      %v812 = vrot.slane %v810, 3
      %v813 = vshll.u32 %v666, 16
      %v815 = vrot.slane %v813, 4
      %v816 = vor.u32 %v812, %v815
      %v818 = vshrl.u32 %v667, 16
      %v820 = vrot.slane %v818, 3
      %v821 = vshll.u32 %v667, 16
      %v823 = vrot.slane %v821, 4
      %v824 = vor.u32 %v820, %v823
      %v825 = vsel %vm723, %v816, %v824
      %v827 = vshrl.u32 %v668, 16
      %v829 = vrot.slane %v827, 3
      %v830 = vshll.u32 %v668, 16
      %v832 = vrot.slane %v830, 4
      %v833 = vor.u32 %v829, %v832
      %v835 = vshrl.u32 %v669, 16
      %v837 = vrot.slane %v835, 3
      %v838 = vshll.u32 %v669, 16
      %v840 = vrot.slane %v838, 4
      %v841 = vor.u32 %v837, %v840
      %v842 = vsel %vm723, %v833, %v841
      %v844 = vshrl.u32 %v670, 16
      %v846 = vrot.slane %v844, 3
      %v847 = vshll.u32 %v670, 16
      %v849 = vrot.slane %v847, 4
      %v850 = vor.u32 %v846, %v849
      %v852 = vshrl.u32 %v671, 16
      %v854 = vrot.slane %v852, 3
      %v855 = vshll.u32 %v671, 16
      %v857 = vrot.slane %v855, 4
      %v858 = vor.u32 %v854, %v857
      %v859 = vsel %vm723, %v850, %v858
      %v861 = vshrl.u32 %v672, 16
      %v863 = vrot.slane %v861, 3
      %v864 = vshll.u32 %v672, 16
      %v866 = vrot.slane %v864, 4
      %v867 = vor.u32 %v863, %v866
      %v869 = vshrl.u32 %v673, 16
      %v871 = vrot.slane %v869, 3
      %v872 = vshll.u32 %v673, 16
      %v874 = vrot.slane %v872, 4
      %v875 = vor.u32 %v871, %v874
      %v876 = vsel %vm723, %v867, %v875
      %v878 = vshrl.u32 %v674, 16
      %v880 = vrot.slane %v878, 3
      %v881 = vshll.u32 %v674, 16
      %v883 = vrot.slane %v881, 4
      %v884 = vor.u32 %v880, %v883
      %v886 = vshrl.u32 %v675, 16
      %v888 = vrot.slane %v886, 3
      %v889 = vshll.u32 %v675, 16
      %v891 = vrot.slane %v889, 4
      %v892 = vor.u32 %v888, %v891
      %v893 = vsel %vm723, %v884, %v892
      %v895 = vshrl.u32 %v676, 16
      %v897 = vrot.slane %v895, 3
      %v898 = vshll.u32 %v676, 16
      %v900 = vrot.slane %v898, 4
      %v901 = vor.u32 %v897, %v900
      %v903 = vshrl.u32 %v677, 16
      %v905 = vrot.slane %v903, 3
      %v906 = vshll.u32 %v677, 16
      %v908 = vrot.slane %v906, 4
      %v909 = vor.u32 %v905, %v908
      %v910 = vsel %vm723, %v901, %v909
      %v912 = vshrl.u32 %v678, 16
      %v914 = vrot.slane %v912, 3
      %v915 = vshll.u32 %v678, 16
      %v917 = vrot.slane %v915, 4
      %v918 = vor.u32 %v914, %v917
      %v920 = vshrl.u32 %v679, 16
      %v922 = vrot.slane %v920, 3
      %v923 = vshll.u32 %v679, 16
      %v925 = vrot.slane %v923, 4
      %v926 = vor.u32 %v922, %v925
      %v927 = vsel %vm723, %v918, %v926
      %v929 = vshrl.u32 %v680, 16
      %v931 = vrot.slane %v929, 3
      %v932 = vshll.u32 %v680, 16
      %v934 = vrot.slane %v932, 4
      %v935 = vor.u32 %v931, %v934
      %v937 = vshrl.u32 %v681, 16
      %v939 = vrot.slane %v937, 3
      %v940 = vshll.u32 %v681, 16
      %v942 = vrot.slane %v940, 4
      %v943 = vor.u32 %v939, %v942
      %v944 = vsel %vm723, %v935, %v943
      %v946 = vshrl.u32 %v682, 16
      %v948 = vrot.slane %v946, 3
      %v949 = vshll.u32 %v682, 16
      %v951 = vrot.slane %v949, 4
      %v952 = vor.u32 %v948, %v951
      %v954 = vshrl.u32 %v683, 16
      %v956 = vrot.slane %v954, 3
      %v957 = vshll.u32 %v683, 16
      %v959 = vrot.slane %v957, 4
      %v960 = vor.u32 %v956, %v959
      %v961 = vsel %vm723, %v952, %v960
      %v963 = vshrl.u32 %v684, 16
      %v965 = vrot.slane %v963, 3
      %v966 = vshll.u32 %v684, 16
      %v968 = vrot.slane %v966, 4
      %v969 = vor.u32 %v965, %v968
      %v971 = vshrl.u32 %v685, 16
      %v973 = vrot.slane %v971, 3
      %v974 = vshll.u32 %v685, 16
      %v976 = vrot.slane %v974, 4
      %v977 = vor.u32 %v973, %v976
      %v978 = vsel %vm723, %v969, %v977
      %v980 = vshrl.u32 %v686, 16
      %v982 = vrot.slane %v980, 3
      %v983 = vshll.u32 %v686, 16
      %v985 = vrot.slane %v983, 4
      %v986 = vor.u32 %v982, %v985
      %v988 = vshrl.u32 %v687, 16
      %v990 = vrot.slane %v988, 3
      %v991 = vshll.u32 %v687, 16
      %v993 = vrot.slane %v991, 4
      %v994 = vor.u32 %v990, %v993
      %v995 = vsel %vm723, %v986, %v994
      %v1028 = vunpack.c.l.b16 %v707
      %v1029 = vunpack.c.l.b16 %v708
      %v1030 = vunpack.c.l.b16 %v709
      %v1031 = vunpack.c.l.b16 %v710
      %v1032 = vunpack.c.l.b16 %v711
      %v1033 = vunpack.c.l.b16 %v712
      %v1034 = vunpack.c.l.b16 %v713
      %v1035 = vunpack.c.l.b16 %v714
      %v1036 = vunpack.c.l.b16 %v715
      %v1037 = vunpack.c.l.b16 %v716
      %v1038 = vunpack.c.l.b16 %v717
      %v1039 = vunpack.c.l.b16 %v718
      %v1040 = vunpack.c.l.b16 %v719
      %v1041 = vunpack.c.l.b16 %v720
      %v1042 = vunpack.c.l.b16 %v721
      %v1043 = vunpack.c.l.b16 %v722
      %v1044 = vpack.c.b16 %v1029, %v1028
      %v1045 = vpack.c.b16 %v1031, %v1030
      %v1046 = vpack.c.b16 %v1033, %v1032
      %v1047 = vpack.c.b16 %v1035, %v1034
      %v1048 = vpack.c.b16 %v1037, %v1036
      %v1049 = vpack.c.b16 %v1039, %v1038
      %v1050 = vpack.c.b16 %v1041, %v1040
      %v1051 = vpack.c.b16 %v1043, %v1042
      %1060 = vmatprep.subr.bf16.mxu0 0
      %1061 = vmatpush1.bf16.msra.mxu0 %v1044
      %1062 = vmatprep.subr.bf16.mxu0 0
      %1063 = vmatpush1.bf16.msra.mxu0 %v1045
      %1064 = vmatprep.subr.bf16.mxu0 0
      %1065 = vmatpush1.bf16.msra.mxu0 %v1046
      %1066 = vmatprep.subr.bf16.mxu0 0
      %1067 = vmatpush1.bf16.msra.mxu0 %v1047
      %1068 = vmatprep.subr.bf16.mxu0 0
      %1069 = vmatpush1.bf16.msra.mxu0 %v1048
      %1070 = vmatprep.subr.bf16.mxu0 0
      %1071 = vmatpush1.bf16.msra.mxu0 %v1049
      %1072 = vmatprep.subr.bf16.mxu0 0
      %1073 = vmatpush1.bf16.msra.mxu0 %v1050
      %1074 = vmatprep.subr.bf16.mxu0 0
      %1075 = vmatpush1.bf16.msra.mxu0 %v1051
      %1076 = vmatprep.subr.bf16.mxu0 0
      %1077 = vmatpush1.bf16.msra.mxu0 0
      %1078 = vmatprep.subr.bf16.mxu0 0
      %1079 = vmatpush1.bf16.msra.mxu0 0
      %1080 = vmatprep.subr.bf16.mxu0 0
      %1081 = vmatpush1.bf16.msra.mxu0 0
      %1082 = vmatprep.subr.bf16.mxu0 0
      %1083 = vmatpush1.bf16.msra.mxu0 0
      %1084 = vmatprep.subr.bf16.mxu0 0
      %1085 = vmatpush1.bf16.msra.mxu0 0
      %1086 = vmatprep.subr.bf16.mxu0 0
      %1087 = vmatpush1.bf16.msra.mxu0 0
      %1088 = vmatprep.subr.bf16.mxu0 0
      %1089 = vmatpush1.bf16.msra.mxu0 0
      %1090 = vmatprep.subr.bf16.mxu0 0
      %1091 = vmatpush1.bf16.msra.mxu0 0
      %1092 = vmatprep.mubr.bf16.mxu0 0
      %1093 = vmatmul.mubr.bf16.gmra.mrb[0].mxu0 %v740
      %v1094 = vpop.f32.mrb[0].mxu0
      %v1095 = vadd.f32 0.0, %v1094
      %v1096 = vpop.f32.mrb[0].mxu0
      %v1097 = vpop.f32.mrb[0].mxu0
      %v1098 = vadd.f32 0.0, %v1097
      %v1099 = vpop.f32.mrb[0].mxu0
      %1100 = vmatprep.mubr.bf16.mxu0 0
      %1101 = vmatmul.mubr.bf16.gmra.mrb[0].mxu0 %v757
      %v1102 = vpop.f32.mrb[0].mxu0
      %v1103 = vadd.f32 0.0, %v1102
      %v1104 = vpop.f32.mrb[0].mxu0
      %v1105 = vpop.f32.mrb[0].mxu0
      %v1106 = vadd.f32 0.0, %v1105
      %v1107 = vpop.f32.mrb[0].mxu0
      %1108 = vmatprep.mubr.bf16.mxu0 0
      %1109 = vmatmul.mubr.bf16.gmra.mrb[0].mxu0 %v774
      %v1110 = vpop.f32.mrb[0].mxu0
      %v1111 = vadd.f32 0.0, %v1110
      %v1112 = vpop.f32.mrb[0].mxu0
      %v1113 = vpop.f32.mrb[0].mxu0
      %v1114 = vadd.f32 0.0, %v1113
      %v1115 = vpop.f32.mrb[0].mxu0
      %1116 = vmatprep.mubr.bf16.mxu0 0
      %1117 = vmatmul.mubr.bf16.gmra.mrb[0].mxu0 %v791
      %v1118 = vpop.f32.mrb[0].mxu0
      %v1119 = vadd.f32 0.0, %v1118
      %v1120 = vpop.f32.mrb[0].mxu0
      %v1121 = vpop.f32.mrb[0].mxu0
      %v1122 = vadd.f32 0.0, %v1121
      %v1123 = vpop.f32.mrb[0].mxu0
      %1124 = vmatprep.mubr.bf16.mxu0 0
      %1125 = vmatmul.mubr.bf16.gmra.mrb[0].mxu0 %v808
      %v1126 = vpop.f32.mrb[0].mxu0
      %v1127 = vadd.f32 0.0, %v1126
      %v1128 = vpop.f32.mrb[0].mxu0
      %v1129 = vpop.f32.mrb[0].mxu0
      %v1130 = vadd.f32 0.0, %v1129
      %v1131 = vpop.f32.mrb[0].mxu0
      %1132 = vmatprep.mubr.bf16.mxu0 0
      %1133 = vmatmul.mubr.bf16.gmra.mrb[0].mxu0 %v825
      %v1134 = vpop.f32.mrb[0].mxu0
      %v1135 = vadd.f32 0.0, %v1134
      %v1136 = vpop.f32.mrb[0].mxu0
      %v1137 = vpop.f32.mrb[0].mxu0
      %v1138 = vadd.f32 0.0, %v1137
      %v1139 = vpop.f32.mrb[0].mxu0
      %1140 = vmatprep.mubr.bf16.mxu0 0
      %1141 = vmatmul.mubr.bf16.gmra.mrb[0].mxu0 %v842
      %v1142 = vpop.f32.mrb[0].mxu0
      %v1143 = vadd.f32 0.0, %v1142
      %v1144 = vpop.f32.mrb[0].mxu0
      %v1145 = vpop.f32.mrb[0].mxu0
      %v1146 = vadd.f32 0.0, %v1145
      %v1147 = vpop.f32.mrb[0].mxu0
      %1148 = vmatprep.mubr.bf16.mxu0 0
      %1149 = vmatmul.mubr.bf16.gmra.mrb[0].mxu0 %v859
      %v1150 = vpop.f32.mrb[0].mxu0
      %v1151 = vadd.f32 0.0, %v1150
      %v1152 = vpop.f32.mrb[0].mxu0
      %v1153 = vpop.f32.mrb[0].mxu0
      %v1154 = vadd.f32 0.0, %v1153
      %v1155 = vpop.f32.mrb[0].mxu0
      %1156 = vmatprep.mubr.bf16.mxu0 0
      %1157 = vmatmul.mubr.bf16.gmra.mrb[0].mxu0 %v876
      %v1158 = vpop.f32.mrb[0].mxu0
      %v1159 = vadd.f32 0.0, %v1158
      %v1160 = vpop.f32.mrb[0].mxu0
      %v1161 = vpop.f32.mrb[0].mxu0
      %v1162 = vadd.f32 0.0, %v1161
      %v1163 = vpop.f32.mrb[0].mxu0
      %1164 = vmatprep.mubr.bf16.mxu0 0
      %1165 = vmatmul.mubr.bf16.gmra.mrb[0].mxu0 %v893
      %v1166 = vpop.f32.mrb[0].mxu0
      %v1167 = vadd.f32 0.0, %v1166
      %v1168 = vpop.f32.mrb[0].mxu0
      %v1169 = vpop.f32.mrb[0].mxu0
      %v1170 = vadd.f32 0.0, %v1169
      %v1171 = vpop.f32.mrb[0].mxu0
      %1172 = vmatprep.mubr.bf16.mxu0 0
      %1173 = vmatmul.mubr.bf16.gmra.mrb[0].mxu0 %v910
      %v1174 = vpop.f32.mrb[0].mxu0
      %v1175 = vadd.f32 0.0, %v1174
      %v1176 = vpop.f32.mrb[0].mxu0
      %v1177 = vpop.f32.mrb[0].mxu0
      %v1178 = vadd.f32 0.0, %v1177
      %v1179 = vpop.f32.mrb[0].mxu0
      %1180 = vmatprep.mubr.bf16.mxu0 0
      %1181 = vmatmul.mubr.bf16.gmra.mrb[0].mxu0 %v927
      %v1182 = vpop.f32.mrb[0].mxu0
      %v1183 = vadd.f32 0.0, %v1182
      %v1184 = vpop.f32.mrb[0].mxu0
      %v1185 = vpop.f32.mrb[0].mxu0
      %v1186 = vadd.f32 0.0, %v1185
      %v1187 = vpop.f32.mrb[0].mxu0
      %1188 = vmatprep.mubr.bf16.mxu0 0
      %1189 = vmatmul.mubr.bf16.gmra.mrb[0].mxu0 %v944
      %v1190 = vpop.f32.mrb[0].mxu0
      %v1191 = vadd.f32 0.0, %v1190
      %v1192 = vpop.f32.mrb[0].mxu0
      %v1193 = vpop.f32.mrb[0].mxu0
      %v1194 = vadd.f32 0.0, %v1193
      %v1195 = vpop.f32.mrb[0].mxu0
      %1196 = vmatprep.mubr.bf16.mxu0 0
      %1197 = vmatmul.mubr.bf16.gmra.mrb[0].mxu0 %v961
      %v1198 = vpop.f32.mrb[0].mxu0
      %v1199 = vadd.f32 0.0, %v1198
      %v1200 = vpop.f32.mrb[0].mxu0
      %v1201 = vpop.f32.mrb[0].mxu0
      %v1202 = vadd.f32 0.0, %v1201
      %v1203 = vpop.f32.mrb[0].mxu0
      %1204 = vmatprep.mubr.bf16.mxu0 0
      %1205 = vmatmul.mubr.bf16.gmra.mrb[0].mxu0 %v978
      %v1206 = vpop.f32.mrb[0].mxu0
      %v1207 = vadd.f32 0.0, %v1206
      %v1208 = vpop.f32.mrb[0].mxu0
      %v1209 = vpop.f32.mrb[0].mxu0
      %v1210 = vadd.f32 0.0, %v1209
      %v1211 = vpop.f32.mrb[0].mxu0
      %1212 = vmatprep.mubr.bf16.mxu0 0
      %1213 = vmatmul.mubr.bf16.gmra.mrb[0].mxu0 %v995
      %v1214 = vpop.f32.mrb[0].mxu0
      %v1215 = vadd.f32 0.0, %v1214
      %v1216 = vpop.f32.mrb[0].mxu0
      %v1217 = vpop.f32.mrb[0].mxu0
      %v1218 = vadd.f32 0.0, %v1217
      %v1219 = vpop.f32.mrb[0].mxu0
      %1220 = vdwg.mxu0
      %v1222 = vshrl.u32 %v654, 16
      %v1224 = vrot.slane %v1222, 3
      %v1225 = vshll.u32 %v654, 16
      %v1227 = vrot.slane %v1225, 4
      %v1228 = vor.u32 %v1224, %v1227
      %v1230 = vshrl.u32 %v655, 16
      %v1232 = vrot.slane %v1230, 3
      %v1233 = vshll.u32 %v655, 16
      %v1235 = vrot.slane %v1233, 4
      %v1236 = vor.u32 %v1232, %v1235
      %v1237 = vsel %vm723, %v1228, %v1236
      %v1255 = vunpack.c.l.b16 %v690
      %v1256 = vunpack.c.l.b16 %v691
      %v1257 = vunpack.c.l.b16 %v692
      %v1258 = vunpack.c.l.b16 %v693
      %v1259 = vunpack.c.l.b16 %v694
      %v1260 = vunpack.c.l.b16 %v695
      %v1261 = vunpack.c.l.b16 %v696
      %v1262 = vunpack.c.l.b16 %v697
      %v1263 = vunpack.c.l.b16 %v698
      %v1264 = vunpack.c.l.b16 %v699
      %v1265 = vunpack.c.l.b16 %v700
      %v1266 = vunpack.c.l.b16 %v701
      %v1267 = vunpack.c.l.b16 %v702
      %v1268 = vunpack.c.l.b16 %v703
      %v1269 = vunpack.c.l.b16 %v704
      %v1270 = vunpack.c.l.b16 %v705
      %v1271 = vpack.c.b16 %v1256, %v1255
      %v1272 = vpack.c.b16 %v1258, %v1257
      %v1273 = vpack.c.b16 %v1260, %v1259
      %v1274 = vpack.c.b16 %v1262, %v1261
      %v1275 = vpack.c.b16 %v1264, %v1263
      %v1276 = vpack.c.b16 %v1266, %v1265
      %v1277 = vpack.c.b16 %v1268, %v1267
      %v1278 = vpack.c.b16 %v1270, %v1269
      %1287 = vmatprep.subr.bf16.mxu0 0
      %1288 = vmatpush1.bf16.msra.mxu0 %v1271
      %1289 = vmatprep.subr.bf16.mxu0 0
      %1290 = vmatpush1.bf16.msra.mxu0 %v1272
      %1291 = vmatprep.subr.bf16.mxu0 0
      %1292 = vmatpush1.bf16.msra.mxu0 %v1273
      %1293 = vmatprep.subr.bf16.mxu0 0
      %1294 = vmatpush1.bf16.msra.mxu0 %v1274
      %1295 = vmatprep.subr.bf16.mxu0 0
      %1296 = vmatpush1.bf16.msra.mxu0 %v1275
      %1297 = vmatprep.subr.bf16.mxu0 0
      %1298 = vmatpush1.bf16.msra.mxu0 %v1276
      %1299 = vmatprep.subr.bf16.mxu0 0
      %1300 = vmatpush1.bf16.msra.mxu0 %v1277
      %1301 = vmatprep.subr.bf16.mxu0 0
      %1302 = vmatpush1.bf16.msra.mxu0 %v1278
      %1303 = vmatprep.subr.bf16.mxu0 0
      %1304 = vmatpush1.bf16.msra.mxu0 0
      %1305 = vmatprep.subr.bf16.mxu0 0
      %1306 = vmatpush1.bf16.msra.mxu0 0
      %1307 = vmatprep.subr.bf16.mxu0 0
      %1308 = vmatpush1.bf16.msra.mxu0 0
      %1309 = vmatprep.subr.bf16.mxu0 0
      %1310 = vmatpush1.bf16.msra.mxu0 0
      %1311 = vmatprep.subr.bf16.mxu0 0
      %1312 = vmatpush1.bf16.msra.mxu0 0
      %1313 = vmatprep.subr.bf16.mxu0 0
      %1314 = vmatpush1.bf16.msra.mxu0 0
      %1315 = vmatprep.subr.bf16.mxu0 0
      %1316 = vmatpush1.bf16.msra.mxu0 0
      %1317 = vmatprep.subr.bf16.mxu0 0
      %1318 = vmatpush1.bf16.msra.mxu0 0
      %1319 = vmatprep.mubr.bf16.mxu0 0
      %1320 = vmatmul.mubr.bf16.gmra.mrb[0].mxu0 %v1237
      %v1321 = vpop.f32.mrb[0].mxu0
      %v1322 = vadd.f32 %v1095, %v1321
      %v1323 = vpop.f32.mrb[0].mxu0
      %v1324 = vpop.f32.mrb[0].mxu0
      %v1325 = vadd.f32 %v1098, %v1324
      %v1326 = vpop.f32.mrb[0].mxu0
      %1327 = vmatprep.mubr.bf16.mxu0 0
      %1328 = vmatmul.mubr.bf16.gmra.mrb[0].mxu0 %v740
      %v1329 = vpop.f32.mrb[0].mxu0
      %v1330 = vadd.f32 %v1103, %v1329
      %v1331 = vpop.f32.mrb[0].mxu0
      %v1332 = vpop.f32.mrb[0].mxu0
      %v1333 = vadd.f32 %v1106, %v1332
      %v1334 = vpop.f32.mrb[0].mxu0
      %1335 = vmatprep.mubr.bf16.mxu0 0
      %1336 = vmatmul.mubr.bf16.gmra.mrb[0].mxu0 %v757
      %v1337 = vpop.f32.mrb[0].mxu0
      %v1338 = vadd.f32 %v1111, %v1337
      %v1339 = vpop.f32.mrb[0].mxu0
      %v1340 = vpop.f32.mrb[0].mxu0
      %v1341 = vadd.f32 %v1114, %v1340
      %v1342 = vpop.f32.mrb[0].mxu0
      %1343 = vmatprep.mubr.bf16.mxu0 0
      %1344 = vmatmul.mubr.bf16.gmra.mrb[0].mxu0 %v774
      %v1345 = vpop.f32.mrb[0].mxu0
      %v1346 = vadd.f32 %v1119, %v1345
      %v1347 = vpop.f32.mrb[0].mxu0
      %v1348 = vpop.f32.mrb[0].mxu0
      %v1349 = vadd.f32 %v1122, %v1348
      %v1350 = vpop.f32.mrb[0].mxu0
      %1351 = vmatprep.mubr.bf16.mxu0 0
      %1352 = vmatmul.mubr.bf16.gmra.mrb[0].mxu0 %v791
      %v1353 = vpop.f32.mrb[0].mxu0
      %v1354 = vadd.f32 %v1127, %v1353
      %v1355 = vpop.f32.mrb[0].mxu0
      %v1356 = vpop.f32.mrb[0].mxu0
      %v1357 = vadd.f32 %v1130, %v1356
      %v1358 = vpop.f32.mrb[0].mxu0
      %1359 = vmatprep.mubr.bf16.mxu0 0
      %1360 = vmatmul.mubr.bf16.gmra.mrb[0].mxu0 %v808
      %v1361 = vpop.f32.mrb[0].mxu0
      %v1362 = vadd.f32 %v1135, %v1361
      %v1363 = vpop.f32.mrb[0].mxu0
      %v1364 = vpop.f32.mrb[0].mxu0
      %v1365 = vadd.f32 %v1138, %v1364
      %v1366 = vpop.f32.mrb[0].mxu0
      %1367 = vmatprep.mubr.bf16.mxu0 0
      %1368 = vmatmul.mubr.bf16.gmra.mrb[0].mxu0 %v825
      %v1369 = vpop.f32.mrb[0].mxu0
      %v1370 = vadd.f32 %v1143, %v1369
      %v1371 = vpop.f32.mrb[0].mxu0
      %v1372 = vpop.f32.mrb[0].mxu0
      %v1373 = vadd.f32 %v1146, %v1372
      %v1374 = vpop.f32.mrb[0].mxu0
      %1375 = vmatprep.mubr.bf16.mxu0 0
      %1376 = vmatmul.mubr.bf16.gmra.mrb[0].mxu0 %v842
      %v1377 = vpop.f32.mrb[0].mxu0
      %v1378 = vadd.f32 %v1151, %v1377
      %v1379 = vpop.f32.mrb[0].mxu0
      %v1380 = vpop.f32.mrb[0].mxu0
      %v1381 = vadd.f32 %v1154, %v1380
      %v1382 = vpop.f32.mrb[0].mxu0
      %1383 = vmatprep.mubr.bf16.mxu0 0
      %1384 = vmatmul.mubr.bf16.gmra.mrb[0].mxu0 %v859
      %v1385 = vpop.f32.mrb[0].mxu0
      %v1386 = vadd.f32 %v1159, %v1385
      %v1387 = vpop.f32.mrb[0].mxu0
      %v1388 = vpop.f32.mrb[0].mxu0
      %v1389 = vadd.f32 %v1162, %v1388
      %v1390 = vpop.f32.mrb[0].mxu0
      %1391 = vmatprep.mubr.bf16.mxu0 0
      %1392 = vmatmul.mubr.bf16.gmra.mrb[0].mxu0 %v876
      %v1393 = vpop.f32.mrb[0].mxu0
      %v1394 = vadd.f32 %v1167, %v1393
      %v1395 = vpop.f32.mrb[0].mxu0
      %v1396 = vpop.f32.mrb[0].mxu0
      %v1397 = vadd.f32 %v1170, %v1396
      %v1398 = vpop.f32.mrb[0].mxu0
      %1399 = vmatprep.mubr.bf16.mxu0 0
      %1400 = vmatmul.mubr.bf16.gmra.mrb[0].mxu0 %v893
      %v1401 = vpop.f32.mrb[0].mxu0
      %v1402 = vadd.f32 %v1175, %v1401
      %v1403 = vpop.f32.mrb[0].mxu0
      %v1404 = vpop.f32.mrb[0].mxu0
      %v1405 = vadd.f32 %v1178, %v1404
      %v1406 = vpop.f32.mrb[0].mxu0
      %1407 = vmatprep.mubr.bf16.mxu0 0
      %1408 = vmatmul.mubr.bf16.gmra.mrb[0].mxu0 %v910
      %v1409 = vpop.f32.mrb[0].mxu0
      %v1410 = vadd.f32 %v1183, %v1409
      %v1411 = vpop.f32.mrb[0].mxu0
      %v1412 = vpop.f32.mrb[0].mxu0
      %v1413 = vadd.f32 %v1186, %v1412
      %v1414 = vpop.f32.mrb[0].mxu0
      %1415 = vmatprep.mubr.bf16.mxu0 0
      %1416 = vmatmul.mubr.bf16.gmra.mrb[0].mxu0 %v927
      %v1417 = vpop.f32.mrb[0].mxu0
      %v1418 = vadd.f32 %v1191, %v1417
      %v1419 = vpop.f32.mrb[0].mxu0
      %v1420 = vpop.f32.mrb[0].mxu0
      %v1421 = vadd.f32 %v1194, %v1420
      %v1422 = vpop.f32.mrb[0].mxu0
      %1423 = vmatprep.mubr.bf16.mxu0 0
      %1424 = vmatmul.mubr.bf16.gmra.mrb[0].mxu0 %v944
      %v1425 = vpop.f32.mrb[0].mxu0
      %v1426 = vadd.f32 %v1199, %v1425
      %v1427 = vpop.f32.mrb[0].mxu0
      %v1428 = vpop.f32.mrb[0].mxu0
      %v1429 = vadd.f32 %v1202, %v1428
      %v1430 = vpop.f32.mrb[0].mxu0
      %1431 = vmatprep.mubr.bf16.mxu0 0
      %1432 = vmatmul.mubr.bf16.gmra.mrb[0].mxu0 %v961
      %v1433 = vpop.f32.mrb[0].mxu0
      %v1434 = vadd.f32 %v1207, %v1433
      %v1435 = vpop.f32.mrb[0].mxu0
      %v1436 = vpop.f32.mrb[0].mxu0
      %v1437 = vadd.f32 %v1210, %v1436
      %v1438 = vpop.f32.mrb[0].mxu0
      %1439 = vmatprep.mubr.bf16.mxu0 0
      %1440 = vmatmul.mubr.bf16.gmra.mrb[0].mxu0 %v978
      %v1441 = vpop.f32.mrb[0].mxu0
      %v1442 = vadd.f32 %v1215, %v1441
      %v1443 = vpop.f32.mrb[0].mxu0
      %v1444 = vpop.f32.mrb[0].mxu0
      %v1445 = vadd.f32 %v1218, %v1444
      %v1446 = vpop.f32.mrb[0].mxu0
      %1447 = vdwg.mxu0
      %s1448 = scalar_lea.vmem %s4, 384
      %v1449 = vld [vmem:[%s1448] sm:$0xf]
      %v1450 = vld [vmem:[%s1448 + $0x4] sm:$0xf]
      %v1451 = vld [vmem:[%s1448 + $0x8] sm:$0xf]
      %v1452 = vld [vmem:[%s1448 + $0xc] sm:$0xf]
      %v1453 = vld [vmem:[%s1448 + $0x10] sm:$0xf]
      %v1454 = vld [vmem:[%s1448 + $0x14] sm:$0xf]
      %v1455 = vld [vmem:[%s1448 + $0x18] sm:$0xf]
      %v1456 = vld [vmem:[%s1448 + $0x1c] sm:$0xf]
      %v1457 = vld [vmem:[%s1448 + $0x20] sm:$0xf]
      %v1458 = vld [vmem:[%s1448 + $0x24] sm:$0xf]
      %v1459 = vld [vmem:[%s1448 + $0x28] sm:$0xf]
      %v1460 = vld [vmem:[%s1448 + $0x2c] sm:$0xf]
      %v1461 = vld [vmem:[%s1448 + $0x30] sm:$0xf]
      %v1462 = vld [vmem:[%s1448 + $0x34] sm:$0xf]
      %v1463 = vld [vmem:[%s1448 + $0x38] sm:$0xf]
      %v1464 = vld [vmem:[%s1448 + $0x3c] sm:$0xf]
      %v1466 = vshrl.u32 %v688, 16
      %v1468 = vrot.slane %v1466, 3
      %v1469 = vshll.u32 %v688, 16
      %v1471 = vrot.slane %v1469, 4
      %v1472 = vor.u32 %v1468, %v1471
      %v1474 = vshrl.u32 %v689, 16
      %v1476 = vrot.slane %v1474, 3
      %v1477 = vshll.u32 %v689, 16
      %v1479 = vrot.slane %v1477, 4
      %v1480 = vor.u32 %v1476, %v1479
      %v1481 = vsel %vm723, %v1472, %v1480
      %v1499 = vunpack.c.l.b16 %v1449
      %v1500 = vunpack.c.l.b16 %v1450
      %v1501 = vunpack.c.l.b16 %v1451
      %v1502 = vunpack.c.l.b16 %v1452
      %v1503 = vunpack.c.l.b16 %v1453
      %v1504 = vunpack.c.l.b16 %v1454
      %v1505 = vunpack.c.l.b16 %v1455
      %v1506 = vunpack.c.l.b16 %v1456
      %v1507 = vunpack.c.l.b16 %v1457
      %v1508 = vunpack.c.l.b16 %v1458
      %v1509 = vunpack.c.l.b16 %v1459
      %v1510 = vunpack.c.l.b16 %v1460
      %v1511 = vunpack.c.l.b16 %v1461
      %v1512 = vunpack.c.l.b16 %v1462
      %v1513 = vunpack.c.l.b16 %v1463
      %v1514 = vunpack.c.l.b16 %v1464
      %v1515 = vpack.c.b16 %v1500, %v1499
      %v1516 = vpack.c.b16 %v1502, %v1501
      %v1517 = vpack.c.b16 %v1504, %v1503
      %v1518 = vpack.c.b16 %v1506, %v1505
      %v1519 = vpack.c.b16 %v1508, %v1507
      %v1520 = vpack.c.b16 %v1510, %v1509
      %v1521 = vpack.c.b16 %v1512, %v1511
      %v1522 = vpack.c.b16 %v1514, %v1513
      %1531 = vmatprep.subr.bf16.mxu0 0
      %1532 = vmatpush1.bf16.msra.mxu0 %v1515
      %1533 = vmatprep.subr.bf16.mxu0 0
      %1534 = vmatpush1.bf16.msra.mxu0 %v1516
      %1535 = vmatprep.subr.bf16.mxu0 0
      %1536 = vmatpush1.bf16.msra.mxu0 %v1517
      %1537 = vmatprep.subr.bf16.mxu0 0
      %1538 = vmatpush1.bf16.msra.mxu0 %v1518
      %1539 = vmatprep.subr.bf16.mxu0 0
      %1540 = vmatpush1.bf16.msra.mxu0 %v1519
      %1541 = vmatprep.subr.bf16.mxu0 0
      %1542 = vmatpush1.bf16.msra.mxu0 %v1520
      %1543 = vmatprep.subr.bf16.mxu0 0
      %1544 = vmatpush1.bf16.msra.mxu0 %v1521
      %1545 = vmatprep.subr.bf16.mxu0 0
      %1546 = vmatpush1.bf16.msra.mxu0 %v1522
      %1547 = vmatprep.subr.bf16.mxu0 0
      %1548 = vmatpush1.bf16.msra.mxu0 0
      %1549 = vmatprep.subr.bf16.mxu0 0
      %1550 = vmatpush1.bf16.msra.mxu0 0
      %1551 = vmatprep.subr.bf16.mxu0 0
      %1552 = vmatpush1.bf16.msra.mxu0 0
      %1553 = vmatprep.subr.bf16.mxu0 0
      %1554 = vmatpush1.bf16.msra.mxu0 0
      %1555 = vmatprep.subr.bf16.mxu0 0
      %1556 = vmatpush1.bf16.msra.mxu0 0
      %1557 = vmatprep.subr.bf16.mxu0 0
      %1558 = vmatpush1.bf16.msra.mxu0 0
      %1559 = vmatprep.subr.bf16.mxu0 0
      %1560 = vmatpush1.bf16.msra.mxu0 0
      %1561 = vmatprep.subr.bf16.mxu0 0
      %1562 = vmatpush1.bf16.msra.mxu0 0
      %1563 = vmatprep.mubr.bf16.mxu0 0
      %1564 = vmatmul.mubr.bf16.gmra.mrb[0].mxu0 %v757
      %v1565 = vpop.f32.mrb[0].mxu0
      %v1566 = vadd.f32 0.0, %v1565
      %v1567 = vpop.f32.mrb[0].mxu0
      %v1568 = vpop.f32.mrb[0].mxu0
      %v1569 = vadd.f32 0.0, %v1568
      %v1570 = vpop.f32.mrb[0].mxu0
      %1571 = vmatprep.mubr.bf16.mxu0 0
      %1572 = vmatmul.mubr.bf16.gmra.mrb[0].mxu0 %v774
      %v1573 = vpop.f32.mrb[0].mxu0
      %v1574 = vadd.f32 0.0, %v1573
      %v1575 = vpop.f32.mrb[0].mxu0
      %v1576 = vpop.f32.mrb[0].mxu0
      %v1577 = vadd.f32 0.0, %v1576
      %v1578 = vpop.f32.mrb[0].mxu0
      %1579 = vmatprep.mubr.bf16.mxu0 0
      %1580 = vmatmul.mubr.bf16.gmra.mrb[0].mxu0 %v791
      %v1581 = vpop.f32.mrb[0].mxu0
      %v1582 = vadd.f32 0.0, %v1581
      %v1583 = vpop.f32.mrb[0].mxu0
      %v1584 = vpop.f32.mrb[0].mxu0
      %v1585 = vadd.f32 0.0, %v1584
      %v1586 = vpop.f32.mrb[0].mxu0
      %1587 = vmatprep.mubr.bf16.mxu0 0
      %1588 = vmatmul.mubr.bf16.gmra.mrb[0].mxu0 %v808
      %v1589 = vpop.f32.mrb[0].mxu0
      %v1590 = vadd.f32 0.0, %v1589
      %v1591 = vpop.f32.mrb[0].mxu0
      %v1592 = vpop.f32.mrb[0].mxu0
      %v1593 = vadd.f32 0.0, %v1592
      %v1594 = vpop.f32.mrb[0].mxu0
      %1595 = vmatprep.mubr.bf16.mxu0 0
      %1596 = vmatmul.mubr.bf16.gmra.mrb[0].mxu0 %v825
      %v1597 = vpop.f32.mrb[0].mxu0
      %v1598 = vadd.f32 0.0, %v1597
      %v1599 = vpop.f32.mrb[0].mxu0
      %v1600 = vpop.f32.mrb[0].mxu0
      %v1601 = vadd.f32 0.0, %v1600
      %v1602 = vpop.f32.mrb[0].mxu0
      %1603 = vmatprep.mubr.bf16.mxu0 0
      %1604 = vmatmul.mubr.bf16.gmra.mrb[0].mxu0 %v842
      %v1605 = vpop.f32.mrb[0].mxu0
      %v1606 = vadd.f32 0.0, %v1605
      %v1607 = vpop.f32.mrb[0].mxu0
      %v1608 = vpop.f32.mrb[0].mxu0
      %v1609 = vadd.f32 0.0, %v1608
      %v1610 = vpop.f32.mrb[0].mxu0
      %1611 = vmatprep.mubr.bf16.mxu0 0
      %1612 = vmatmul.mubr.bf16.gmra.mrb[0].mxu0 %v859
      %v1613 = vpop.f32.mrb[0].mxu0
      %v1614 = vadd.f32 0.0, %v1613
      %v1615 = vpop.f32.mrb[0].mxu0
      %v1616 = vpop.f32.mrb[0].mxu0
      %v1617 = vadd.f32 0.0, %v1616
      %v1618 = vpop.f32.mrb[0].mxu0
      %1619 = vmatprep.mubr.bf16.mxu0 0
      %1620 = vmatmul.mubr.bf16.gmra.mrb[0].mxu0 %v876
      %v1621 = vpop.f32.mrb[0].mxu0
      %v1622 = vadd.f32 0.0, %v1621
      %v1623 = vpop.f32.mrb[0].mxu0
      %v1624 = vpop.f32.mrb[0].mxu0
      %v1625 = vadd.f32 0.0, %v1624
      %v1626 = vpop.f32.mrb[0].mxu0
      %1627 = vmatprep.mubr.bf16.mxu0 0
      %1628 = vmatmul.mubr.bf16.gmra.mrb[0].mxu0 %v893
      %v1629 = vpop.f32.mrb[0].mxu0
      %v1630 = vadd.f32 0.0, %v1629
      %v1631 = vpop.f32.mrb[0].mxu0
      %v1632 = vpop.f32.mrb[0].mxu0
      %v1633 = vadd.f32 0.0, %v1632
      %v1634 = vpop.f32.mrb[0].mxu0
      %1635 = vmatprep.mubr.bf16.mxu0 0
      %1636 = vmatmul.mubr.bf16.gmra.mrb[0].mxu0 %v910
      %v1637 = vpop.f32.mrb[0].mxu0
      %v1638 = vadd.f32 0.0, %v1637
      %v1639 = vpop.f32.mrb[0].mxu0
      %v1640 = vpop.f32.mrb[0].mxu0
      %v1641 = vadd.f32 0.0, %v1640
      %v1642 = vpop.f32.mrb[0].mxu0
      %1643 = vmatprep.mubr.bf16.mxu0 0
      %1644 = vmatmul.mubr.bf16.gmra.mrb[0].mxu0 %v927
      %v1645 = vpop.f32.mrb[0].mxu0
      %v1646 = vadd.f32 0.0, %v1645
      %v1647 = vpop.f32.mrb[0].mxu0
      %v1648 = vpop.f32.mrb[0].mxu0
      %v1649 = vadd.f32 0.0, %v1648
      %v1650 = vpop.f32.mrb[0].mxu0
      %1651 = vmatprep.mubr.bf16.mxu0 0
      %1652 = vmatmul.mubr.bf16.gmra.mrb[0].mxu0 %v944
      %v1653 = vpop.f32.mrb[0].mxu0
      %v1654 = vadd.f32 0.0, %v1653
      %v1655 = vpop.f32.mrb[0].mxu0
      %v1656 = vpop.f32.mrb[0].mxu0
      %v1657 = vadd.f32 0.0, %v1656
      %v1658 = vpop.f32.mrb[0].mxu0
      %1659 = vmatprep.mubr.bf16.mxu0 0
      %1660 = vmatmul.mubr.bf16.gmra.mrb[0].mxu0 %v961
      %v1661 = vpop.f32.mrb[0].mxu0
      %v1662 = vadd.f32 0.0, %v1661
      %v1663 = vpop.f32.mrb[0].mxu0
      %v1664 = vpop.f32.mrb[0].mxu0
      %v1665 = vadd.f32 0.0, %v1664
      %v1666 = vpop.f32.mrb[0].mxu0
      %1667 = vmatprep.mubr.bf16.mxu0 0
      %1668 = vmatmul.mubr.bf16.gmra.mrb[0].mxu0 %v978
      %v1669 = vpop.f32.mrb[0].mxu0
      %v1670 = vadd.f32 0.0, %v1669
      %v1671 = vpop.f32.mrb[0].mxu0
      %v1672 = vpop.f32.mrb[0].mxu0
      %v1673 = vadd.f32 0.0, %v1672
      %v1674 = vpop.f32.mrb[0].mxu0
      %1675 = vmatprep.mubr.bf16.mxu0 0
      %1676 = vmatmul.mubr.bf16.gmra.mrb[0].mxu0 %v995
      %v1677 = vpop.f32.mrb[0].mxu0
      %v1678 = vadd.f32 0.0, %v1677
      %v1679 = vpop.f32.mrb[0].mxu0
      %v1680 = vpop.f32.mrb[0].mxu0
      %v1681 = vadd.f32 0.0, %v1680
      %v1682 = vpop.f32.mrb[0].mxu0
      %1683 = vmatprep.mubr.bf16.mxu0 0
      %1684 = vmatmul.mubr.bf16.gmra.mrb[0].mxu0 %v1481
      %v1685 = vpop.f32.mrb[0].mxu0
      %v1686 = vadd.f32 0.0, %v1685
      %v1687 = vpop.f32.mrb[0].mxu0
      %v1688 = vpop.f32.mrb[0].mxu0
      %v1689 = vadd.f32 0.0, %v1688
      %v1690 = vpop.f32.mrb[0].mxu0
      %1691 = vdwg.mxu0
      %v1692 = vadd.f32 %v1322, %v1566
      %v1693 = vadd.f32 %v1325, %v1569
      %v1694 = vadd.f32 %v1330, %v1574
      %v1695 = vadd.f32 %v1333, %v1577
      %v1696 = vadd.f32 %v1338, %v1582
      %v1697 = vadd.f32 %v1341, %v1585
      %v1698 = vadd.f32 %v1346, %v1590
      %v1699 = vadd.f32 %v1349, %v1593
      %v1700 = vadd.f32 %v1354, %v1598
      %v1701 = vadd.f32 %v1357, %v1601
      %v1702 = vadd.f32 %v1362, %v1606
      %v1703 = vadd.f32 %v1365, %v1609
      %v1704 = vadd.f32 %v1370, %v1614
      %v1705 = vadd.f32 %v1373, %v1617
      %v1706 = vadd.f32 %v1378, %v1622
      %v1707 = vadd.f32 %v1381, %v1625
      %v1708 = vadd.f32 %v1386, %v1630
      %v1709 = vadd.f32 %v1389, %v1633
      %v1710 = vadd.f32 %v1394, %v1638
      %v1711 = vadd.f32 %v1397, %v1641
      %v1712 = vadd.f32 %v1402, %v1646
      %v1713 = vadd.f32 %v1405, %v1649
      %v1714 = vadd.f32 %v1410, %v1654
      %v1715 = vadd.f32 %v1413, %v1657
      %v1716 = vadd.f32 %v1418, %v1662
      %v1717 = vadd.f32 %v1421, %v1665
      %v1718 = vadd.f32 %v1426, %v1670
      %v1719 = vadd.f32 %v1429, %v1673
      %v1720 = vadd.f32 %v1434, %v1678
      %v1721 = vadd.f32 %v1437, %v1681
      %v1722 = vadd.f32 %v1442, %v1686
      %v1723 = vadd.f32 %v1445, %v1689
      %s1724 = scalar_lea.vmem %s4, 64
      %v1725 = vld [vmem:[%s1724] sm:$0xf]
      %v1726 = vld [vmem:[%s1724 + $0x4] sm:$0xf]
      %v1727 = vld [vmem:[%s1724 + $0x8] sm:$0xf]
      %v1728 = vld [vmem:[%s1724 + $0xc] sm:$0xf]
      %v1729 = vld [vmem:[%s1724 + $0x10] sm:$0xf]
      %v1730 = vld [vmem:[%s1724 + $0x14] sm:$0xf]
      %v1731 = vld [vmem:[%s1724 + $0x18] sm:$0xf]
      %v1732 = vld [vmem:[%s1724 + $0x1c] sm:$0xf]
      %v1733 = vld [vmem:[%s1724 + $0x20] sm:$0xf]
      %v1734 = vld [vmem:[%s1724 + $0x24] sm:$0xf]
      %v1735 = vld [vmem:[%s1724 + $0x28] sm:$0xf]
      %v1736 = vld [vmem:[%s1724 + $0x2c] sm:$0xf]
      %v1737 = vld [vmem:[%s1724 + $0x30] sm:$0xf]
      %v1738 = vld [vmem:[%s1724 + $0x34] sm:$0xf]
      %v1739 = vld [vmem:[%s1724 + $0x38] sm:$0xf]
      %v1740 = vld [vmem:[%s1724 + $0x3c] sm:$0xf]
      %vm1773 = vcmask 1043456
      %v1774 = vrot.slane %v654, 4
      %v1775 = vrot.slane %v655, 4
      %v1776 = vsel %vm1773, %v1774, %v1775
      %v1777 = vrot.slane %v656, 4
      %v1778 = vrot.slane %v657, 4
      %v1779 = vsel %vm1773, %v1777, %v1778
      %v1780 = vrot.slane %v658, 4
      %v1781 = vrot.slane %v659, 4
      %v1782 = vsel %vm1773, %v1780, %v1781
      %v1783 = vrot.slane %v660, 4
      %v1784 = vrot.slane %v661, 4
      %v1785 = vsel %vm1773, %v1783, %v1784
      %v1786 = vrot.slane %v662, 4
      %v1787 = vrot.slane %v663, 4
      %v1788 = vsel %vm1773, %v1786, %v1787
      %v1789 = vrot.slane %v664, 4
      %v1790 = vrot.slane %v665, 4
      %v1791 = vsel %vm1773, %v1789, %v1790
      %v1792 = vrot.slane %v666, 4
      %v1793 = vrot.slane %v667, 4
      %v1794 = vsel %vm1773, %v1792, %v1793
      %v1795 = vrot.slane %v668, 4
      %v1796 = vrot.slane %v669, 4
      %v1797 = vsel %vm1773, %v1795, %v1796
      %v1798 = vrot.slane %v670, 4
      %v1799 = vrot.slane %v671, 4
      %v1800 = vsel %vm1773, %v1798, %v1799
      %v1801 = vrot.slane %v672, 4
      %v1802 = vrot.slane %v673, 4
      %v1803 = vsel %vm1773, %v1801, %v1802
      %v1804 = vrot.slane %v674, 4
      %v1805 = vrot.slane %v675, 4
      %v1806 = vsel %vm1773, %v1804, %v1805
      %v1807 = vrot.slane %v676, 4
      %v1808 = vrot.slane %v677, 4
      %v1809 = vsel %vm1773, %v1807, %v1808
      %v1810 = vrot.slane %v678, 4
      %v1811 = vrot.slane %v679, 4
      %v1812 = vsel %vm1773, %v1810, %v1811
      %v1813 = vrot.slane %v680, 4
      %v1814 = vrot.slane %v681, 4
      %v1815 = vsel %vm1773, %v1813, %v1814
      %v1816 = vrot.slane %v682, 4
      %v1817 = vrot.slane %v683, 4
      %v1818 = vsel %vm1773, %v1816, %v1817
      %v1819 = vrot.slane %v684, 4
      %v1820 = vrot.slane %v685, 4
      %v1821 = vsel %vm1773, %v1819, %v1820
      %v1854 = vunpack.c.l.b16 %v1725
      %v1855 = vunpack.c.l.b16 %v1726
      %v1856 = vunpack.c.l.b16 %v1727
      %v1857 = vunpack.c.l.b16 %v1728
      %v1858 = vunpack.c.l.b16 %v1729
      %v1859 = vunpack.c.l.b16 %v1730
      %v1860 = vunpack.c.l.b16 %v1731
      %v1861 = vunpack.c.l.b16 %v1732
      %v1862 = vunpack.c.l.b16 %v1733
      %v1863 = vunpack.c.l.b16 %v1734
      %v1864 = vunpack.c.l.b16 %v1735
      %v1865 = vunpack.c.l.b16 %v1736
      %v1866 = vunpack.c.l.b16 %v1737
      %v1867 = vunpack.c.l.b16 %v1738
      %v1868 = vunpack.c.l.b16 %v1739
      %v1869 = vunpack.c.l.b16 %v1740
      %v1870 = vpack.c.b16 %v1855, %v1854
      %v1871 = vpack.c.b16 %v1857, %v1856
      %v1872 = vpack.c.b16 %v1859, %v1858
      %v1873 = vpack.c.b16 %v1861, %v1860
      %v1874 = vpack.c.b16 %v1863, %v1862
      %v1875 = vpack.c.b16 %v1865, %v1864
      %v1876 = vpack.c.b16 %v1867, %v1866
      %v1877 = vpack.c.b16 %v1869, %v1868
      %1886 = vmatprep.subr.bf16.mxu0 0
      %1887 = vmatpush1.bf16.msra.mxu0 %v1870
      %1888 = vmatprep.subr.bf16.mxu0 0
      %1889 = vmatpush1.bf16.msra.mxu0 %v1871
      %1890 = vmatprep.subr.bf16.mxu0 0
      %1891 = vmatpush1.bf16.msra.mxu0 %v1872
      %1892 = vmatprep.subr.bf16.mxu0 0
      %1893 = vmatpush1.bf16.msra.mxu0 %v1873
      %1894 = vmatprep.subr.bf16.mxu0 0
      %1895 = vmatpush1.bf16.msra.mxu0 %v1874
      %1896 = vmatprep.subr.bf16.mxu0 0
      %1897 = vmatpush1.bf16.msra.mxu0 %v1875
      %1898 = vmatprep.subr.bf16.mxu0 0
      %1899 = vmatpush1.bf16.msra.mxu0 %v1876
      %1900 = vmatprep.subr.bf16.mxu0 0
      %1901 = vmatpush1.bf16.msra.mxu0 %v1877
      %1902 = vmatprep.subr.bf16.mxu0 0
      %1903 = vmatpush1.bf16.msra.mxu0 0
      %1904 = vmatprep.subr.bf16.mxu0 0
      %1905 = vmatpush1.bf16.msra.mxu0 0
      %1906 = vmatprep.subr.bf16.mxu0 0
      %1907 = vmatpush1.bf16.msra.mxu0 0
      %1908 = vmatprep.subr.bf16.mxu0 0
      %1909 = vmatpush1.bf16.msra.mxu0 0
      %1910 = vmatprep.subr.bf16.mxu0 0
      %1911 = vmatpush1.bf16.msra.mxu0 0
      %1912 = vmatprep.subr.bf16.mxu0 0
      %1913 = vmatpush1.bf16.msra.mxu0 0
      %1914 = vmatprep.subr.bf16.mxu0 0
      %1915 = vmatpush1.bf16.msra.mxu0 0
      %1916 = vmatprep.subr.bf16.mxu0 0
      %1917 = vmatpush1.bf16.msra.mxu0 0
      %1918 = vmatprep.mubr.bf16.mxu0 0
      %1919 = vmatmul.mubr.bf16.gmra.mrb[0].mxu0 %v1776
      %v1920 = vpop.f32.mrb[0].mxu0
      %v1921 = vadd.f32 0.0, %v1920
      %v1922 = vpop.f32.mrb[0].mxu0
      %v1923 = vpop.f32.mrb[0].mxu0
      %v1924 = vadd.f32 0.0, %v1923
      %v1925 = vpop.f32.mrb[0].mxu0
      %1926 = vmatprep.mubr.bf16.mxu0 0
      %1927 = vmatmul.mubr.bf16.gmra.mrb[0].mxu0 %v1779
      %v1928 = vpop.f32.mrb[0].mxu0
      %v1929 = vadd.f32 0.0, %v1928
      %v1930 = vpop.f32.mrb[0].mxu0
      %v1931 = vpop.f32.mrb[0].mxu0
      %v1932 = vadd.f32 0.0, %v1931
      %v1933 = vpop.f32.mrb[0].mxu0
      %1934 = vmatprep.mubr.bf16.mxu0 0
      %1935 = vmatmul.mubr.bf16.gmra.mrb[0].mxu0 %v1782
      %v1936 = vpop.f32.mrb[0].mxu0
      %v1937 = vadd.f32 0.0, %v1936
      %v1938 = vpop.f32.mrb[0].mxu0
      %v1939 = vpop.f32.mrb[0].mxu0
      %v1940 = vadd.f32 0.0, %v1939
      %v1941 = vpop.f32.mrb[0].mxu0
      %1942 = vmatprep.mubr.bf16.mxu0 0
      %1943 = vmatmul.mubr.bf16.gmra.mrb[0].mxu0 %v1785
      %v1944 = vpop.f32.mrb[0].mxu0
      %v1945 = vadd.f32 0.0, %v1944
      %v1946 = vpop.f32.mrb[0].mxu0
      %v1947 = vpop.f32.mrb[0].mxu0
      %v1948 = vadd.f32 0.0, %v1947
      %v1949 = vpop.f32.mrb[0].mxu0
      %1950 = vmatprep.mubr.bf16.mxu0 0
      %1951 = vmatmul.mubr.bf16.gmra.mrb[0].mxu0 %v1788
      %v1952 = vpop.f32.mrb[0].mxu0
      %v1953 = vadd.f32 0.0, %v1952
      %v1954 = vpop.f32.mrb[0].mxu0
      %v1955 = vpop.f32.mrb[0].mxu0
      %v1956 = vadd.f32 0.0, %v1955
      %v1957 = vpop.f32.mrb[0].mxu0
      %1958 = vmatprep.mubr.bf16.mxu0 0
      %1959 = vmatmul.mubr.bf16.gmra.mrb[0].mxu0 %v1791
      %v1960 = vpop.f32.mrb[0].mxu0
      %v1961 = vadd.f32 0.0, %v1960
      %v1962 = vpop.f32.mrb[0].mxu0
      %v1963 = vpop.f32.mrb[0].mxu0
      %v1964 = vadd.f32 0.0, %v1963
      %v1965 = vpop.f32.mrb[0].mxu0
      %1966 = vmatprep.mubr.bf16.mxu0 0
      %1967 = vmatmul.mubr.bf16.gmra.mrb[0].mxu0 %v1794
      %v1968 = vpop.f32.mrb[0].mxu0
      %v1969 = vadd.f32 0.0, %v1968
      %v1970 = vpop.f32.mrb[0].mxu0
      %v1971 = vpop.f32.mrb[0].mxu0
      %v1972 = vadd.f32 0.0, %v1971
      %v1973 = vpop.f32.mrb[0].mxu0
      %1974 = vmatprep.mubr.bf16.mxu0 0
      %1975 = vmatmul.mubr.bf16.gmra.mrb[0].mxu0 %v1797
      %v1976 = vpop.f32.mrb[0].mxu0
      %v1977 = vadd.f32 0.0, %v1976
      %v1978 = vpop.f32.mrb[0].mxu0
      %v1979 = vpop.f32.mrb[0].mxu0
      %v1980 = vadd.f32 0.0, %v1979
      %v1981 = vpop.f32.mrb[0].mxu0
      %1982 = vmatprep.mubr.bf16.mxu0 0
      %1983 = vmatmul.mubr.bf16.gmra.mrb[0].mxu0 %v1800
      %v1984 = vpop.f32.mrb[0].mxu0
      %v1985 = vadd.f32 0.0, %v1984
      %v1986 = vpop.f32.mrb[0].mxu0
      %v1987 = vpop.f32.mrb[0].mxu0
      %v1988 = vadd.f32 0.0, %v1987
      %v1989 = vpop.f32.mrb[0].mxu0
      %1990 = vmatprep.mubr.bf16.mxu0 0
      %1991 = vmatmul.mubr.bf16.gmra.mrb[0].mxu0 %v1803
      %v1992 = vpop.f32.mrb[0].mxu0
      %v1993 = vadd.f32 0.0, %v1992
      %v1994 = vpop.f32.mrb[0].mxu0
      %v1995 = vpop.f32.mrb[0].mxu0
      %v1996 = vadd.f32 0.0, %v1995
      %v1997 = vpop.f32.mrb[0].mxu0
      %1998 = vmatprep.mubr.bf16.mxu0 0
      %1999 = vmatmul.mubr.bf16.gmra.mrb[0].mxu0 %v1806
      %v2000 = vpop.f32.mrb[0].mxu0
      %v2001 = vadd.f32 0.0, %v2000
      %v2002 = vpop.f32.mrb[0].mxu0
      %v2003 = vpop.f32.mrb[0].mxu0
      %v2004 = vadd.f32 0.0, %v2003
      %v2005 = vpop.f32.mrb[0].mxu0
      %2006 = vmatprep.mubr.bf16.mxu0 0
      %2007 = vmatmul.mubr.bf16.gmra.mrb[0].mxu0 %v1809
      %v2008 = vpop.f32.mrb[0].mxu0
      %v2009 = vadd.f32 0.0, %v2008
      %v2010 = vpop.f32.mrb[0].mxu0
      %v2011 = vpop.f32.mrb[0].mxu0
      %v2012 = vadd.f32 0.0, %v2011
      %v2013 = vpop.f32.mrb[0].mxu0
      %2014 = vmatprep.mubr.bf16.mxu0 0
      %2015 = vmatmul.mubr.bf16.gmra.mrb[0].mxu0 %v1812
      %v2016 = vpop.f32.mrb[0].mxu0
      %v2017 = vadd.f32 0.0, %v2016
      %v2018 = vpop.f32.mrb[0].mxu0
      %v2019 = vpop.f32.mrb[0].mxu0
      %v2020 = vadd.f32 0.0, %v2019
      %v2021 = vpop.f32.mrb[0].mxu0
      %2022 = vmatprep.mubr.bf16.mxu0 0
      %2023 = vmatmul.mubr.bf16.gmra.mrb[0].mxu0 %v1815
      %v2024 = vpop.f32.mrb[0].mxu0
      %v2025 = vadd.f32 0.0, %v2024
      %v2026 = vpop.f32.mrb[0].mxu0
      %v2027 = vpop.f32.mrb[0].mxu0
      %v2028 = vadd.f32 0.0, %v2027
      %v2029 = vpop.f32.mrb[0].mxu0
      %2030 = vmatprep.mubr.bf16.mxu0 0
      %2031 = vmatmul.mubr.bf16.gmra.mrb[0].mxu0 %v1818
      %v2032 = vpop.f32.mrb[0].mxu0
      %v2033 = vadd.f32 0.0, %v2032
      %v2034 = vpop.f32.mrb[0].mxu0
      %v2035 = vpop.f32.mrb[0].mxu0
      %v2036 = vadd.f32 0.0, %v2035
      %v2037 = vpop.f32.mrb[0].mxu0
      %2038 = vmatprep.mubr.bf16.mxu0 0
      %2039 = vmatmul.mubr.bf16.gmra.mrb[0].mxu0 %v1821
      %v2040 = vpop.f32.mrb[0].mxu0
      %v2041 = vadd.f32 0.0, %v2040
      %v2042 = vpop.f32.mrb[0].mxu0
      %v2043 = vpop.f32.mrb[0].mxu0
      %v2044 = vadd.f32 0.0, %v2043
      %v2045 = vpop.f32.mrb[0].mxu0
      %2046 = vdwg.mxu0
      %v2047 = vadd.f32 %v1692, %v1921
      %v2048 = vadd.f32 %v1693, %v1924
      %v2049 = vadd.f32 %v1694, %v1929
      %v2050 = vadd.f32 %v1695, %v1932
      %v2051 = vadd.f32 %v1696, %v1937
      %v2052 = vadd.f32 %v1697, %v1940
      %v2053 = vadd.f32 %v1698, %v1945
      %v2054 = vadd.f32 %v1699, %v1948
      %v2055 = vadd.f32 %v1700, %v1953
      %v2056 = vadd.f32 %v1701, %v1956
      %v2057 = vadd.f32 %v1702, %v1961
      %v2058 = vadd.f32 %v1703, %v1964
      %v2059 = vadd.f32 %v1704, %v1969
      %v2060 = vadd.f32 %v1705, %v1972
      %v2061 = vadd.f32 %v1706, %v1977
      %v2062 = vadd.f32 %v1707, %v1980
      %v2063 = vadd.f32 %v1708, %v1985
      %v2064 = vadd.f32 %v1709, %v1988
      %v2065 = vadd.f32 %v1710, %v1993
      %v2066 = vadd.f32 %v1711, %v1996
      %v2067 = vadd.f32 %v1712, %v2001
      %v2068 = vadd.f32 %v1713, %v2004
      %v2069 = vadd.f32 %v1714, %v2009
      %v2070 = vadd.f32 %v1715, %v2012
      %v2071 = vadd.f32 %v1716, %v2017
      %v2072 = vadd.f32 %v1717, %v2020
      %v2073 = vadd.f32 %v1718, %v2025
      %v2074 = vadd.f32 %v1719, %v2028
      %v2075 = vadd.f32 %v1720, %v2033
      %v2076 = vadd.f32 %v1721, %v2036
      %v2077 = vadd.f32 %v1722, %v2041
      %v2078 = vadd.f32 %v1723, %v2044
      %s2079 = scalar_lea.vmem %s4, 256
      %v2080 = vld [vmem:[%s2079] sm:$0xf]
      %v2081 = vld [vmem:[%s2079 + $0x4] sm:$0xf]
      %v2082 = vld [vmem:[%s2079 + $0x8] sm:$0xf]
      %v2083 = vld [vmem:[%s2079 + $0xc] sm:$0xf]
      %v2084 = vld [vmem:[%s2079 + $0x10] sm:$0xf]
      %v2085 = vld [vmem:[%s2079 + $0x14] sm:$0xf]
      %v2086 = vld [vmem:[%s2079 + $0x18] sm:$0xf]
      %v2087 = vld [vmem:[%s2079 + $0x1c] sm:$0xf]
      %v2088 = vld [vmem:[%s2079 + $0x20] sm:$0xf]
      %v2089 = vld [vmem:[%s2079 + $0x24] sm:$0xf]
      %v2090 = vld [vmem:[%s2079 + $0x28] sm:$0xf]
      %v2091 = vld [vmem:[%s2079 + $0x2c] sm:$0xf]
      %v2092 = vld [vmem:[%s2079 + $0x30] sm:$0xf]
      %v2093 = vld [vmem:[%s2079 + $0x34] sm:$0xf]
      %v2094 = vld [vmem:[%s2079 + $0x38] sm:$0xf]
      %v2095 = vld [vmem:[%s2079 + $0x3c] sm:$0xf]
      %v2098 = vrot.slane %v686, 4
      %v2099 = vrot.slane %v687, 4
      %v2100 = vsel %vm1773, %v2098, %v2099
      %v2118 = vunpack.c.l.b16 %v2080
      %v2119 = vunpack.c.l.b16 %v2081
      %v2120 = vunpack.c.l.b16 %v2082
      %v2121 = vunpack.c.l.b16 %v2083
      %v2122 = vunpack.c.l.b16 %v2084
      %v2123 = vunpack.c.l.b16 %v2085
      %v2124 = vunpack.c.l.b16 %v2086
      %v2125 = vunpack.c.l.b16 %v2087
      %v2126 = vunpack.c.l.b16 %v2088
      %v2127 = vunpack.c.l.b16 %v2089
      %v2128 = vunpack.c.l.b16 %v2090
      %v2129 = vunpack.c.l.b16 %v2091
      %v2130 = vunpack.c.l.b16 %v2092
      %v2131 = vunpack.c.l.b16 %v2093
      %v2132 = vunpack.c.l.b16 %v2094
      %v2133 = vunpack.c.l.b16 %v2095
      %v2134 = vpack.c.b16 %v2119, %v2118
      %v2135 = vpack.c.b16 %v2121, %v2120
      %v2136 = vpack.c.b16 %v2123, %v2122
      %v2137 = vpack.c.b16 %v2125, %v2124
      %v2138 = vpack.c.b16 %v2127, %v2126
      %v2139 = vpack.c.b16 %v2129, %v2128
      %v2140 = vpack.c.b16 %v2131, %v2130
      %v2141 = vpack.c.b16 %v2133, %v2132
      %2150 = vmatprep.subr.bf16.mxu0 0
      %2151 = vmatpush1.bf16.msra.mxu0 %v2134
      %2152 = vmatprep.subr.bf16.mxu0 0
      %2153 = vmatpush1.bf16.msra.mxu0 %v2135
      %2154 = vmatprep.subr.bf16.mxu0 0
      %2155 = vmatpush1.bf16.msra.mxu0 %v2136
      %2156 = vmatprep.subr.bf16.mxu0 0
      %2157 = vmatpush1.bf16.msra.mxu0 %v2137
      %2158 = vmatprep.subr.bf16.mxu0 0
      %2159 = vmatpush1.bf16.msra.mxu0 %v2138
      %2160 = vmatprep.subr.bf16.mxu0 0
      %2161 = vmatpush1.bf16.msra.mxu0 %v2139
      %2162 = vmatprep.subr.bf16.mxu0 0
      %2163 = vmatpush1.bf16.msra.mxu0 %v2140
      %2164 = vmatprep.subr.bf16.mxu0 0
      %2165 = vmatpush1.bf16.msra.mxu0 %v2141
      %2166 = vmatprep.subr.bf16.mxu0 0
      %2167 = vmatpush1.bf16.msra.mxu0 0
      %2168 = vmatprep.subr.bf16.mxu0 0
      %2169 = vmatpush1.bf16.msra.mxu0 0
      %2170 = vmatprep.subr.bf16.mxu0 0
      %2171 = vmatpush1.bf16.msra.mxu0 0
      %2172 = vmatprep.subr.bf16.mxu0 0
      %2173 = vmatpush1.bf16.msra.mxu0 0
      %2174 = vmatprep.subr.bf16.mxu0 0
      %2175 = vmatpush1.bf16.msra.mxu0 0
      %2176 = vmatprep.subr.bf16.mxu0 0
      %2177 = vmatpush1.bf16.msra.mxu0 0
      %2178 = vmatprep.subr.bf16.mxu0 0
      %2179 = vmatpush1.bf16.msra.mxu0 0
      %2180 = vmatprep.subr.bf16.mxu0 0
      %2181 = vmatpush1.bf16.msra.mxu0 0
      %2182 = vmatprep.mubr.bf16.mxu0 0
      %2183 = vmatmul.mubr.bf16.gmra.mrb[0].mxu0 %v1779
      %v2184 = vpop.f32.mrb[0].mxu0
      %v2185 = vadd.f32 0.0, %v2184
      %v2186 = vpop.f32.mrb[0].mxu0
      %v2187 = vpop.f32.mrb[0].mxu0
      %v2188 = vadd.f32 0.0, %v2187
      %v2189 = vpop.f32.mrb[0].mxu0
      %2190 = vmatprep.mubr.bf16.mxu0 0
      %2191 = vmatmul.mubr.bf16.gmra.mrb[0].mxu0 %v1782
      %v2192 = vpop.f32.mrb[0].mxu0
      %v2193 = vadd.f32 0.0, %v2192
      %v2194 = vpop.f32.mrb[0].mxu0
      %v2195 = vpop.f32.mrb[0].mxu0
      %v2196 = vadd.f32 0.0, %v2195
      %v2197 = vpop.f32.mrb[0].mxu0
      %2198 = vmatprep.mubr.bf16.mxu0 0
      %2199 = vmatmul.mubr.bf16.gmra.mrb[0].mxu0 %v1785
      %v2200 = vpop.f32.mrb[0].mxu0
      %v2201 = vadd.f32 0.0, %v2200
      %v2202 = vpop.f32.mrb[0].mxu0
      %v2203 = vpop.f32.mrb[0].mxu0
      %v2204 = vadd.f32 0.0, %v2203
      %v2205 = vpop.f32.mrb[0].mxu0
      %2206 = vmatprep.mubr.bf16.mxu0 0
      %2207 = vmatmul.mubr.bf16.gmra.mrb[0].mxu0 %v1788
      %v2208 = vpop.f32.mrb[0].mxu0
      %v2209 = vadd.f32 0.0, %v2208
      %v2210 = vpop.f32.mrb[0].mxu0
      %v2211 = vpop.f32.mrb[0].mxu0
      %v2212 = vadd.f32 0.0, %v2211
      %v2213 = vpop.f32.mrb[0].mxu0
      %2214 = vmatprep.mubr.bf16.mxu0 0
      %2215 = vmatmul.mubr.bf16.gmra.mrb[0].mxu0 %v1791
      %v2216 = vpop.f32.mrb[0].mxu0
      %v2217 = vadd.f32 0.0, %v2216
      %v2218 = vpop.f32.mrb[0].mxu0
      %v2219 = vpop.f32.mrb[0].mxu0
      %v2220 = vadd.f32 0.0, %v2219
      %v2221 = vpop.f32.mrb[0].mxu0
      %2222 = vmatprep.mubr.bf16.mxu0 0
      %2223 = vmatmul.mubr.bf16.gmra.mrb[0].mxu0 %v1794
      %v2224 = vpop.f32.mrb[0].mxu0
      %v2225 = vadd.f32 0.0, %v2224
      %v2226 = vpop.f32.mrb[0].mxu0
      %v2227 = vpop.f32.mrb[0].mxu0
      %v2228 = vadd.f32 0.0, %v2227
      %v2229 = vpop.f32.mrb[0].mxu0
      %2230 = vmatprep.mubr.bf16.mxu0 0
      %2231 = vmatmul.mubr.bf16.gmra.mrb[0].mxu0 %v1797
      %v2232 = vpop.f32.mrb[0].mxu0
      %v2233 = vadd.f32 0.0, %v2232
      %v2234 = vpop.f32.mrb[0].mxu0
      %v2235 = vpop.f32.mrb[0].mxu0
      %v2236 = vadd.f32 0.0, %v2235
      %v2237 = vpop.f32.mrb[0].mxu0
      %2238 = vmatprep.mubr.bf16.mxu0 0
      %2239 = vmatmul.mubr.bf16.gmra.mrb[0].mxu0 %v1800
      %v2240 = vpop.f32.mrb[0].mxu0
      %v2241 = vadd.f32 0.0, %v2240
      %v2242 = vpop.f32.mrb[0].mxu0
      %v2243 = vpop.f32.mrb[0].mxu0
      %v2244 = vadd.f32 0.0, %v2243
      %v2245 = vpop.f32.mrb[0].mxu0
      %2246 = vmatprep.mubr.bf16.mxu0 0
      %2247 = vmatmul.mubr.bf16.gmra.mrb[0].mxu0 %v1803
      %v2248 = vpop.f32.mrb[0].mxu0
      %v2249 = vadd.f32 0.0, %v2248
      %v2250 = vpop.f32.mrb[0].mxu0
      %v2251 = vpop.f32.mrb[0].mxu0
      %v2252 = vadd.f32 0.0, %v2251
      %v2253 = vpop.f32.mrb[0].mxu0
      %2254 = vmatprep.mubr.bf16.mxu0 0
      %2255 = vmatmul.mubr.bf16.gmra.mrb[0].mxu0 %v1806
      %v2256 = vpop.f32.mrb[0].mxu0
      %v2257 = vadd.f32 0.0, %v2256
      %v2258 = vpop.f32.mrb[0].mxu0
      %v2259 = vpop.f32.mrb[0].mxu0
      %v2260 = vadd.f32 0.0, %v2259
      %v2261 = vpop.f32.mrb[0].mxu0
      %2262 = vmatprep.mubr.bf16.mxu0 0
      %2263 = vmatmul.mubr.bf16.gmra.mrb[0].mxu0 %v1809
      %v2264 = vpop.f32.mrb[0].mxu0
      %v2265 = vadd.f32 0.0, %v2264
      %v2266 = vpop.f32.mrb[0].mxu0
      %v2267 = vpop.f32.mrb[0].mxu0
      %v2268 = vadd.f32 0.0, %v2267
      %v2269 = vpop.f32.mrb[0].mxu0
      %2270 = vmatprep.mubr.bf16.mxu0 0
      %2271 = vmatmul.mubr.bf16.gmra.mrb[0].mxu0 %v1812
      %v2272 = vpop.f32.mrb[0].mxu0
      %v2273 = vadd.f32 0.0, %v2272
      %v2274 = vpop.f32.mrb[0].mxu0
      %v2275 = vpop.f32.mrb[0].mxu0
      %v2276 = vadd.f32 0.0, %v2275
      %v2277 = vpop.f32.mrb[0].mxu0
      %2278 = vmatprep.mubr.bf16.mxu0 0
      %2279 = vmatmul.mubr.bf16.gmra.mrb[0].mxu0 %v1815
      %v2280 = vpop.f32.mrb[0].mxu0
      %v2281 = vadd.f32 0.0, %v2280
      %v2282 = vpop.f32.mrb[0].mxu0
      %v2283 = vpop.f32.mrb[0].mxu0
      %v2284 = vadd.f32 0.0, %v2283
      %v2285 = vpop.f32.mrb[0].mxu0
      %2286 = vmatprep.mubr.bf16.mxu0 0
      %2287 = vmatmul.mubr.bf16.gmra.mrb[0].mxu0 %v1818
      %v2288 = vpop.f32.mrb[0].mxu0
      %v2289 = vadd.f32 0.0, %v2288
      %v2290 = vpop.f32.mrb[0].mxu0
      %v2291 = vpop.f32.mrb[0].mxu0
      %v2292 = vadd.f32 0.0, %v2291
      %v2293 = vpop.f32.mrb[0].mxu0
      %2294 = vmatprep.mubr.bf16.mxu0 0
      %2295 = vmatmul.mubr.bf16.gmra.mrb[0].mxu0 %v1821
      %v2296 = vpop.f32.mrb[0].mxu0
      %v2297 = vadd.f32 0.0, %v2296
      %v2298 = vpop.f32.mrb[0].mxu0
      %v2299 = vpop.f32.mrb[0].mxu0
      %v2300 = vadd.f32 0.0, %v2299
      %v2301 = vpop.f32.mrb[0].mxu0
      %2302 = vmatprep.mubr.bf16.mxu0 0
      %2303 = vmatmul.mubr.bf16.gmra.mrb[0].mxu0 %v2100
      %v2304 = vpop.f32.mrb[0].mxu0
      %v2305 = vadd.f32 0.0, %v2304
      %v2306 = vpop.f32.mrb[0].mxu0
      %v2307 = vpop.f32.mrb[0].mxu0
      %v2308 = vadd.f32 0.0, %v2307
      %v2309 = vpop.f32.mrb[0].mxu0
      %2310 = vdwg.mxu0
      %v2311 = vadd.f32 %v2047, %v2185
      %v2312 = vadd.f32 %v2048, %v2188
      %v2313 = vadd.f32 %v2049, %v2193
      %v2314 = vadd.f32 %v2050, %v2196
      %v2315 = vadd.f32 %v2051, %v2201
      %v2316 = vadd.f32 %v2052, %v2204
      %v2317 = vadd.f32 %v2053, %v2209
      %v2318 = vadd.f32 %v2054, %v2212
      %v2319 = vadd.f32 %v2055, %v2217
      %v2320 = vadd.f32 %v2056, %v2220
      %v2321 = vadd.f32 %v2057, %v2225
      %v2322 = vadd.f32 %v2058, %v2228
      %v2323 = vadd.f32 %v2059, %v2233
      %v2324 = vadd.f32 %v2060, %v2236
      %v2325 = vadd.f32 %v2061, %v2241
      %v2326 = vadd.f32 %v2062, %v2244
      %v2327 = vadd.f32 %v2063, %v2249
      %v2328 = vadd.f32 %v2064, %v2252
      %v2329 = vadd.f32 %v2065, %v2257
      %v2330 = vadd.f32 %v2066, %v2260
      %v2331 = vadd.f32 %v2067, %v2265
      %v2332 = vadd.f32 %v2068, %v2268
      %v2333 = vadd.f32 %v2069, %v2273
      %v2334 = vadd.f32 %v2070, %v2276
      %v2335 = vadd.f32 %v2071, %v2281
      %v2336 = vadd.f32 %v2072, %v2284
      %v2337 = vadd.f32 %v2073, %v2289
      %v2338 = vadd.f32 %v2074, %v2292
      %v2339 = vadd.f32 %v2075, %v2297
      %v2340 = vadd.f32 %v2076, %v2300
      %v2341 = vadd.f32 %v2077, %v2305
      %v2342 = vadd.f32 %v2078, %v2308
      %s2343 = scalar_lea.vmem %s4, 448
      %v2344 = vld [vmem:[%s2343] sm:$0xf]
      %v2345 = vld [vmem:[%s2343 + $0x4] sm:$0xf]
      %v2346 = vld [vmem:[%s2343 + $0x8] sm:$0xf]
      %v2347 = vld [vmem:[%s2343 + $0xc] sm:$0xf]
      %v2348 = vld [vmem:[%s2343 + $0x10] sm:$0xf]
      %v2349 = vld [vmem:[%s2343 + $0x14] sm:$0xf]
      %v2350 = vld [vmem:[%s2343 + $0x18] sm:$0xf]
      %v2351 = vld [vmem:[%s2343 + $0x1c] sm:$0xf]
      %v2352 = vld [vmem:[%s2343 + $0x20] sm:$0xf]
      %v2353 = vld [vmem:[%s2343 + $0x24] sm:$0xf]
      %v2354 = vld [vmem:[%s2343 + $0x28] sm:$0xf]
      %v2355 = vld [vmem:[%s2343 + $0x2c] sm:$0xf]
      %v2356 = vld [vmem:[%s2343 + $0x30] sm:$0xf]
      %v2357 = vld [vmem:[%s2343 + $0x34] sm:$0xf]
      %v2358 = vld [vmem:[%s2343 + $0x38] sm:$0xf]
      %v2359 = vld [vmem:[%s2343 + $0x3c] sm:$0xf]
      %v2362 = vrot.slane %v688, 4
      %v2363 = vrot.slane %v689, 4
      %v2364 = vsel %vm1773, %v2362, %v2363
      %v2382 = vunpack.c.l.b16 %v2344
      %v2383 = vunpack.c.l.b16 %v2345
      %v2384 = vunpack.c.l.b16 %v2346
      %v2385 = vunpack.c.l.b16 %v2347
      %v2386 = vunpack.c.l.b16 %v2348
      %v2387 = vunpack.c.l.b16 %v2349
      %v2388 = vunpack.c.l.b16 %v2350
      %v2389 = vunpack.c.l.b16 %v2351
      %v2390 = vunpack.c.l.b16 %v2352
      %v2391 = vunpack.c.l.b16 %v2353
      %v2392 = vunpack.c.l.b16 %v2354
      %v2393 = vunpack.c.l.b16 %v2355
      %v2394 = vunpack.c.l.b16 %v2356
      %v2395 = vunpack.c.l.b16 %v2357
      %v2396 = vunpack.c.l.b16 %v2358
      %v2397 = vunpack.c.l.b16 %v2359
      %v2398 = vpack.c.b16 %v2383, %v2382
      %v2399 = vpack.c.b16 %v2385, %v2384
      %v2400 = vpack.c.b16 %v2387, %v2386
      %v2401 = vpack.c.b16 %v2389, %v2388
      %v2402 = vpack.c.b16 %v2391, %v2390
      %v2403 = vpack.c.b16 %v2393, %v2392
      %v2404 = vpack.c.b16 %v2395, %v2394
      %v2405 = vpack.c.b16 %v2397, %v2396
      %2414 = vmatprep.subr.bf16.mxu0 0
      %2415 = vmatpush1.bf16.msra.mxu0 %v2398
      %2416 = vmatprep.subr.bf16.mxu0 0
      %2417 = vmatpush1.bf16.msra.mxu0 %v2399
      %2418 = vmatprep.subr.bf16.mxu0 0
      %2419 = vmatpush1.bf16.msra.mxu0 %v2400
      %2420 = vmatprep.subr.bf16.mxu0 0
      %2421 = vmatpush1.bf16.msra.mxu0 %v2401
      %2422 = vmatprep.subr.bf16.mxu0 0
      %2423 = vmatpush1.bf16.msra.mxu0 %v2402
      %2424 = vmatprep.subr.bf16.mxu0 0
      %2425 = vmatpush1.bf16.msra.mxu0 %v2403
      %2426 = vmatprep.subr.bf16.mxu0 0
      %2427 = vmatpush1.bf16.msra.mxu0 %v2404
      %2428 = vmatprep.subr.bf16.mxu0 0
      %2429 = vmatpush1.bf16.msra.mxu0 %v2405
      %2430 = vmatprep.subr.bf16.mxu0 0
      %2431 = vmatpush1.bf16.msra.mxu0 0
      %2432 = vmatprep.subr.bf16.mxu0 0
      %2433 = vmatpush1.bf16.msra.mxu0 0
      %2434 = vmatprep.subr.bf16.mxu0 0
      %2435 = vmatpush1.bf16.msra.mxu0 0
      %2436 = vmatprep.subr.bf16.mxu0 0
      %2437 = vmatpush1.bf16.msra.mxu0 0
      %2438 = vmatprep.subr.bf16.mxu0 0
      %2439 = vmatpush1.bf16.msra.mxu0 0
      %2440 = vmatprep.subr.bf16.mxu0 0
      %2441 = vmatpush1.bf16.msra.mxu0 0
      %2442 = vmatprep.subr.bf16.mxu0 0
      %2443 = vmatpush1.bf16.msra.mxu0 0
      %2444 = vmatprep.subr.bf16.mxu0 0
      %2445 = vmatpush1.bf16.msra.mxu0 0
      %2446 = vmatprep.mubr.bf16.mxu0 0
      %2447 = vmatmul.mubr.bf16.gmra.mrb[0].mxu0 %v1782
      %v2448 = vpop.f32.mrb[0].mxu0
      %v2449 = vadd.f32 0.0, %v2448
      %v2450 = vpop.f32.mrb[0].mxu0
      %v2451 = vpop.f32.mrb[0].mxu0
      %v2452 = vadd.f32 0.0, %v2451
      %v2453 = vpop.f32.mrb[0].mxu0
      %2454 = vmatprep.mubr.bf16.mxu0 0
      %2455 = vmatmul.mubr.bf16.gmra.mrb[0].mxu0 %v1785
      %v2456 = vpop.f32.mrb[0].mxu0
      %v2457 = vadd.f32 0.0, %v2456
      %v2458 = vpop.f32.mrb[0].mxu0
      %v2459 = vpop.f32.mrb[0].mxu0
      %v2460 = vadd.f32 0.0, %v2459
      %v2461 = vpop.f32.mrb[0].mxu0
      %2462 = vmatprep.mubr.bf16.mxu0 0
      %2463 = vmatmul.mubr.bf16.gmra.mrb[0].mxu0 %v1788
      %v2464 = vpop.f32.mrb[0].mxu0
      %v2465 = vadd.f32 0.0, %v2464
      %v2466 = vpop.f32.mrb[0].mxu0
      %v2467 = vpop.f32.mrb[0].mxu0
      %v2468 = vadd.f32 0.0, %v2467
      %v2469 = vpop.f32.mrb[0].mxu0
      %2470 = vmatprep.mubr.bf16.mxu0 0
      %2471 = vmatmul.mubr.bf16.gmra.mrb[0].mxu0 %v1791
      %v2472 = vpop.f32.mrb[0].mxu0
      %v2473 = vadd.f32 0.0, %v2472
      %v2474 = vpop.f32.mrb[0].mxu0
      %v2475 = vpop.f32.mrb[0].mxu0
      %v2476 = vadd.f32 0.0, %v2475
      %v2477 = vpop.f32.mrb[0].mxu0
      %2478 = vmatprep.mubr.bf16.mxu0 0
      %2479 = vmatmul.mubr.bf16.gmra.mrb[0].mxu0 %v1794
      %v2480 = vpop.f32.mrb[0].mxu0
      %v2481 = vadd.f32 0.0, %v2480
      %v2482 = vpop.f32.mrb[0].mxu0
      %v2483 = vpop.f32.mrb[0].mxu0
      %v2484 = vadd.f32 0.0, %v2483
      %v2485 = vpop.f32.mrb[0].mxu0
      %2486 = vmatprep.mubr.bf16.mxu0 0
      %2487 = vmatmul.mubr.bf16.gmra.mrb[0].mxu0 %v1797
      %v2488 = vpop.f32.mrb[0].mxu0
      %v2489 = vadd.f32 0.0, %v2488
      %v2490 = vpop.f32.mrb[0].mxu0
      %v2491 = vpop.f32.mrb[0].mxu0
      %v2492 = vadd.f32 0.0, %v2491
      %v2493 = vpop.f32.mrb[0].mxu0
      %2494 = vmatprep.mubr.bf16.mxu0 0
      %2495 = vmatmul.mubr.bf16.gmra.mrb[0].mxu0 %v1800
      %v2496 = vpop.f32.mrb[0].mxu0
      %v2497 = vadd.f32 0.0, %v2496
      %v2498 = vpop.f32.mrb[0].mxu0
      %v2499 = vpop.f32.mrb[0].mxu0
      %v2500 = vadd.f32 0.0, %v2499
      %v2501 = vpop.f32.mrb[0].mxu0
      %2502 = vmatprep.mubr.bf16.mxu0 0
      %2503 = vmatmul.mubr.bf16.gmra.mrb[0].mxu0 %v1803
      %v2504 = vpop.f32.mrb[0].mxu0
      %v2505 = vadd.f32 0.0, %v2504
      %v2506 = vpop.f32.mrb[0].mxu0
      %v2507 = vpop.f32.mrb[0].mxu0
      %v2508 = vadd.f32 0.0, %v2507
      %v2509 = vpop.f32.mrb[0].mxu0
      %2510 = vmatprep.mubr.bf16.mxu0 0
      %2511 = vmatmul.mubr.bf16.gmra.mrb[0].mxu0 %v1806
      %v2512 = vpop.f32.mrb[0].mxu0
      %v2513 = vadd.f32 0.0, %v2512
      %v2514 = vpop.f32.mrb[0].mxu0
      %v2515 = vpop.f32.mrb[0].mxu0
      %v2516 = vadd.f32 0.0, %v2515
      %v2517 = vpop.f32.mrb[0].mxu0
      %2518 = vmatprep.mubr.bf16.mxu0 0
      %2519 = vmatmul.mubr.bf16.gmra.mrb[0].mxu0 %v1809
      %v2520 = vpop.f32.mrb[0].mxu0
      %v2521 = vadd.f32 0.0, %v2520
      %v2522 = vpop.f32.mrb[0].mxu0
      %v2523 = vpop.f32.mrb[0].mxu0
      %v2524 = vadd.f32 0.0, %v2523
      %v2525 = vpop.f32.mrb[0].mxu0
      %2526 = vmatprep.mubr.bf16.mxu0 0
      %2527 = vmatmul.mubr.bf16.gmra.mrb[0].mxu0 %v1812
      %v2528 = vpop.f32.mrb[0].mxu0
      %v2529 = vadd.f32 0.0, %v2528
      %v2530 = vpop.f32.mrb[0].mxu0
      %v2531 = vpop.f32.mrb[0].mxu0
      %v2532 = vadd.f32 0.0, %v2531
      %v2533 = vpop.f32.mrb[0].mxu0
      %2534 = vmatprep.mubr.bf16.mxu0 0
      %2535 = vmatmul.mubr.bf16.gmra.mrb[0].mxu0 %v1815
      %v2536 = vpop.f32.mrb[0].mxu0
      %v2537 = vadd.f32 0.0, %v2536
      %v2538 = vpop.f32.mrb[0].mxu0
      %v2539 = vpop.f32.mrb[0].mxu0
      %v2540 = vadd.f32 0.0, %v2539
      %v2541 = vpop.f32.mrb[0].mxu0
      %2542 = vmatprep.mubr.bf16.mxu0 0
      %2543 = vmatmul.mubr.bf16.gmra.mrb[0].mxu0 %v1818
      %v2544 = vpop.f32.mrb[0].mxu0
      %v2545 = vadd.f32 0.0, %v2544
      %v2546 = vpop.f32.mrb[0].mxu0
      %v2547 = vpop.f32.mrb[0].mxu0
      %v2548 = vadd.f32 0.0, %v2547
      %v2549 = vpop.f32.mrb[0].mxu0
      %2550 = vmatprep.mubr.bf16.mxu0 0
      %2551 = vmatmul.mubr.bf16.gmra.mrb[0].mxu0 %v1821
      %v2552 = vpop.f32.mrb[0].mxu0
      %v2553 = vadd.f32 0.0, %v2552
      %v2554 = vpop.f32.mrb[0].mxu0
      %v2555 = vpop.f32.mrb[0].mxu0
      %v2556 = vadd.f32 0.0, %v2555
      %v2557 = vpop.f32.mrb[0].mxu0
      %2558 = vmatprep.mubr.bf16.mxu0 0
      %2559 = vmatmul.mubr.bf16.gmra.mrb[0].mxu0 %v2100
      %v2560 = vpop.f32.mrb[0].mxu0
      %v2561 = vadd.f32 0.0, %v2560
      %v2562 = vpop.f32.mrb[0].mxu0
      %v2563 = vpop.f32.mrb[0].mxu0
      %v2564 = vadd.f32 0.0, %v2563
      %v2565 = vpop.f32.mrb[0].mxu0
      %2566 = vmatprep.mubr.bf16.mxu0 0
      %2567 = vmatmul.mubr.bf16.gmra.mrb[0].mxu0 %v2364
      %v2568 = vpop.f32.mrb[0].mxu0
      %v2569 = vadd.f32 0.0, %v2568
      %v2570 = vpop.f32.mrb[0].mxu0
      %v2571 = vpop.f32.mrb[0].mxu0
      %v2572 = vadd.f32 0.0, %v2571
      %v2573 = vpop.f32.mrb[0].mxu0
      %2574 = vdwg.mxu0
      %v2575 = vadd.f32 %v2311, %v2449
      %v2576 = vadd.f32 %v2312, %v2452
      %v2577 = vadd.f32 %v2313, %v2457
      %v2578 = vadd.f32 %v2314, %v2460
      %v2579 = vadd.f32 %v2315, %v2465
      %v2580 = vadd.f32 %v2316, %v2468
      %v2581 = vadd.f32 %v2317, %v2473
      %v2582 = vadd.f32 %v2318, %v2476
      %v2583 = vadd.f32 %v2319, %v2481
      %v2584 = vadd.f32 %v2320, %v2484
      %v2585 = vadd.f32 %v2321, %v2489
      %v2586 = vadd.f32 %v2322, %v2492
      %v2587 = vadd.f32 %v2323, %v2497
      %v2588 = vadd.f32 %v2324, %v2500
      %v2589 = vadd.f32 %v2325, %v2505
      %v2590 = vadd.f32 %v2326, %v2508
      %v2591 = vadd.f32 %v2327, %v2513
      %v2592 = vadd.f32 %v2328, %v2516
      %v2593 = vadd.f32 %v2329, %v2521
      %v2594 = vadd.f32 %v2330, %v2524
      %v2595 = vadd.f32 %v2331, %v2529
      %v2596 = vadd.f32 %v2332, %v2532
      %v2597 = vadd.f32 %v2333, %v2537
      %v2598 = vadd.f32 %v2334, %v2540
      %v2599 = vadd.f32 %v2335, %v2545
      %v2600 = vadd.f32 %v2336, %v2548
      %v2601 = vadd.f32 %v2337, %v2553
      %v2602 = vadd.f32 %v2338, %v2556
      %v2603 = vadd.f32 %v2339, %v2561
      %v2604 = vadd.f32 %v2340, %v2564
      %v2605 = vadd.f32 %v2341, %v2569
      %v2606 = vadd.f32 %v2342, %v2572
      %s2607 = scalar_lea.vmem %s4, 128
      %v2608 = vld [vmem:[%s2607] sm:$0xf]
      %v2609 = vld [vmem:[%s2607 + $0x4] sm:$0xf]
      %v2610 = vld [vmem:[%s2607 + $0x8] sm:$0xf]
      %v2611 = vld [vmem:[%s2607 + $0xc] sm:$0xf]
      %v2612 = vld [vmem:[%s2607 + $0x10] sm:$0xf]
      %v2613 = vld [vmem:[%s2607 + $0x14] sm:$0xf]
      %v2614 = vld [vmem:[%s2607 + $0x18] sm:$0xf]
      %v2615 = vld [vmem:[%s2607 + $0x1c] sm:$0xf]
      %v2616 = vld [vmem:[%s2607 + $0x20] sm:$0xf]
      %v2617 = vld [vmem:[%s2607 + $0x24] sm:$0xf]
      %v2618 = vld [vmem:[%s2607 + $0x28] sm:$0xf]
      %v2619 = vld [vmem:[%s2607 + $0x2c] sm:$0xf]
      %v2620 = vld [vmem:[%s2607 + $0x30] sm:$0xf]
      %v2621 = vld [vmem:[%s2607 + $0x34] sm:$0xf]
      %v2622 = vld [vmem:[%s2607 + $0x38] sm:$0xf]
      %v2623 = vld [vmem:[%s2607 + $0x3c] sm:$0xf]
      %vm2624 = vsmask.f32 3328
      %v2625 = vrot.slane %v1222, 4
      %v2626 = vrot.slane %v1225, 5
      %v2627 = vor.u32 %v2625, %v2626
      %v2628 = vrot.slane %v1230, 4
      %v2629 = vrot.slane %v1233, 5
      %v2630 = vor.u32 %v2628, %v2629
      %v2631 = vsel %vm2624, %v2627, %v2630
      %v2632 = vrot.slane %v725, 4
      %v2633 = vrot.slane %v728, 5
      %v2634 = vor.u32 %v2632, %v2633
      %v2635 = vrot.slane %v733, 4
      %v2636 = vrot.slane %v736, 5
      %v2637 = vor.u32 %v2635, %v2636
      %v2638 = vsel %vm2624, %v2634, %v2637
      %v2639 = vrot.slane %v742, 4
      %v2640 = vrot.slane %v745, 5
      %v2641 = vor.u32 %v2639, %v2640
      %v2642 = vrot.slane %v750, 4
      %v2643 = vrot.slane %v753, 5
      %v2644 = vor.u32 %v2642, %v2643
      %v2645 = vsel %vm2624, %v2641, %v2644
      %v2646 = vrot.slane %v759, 4
      %v2647 = vrot.slane %v762, 5
      %v2648 = vor.u32 %v2646, %v2647
      %v2649 = vrot.slane %v767, 4
      %v2650 = vrot.slane %v770, 5
      %v2651 = vor.u32 %v2649, %v2650
      %v2652 = vsel %vm2624, %v2648, %v2651
      %v2653 = vrot.slane %v776, 4
      %v2654 = vrot.slane %v779, 5
      %v2655 = vor.u32 %v2653, %v2654
      %v2656 = vrot.slane %v784, 4
      %v2657 = vrot.slane %v787, 5
      %v2658 = vor.u32 %v2656, %v2657
      %v2659 = vsel %vm2624, %v2655, %v2658
      %v2660 = vrot.slane %v793, 4
      %v2661 = vrot.slane %v796, 5
      %v2662 = vor.u32 %v2660, %v2661
      %v2663 = vrot.slane %v801, 4
      %v2664 = vrot.slane %v804, 5
      %v2665 = vor.u32 %v2663, %v2664
      %v2666 = vsel %vm2624, %v2662, %v2665
      %v2667 = vrot.slane %v810, 4
      %v2668 = vrot.slane %v813, 5
      %v2669 = vor.u32 %v2667, %v2668
      %v2670 = vrot.slane %v818, 4
      %v2671 = vrot.slane %v821, 5
      %v2672 = vor.u32 %v2670, %v2671
      %v2673 = vsel %vm2624, %v2669, %v2672
      %v2674 = vrot.slane %v827, 4
      %v2675 = vrot.slane %v830, 5
      %v2676 = vor.u32 %v2674, %v2675
      %v2677 = vrot.slane %v835, 4
      %v2678 = vrot.slane %v838, 5
      %v2679 = vor.u32 %v2677, %v2678
      %v2680 = vsel %vm2624, %v2676, %v2679
      %v2681 = vrot.slane %v844, 4
      %v2682 = vrot.slane %v847, 5
      %v2683 = vor.u32 %v2681, %v2682
      %v2684 = vrot.slane %v852, 4
      %v2685 = vrot.slane %v855, 5
      %v2686 = vor.u32 %v2684, %v2685
      %v2687 = vsel %vm2624, %v2683, %v2686
      %v2688 = vrot.slane %v861, 4
      %v2689 = vrot.slane %v864, 5
      %v2690 = vor.u32 %v2688, %v2689
      %v2691 = vrot.slane %v869, 4
      %v2692 = vrot.slane %v872, 5
      %v2693 = vor.u32 %v2691, %v2692
      %v2694 = vsel %vm2624, %v2690, %v2693
      %v2695 = vrot.slane %v878, 4
      %v2696 = vrot.slane %v881, 5
      %v2697 = vor.u32 %v2695, %v2696
      %v2698 = vrot.slane %v886, 4
      %v2699 = vrot.slane %v889, 5
      %v2700 = vor.u32 %v2698, %v2699
      %v2701 = vsel %vm2624, %v2697, %v2700
      %v2702 = vrot.slane %v895, 4
      %v2703 = vrot.slane %v898, 5
      %v2704 = vor.u32 %v2702, %v2703
      %v2705 = vrot.slane %v903, 4
      %v2706 = vrot.slane %v906, 5
      %v2707 = vor.u32 %v2705, %v2706
      %v2708 = vsel %vm2624, %v2704, %v2707
      %v2709 = vrot.slane %v912, 4
      %v2710 = vrot.slane %v915, 5
      %v2711 = vor.u32 %v2709, %v2710
      %v2712 = vrot.slane %v920, 4
      %v2713 = vrot.slane %v923, 5
      %v2714 = vor.u32 %v2712, %v2713
      %v2715 = vsel %vm2624, %v2711, %v2714
      %v2716 = vrot.slane %v929, 4
      %v2717 = vrot.slane %v932, 5
      %v2718 = vor.u32 %v2716, %v2717
      %v2719 = vrot.slane %v937, 4
      %v2720 = vrot.slane %v940, 5
      %v2721 = vor.u32 %v2719, %v2720
      %v2722 = vsel %vm2624, %v2718, %v2721
      %v2723 = vrot.slane %v946, 4
      %v2724 = vrot.slane %v949, 5
      %v2725 = vor.u32 %v2723, %v2724
      %v2726 = vrot.slane %v954, 4
      %v2727 = vrot.slane %v957, 5
      %v2728 = vor.u32 %v2726, %v2727
      %v2729 = vsel %vm2624, %v2725, %v2728
      %v2730 = vrot.slane %v963, 4
      %v2731 = vrot.slane %v966, 5
      %v2732 = vor.u32 %v2730, %v2731
      %v2733 = vrot.slane %v971, 4
      %v2734 = vrot.slane %v974, 5
      %v2735 = vor.u32 %v2733, %v2734
      %v2736 = vsel %vm2624, %v2732, %v2735
      %v2769 = vunpack.c.l.b16 %v2608
      %v2770 = vunpack.c.l.b16 %v2609
      %v2771 = vunpack.c.l.b16 %v2610
      %v2772 = vunpack.c.l.b16 %v2611
      %v2773 = vunpack.c.l.b16 %v2612
      %v2774 = vunpack.c.l.b16 %v2613
      %v2775 = vunpack.c.l.b16 %v2614
      %v2776 = vunpack.c.l.b16 %v2615
      %v2777 = vunpack.c.l.b16 %v2616
      %v2778 = vunpack.c.l.b16 %v2617
      %v2779 = vunpack.c.l.b16 %v2618
      %v2780 = vunpack.c.l.b16 %v2619
      %v2781 = vunpack.c.l.b16 %v2620
      %v2782 = vunpack.c.l.b16 %v2621
      %v2783 = vunpack.c.l.b16 %v2622
      %v2784 = vunpack.c.l.b16 %v2623
      %v2785 = vpack.c.b16 %v2770, %v2769
      %v2786 = vpack.c.b16 %v2772, %v2771
      %v2787 = vpack.c.b16 %v2774, %v2773
      %v2788 = vpack.c.b16 %v2776, %v2775
      %v2789 = vpack.c.b16 %v2778, %v2777
      %v2790 = vpack.c.b16 %v2780, %v2779
      %v2791 = vpack.c.b16 %v2782, %v2781
      %v2792 = vpack.c.b16 %v2784, %v2783
      %2801 = vmatprep.subr.bf16.mxu0 0
      %2802 = vmatpush1.bf16.msra.mxu0 %v2785
      %2803 = vmatprep.subr.bf16.mxu0 0
      %2804 = vmatpush1.bf16.msra.mxu0 %v2786
      %2805 = vmatprep.subr.bf16.mxu0 0
      %2806 = vmatpush1.bf16.msra.mxu0 %v2787
      %2807 = vmatprep.subr.bf16.mxu0 0
      %2808 = vmatpush1.bf16.msra.mxu0 %v2788
      %2809 = vmatprep.subr.bf16.mxu0 0
      %2810 = vmatpush1.bf16.msra.mxu0 %v2789
      %2811 = vmatprep.subr.bf16.mxu0 0
      %2812 = vmatpush1.bf16.msra.mxu0 %v2790
      %2813 = vmatprep.subr.bf16.mxu0 0
      %2814 = vmatpush1.bf16.msra.mxu0 %v2791
      %2815 = vmatprep.subr.bf16.mxu0 0
      %2816 = vmatpush1.bf16.msra.mxu0 %v2792
      %2817 = vmatprep.subr.bf16.mxu0 0
      %2818 = vmatpush1.bf16.msra.mxu0 0
      %2819 = vmatprep.subr.bf16.mxu0 0
      %2820 = vmatpush1.bf16.msra.mxu0 0
      %2821 = vmatprep.subr.bf16.mxu0 0
      %2822 = vmatpush1.bf16.msra.mxu0 0
      %2823 = vmatprep.subr.bf16.mxu0 0
      %2824 = vmatpush1.bf16.msra.mxu0 0
      %2825 = vmatprep.subr.bf16.mxu0 0
      %2826 = vmatpush1.bf16.msra.mxu0 0
      %2827 = vmatprep.subr.bf16.mxu0 0
      %2828 = vmatpush1.bf16.msra.mxu0 0
      %2829 = vmatprep.subr.bf16.mxu0 0
      %2830 = vmatpush1.bf16.msra.mxu0 0
      %2831 = vmatprep.subr.bf16.mxu0 0
      %2832 = vmatpush1.bf16.msra.mxu0 0
      %2833 = vmatprep.mubr.bf16.mxu0 0
      %2834 = vmatmul.mubr.bf16.gmra.mrb[0].mxu0 %v2631
      %v2835 = vpop.f32.mrb[0].mxu0
      %v2836 = vadd.f32 0.0, %v2835
      %v2837 = vpop.f32.mrb[0].mxu0
      %v2838 = vpop.f32.mrb[0].mxu0
      %v2839 = vadd.f32 0.0, %v2838
      %v2840 = vpop.f32.mrb[0].mxu0
      %2841 = vmatprep.mubr.bf16.mxu0 0
      %2842 = vmatmul.mubr.bf16.gmra.mrb[0].mxu0 %v2638
      %v2843 = vpop.f32.mrb[0].mxu0
      %v2844 = vadd.f32 0.0, %v2843
      %v2845 = vpop.f32.mrb[0].mxu0
      %v2846 = vpop.f32.mrb[0].mxu0
      %v2847 = vadd.f32 0.0, %v2846
      %v2848 = vpop.f32.mrb[0].mxu0
      %2849 = vmatprep.mubr.bf16.mxu0 0
      %2850 = vmatmul.mubr.bf16.gmra.mrb[0].mxu0 %v2645
      %v2851 = vpop.f32.mrb[0].mxu0
      %v2852 = vadd.f32 0.0, %v2851
      %v2853 = vpop.f32.mrb[0].mxu0
      %v2854 = vpop.f32.mrb[0].mxu0
      %v2855 = vadd.f32 0.0, %v2854
      %v2856 = vpop.f32.mrb[0].mxu0
      %2857 = vmatprep.mubr.bf16.mxu0 0
      %2858 = vmatmul.mubr.bf16.gmra.mrb[0].mxu0 %v2652
      %v2859 = vpop.f32.mrb[0].mxu0
      %v2860 = vadd.f32 0.0, %v2859
      %v2861 = vpop.f32.mrb[0].mxu0
      %v2862 = vpop.f32.mrb[0].mxu0
      %v2863 = vadd.f32 0.0, %v2862
      %v2864 = vpop.f32.mrb[0].mxu0
      %2865 = vmatprep.mubr.bf16.mxu0 0
      %2866 = vmatmul.mubr.bf16.gmra.mrb[0].mxu0 %v2659
      %v2867 = vpop.f32.mrb[0].mxu0
      %v2868 = vadd.f32 0.0, %v2867
      %v2869 = vpop.f32.mrb[0].mxu0
      %v2870 = vpop.f32.mrb[0].mxu0
      %v2871 = vadd.f32 0.0, %v2870
      %v2872 = vpop.f32.mrb[0].mxu0
      %2873 = vmatprep.mubr.bf16.mxu0 0
      %2874 = vmatmul.mubr.bf16.gmra.mrb[0].mxu0 %v2666
      %v2875 = vpop.f32.mrb[0].mxu0
      %v2876 = vadd.f32 0.0, %v2875
      %v2877 = vpop.f32.mrb[0].mxu0
      %v2878 = vpop.f32.mrb[0].mxu0
      %v2879 = vadd.f32 0.0, %v2878
      %v2880 = vpop.f32.mrb[0].mxu0
      %2881 = vmatprep.mubr.bf16.mxu0 0
      %2882 = vmatmul.mubr.bf16.gmra.mrb[0].mxu0 %v2673
      %v2883 = vpop.f32.mrb[0].mxu0
      %v2884 = vadd.f32 0.0, %v2883
      %v2885 = vpop.f32.mrb[0].mxu0
      %v2886 = vpop.f32.mrb[0].mxu0
      %v2887 = vadd.f32 0.0, %v2886
      %v2888 = vpop.f32.mrb[0].mxu0
      %2889 = vmatprep.mubr.bf16.mxu0 0
      %2890 = vmatmul.mubr.bf16.gmra.mrb[0].mxu0 %v2680
      %v2891 = vpop.f32.mrb[0].mxu0
      %v2892 = vadd.f32 0.0, %v2891
      %v2893 = vpop.f32.mrb[0].mxu0
      %v2894 = vpop.f32.mrb[0].mxu0
      %v2895 = vadd.f32 0.0, %v2894
      %v2896 = vpop.f32.mrb[0].mxu0
      %2897 = vmatprep.mubr.bf16.mxu0 0
      %2898 = vmatmul.mubr.bf16.gmra.mrb[0].mxu0 %v2687
      %v2899 = vpop.f32.mrb[0].mxu0
      %v2900 = vadd.f32 0.0, %v2899
      %v2901 = vpop.f32.mrb[0].mxu0
      %v2902 = vpop.f32.mrb[0].mxu0
      %v2903 = vadd.f32 0.0, %v2902
      %v2904 = vpop.f32.mrb[0].mxu0
      %2905 = vmatprep.mubr.bf16.mxu0 0
      %2906 = vmatmul.mubr.bf16.gmra.mrb[0].mxu0 %v2694
      %v2907 = vpop.f32.mrb[0].mxu0
      %v2908 = vadd.f32 0.0, %v2907
      %v2909 = vpop.f32.mrb[0].mxu0
      %v2910 = vpop.f32.mrb[0].mxu0
      %v2911 = vadd.f32 0.0, %v2910
      %v2912 = vpop.f32.mrb[0].mxu0
      %2913 = vmatprep.mubr.bf16.mxu0 0
      %2914 = vmatmul.mubr.bf16.gmra.mrb[0].mxu0 %v2701
      %v2915 = vpop.f32.mrb[0].mxu0
      %v2916 = vadd.f32 0.0, %v2915
      %v2917 = vpop.f32.mrb[0].mxu0
      %v2918 = vpop.f32.mrb[0].mxu0
      %v2919 = vadd.f32 0.0, %v2918
      %v2920 = vpop.f32.mrb[0].mxu0
      %2921 = vmatprep.mubr.bf16.mxu0 0
      %2922 = vmatmul.mubr.bf16.gmra.mrb[0].mxu0 %v2708
      %v2923 = vpop.f32.mrb[0].mxu0
      %v2924 = vadd.f32 0.0, %v2923
      %v2925 = vpop.f32.mrb[0].mxu0
      %v2926 = vpop.f32.mrb[0].mxu0
      %v2927 = vadd.f32 0.0, %v2926
      %v2928 = vpop.f32.mrb[0].mxu0
      %2929 = vmatprep.mubr.bf16.mxu0 0
      %2930 = vmatmul.mubr.bf16.gmra.mrb[0].mxu0 %v2715
      %v2931 = vpop.f32.mrb[0].mxu0
      %v2932 = vadd.f32 0.0, %v2931
      %v2933 = vpop.f32.mrb[0].mxu0
      %v2934 = vpop.f32.mrb[0].mxu0
      %v2935 = vadd.f32 0.0, %v2934
      %v2936 = vpop.f32.mrb[0].mxu0
      %2937 = vmatprep.mubr.bf16.mxu0 0
      %2938 = vmatmul.mubr.bf16.gmra.mrb[0].mxu0 %v2722
      %v2939 = vpop.f32.mrb[0].mxu0
      %v2940 = vadd.f32 0.0, %v2939
      %v2941 = vpop.f32.mrb[0].mxu0
      %v2942 = vpop.f32.mrb[0].mxu0
      %v2943 = vadd.f32 0.0, %v2942
      %v2944 = vpop.f32.mrb[0].mxu0
      %2945 = vmatprep.mubr.bf16.mxu0 0
      %2946 = vmatmul.mubr.bf16.gmra.mrb[0].mxu0 %v2729
      %v2947 = vpop.f32.mrb[0].mxu0
      %v2948 = vadd.f32 0.0, %v2947
      %v2949 = vpop.f32.mrb[0].mxu0
      %v2950 = vpop.f32.mrb[0].mxu0
      %v2951 = vadd.f32 0.0, %v2950
      %v2952 = vpop.f32.mrb[0].mxu0
      %2953 = vmatprep.mubr.bf16.mxu0 0
      %2954 = vmatmul.mubr.bf16.gmra.mrb[0].mxu0 %v2736
      %v2955 = vpop.f32.mrb[0].mxu0
      %v2956 = vadd.f32 0.0, %v2955
      %v2957 = vpop.f32.mrb[0].mxu0
      %v2958 = vpop.f32.mrb[0].mxu0
      %v2959 = vadd.f32 0.0, %v2958
      %v2960 = vpop.f32.mrb[0].mxu0
      %2961 = vdwg.mxu0
      %v2962 = vadd.f32 %v2575, %v2836
      %v2963 = vadd.f32 %v2576, %v2839
      %v2964 = vadd.f32 %v2577, %v2844
      %v2965 = vadd.f32 %v2578, %v2847
      %v2966 = vadd.f32 %v2579, %v2852
      %v2967 = vadd.f32 %v2580, %v2855
      %v2968 = vadd.f32 %v2581, %v2860
      %v2969 = vadd.f32 %v2582, %v2863
      %v2970 = vadd.f32 %v2583, %v2868
      %v2971 = vadd.f32 %v2584, %v2871
      %v2972 = vadd.f32 %v2585, %v2876
      %v2973 = vadd.f32 %v2586, %v2879
      %v2974 = vadd.f32 %v2587, %v2884
      %v2975 = vadd.f32 %v2588, %v2887
      %v2976 = vadd.f32 %v2589, %v2892
      %v2977 = vadd.f32 %v2590, %v2895
      %v2978 = vadd.f32 %v2591, %v2900
      %v2979 = vadd.f32 %v2592, %v2903
      %v2980 = vadd.f32 %v2593, %v2908
      %v2981 = vadd.f32 %v2594, %v2911
      %v2982 = vadd.f32 %v2595, %v2916
      %v2983 = vadd.f32 %v2596, %v2919
      %v2984 = vadd.f32 %v2597, %v2924
      %v2985 = vadd.f32 %v2598, %v2927
      %v2986 = vadd.f32 %v2599, %v2932
      %v2987 = vadd.f32 %v2600, %v2935
      %v2988 = vadd.f32 %v2601, %v2940
      %v2989 = vadd.f32 %v2602, %v2943
      %v2990 = vadd.f32 %v2603, %v2948
      %v2991 = vadd.f32 %v2604, %v2951
      %v2992 = vadd.f32 %v2605, %v2956
      %v2993 = vadd.f32 %v2606, %v2959
      %s2994 = scalar_lea.vmem %s4, 320
      %v2995 = vld [vmem:[%s2994] sm:$0xf]
      %v2996 = vld [vmem:[%s2994 + $0x4] sm:$0xf]
      %v2997 = vld [vmem:[%s2994 + $0x8] sm:$0xf]
      %v2998 = vld [vmem:[%s2994 + $0xc] sm:$0xf]
      %v2999 = vld [vmem:[%s2994 + $0x10] sm:$0xf]
      %v3000 = vld [vmem:[%s2994 + $0x14] sm:$0xf]
      %v3001 = vld [vmem:[%s2994 + $0x18] sm:$0xf]
      %v3002 = vld [vmem:[%s2994 + $0x1c] sm:$0xf]
      %v3003 = vld [vmem:[%s2994 + $0x20] sm:$0xf]
      %v3004 = vld [vmem:[%s2994 + $0x24] sm:$0xf]
      %v3005 = vld [vmem:[%s2994 + $0x28] sm:$0xf]
      %v3006 = vld [vmem:[%s2994 + $0x2c] sm:$0xf]
      %v3007 = vld [vmem:[%s2994 + $0x30] sm:$0xf]
      %v3008 = vld [vmem:[%s2994 + $0x34] sm:$0xf]
      %v3009 = vld [vmem:[%s2994 + $0x38] sm:$0xf]
      %v3010 = vld [vmem:[%s2994 + $0x3c] sm:$0xf]
      %v3011 = vrot.slane %v980, 4
      %v3012 = vrot.slane %v983, 5
      %v3013 = vor.u32 %v3011, %v3012
      %v3014 = vrot.slane %v988, 4
      %v3015 = vrot.slane %v991, 5
      %v3016 = vor.u32 %v3014, %v3015
      %v3017 = vsel %vm2624, %v3013, %v3016
      %v3035 = vunpack.c.l.b16 %v2995
      %v3036 = vunpack.c.l.b16 %v2996
      %v3037 = vunpack.c.l.b16 %v2997
      %v3038 = vunpack.c.l.b16 %v2998
      %v3039 = vunpack.c.l.b16 %v2999
      %v3040 = vunpack.c.l.b16 %v3000
      %v3041 = vunpack.c.l.b16 %v3001
      %v3042 = vunpack.c.l.b16 %v3002
      %v3043 = vunpack.c.l.b16 %v3003
      %v3044 = vunpack.c.l.b16 %v3004
      %v3045 = vunpack.c.l.b16 %v3005
      %v3046 = vunpack.c.l.b16 %v3006
      %v3047 = vunpack.c.l.b16 %v3007
      %v3048 = vunpack.c.l.b16 %v3008
      %v3049 = vunpack.c.l.b16 %v3009
      %v3050 = vunpack.c.l.b16 %v3010
      %v3051 = vpack.c.b16 %v3036, %v3035
      %v3052 = vpack.c.b16 %v3038, %v3037
      %v3053 = vpack.c.b16 %v3040, %v3039
      %v3054 = vpack.c.b16 %v3042, %v3041
      %v3055 = vpack.c.b16 %v3044, %v3043
      %v3056 = vpack.c.b16 %v3046, %v3045
      %v3057 = vpack.c.b16 %v3048, %v3047
      %v3058 = vpack.c.b16 %v3050, %v3049
      %3067 = vmatprep.subr.bf16.mxu0 0
      %3068 = vmatpush1.bf16.msra.mxu0 %v3051
      %3069 = vmatprep.subr.bf16.mxu0 0
      %3070 = vmatpush1.bf16.msra.mxu0 %v3052
      %3071 = vmatprep.subr.bf16.mxu0 0
      %3072 = vmatpush1.bf16.msra.mxu0 %v3053
      %3073 = vmatprep.subr.bf16.mxu0 0
      %3074 = vmatpush1.bf16.msra.mxu0 %v3054
      %3075 = vmatprep.subr.bf16.mxu0 0
      %3076 = vmatpush1.bf16.msra.mxu0 %v3055
      %3077 = vmatprep.subr.bf16.mxu0 0
      %3078 = vmatpush1.bf16.msra.mxu0 %v3056
      %3079 = vmatprep.subr.bf16.mxu0 0
      %3080 = vmatpush1.bf16.msra.mxu0 %v3057
      %3081 = vmatprep.subr.bf16.mxu0 0
      %3082 = vmatpush1.bf16.msra.mxu0 %v3058
      %3083 = vmatprep.subr.bf16.mxu0 0
      %3084 = vmatpush1.bf16.msra.mxu0 0
      %3085 = vmatprep.subr.bf16.mxu0 0
      %3086 = vmatpush1.bf16.msra.mxu0 0
      %3087 = vmatprep.subr.bf16.mxu0 0
      %3088 = vmatpush1.bf16.msra.mxu0 0
      %3089 = vmatprep.subr.bf16.mxu0 0
      %3090 = vmatpush1.bf16.msra.mxu0 0
      %3091 = vmatprep.subr.bf16.mxu0 0
      %3092 = vmatpush1.bf16.msra.mxu0 0
      %3093 = vmatprep.subr.bf16.mxu0 0
      %3094 = vmatpush1.bf16.msra.mxu0 0
      %3095 = vmatprep.subr.bf16.mxu0 0
      %3096 = vmatpush1.bf16.msra.mxu0 0
      %3097 = vmatprep.subr.bf16.mxu0 0
      %3098 = vmatpush1.bf16.msra.mxu0 0
      %3099 = vmatprep.mubr.bf16.mxu0 0
      %3100 = vmatmul.mubr.bf16.gmra.mrb[0].mxu0 %v2638
      %v3101 = vpop.f32.mrb[0].mxu0
      %v3102 = vadd.f32 0.0, %v3101
      %v3103 = vpop.f32.mrb[0].mxu0
      %v3104 = vpop.f32.mrb[0].mxu0
      %v3105 = vadd.f32 0.0, %v3104
      %v3106 = vpop.f32.mrb[0].mxu0
      %3107 = vmatprep.mubr.bf16.mxu0 0
      %3108 = vmatmul.mubr.bf16.gmra.mrb[0].mxu0 %v2645
      %v3109 = vpop.f32.mrb[0].mxu0
      %v3110 = vadd.f32 0.0, %v3109
      %v3111 = vpop.f32.mrb[0].mxu0
      %v3112 = vpop.f32.mrb[0].mxu0
      %v3113 = vadd.f32 0.0, %v3112
      %v3114 = vpop.f32.mrb[0].mxu0
      %3115 = vmatprep.mubr.bf16.mxu0 0
      %3116 = vmatmul.mubr.bf16.gmra.mrb[0].mxu0 %v2652
      %v3117 = vpop.f32.mrb[0].mxu0
      %v3118 = vadd.f32 0.0, %v3117
      %v3119 = vpop.f32.mrb[0].mxu0
      %v3120 = vpop.f32.mrb[0].mxu0
      %v3121 = vadd.f32 0.0, %v3120
      %v3122 = vpop.f32.mrb[0].mxu0
      %3123 = vmatprep.mubr.bf16.mxu0 0
      %3124 = vmatmul.mubr.bf16.gmra.mrb[0].mxu0 %v2659
      %v3125 = vpop.f32.mrb[0].mxu0
      %v3126 = vadd.f32 0.0, %v3125
      %v3127 = vpop.f32.mrb[0].mxu0
      %v3128 = vpop.f32.mrb[0].mxu0
      %v3129 = vadd.f32 0.0, %v3128
      %v3130 = vpop.f32.mrb[0].mxu0
      %3131 = vmatprep.mubr.bf16.mxu0 0
      %3132 = vmatmul.mubr.bf16.gmra.mrb[0].mxu0 %v2666
      %v3133 = vpop.f32.mrb[0].mxu0
      %v3134 = vadd.f32 0.0, %v3133
      %v3135 = vpop.f32.mrb[0].mxu0
      %v3136 = vpop.f32.mrb[0].mxu0
      %v3137 = vadd.f32 0.0, %v3136
      %v3138 = vpop.f32.mrb[0].mxu0
      %3139 = vmatprep.mubr.bf16.mxu0 0
      %3140 = vmatmul.mubr.bf16.gmra.mrb[0].mxu0 %v2673
      %v3141 = vpop.f32.mrb[0].mxu0
      %v3142 = vadd.f32 0.0, %v3141
      %v3143 = vpop.f32.mrb[0].mxu0
      %v3144 = vpop.f32.mrb[0].mxu0
      %v3145 = vadd.f32 0.0, %v3144
      %v3146 = vpop.f32.mrb[0].mxu0
      %3147 = vmatprep.mubr.bf16.mxu0 0
      %3148 = vmatmul.mubr.bf16.gmra.mrb[0].mxu0 %v2680
      %v3149 = vpop.f32.mrb[0].mxu0
      %v3150 = vadd.f32 0.0, %v3149
      %v3151 = vpop.f32.mrb[0].mxu0
      %v3152 = vpop.f32.mrb[0].mxu0
      %v3153 = vadd.f32 0.0, %v3152
      %v3154 = vpop.f32.mrb[0].mxu0
      %3155 = vmatprep.mubr.bf16.mxu0 0
      %3156 = vmatmul.mubr.bf16.gmra.mrb[0].mxu0 %v2687
      %v3157 = vpop.f32.mrb[0].mxu0
      %v3158 = vadd.f32 0.0, %v3157
      %v3159 = vpop.f32.mrb[0].mxu0
      %v3160 = vpop.f32.mrb[0].mxu0
      %v3161 = vadd.f32 0.0, %v3160
      %v3162 = vpop.f32.mrb[0].mxu0
      %3163 = vmatprep.mubr.bf16.mxu0 0
      %3164 = vmatmul.mubr.bf16.gmra.mrb[0].mxu0 %v2694
      %v3165 = vpop.f32.mrb[0].mxu0
      %v3166 = vadd.f32 0.0, %v3165
      %v3167 = vpop.f32.mrb[0].mxu0
      %v3168 = vpop.f32.mrb[0].mxu0
      %v3169 = vadd.f32 0.0, %v3168
      %v3170 = vpop.f32.mrb[0].mxu0
      %3171 = vmatprep.mubr.bf16.mxu0 0
      %3172 = vmatmul.mubr.bf16.gmra.mrb[0].mxu0 %v2701
      %v3173 = vpop.f32.mrb[0].mxu0
      %v3174 = vadd.f32 0.0, %v3173
      %v3175 = vpop.f32.mrb[0].mxu0
      %v3176 = vpop.f32.mrb[0].mxu0
      %v3177 = vadd.f32 0.0, %v3176
      %v3178 = vpop.f32.mrb[0].mxu0
      %3179 = vmatprep.mubr.bf16.mxu0 0
      %3180 = vmatmul.mubr.bf16.gmra.mrb[0].mxu0 %v2708
      %v3181 = vpop.f32.mrb[0].mxu0
      %v3182 = vadd.f32 0.0, %v3181
      %v3183 = vpop.f32.mrb[0].mxu0
      %v3184 = vpop.f32.mrb[0].mxu0
      %v3185 = vadd.f32 0.0, %v3184
      %v3186 = vpop.f32.mrb[0].mxu0
      %3187 = vmatprep.mubr.bf16.mxu0 0
      %3188 = vmatmul.mubr.bf16.gmra.mrb[0].mxu0 %v2715
      %v3189 = vpop.f32.mrb[0].mxu0
      %v3190 = vadd.f32 0.0, %v3189
      %v3191 = vpop.f32.mrb[0].mxu0
      %v3192 = vpop.f32.mrb[0].mxu0
      %v3193 = vadd.f32 0.0, %v3192
      %v3194 = vpop.f32.mrb[0].mxu0
      %3195 = vmatprep.mubr.bf16.mxu0 0
      %3196 = vmatmul.mubr.bf16.gmra.mrb[0].mxu0 %v2722
      %v3197 = vpop.f32.mrb[0].mxu0
      %v3198 = vadd.f32 0.0, %v3197
      %v3199 = vpop.f32.mrb[0].mxu0
      %v3200 = vpop.f32.mrb[0].mxu0
      %v3201 = vadd.f32 0.0, %v3200
      %v3202 = vpop.f32.mrb[0].mxu0
      %3203 = vmatprep.mubr.bf16.mxu0 0
      %3204 = vmatmul.mubr.bf16.gmra.mrb[0].mxu0 %v2729
      %v3205 = vpop.f32.mrb[0].mxu0
      %v3206 = vadd.f32 0.0, %v3205
      %v3207 = vpop.f32.mrb[0].mxu0
      %v3208 = vpop.f32.mrb[0].mxu0
      %v3209 = vadd.f32 0.0, %v3208
      %v3210 = vpop.f32.mrb[0].mxu0
      %3211 = vmatprep.mubr.bf16.mxu0 0
      %3212 = vmatmul.mubr.bf16.gmra.mrb[0].mxu0 %v2736
      %v3213 = vpop.f32.mrb[0].mxu0
      %v3214 = vadd.f32 0.0, %v3213
      %v3215 = vpop.f32.mrb[0].mxu0
      %v3216 = vpop.f32.mrb[0].mxu0
      %v3217 = vadd.f32 0.0, %v3216
      %v3218 = vpop.f32.mrb[0].mxu0
      %3219 = vmatprep.mubr.bf16.mxu0 0
      %3220 = vmatmul.mubr.bf16.gmra.mrb[0].mxu0 %v3017
      %v3221 = vpop.f32.mrb[0].mxu0
      %v3222 = vadd.f32 0.0, %v3221
      %v3223 = vpop.f32.mrb[0].mxu0
      %v3224 = vpop.f32.mrb[0].mxu0
      %v3225 = vadd.f32 0.0, %v3224
      %v3226 = vpop.f32.mrb[0].mxu0
      %3227 = vdwg.mxu0
      %v3228 = vadd.f32 %v2962, %v3102
      %v3229 = vadd.f32 %v2963, %v3105
      %v3230 = vadd.f32 %v2964, %v3110
      %v3231 = vadd.f32 %v2965, %v3113
      %v3232 = vadd.f32 %v2966, %v3118
      %v3233 = vadd.f32 %v2967, %v3121
      %v3234 = vadd.f32 %v2968, %v3126
      %v3235 = vadd.f32 %v2969, %v3129
      %v3236 = vadd.f32 %v2970, %v3134
      %v3237 = vadd.f32 %v2971, %v3137
      %v3238 = vadd.f32 %v2972, %v3142
      %v3239 = vadd.f32 %v2973, %v3145
      %v3240 = vadd.f32 %v2974, %v3150
      %v3241 = vadd.f32 %v2975, %v3153
      %v3242 = vadd.f32 %v2976, %v3158
      %v3243 = vadd.f32 %v2977, %v3161
      %v3244 = vadd.f32 %v2978, %v3166
      %v3245 = vadd.f32 %v2979, %v3169
      %v3246 = vadd.f32 %v2980, %v3174
      %v3247 = vadd.f32 %v2981, %v3177
      %v3248 = vadd.f32 %v2982, %v3182
      %v3249 = vadd.f32 %v2983, %v3185
      %v3250 = vadd.f32 %v2984, %v3190
      %v3251 = vadd.f32 %v2985, %v3193
      %v3252 = vadd.f32 %v2986, %v3198
      %v3253 = vadd.f32 %v2987, %v3201
      %v3254 = vadd.f32 %v2988, %v3206
      %v3255 = vadd.f32 %v2989, %v3209
      %v3256 = vadd.f32 %v2990, %v3214
      %v3257 = vadd.f32 %v2991, %v3217
      %v3258 = vadd.f32 %v2992, %v3222
      %v3259 = vadd.f32 %v2993, %v3225
      %s3260 = scalar_lea.vmem %s4, 512
      %v3261 = vld [vmem:[%s3260] sm:$0xf]
      %v3262 = vld [vmem:[%s3260 + $0x4] sm:$0xf]
      %v3263 = vld [vmem:[%s3260 + $0x8] sm:$0xf]
      %v3264 = vld [vmem:[%s3260 + $0xc] sm:$0xf]
      %v3265 = vld [vmem:[%s3260 + $0x10] sm:$0xf]
      %v3266 = vld [vmem:[%s3260 + $0x14] sm:$0xf]
      %v3267 = vld [vmem:[%s3260 + $0x18] sm:$0xf]
      %v3268 = vld [vmem:[%s3260 + $0x1c] sm:$0xf]
      %v3269 = vld [vmem:[%s3260 + $0x20] sm:$0xf]
      %v3270 = vld [vmem:[%s3260 + $0x24] sm:$0xf]
      %v3271 = vld [vmem:[%s3260 + $0x28] sm:$0xf]
      %v3272 = vld [vmem:[%s3260 + $0x2c] sm:$0xf]
      %v3273 = vld [vmem:[%s3260 + $0x30] sm:$0xf]
      %v3274 = vld [vmem:[%s3260 + $0x34] sm:$0xf]
      %v3275 = vld [vmem:[%s3260 + $0x38] sm:$0xf]
      %v3276 = vld [vmem:[%s3260 + $0x3c] sm:$0xf]
      %v3277 = vrot.slane %v1466, 4
      %v3278 = vrot.slane %v1469, 5
      %v3279 = vor.u32 %v3277, %v3278
      %v3280 = vrot.slane %v1474, 4
      %v3281 = vrot.slane %v1477, 5
      %v3282 = vor.u32 %v3280, %v3281
      %v3283 = vsel %vm2624, %v3279, %v3282
      %v3301 = vunpack.c.l.b16 %v3261
      %v3302 = vunpack.c.l.b16 %v3262
      %v3303 = vunpack.c.l.b16 %v3263
      %v3304 = vunpack.c.l.b16 %v3264
      %v3305 = vunpack.c.l.b16 %v3265
      %v3306 = vunpack.c.l.b16 %v3266
      %v3307 = vunpack.c.l.b16 %v3267
      %v3308 = vunpack.c.l.b16 %v3268
      %v3309 = vunpack.c.l.b16 %v3269
      %v3310 = vunpack.c.l.b16 %v3270
      %v3311 = vunpack.c.l.b16 %v3271
      %v3312 = vunpack.c.l.b16 %v3272
      %v3313 = vunpack.c.l.b16 %v3273
      %v3314 = vunpack.c.l.b16 %v3274
      %v3315 = vunpack.c.l.b16 %v3275
      %v3316 = vunpack.c.l.b16 %v3276
      %v3317 = vpack.c.b16 %v3302, %v3301
      %v3318 = vpack.c.b16 %v3304, %v3303
      %v3319 = vpack.c.b16 %v3306, %v3305
      %v3320 = vpack.c.b16 %v3308, %v3307
      %v3321 = vpack.c.b16 %v3310, %v3309
      %v3322 = vpack.c.b16 %v3312, %v3311
      %v3323 = vpack.c.b16 %v3314, %v3313
      %v3324 = vpack.c.b16 %v3316, %v3315
      %3333 = vmatprep.subr.bf16.mxu0 0
      %3334 = vmatpush1.bf16.msra.mxu0 %v3317
      %3335 = vmatprep.subr.bf16.mxu0 0
      %3336 = vmatpush1.bf16.msra.mxu0 %v3318
      %3337 = vmatprep.subr.bf16.mxu0 0
      %3338 = vmatpush1.bf16.msra.mxu0 %v3319
      %3339 = vmatprep.subr.bf16.mxu0 0
      %3340 = vmatpush1.bf16.msra.mxu0 %v3320
      %3341 = vmatprep.subr.bf16.mxu0 0
      %3342 = vmatpush1.bf16.msra.mxu0 %v3321
      %3343 = vmatprep.subr.bf16.mxu0 0
      %3344 = vmatpush1.bf16.msra.mxu0 %v3322
      %3345 = vmatprep.subr.bf16.mxu0 0
      %3346 = vmatpush1.bf16.msra.mxu0 %v3323
      %3347 = vmatprep.subr.bf16.mxu0 0
      %3348 = vmatpush1.bf16.msra.mxu0 %v3324
      %3349 = vmatprep.subr.bf16.mxu0 0
      %3350 = vmatpush1.bf16.msra.mxu0 0
      %3351 = vmatprep.subr.bf16.mxu0 0
      %3352 = vmatpush1.bf16.msra.mxu0 0
      %3353 = vmatprep.subr.bf16.mxu0 0
      %3354 = vmatpush1.bf16.msra.mxu0 0
      %3355 = vmatprep.subr.bf16.mxu0 0
      %3356 = vmatpush1.bf16.msra.mxu0 0
      %3357 = vmatprep.subr.bf16.mxu0 0
      %3358 = vmatpush1.bf16.msra.mxu0 0
      %3359 = vmatprep.subr.bf16.mxu0 0
      %3360 = vmatpush1.bf16.msra.mxu0 0
      %3361 = vmatprep.subr.bf16.mxu0 0
      %3362 = vmatpush1.bf16.msra.mxu0 0
      %3363 = vmatprep.subr.bf16.mxu0 0
      %3364 = vmatpush1.bf16.msra.mxu0 0
      %3365 = vmatprep.mubr.bf16.mxu0 0
      %3366 = vmatmul.mubr.bf16.gmra.mrb[0].mxu0 %v2645
      %v3367 = vpop.f32.mrb[0].mxu0
      %v3368 = vadd.f32 0.0, %v3367
      %v3369 = vpop.f32.mrb[0].mxu0
      %v3370 = vpop.f32.mrb[0].mxu0
      %v3371 = vadd.f32 0.0, %v3370
      %v3372 = vpop.f32.mrb[0].mxu0
      %3373 = vmatprep.mubr.bf16.mxu0 0
      %3374 = vmatmul.mubr.bf16.gmra.mrb[0].mxu0 %v2652
      %v3375 = vpop.f32.mrb[0].mxu0
      %v3376 = vadd.f32 0.0, %v3375
      %v3377 = vpop.f32.mrb[0].mxu0
      %v3378 = vpop.f32.mrb[0].mxu0
      %v3379 = vadd.f32 0.0, %v3378
      %v3380 = vpop.f32.mrb[0].mxu0
      %3381 = vmatprep.mubr.bf16.mxu0 0
      %3382 = vmatmul.mubr.bf16.gmra.mrb[0].mxu0 %v2659
      %v3383 = vpop.f32.mrb[0].mxu0
      %v3384 = vadd.f32 0.0, %v3383
      %v3385 = vpop.f32.mrb[0].mxu0
      %v3386 = vpop.f32.mrb[0].mxu0
      %v3387 = vadd.f32 0.0, %v3386
      %v3388 = vpop.f32.mrb[0].mxu0
      %3389 = vmatprep.mubr.bf16.mxu0 0
      %3390 = vmatmul.mubr.bf16.gmra.mrb[0].mxu0 %v2666
      %v3391 = vpop.f32.mrb[0].mxu0
      %v3392 = vadd.f32 0.0, %v3391
      %v3393 = vpop.f32.mrb[0].mxu0
      %v3394 = vpop.f32.mrb[0].mxu0
      %v3395 = vadd.f32 0.0, %v3394
      %v3396 = vpop.f32.mrb[0].mxu0
      %3397 = vmatprep.mubr.bf16.mxu0 0
      %3398 = vmatmul.mubr.bf16.gmra.mrb[0].mxu0 %v2673
      %v3399 = vpop.f32.mrb[0].mxu0
      %v3400 = vadd.f32 0.0, %v3399
      %v3401 = vpop.f32.mrb[0].mxu0
      %v3402 = vpop.f32.mrb[0].mxu0
      %v3403 = vadd.f32 0.0, %v3402
      %v3404 = vpop.f32.mrb[0].mxu0
      %3405 = vmatprep.mubr.bf16.mxu0 0
      %3406 = vmatmul.mubr.bf16.gmra.mrb[0].mxu0 %v2680
      %v3407 = vpop.f32.mrb[0].mxu0
      %v3408 = vadd.f32 0.0, %v3407
      %v3409 = vpop.f32.mrb[0].mxu0
      %v3410 = vpop.f32.mrb[0].mxu0
      %v3411 = vadd.f32 0.0, %v3410
      %v3412 = vpop.f32.mrb[0].mxu0
      %3413 = vmatprep.mubr.bf16.mxu0 0
      %3414 = vmatmul.mubr.bf16.gmra.mrb[0].mxu0 %v2687
      %v3415 = vpop.f32.mrb[0].mxu0
      %v3416 = vadd.f32 0.0, %v3415
      %v3417 = vpop.f32.mrb[0].mxu0
      %v3418 = vpop.f32.mrb[0].mxu0
      %v3419 = vadd.f32 0.0, %v3418
      %v3420 = vpop.f32.mrb[0].mxu0
      %3421 = vmatprep.mubr.bf16.mxu0 0
      %3422 = vmatmul.mubr.bf16.gmra.mrb[0].mxu0 %v2694
      %v3423 = vpop.f32.mrb[0].mxu0
      %v3424 = vadd.f32 0.0, %v3423
      %v3425 = vpop.f32.mrb[0].mxu0
      %v3426 = vpop.f32.mrb[0].mxu0
      %v3427 = vadd.f32 0.0, %v3426
      %v3428 = vpop.f32.mrb[0].mxu0
      %3429 = vmatprep.mubr.bf16.mxu0 0
      %3430 = vmatmul.mubr.bf16.gmra.mrb[0].mxu0 %v2701
      %v3431 = vpop.f32.mrb[0].mxu0
      %v3432 = vadd.f32 0.0, %v3431
      %v3433 = vpop.f32.mrb[0].mxu0
      %v3434 = vpop.f32.mrb[0].mxu0
      %v3435 = vadd.f32 0.0, %v3434
      %v3436 = vpop.f32.mrb[0].mxu0
      %3437 = vmatprep.mubr.bf16.mxu0 0
      %3438 = vmatmul.mubr.bf16.gmra.mrb[0].mxu0 %v2708
      %v3439 = vpop.f32.mrb[0].mxu0
      %v3440 = vadd.f32 0.0, %v3439
      %v3441 = vpop.f32.mrb[0].mxu0
      %v3442 = vpop.f32.mrb[0].mxu0
      %v3443 = vadd.f32 0.0, %v3442
      %v3444 = vpop.f32.mrb[0].mxu0
      %3445 = vmatprep.mubr.bf16.mxu0 0
      %3446 = vmatmul.mubr.bf16.gmra.mrb[0].mxu0 %v2715
      %v3447 = vpop.f32.mrb[0].mxu0
      %v3448 = vadd.f32 0.0, %v3447
      %v3449 = vpop.f32.mrb[0].mxu0
      %v3450 = vpop.f32.mrb[0].mxu0
      %v3451 = vadd.f32 0.0, %v3450
      %v3452 = vpop.f32.mrb[0].mxu0
      %3453 = vmatprep.mubr.bf16.mxu0 0
      %3454 = vmatmul.mubr.bf16.gmra.mrb[0].mxu0 %v2722
      %v3455 = vpop.f32.mrb[0].mxu0
      %v3456 = vadd.f32 0.0, %v3455
      %v3457 = vpop.f32.mrb[0].mxu0
      %v3458 = vpop.f32.mrb[0].mxu0
      %v3459 = vadd.f32 0.0, %v3458
      %v3460 = vpop.f32.mrb[0].mxu0
      %3461 = vmatprep.mubr.bf16.mxu0 0
      %3462 = vmatmul.mubr.bf16.gmra.mrb[0].mxu0 %v2729
      %v3463 = vpop.f32.mrb[0].mxu0
      %v3464 = vadd.f32 0.0, %v3463
      %v3465 = vpop.f32.mrb[0].mxu0
      %v3466 = vpop.f32.mrb[0].mxu0
      %v3467 = vadd.f32 0.0, %v3466
      %v3468 = vpop.f32.mrb[0].mxu0
      %3469 = vmatprep.mubr.bf16.mxu0 0
      %3470 = vmatmul.mubr.bf16.gmra.mrb[0].mxu0 %v2736
      %v3471 = vpop.f32.mrb[0].mxu0
      %v3472 = vadd.f32 0.0, %v3471
      %v3473 = vpop.f32.mrb[0].mxu0
      %v3474 = vpop.f32.mrb[0].mxu0
      %v3475 = vadd.f32 0.0, %v3474
      %v3476 = vpop.f32.mrb[0].mxu0
      %3477 = vmatprep.mubr.bf16.mxu0 0
      %3478 = vmatmul.mubr.bf16.gmra.mrb[0].mxu0 %v3017
      %v3479 = vpop.f32.mrb[0].mxu0
      %v3480 = vadd.f32 0.0, %v3479
      %v3481 = vpop.f32.mrb[0].mxu0
      %v3482 = vpop.f32.mrb[0].mxu0
      %v3483 = vadd.f32 0.0, %v3482
      %v3484 = vpop.f32.mrb[0].mxu0
      %3485 = vmatprep.mubr.bf16.mxu0 0
      %3486 = vmatmul.mubr.bf16.gmra.mrb[0].mxu0 %v3283
      %v3487 = vpop.f32.mrb[0].mxu0
      %v3488 = vadd.f32 0.0, %v3487
      %v3489 = vpop.f32.mrb[0].mxu0
      %v3490 = vpop.f32.mrb[0].mxu0
      %v3491 = vadd.f32 0.0, %v3490
      %v3492 = vpop.f32.mrb[0].mxu0
      %3493 = vdwg.mxu0
      %v3494 = vadd.f32 %v3228, %v3368
      %v3495 = vadd.f32 %v3229, %v3371
      %v3496 = vadd.f32 %v3230, %v3376
      %v3497 = vadd.f32 %v3231, %v3379
      %v3498 = vadd.f32 %v3232, %v3384
      %v3499 = vadd.f32 %v3233, %v3387
      %v3500 = vadd.f32 %v3234, %v3392
      %v3501 = vadd.f32 %v3235, %v3395
      %v3502 = vadd.f32 %v3236, %v3400
      %v3503 = vadd.f32 %v3237, %v3403
      %v3504 = vadd.f32 %v3238, %v3408
      %v3505 = vadd.f32 %v3239, %v3411
      %v3506 = vadd.f32 %v3240, %v3416
      %v3507 = vadd.f32 %v3241, %v3419
      %v3508 = vadd.f32 %v3242, %v3424
      %v3509 = vadd.f32 %v3243, %v3427
      %v3510 = vadd.f32 %v3244, %v3432
      %v3511 = vadd.f32 %v3245, %v3435
      %v3512 = vadd.f32 %v3246, %v3440
      %v3513 = vadd.f32 %v3247, %v3443
      %v3514 = vadd.f32 %v3248, %v3448
      %v3515 = vadd.f32 %v3249, %v3451
      %v3516 = vadd.f32 %v3250, %v3456
      %v3517 = vadd.f32 %v3251, %v3459
      %v3518 = vadd.f32 %v3252, %v3464
      %v3519 = vadd.f32 %v3253, %v3467
      %v3520 = vadd.f32 %v3254, %v3472
      %v3521 = vadd.f32 %v3255, %v3475
      %v3522 = vadd.f32 %v3256, %v3480
      %v3523 = vadd.f32 %v3257, %v3483
      %v3524 = vadd.f32 %v3258, %v3488
      %v3525 = vadd.f32 %v3259, %v3491
      %v3526 = vpack.c.bf16 %v3495, %v3494
      %v3527 = vpack.c.bf16 %v3497, %v3496
      %v3528 = vpack.c.bf16 %v3499, %v3498
      %v3529 = vpack.c.bf16 %v3501, %v3500
      %v3530 = vpack.c.bf16 %v3503, %v3502
      %v3531 = vpack.c.bf16 %v3505, %v3504
      %v3532 = vpack.c.bf16 %v3507, %v3506
      %v3533 = vpack.c.bf16 %v3509, %v3508
      %v3534 = vpack.c.bf16 %v3511, %v3510
      %v3535 = vpack.c.bf16 %v3513, %v3512
      %v3536 = vpack.c.bf16 %v3515, %v3514
      %v3537 = vpack.c.bf16 %v3517, %v3516
      %v3538 = vpack.c.bf16 %v3519, %v3518
      %v3539 = vpack.c.bf16 %v3521, %v3520
      %v3540 = vpack.c.bf16 %v3523, %v3522
      %v3541 = vpack.c.bf16 %v3525, %v3524
      %v3558 = vunpack.c.l.b16 %v3526
      %v3559 = vunpack.c.h.b16 %v3526
      %v3560 = vunpack.c.l.b16 %v3527
      %v3561 = vunpack.c.h.b16 %v3527
      %v3562 = vunpack.c.l.b16 %v3528
      %v3563 = vunpack.c.h.b16 %v3528
      %v3564 = vunpack.c.l.b16 %v3529
      %v3565 = vunpack.c.h.b16 %v3529
      %v3566 = vunpack.c.l.b16 %v3530
      %v3567 = vunpack.c.h.b16 %v3530
      %v3568 = vunpack.c.l.b16 %v3531
      %v3569 = vunpack.c.h.b16 %v3531
      %v3570 = vunpack.c.l.b16 %v3532
      %v3571 = vunpack.c.h.b16 %v3532
      %v3572 = vunpack.c.l.b16 %v3533
      %v3573 = vunpack.c.h.b16 %v3533
      %v3574 = vunpack.c.l.b16 %v3534
      %v3575 = vunpack.c.h.b16 %v3534
      %v3576 = vunpack.c.l.b16 %v3535
      %v3577 = vunpack.c.h.b16 %v3535
      %v3578 = vunpack.c.l.b16 %v3536
      %v3579 = vunpack.c.h.b16 %v3536
      %v3580 = vunpack.c.l.b16 %v3537
      %v3581 = vunpack.c.h.b16 %v3537
      %v3582 = vunpack.c.l.b16 %v3538
      %v3583 = vunpack.c.h.b16 %v3538
      %v3584 = vunpack.c.l.b16 %v3539
      %v3585 = vunpack.c.h.b16 %v3539
      %v3586 = vunpack.c.l.b16 %v3540
      %v3587 = vunpack.c.h.b16 %v3540
      %v3588 = vunpack.c.l.b16 %v3541
      %v3589 = vunpack.c.h.b16 %v3541
      %v3590 = vpack.c.b16 %v3558, %v3558
      %v3591 = vpack.c.b16 %v3559, %v3559
      %v3592 = vpack.c.b16 %v3560, %v3560
      %v3593 = vpack.c.b16 %v3561, %v3561
      %v3594 = vpack.c.b16 %v3562, %v3562
      %v3595 = vpack.c.b16 %v3563, %v3563
      %v3596 = vpack.c.b16 %v3564, %v3564
      %v3597 = vpack.c.b16 %v3565, %v3565
      %v3598 = vpack.c.b16 %v3566, %v3566
      %v3599 = vpack.c.b16 %v3567, %v3567
      %v3600 = vpack.c.b16 %v3568, %v3568
      %v3601 = vpack.c.b16 %v3569, %v3569
      %v3602 = vpack.c.b16 %v3570, %v3570
      %v3603 = vpack.c.b16 %v3571, %v3571
      %v3604 = vpack.c.b16 %v3572, %v3572
      %v3605 = vpack.c.b16 %v3573, %v3573
      %v3606 = vpack.c.b16 %v3574, %v3574
      %v3607 = vpack.c.b16 %v3575, %v3575
      %v3608 = vpack.c.b16 %v3576, %v3576
      %v3609 = vpack.c.b16 %v3577, %v3577
      %v3610 = vpack.c.b16 %v3578, %v3578
      %v3611 = vpack.c.b16 %v3579, %v3579
      %v3612 = vpack.c.b16 %v3580, %v3580
      %v3613 = vpack.c.b16 %v3581, %v3581
      %v3614 = vpack.c.b16 %v3582, %v3582
      %v3615 = vpack.c.b16 %v3583, %v3583
      %v3616 = vpack.c.b16 %v3584, %v3584
      %v3617 = vpack.c.b16 %v3585, %v3585
      %v3618 = vpack.c.b16 %v3586, %v3586
      %v3619 = vpack.c.b16 %v3587, %v3587
      %v3620 = vpack.c.b16 %v3588, %v3588
      %v3621 = vpack.c.b16 %v3589, %v3589
      %3654 = vst [vmem:[%s244] sm:$0xf] %v3590
      %3655 = vst [vmem:[%s244 + $0x4] sm:$0xf] %v3591
      %3656 = vst [vmem:[%s244 + $0x8] sm:$0xf] %v3592
      %3657 = vst [vmem:[%s244 + $0xc] sm:$0xf] %v3593
      %3658 = vst [vmem:[%s244 + $0x10] sm:$0xf] %v3594
      %3659 = vst [vmem:[%s244 + $0x14] sm:$0xf] %v3595
      %3660 = vst [vmem:[%s244 + $0x18] sm:$0xf] %v3596
      %3661 = vst [vmem:[%s244 + $0x1c] sm:$0xf] %v3597
      %3662 = vst [vmem:[%s244 + $0x20] sm:$0xf] %v3598
      %3663 = vst [vmem:[%s244 + $0x24] sm:$0xf] %v3599
      %3664 = vst [vmem:[%s244 + $0x28] sm:$0xf] %v3600
      %3665 = vst [vmem:[%s244 + $0x2c] sm:$0xf] %v3601
      %3666 = vst [vmem:[%s244 + $0x30] sm:$0xf] %v3602
      %3667 = vst [vmem:[%s244 + $0x34] sm:$0xf] %v3603
      %3668 = vst [vmem:[%s244 + $0x38] sm:$0xf] %v3604
      %3669 = vst [vmem:[%s244 + $0x3c] sm:$0xf] %v3605
      %3670 = vst [vmem:[%s244 + $0x40] sm:$0xf] %v3606
      %3671 = vst [vmem:[%s244 + $0x44] sm:$0xf] %v3607
      %3672 = vst [vmem:[%s244 + $0x48] sm:$0xf] %v3608
      %3673 = vst [vmem:[%s244 + $0x4c] sm:$0xf] %v3609
      %3674 = vst [vmem:[%s244 + $0x50] sm:$0xf] %v3610
      %3675 = vst [vmem:[%s244 + $0x54] sm:$0xf] %v3611
      %3676 = vst [vmem:[%s244 + $0x58] sm:$0xf] %v3612
      %3677 = vst [vmem:[%s244 + $0x5c] sm:$0xf] %v3613
      %3678 = vst [vmem:[%s244 + $0x60] sm:$0xf] %v3614
      %3679 = vst [vmem:[%s244 + $0x64] sm:$0xf] %v3615
      %3680 = vst [vmem:[%s244 + $0x68] sm:$0xf] %v3616
      %3681 = vst [vmem:[%s244 + $0x6c] sm:$0xf] %v3617
      %3682 = vst [vmem:[%s244 + $0x70] sm:$0xf] %v3618
      %3683 = vst [vmem:[%s244 + $0x74] sm:$0xf] %v3619
      %3684 = vst [vmem:[%s244 + $0x78] sm:$0xf] %v3620
      %3685 = vst [vmem:[%s244 + $0x7c] sm:$0xf] %v3621
      %p3686 = scmp.lt.s32.totalorder %s16, 1
      %s3687 = scalar_select %p3686, %s16, 1
      %s3688 = smul.addr %s3687, 32
      %s3689 = smul.addr %s3688, 4
      %s3690 = scalar_lea.vmem %s5, %s3689
      // Predicated region
      $region41: #{dappm_forward.12} parent=39 // pred_check
        %p3691 = pneg %p149
      $region42: #{dappm_forward.12} parent=39 // pred_check_branch
        %3693 = sbr.rel (%p3691) target = $region44
      $region43: #{dappm_forward.12} parent=39 // pred_region
        _
      $region44: #{dappm_forward.12} parent=39 // pred_fallthru
        _
    $region40: #{dappm_forward.12} parent=5 // pred_fallthru
      _
    %p3694 = scmp.le.s32.totalorder 2, %s11
    // Predicated region
    $region45: #{dappm_forward.12} parent=5 // pred_check
      %p3695 = pneg %p3694
    $region46: #{dappm_forward.12} parent=5 // pred_check_branch
      %3697 = sbr.rel (%p3695) target = $region48
    $region47: #{dappm_forward.12} parent=5 // pred_region
      %s3698 = ssub.s32 %s11, 2
      // Predicated region
      $region49: #{dappm_forward.12} parent=47 // pred_check
        %p3699 = pneg %p155
      $region50: #{dappm_forward.12} parent=47 // pred_check_branch
        %3701 = sbr.rel (%p3699) target = $region52
      $region51: #{dappm_forward.12} parent=47 // pred_region
        %p3702 = scmp.lt.s32.totalorder %s17, 1
        %s3703 = scalar_select %p3702, %s17, 1
        %s3704 = smul.addr %s3703, 32
        %s3705 = smul.addr %s3704, 4
        %s3706 = scalar_lea.vmem %s5, %s3705
      $region52: #{dappm_forward.12} parent=47 // pred_fallthru
        _
    $region48: #{dappm_forward.12} parent=5 // pred_fallthru
      _
  $region6: #{dappm_forward.12} parent=0 // loop_footer
    %s15 = sadd.s32 1, %s11
  $region7: #{dappm_forward.12} parent=0 // loop_footer_branch
    %10 = sbr.rel target = $region3
  $region8: #{dappm_forward.12} parent=0 // loop_exit
    _

</llo_original>
